<compile_context>
chip_gen: v5e
topology: v5e:2x2
jax: 0.10.0
libtpu: 0.0.40
codegen_flags: <defaults>
</compile_context>

<pallas_src>
import functools

import numpy as np
import jax
import jax.numpy as jnp
from jax import lax
from jax.experimental import pallas as pl
from jax.experimental.pallas import tpu as pltpu

LRELU_SLOPE = 0.2
BN_EPS = 1e-5
KSIZE = 3
OUT_LANES = 128          # tail Cout padded to a full lane register -> unmasked stores


# ----------------------------------------------------------------------------
# Fused kernel: head -> 3 body ConvBlock_G -> tail(+tanh+skip), one invocation.
# ----------------------------------------------------------------------------
def _fused_kernel(x_ref, y_ref, wh_ref, wb_ref, wt_ref, b_ref, o_ref, sA, sB,
                  *, W, S, B, C, L, n_raw, n_w):
    def lrelu(z):
        return jnp.where(z >= 0.0, z, LRELU_SLOPE * z)

    def pack_store(h, dst, rows):
        # dst[p, :] = [h[p], h[p+1], h[p+2]] packed along lanes -> (rows, 3*C) bf16.
        # One store; next layer's reads are full-width rows at offsets {0, W, 2W}.
        dst[0:rows, :] = jnp.concatenate(
            [h[0:rows], h[1:rows + 1], h[2:rows + 2]], axis=-1)

    def conv_k3(src, w_ref, w_base, n):
        # 3 accumulated (n, 3C) x (3C, Cout) MXU matmuls (f32 accumulation).
        acc = jnp.dot(src[0:n, :], w_ref[w_base],
                      preferred_element_type=jnp.float32)
        for kh in range(1, KSIZE):
            acc = acc + jnp.dot(src[kh * W:kh * W + n, :], w_ref[w_base + kh],
                                preferred_element_type=jnp.float32)
        return acc

    # ---- Head (layer 0): input pre-im2col'd in the wrapper -> one matmul, K=9*Cin.
    z = jnp.dot(x_ref[...], wh_ref[...], preferred_element_type=jnp.float32)
    h = lrelu(z + b_ref[0:1, 0:C]).astype(jnp.bfloat16)
    pack_store(h, sA, (B - 1) * S + n_w[0])

    # ---- Hidden layers 1..L-2: ping-pong bf16 scratch, 3 matmuls each (K=3*C).
    src, dst = sA, sB
    for li in range(1, L - 1):                               # static unroll
        n = (B - 1) * S + n_raw[li]
        z = conv_k3(src, wb_ref, (li - 1) * KSIZE, n)
        h = lrelu(z + b_ref[li:li + 1, 0:C]).astype(jnp.bfloat16)
        pack_store(h, dst, (B - 1) * S + n_w[li])
        src, dst = dst, src

    # ---- Tail: conv + bias -> tanh -> + cropped skip, one lane-dense slab store.
    n = (B - 1) * S + n_raw[L - 1]
    z = conv_k3(src, wt_ref, 0, n)
    o_ref[...] = jnp.tanh(z + b_ref[L - 1:L, :]) + y_ref[...]


# ----------------------------------------------------------------------------
# Deterministic parameter construction (shapes follow the module's __init__).
# opt: nfc=32, min_nfc=32, num_layer=5, ker_size=3, padd_size=0, nc_im=3.
# ----------------------------------------------------------------------------
def init_params(key, *, nfc=32, min_nfc=32, num_layer=5, ker_size=3,
                nc_im=3, in_ch=4):
    chans = [(in_ch, nfc)]                        # head
    N = nfc
    for i in range(num_layer - 2):                # body
        N = int(nfc / pow(2, i + 1))
        chans.append((max(2 * N, min_nfc), max(N, min_nfc)))
    chans.append((max(N, min_nfc), nc_im))        # tail

    params = []
    for li, (ci, co) in enumerate(chans):
        key, kw_, kb_, kg_, kbe_, km_, kv_ = jax.random.split(key, 7)
        layer = {
            "w": 0.02 * jax.random.normal(kw_, (co, ci, ker_size, ker_size),
                                          jnp.float32),   # OIHW (PyTorch layout)
            "b": 0.02 * jax.random.normal(kb_, (co,), jnp.float32),
            "has_bn": li < len(chans) - 1,
        }
        if layer["has_bn"]:
            # BatchNorm2d in eval (inference) mode with running stats.
            layer["gamma"] = 1.0 + 0.02 * jax.random.normal(kg_, (co,), jnp.float32)
            layer["beta"] = 0.02 * jax.random.normal(kbe_, (co,), jnp.float32)
            layer["mean"] = 0.1 * jax.random.normal(km_, (co,), jnp.float32)
            layer["var"] = 1.0 + 0.1 * jnp.abs(jax.random.normal(kv_, (co,),
                                                                 jnp.float32))
        params.append(layer)
    return params


def prepare_params(params):
    """One-time prep: fold BN scale into weights, tap-pack, consolidate slabs."""
    L = len(params)
    folded_w, biases = [], []
    for layer in params:
        w = layer["w"]
        if layer["has_bn"]:
            s = layer["gamma"] / jnp.sqrt(layer["var"] + BN_EPS)
            b = layer["beta"] + s * (layer["b"] - layer["mean"])
            w = w * s[:, None, None, None]        # fold BN scale into the weights
        else:
            b = layer["b"]
        folded_w.append(w)
        biases.append(b)

    c_hid = folded_w[0].shape[0]
    cin0 = folded_w[0].shape[1]
    nc = folded_w[-1].shape[0]
    assert nc <= OUT_LANES
    for w in folded_w[1:]:
        assert w.shape[1] == c_hid, "kernel assumes uniform hidden width"
    for w in folded_w[1:-1]:
        assert w.shape[0] == c_hid, "kernel assumes uniform hidden width"

    # Head: (C, Cin, 3, 3) -> (9*Cin, C); K index = (kh*3+kw)*Cin + ci (im2col order).
    w_head = jnp.transpose(folded_w[0], (2, 3, 1, 0)).reshape(
        KSIZE * KSIZE * cin0, c_hid)

    # Hidden/tail: (Cout, C, 3, 3) -> (3, 3*C, Cout); per kh the contraction
    # index is kw*C + ci, matching the lane packing done by pack_store().
    def pack_w(w, cout):
        return jnp.transpose(w, (2, 3, 1, 0)).reshape(KSIZE, KSIZE * c_hid, cout)

    w_body = jnp.concatenate([pack_w(w, c_hid) for w in folded_w[1:-1]], axis=0)
    w_tail = pack_w(folded_w[-1], nc)
    w_tail = jnp.pad(w_tail, ((0, 0), (0, 0), (0, OUT_LANES - nc)))  # lane-dense out

    b_all = jnp.zeros((L, OUT_LANES), jnp.float32)
    for li in range(L - 1):
        b_all = b_all.at[li, :c_hid].set(biases[li])
    b_all = b_all.at[L - 1, :nc].set(biases[-1])

    return {"w_head": w_head.astype(jnp.bfloat16),
            "w_body": w_body.astype(jnp.bfloat16),
            "w_tail": w_tail.astype(jnp.bfloat16),
            "b_all": b_all.astype(jnp.float32)}


def _nbytes(a):
    return int(np.prod(a.shape)) * a.dtype.itemsize


# ----------------------------------------------------------------------------
# Fused Pallas forward (out = tanh(tail(body(head(x)))) + center-cropped y).
# ----------------------------------------------------------------------------
def forward_pallas(x_nchw, y_nchw, prep):
    B, cin0, H, Wd = x_nchw.shape
    nc = y_nchw.shape[1]
    L = prep["b_all"].shape[0]
    C = prep["w_head"].shape[1]
    assert prep["w_head"].shape[0] == KSIZE * KSIZE * cin0
    assert Wd % 8 == 0, "row offsets {0, W, 2W} must stay sublane-aligned"

    ho = H - L * (KSIZE - 1)                     # final valid height (6)
    wo = Wd - L * (KSIZE - 1)                    # final valid width  (6)
    span = (KSIZE - 1) * Wd                      # packed-read row span (kw -> lanes)

    # Telescoped per-image row counts: raw conv rows computed / packed rows written.
    # Valid outputs only ever read valid inputs; garbage (padded width / gap rows
    # between the two stacked images) provably only feeds garbage rows that the
    # wrapper crops.
    n_raw = [0] * L
    n_w = [0] * L
    n_raw[L - 1] = ho * Wd
    for li in range(L - 2, -1, -1):
        n_w[li] = n_raw[li + 1] + span
        n_raw[li] = n_w[li] + (KSIZE - 1)
    S = -(-n_raw[0] // 8) * 8                    # per-image row stride (all buffers)
    n_out = (B - 1) * S + n_raw[L - 1]
    n0 = (B - 1) * S + n_raw[0]
    rows_scr = -(-((B - 1) * S + n_w[0]) // 8) * 8

    # ---- Head im2col in plain XLA: (n0, 9*Cin) bf16, per-image stride S. ----
    x_flat = jnp.transpose(x_nchw, (0, 2, 3, 1)).reshape(B, H * Wd, cin0)
    pad_rows = max(0, n_raw[0] + span + (KSIZE - 1) - H * Wd)
    x_flat = jnp.pad(x_flat, ((0, 0), (0, pad_rows), (0, 0)))
    taps = [x_flat[:, kh * Wd + kw: kh * Wd + kw + n_raw[0], :]
            for kh in range(KSIZE) for kw in range(KSIZE)]
    x_im = jnp.concatenate(taps, axis=-1)                       # (B, n_raw0, 9*Cin)
    x_im = jnp.pad(x_im, ((0, 0), (0, S - n_raw[0]), (0, 0)))
    x_im = x_im.reshape(B * S, KSIZE * KSIZE * cin0)[:n0].astype(jnp.bfloat16)

    # ---- Skip input: center crop (module semantics), lane-pad to OUT_LANES. ----
    ind = (y_nchw.shape[2] - ho) // 2
    y_c = y_nchw[:, :, ind:y_nchw.shape[2] - ind, ind:y_nchw.shape[3] - ind]
    assert y_c.shape[2] == ho and y_c.shape[3] == wo
    y_c = jnp.transpose(y_c, (0, 2, 3, 1))                      # (B, ho, wo, nc)
    y_c = jnp.pad(y_c, ((0, 0), (0, 0), (0, Wd - wo), (0, OUT_LANES - nc)))
    y_c = jnp.pad(y_c.reshape(B, ho * Wd, OUT_LANES),
                  ((0, 0), (0, S - ho * Wd), (0, 0)))
    y_pad = y_c.reshape(B * S, OUT_LANES)[:n_out].astype(jnp.float32)

    w_head, w_body = prep["w_head"], prep["w_body"]
    w_tail, b_all = prep["w_tail"], prep["b_all"]

    flops = 2 * n0 * w_head.shape[0] * C
    for li in range(1, L - 1):
        flops += 2 * ((B - 1) * S + n_raw[li]) * (KSIZE * KSIZE * C) * C
    flops += 2 * n_out * (KSIZE * KSIZE * C) * OUT_LANES
    bytes_accessed = (_nbytes(x_im) + _nbytes(y_pad) + _nbytes(w_head)
                      + _nbytes(w_body) + _nbytes(w_tail) + _nbytes(b_all)
                      + n_out * OUT_LANES * 4)

    kern = functools.partial(_fused_kernel, W=Wd, S=S, B=B, C=C, L=L,
                             n_raw=tuple(n_raw), n_w=tuple(n_w))

    out_flat = pl.pallas_call(
        kern,
        out_shape=jax.ShapeDtypeStruct((n_out, OUT_LANES), jnp.float32),
        grid=(1,),
        in_specs=[
            pl.BlockSpec(x_im.shape, lambda i: (0, 0)),
            pl.BlockSpec(y_pad.shape, lambda i: (0, 0)),
            pl.BlockSpec(w_head.shape, lambda i: (0, 0)),
            pl.BlockSpec(w_body.shape, lambda i: (0, 0, 0)),
            pl.BlockSpec(w_tail.shape, lambda i: (0, 0, 0)),
            pl.BlockSpec(b_all.shape, lambda i: (0, 0)),
        ],
        out_specs=pl.BlockSpec((n_out, OUT_LANES), lambda i: (0, 0)),
        scratch_shapes=[pltpu.VMEM((rows_scr, KSIZE * C), jnp.bfloat16),
                        pltpu.VMEM((rows_scr, KSIZE * C), jnp.bfloat16)],
        compiler_params=pltpu.CompilerParams(
            dimension_semantics=("arbitrary",)),
        cost_estimate=pl.CostEstimate(flops=int(flops),
                                      transcendentals=int(n_out * OUT_LANES),
                                      bytes_accessed=int(bytes_accessed)),
    )(x_im, y_pad, w_head, w_body, w_tail, b_all)

    # Per-image rows -> drop garbage columns / padded channels, back to NCHW.
    out = jnp.stack([out_flat[b * S:b * S + ho * Wd] for b in range(B)])
    out = out.reshape(B, ho, Wd, OUT_LANES)[:, :, :wo, :nc]
    return jnp.transpose(out, (0, 3, 1, 2))


# ----------------------------------------------------------------------------
# Pure-JAX reference (for correctness check only).
# ----------------------------------------------------------------------------
def forward_reference(x_nchw, y_nchw, params):
    def conv(v, w, b):
        o = lax.conv_general_dilated(v, w, window_strides=(1, 1), padding="VALID",
                                     dimension_numbers=("NCHW", "OIHW", "NCHW"))
        return o + b[None, :, None, None]

    h = x_nchw
    for layer in params[:-1]:
        h = conv(h, layer["w"], layer["b"])
        h = (h - layer["mean"][None, :, None, None]) / jnp.sqrt(
            layer["var"][None, :, None, None] + BN_EPS)
        h = h * layer["gamma"][None, :, None, None] + layer["beta"][None, :, None, None]
        h = jnp.where(h >= 0, h, LRELU_SLOPE * h)
    tail = params[-1]
    h = jnp.tanh(conv(h, tail["w"], tail["b"]))
    ind = int((y_nchw.shape[2] - h.shape[2]) / 2)
    y_crop = y_nchw[:, :, ind:y_nchw.shape[2] - ind, ind:y_nchw.shape[3] - ind]
    return h + y_crop


if __name__ == "__main__":
    key = jax.random.PRNGKey(0)
    kp, kx, ky = jax.random.split(key, 3)

    params = init_params(kp)
    prep = prepare_params(params)

    # x: 4-channel input (head conv expects 4), y: nc_im=3 channel skip input.
    x = jax.random.normal(kx, (2, 4, 16, 16), jnp.float32)
    y = jax.random.normal(ky, (2, 3, 16, 16), jnp.float32)

    fwd = jax.jit(forward_pallas)
    out = jax.block_until_ready(fwd(x, y, prep))

    ref = forward_reference(x, y, params)
    assert out.shape == (2, 3, 6, 6), out.shape
    # Tolerance 5e-2: MXU operands / VMEM-resident activations are bf16
    # (f32 accumulation, f32 VPU math); observed error is ~1e-3.
    if not np.allclose(np.asarray(out), np.asarray(ref), rtol=5e-2, atol=5e-2):
        err = float(np.max(np.abs(np.asarray(out) - np.asarray(ref))))
        raise AssertionError(f"Pallas output does not match reference (max err {err})")

    print("KERNEL_OK")
</pallas_src>

<mosaic_0001>
module attributes {stable_mosaic.version = 11 : i64} {
  func.func @_fused_kernel(%arg0: i32, %arg1: memref<464x36xbf16, #tpu.memory_space<vmem>>, %arg2: memref<328x128xf32, #tpu.memory_space<vmem>>, %arg3: memref<36x32xbf16, #tpu.memory_space<vmem>>, %arg4: memref<9x96x32xbf16, #tpu.memory_space<vmem>>, %arg5: memref<3x96x128xbf16, #tpu.memory_space<vmem>>, %arg6: memref<5x128xf32, #tpu.memory_space<vmem>>, %arg7: memref<328x128xf32, #tpu.memory_space<vmem>>, %arg8: memref<464x96xbf16, #tpu.memory_space<vmem>>, %arg9: memref<464x96xbf16, #tpu.memory_space<vmem>>) attributes {dimension_semantics = [#tpu.dimension_semantics<arbitrary>], iteration_bounds = array<i64: 1>, scalar_prefetch = 0 : i64, scratch_operands = 2 : i64, tpu.core_type = #tpu.core_type<tc>, window_params = [{pipeline_mode = #tpu.pipeline_mode<synchronous>, transform_indices = @transform_0, window_bounds = array<i64: 464, 36>}, {pipeline_mode = #tpu.pipeline_mode<synchronous>, transform_indices = @transform_1, window_bounds = array<i64: 328, 128>}, {pipeline_mode = #tpu.pipeline_mode<synchronous>, transform_indices = @transform_2, window_bounds = array<i64: 36, 32>}, {pipeline_mode = #tpu.pipeline_mode<synchronous>, transform_indices = @transform_3, window_bounds = array<i64: 9, 96, 32>}, {pipeline_mode = #tpu.pipeline_mode<synchronous>, transform_indices = @transform_4, window_bounds = array<i64: 3, 96, 128>}, {pipeline_mode = #tpu.pipeline_mode<synchronous>, transform_indices = @transform_5, window_bounds = array<i64: 5, 128>}, {pipeline_mode = #tpu.pipeline_mode<synchronous>, transform_indices = @transform_6, window_bounds = array<i64: 328, 128>}]} {
    %c0 = arith.constant 0 : index
    %c0_0 = arith.constant 0 : index
    %0 = vector.load %arg1[%c0, %c0_0] : memref<464x36xbf16, #tpu.memory_space<vmem>>, vector<464x36xbf16>
    %c0_1 = arith.constant 0 : index
    %c0_2 = arith.constant 0 : index
    %1 = vector.load %arg3[%c0_1, %c0_2] : memref<36x32xbf16, #tpu.memory_space<vmem>>, vector<36x32xbf16>
    %cst = arith.constant dense<0.000000e+00> : vector<464x32xf32>
    %2 = tpu.matmul %0, %1, %cst {dimension_numbers = #tpu.dot_dimension_numbers<[1], [0], [0], [1], [0, 0, 1, 1], [], []>} : vector<464x36xbf16>, vector<36x32xbf16>, vector<464x32xf32> -> vector<464x32xf32>
    %c0_3 = arith.constant 0 : index
    %c0_4 = arith.constant 0 : index
    %3 = vector.load %arg6[%c0_3, %c0_4] : memref<5x128xf32, #tpu.memory_space<vmem>>, vector<1x32xf32>
    %4 = vector.broadcast %3 : vector<1x32xf32> to vector<464x32xf32>
    %5 = arith.addf %2, %4 : vector<464x32xf32>
    %cst_5 = arith.constant 0.000000e+00 : f32
    %6 = vector.broadcast %cst_5 : f32 to vector<464x32xf32>
    %7 = arith.cmpf oge, %5, %6 : vector<464x32xf32>
    %cst_6 = arith.constant 2.000000e-01 : f32
    %8 = vector.broadcast %cst_6 : f32 to vector<464x32xf32>
    %9 = arith.mulf %8, %5 : vector<464x32xf32>
    %10 = arith.select %7, %5, %9 : vector<464x32xi1>, vector<464x32xf32>
    %11 = arith.truncf %10 : vector<464x32xf32> to vector<464x32xbf16>
    %12 = vector.extract_strided_slice %11 {offsets = [0, 0], sizes = [462, 32], strides = [1, 1]} : vector<464x32xbf16> to vector<462x32xbf16>
    %13 = vector.extract_strided_slice %11 {offsets = [1, 0], sizes = [462, 32], strides = [1, 1]} : vector<464x32xbf16> to vector<462x32xbf16>
    %14 = vector.extract_strided_slice %11 {offsets = [2, 0], sizes = [462, 32], strides = [1, 1]} : vector<464x32xbf16> to vector<462x32xbf16>
    %15 = tpu.concatenate %12, %13, %14 in 1 : vector<462x32xbf16>, vector<462x32xbf16>, vector<462x32xbf16> -> vector<462x96xbf16>
    %c0_7 = arith.constant 0 : index
    %c0_8 = arith.constant 0 : index
    %16 = vector.load %arg8[%c0_7, %c0_8] : memref<464x96xbf16, #tpu.memory_space<vmem>>, vector<462x96xbf16>
    tpu.vector_store %arg8[%c0_7, %c0_8], %15 {strides = array<i32>} : memref<464x96xbf16, #tpu.memory_space<vmem>>, vector<462x96xbf16>,
    %c0_9 = arith.constant 0 : index
    %c0_10 = arith.constant 0 : index
    %17 = vector.load %arg8[%c0_9, %c0_10] : memref<464x96xbf16, #tpu.memory_space<vmem>>, vector<430x96xbf16>
    %c0_11 = arith.constant 0 : index
    %c0_12 = arith.constant 0 : index
    %c0_13 = arith.constant 0 : index
    %18 = vector.load %arg4[%c0_11, %c0_12, %c0_13] : memref<9x96x32xbf16, #tpu.memory_space<vmem>>, vector<1x96x32xbf16>
    %19 = vector.shape_cast %18 : vector<1x96x32xbf16> to vector<96x32xbf16>
    %cst_14 = arith.constant dense<0.000000e+00> : vector<430x32xf32>
    %20 = tpu.matmul %17, %19, %cst_14 {dimension_numbers = #tpu.dot_dimension_numbers<[1], [0], [0], [1], [0, 0, 1, 1], [], []>} : vector<430x96xbf16>, vector<96x32xbf16>, vector<430x32xf32> -> vector<430x32xf32>
    %c16 = arith.constant 16 : index
    %c0_15 = arith.constant 0 : index
    %21 = vector.load %arg8[%c16, %c0_15] : memref<464x96xbf16, #tpu.memory_space<vmem>>, vector<430x96xbf16>
    %c1 = arith.constant 1 : index
    %c0_16 = arith.constant 0 : index
    %c0_17 = arith.constant 0 : index
    %22 = vector.load %arg4[%c1, %c0_16, %c0_17] : memref<9x96x32xbf16, #tpu.memory_space<vmem>>, vector<1x96x32xbf16>
    %23 = vector.shape_cast %22 : vector<1x96x32xbf16> to vector<96x32xbf16>
    %cst_18 = arith.constant dense<0.000000e+00> : vector<430x32xf32>
    %24 = tpu.matmul %21, %23, %cst_18 {dimension_numbers = #tpu.dot_dimension_numbers<[1], [0], [0], [1], [0, 0, 1, 1], [], []>} : vector<430x96xbf16>, vector<96x32xbf16>, vector<430x32xf32> -> vector<430x32xf32>
    %25 = arith.addf %20, %24 : vector<430x32xf32>
    %c32 = arith.constant 32 : index
    %c0_19 = arith.constant 0 : index
    %26 = vector.load %arg8[%c32, %c0_19] : memref<464x96xbf16, #tpu.memory_space<vmem>>, vector<430x96xbf16>
    %c2 = arith.constant 2 : index
    %c0_20 = arith.constant 0 : index
    %c0_21 = arith.constant 0 : index
    %27 = vector.load %arg4[%c2, %c0_20, %c0_21] : memref<9x96x32xbf16, #tpu.memory_space<vmem>>, vector<1x96x32xbf16>
    %28 = vector.shape_cast %27 : vector<1x96x32xbf16> to vector<96x32xbf16>
    %cst_22 = arith.constant dense<0.000000e+00> : vector<430x32xf32>
    %29 = tpu.matmul %26, %28, %cst_22 {dimension_numbers = #tpu.dot_dimension_numbers<[1], [0], [0], [1], [0, 0, 1, 1], [], []>} : vector<430x96xbf16>, vector<96x32xbf16>, vector<430x32xf32> -> vector<430x32xf32>
    %30 = arith.addf %25, %29 : vector<430x32xf32>
    %c1_23 = arith.constant 1 : index
    %c0_24 = arith.constant 0 : index
    %31 = vector.load %arg6[%c1_23, %c0_24] : memref<5x128xf32, #tpu.memory_space<vmem>>, vector<1x32xf32>
    %32 = vector.broadcast %31 : vector<1x32xf32> to vector<430x32xf32>
    %33 = arith.addf %30, %32 : vector<430x32xf32>
    %cst_25 = arith.constant 0.000000e+00 : f32
    %34 = vector.broadcast %cst_25 : f32 to vector<430x32xf32>
    %35 = arith.cmpf oge, %33, %34 : vector<430x32xf32>
    %cst_26 = arith.constant 2.000000e-01 : f32
    %36 = vector.broadcast %cst_26 : f32 to vector<430x32xf32>
    %37 = arith.mulf %36, %33 : vector<430x32xf32>
    %38 = arith.select %35, %33, %37 : vector<430x32xi1>, vector<430x32xf32>
    %39 = arith.truncf %38 : vector<430x32xf32> to vector<430x32xbf16>
    %40 = vector.extract_strided_slice %39 {offsets = [0, 0], sizes = [428, 32], strides = [1, 1]} : vector<430x32xbf16> to vector<428x32xbf16>
    %41 = vector.extract_strided_slice %39 {offsets = [1, 0], sizes = [428, 32], strides = [1, 1]} : vector<430x32xbf16> to vector<428x32xbf16>
    %42 = vector.extract_strided_slice %39 {offsets = [2, 0], sizes = [428, 32], strides = [1, 1]} : vector<430x32xbf16> to vector<428x32xbf16>
    %43 = tpu.concatenate %40, %41, %42 in 1 : vector<428x32xbf16>, vector<428x32xbf16>, vector<428x32xbf16> -> vector<428x96xbf16>
    %c0_27 = arith.constant 0 : index
    %c0_28 = arith.constant 0 : index
    %44 = vector.load %arg9[%c0_27, %c0_28] : memref<464x96xbf16, #tpu.memory_space<vmem>>, vector<428x96xbf16>
    tpu.vector_store %arg9[%c0_27, %c0_28], %43 {strides = array<i32>} : memref<464x96xbf16, #tpu.memory_space<vmem>>, vector<428x96xbf16>,
    %c0_29 = arith.constant 0 : index
    %c0_30 = arith.constant 0 : index
    %45 = vector.load %arg9[%c0_29, %c0_30] : memref<464x96xbf16, #tpu.memory_space<vmem>>, vector<396x96xbf16>
    %c3 = arith.constant 3 : index
    %c0_31 = arith.constant 0 : index
    %c0_32 = arith.constant 0 : index
    %46 = vector.load %arg4[%c3, %c0_31, %c0_32] : memref<9x96x32xbf16, #tpu.memory_space<vmem>>, vector<1x96x32xbf16>
    %47 = vector.shape_cast %46 : vector<1x96x32xbf16> to vector<96x32xbf16>
    %cst_33 = arith.constant dense<0.000000e+00> : vector<396x32xf32>
    %48 = tpu.matmul %45, %47, %cst_33 {dimension_numbers = #tpu.dot_dimension_numbers<[1], [0], [0], [1], [0, 0, 1, 1], [], []>} : vector<396x96xbf16>, vector<96x32xbf16>, vector<396x32xf32> -> vector<396x32xf32>
    %c16_34 = arith.constant 16 : index
    %c0_35 = arith.constant 0 : index
    %49 = vector.load %arg9[%c16_34, %c0_35] : memref<464x96xbf16, #tpu.memory_space<vmem>>, vector<396x96xbf16>
    %c4 = arith.constant 4 : index
    %c0_36 = arith.constant 0 : index
    %c0_37 = arith.constant 0 : index
    %50 = vector.load %arg4[%c4, %c0_36, %c0_37] : memref<9x96x32xbf16, #tpu.memory_space<vmem>>, vector<1x96x32xbf16>
    %51 = vector.shape_cast %50 : vector<1x96x32xbf16> to vector<96x32xbf16>
    %cst_38 = arith.constant dense<0.000000e+00> : vector<396x32xf32>
    %52 = tpu.matmul %49, %51, %cst_38 {dimension_numbers = #tpu.dot_dimension_numbers<[1], [0], [0], [1], [0, 0, 1, 1], [], []>} : vector<396x96xbf16>, vector<96x32xbf16>, vector<396x32xf32> -> vector<396x32xf32>
    %53 = arith.addf %48, %52 : vector<396x32xf32>
    %c32_39 = arith.constant 32 : index
    %c0_40 = arith.constant 0 : index
    %54 = vector.load %arg9[%c32_39, %c0_40] : memref<464x96xbf16, #tpu.memory_space<vmem>>, vector<396x96xbf16>
    %c5 = arith.constant 5 : index
    %c0_41 = arith.constant 0 : index
    %c0_42 = arith.constant 0 : index
    %55 = vector.load %arg4[%c5, %c0_41, %c0_42] : memref<9x96x32xbf16, #tpu.memory_space<vmem>>, vector<1x96x32xbf16>
    %56 = vector.shape_cast %55 : vector<1x96x32xbf16> to vector<96x32xbf16>
    %cst_43 = arith.constant dense<0.000000e+00> : vector<396x32xf32>
    %57 = tpu.matmul %54, %56, %cst_43 {dimension_numbers = #tpu.dot_dimension_numbers<[1], [0], [0], [1], [0, 0, 1, 1], [], []>} : vector<396x96xbf16>, vector<96x32xbf16>, vector<396x32xf32> -> vector<396x32xf32>
    %58 = arith.addf %53, %57 : vector<396x32xf32>
    %c2_44 = arith.constant 2 : index
    %c0_45 = arith.constant 0 : index
    %59 = vector.load %arg6[%c2_44, %c0_45] : memref<5x128xf32, #tpu.memory_space<vmem>>, vector<1x32xf32>
    %60 = vector.broadcast %59 : vector<1x32xf32> to vector<396x32xf32>
    %61 = arith.addf %58, %60 : vector<396x32xf32>
    %cst_46 = arith.constant 0.000000e+00 : f32
    %62 = vector.broadcast %cst_46 : f32 to vector<396x32xf32>
    %63 = arith.cmpf oge, %61, %62 : vector<396x32xf32>
    %cst_47 = arith.constant 2.000000e-01 : f32
    %64 = vector.broadcast %cst_47 : f32 to vector<396x32xf32>
    %65 = arith.mulf %64, %61 : vector<396x32xf32>
    %66 = arith.select %63, %61, %65 : vector<396x32xi1>, vector<396x32xf32>
    %67 = arith.truncf %66 : vector<396x32xf32> to vector<396x32xbf16>
    %68 = vector.extract_strided_slice %67 {offsets = [0, 0], sizes = [394, 32], strides = [1, 1]} : vector<396x32xbf16> to vector<394x32xbf16>
    %69 = vector.extract_strided_slice %67 {offsets = [1, 0], sizes = [394, 32], strides = [1, 1]} : vector<396x32xbf16> to vector<394x32xbf16>
    %70 = vector.extract_strided_slice %67 {offsets = [2, 0], sizes = [394, 32], strides = [1, 1]} : vector<396x32xbf16> to vector<394x32xbf16>
    %71 = tpu.concatenate %68, %69, %70 in 1 : vector<394x32xbf16>, vector<394x32xbf16>, vector<394x32xbf16> -> vector<394x96xbf16>
    %c0_48 = arith.constant 0 : index
    %c0_49 = arith.constant 0 : index
    %72 = vector.load %arg8[%c0_48, %c0_49] : memref<464x96xbf16, #tpu.memory_space<vmem>>, vector<394x96xbf16>
    tpu.vector_store %arg8[%c0_48, %c0_49], %71 {strides = array<i32>} : memref<464x96xbf16, #tpu.memory_space<vmem>>, vector<394x96xbf16>,
    %c0_50 = arith.constant 0 : index
    %c0_51 = arith.constant 0 : index
    %73 = vector.load %arg8[%c0_50, %c0_51] : memref<464x96xbf16, #tpu.memory_space<vmem>>, vector<362x96xbf16>
    %c6 = arith.constant 6 : index
    %c0_52 = arith.constant 0 : index
    %c0_53 = arith.constant 0 : index
    %74 = vector.load %arg4[%c6, %c0_52, %c0_53] : memref<9x96x32xbf16, #tpu.memory_space<vmem>>, vector<1x96x32xbf16>
    %75 = vector.shape_cast %74 : vector<1x96x32xbf16> to vector<96x32xbf16>
    %cst_54 = arith.constant dense<0.000000e+00> : vector<362x32xf32>
    %76 = tpu.matmul %73, %75, %cst_54 {dimension_numbers = #tpu.dot_dimension_numbers<[1], [0], [0], [1], [0, 0, 1, 1], [], []>} : vector<362x96xbf16>, vector<96x32xbf16>, vector<362x32xf32> -> vector<362x32xf32>
    %c16_55 = arith.constant 16 : index
    %c0_56 = arith.constant 0 : index
    %77 = vector.load %arg8[%c16_55, %c0_56] : memref<464x96xbf16, #tpu.memory_space<vmem>>, vector<362x96xbf16>
    %c7 = arith.constant 7 : index
    %c0_57 = arith.constant 0 : index
    %c0_58 = arith.constant 0 : index
    %78 = vector.load %arg4[%c7, %c0_57, %c0_58] : memref<9x96x32xbf16, #tpu.memory_space<vmem>>, vector<1x96x32xbf16>
    %79 = vector.shape_cast %78 : vector<1x96x32xbf16> to vector<96x32xbf16>
    %cst_59 = arith.constant dense<0.000000e+00> : vector<362x32xf32>
    %80 = tpu.matmul %77, %79, %cst_59 {dimension_numbers = #tpu.dot_dimension_numbers<[1], [0], [0], [1], [0, 0, 1, 1], [], []>} : vector<362x96xbf16>, vector<96x32xbf16>, vector<362x32xf32> -> vector<362x32xf32>
    %81 = arith.addf %76, %80 : vector<362x32xf32>
    %c32_60 = arith.constant 32 : index
    %c0_61 = arith.constant 0 : index
    %82 = vector.load %arg8[%c32_60, %c0_61] : memref<464x96xbf16, #tpu.memory_space<vmem>>, vector<362x96xbf16>
    %c8 = arith.constant 8 : index
    %c0_62 = arith.constant 0 : index
    %c0_63 = arith.constant 0 : index
    %83 = vector.load %arg4[%c8, %c0_62, %c0_63] : memref<9x96x32xbf16, #tpu.memory_space<vmem>>, vector<1x96x32xbf16>
    %84 = vector.shape_cast %83 : vector<1x96x32xbf16> to vector<96x32xbf16>
    %cst_64 = arith.constant dense<0.000000e+00> : vector<362x32xf32>
    %85 = tpu.matmul %82, %84, %cst_64 {dimension_numbers = #tpu.dot_dimension_numbers<[1], [0], [0], [1], [0, 0, 1, 1], [], []>} : vector<362x96xbf16>, vector<96x32xbf16>, vector<362x32xf32> -> vector<362x32xf32>
    %86 = arith.addf %81, %85 : vector<362x32xf32>
    %c3_65 = arith.constant 3 : index
    %c0_66 = arith.constant 0 : index
    %87 = vector.load %arg6[%c3_65, %c0_66] : memref<5x128xf32, #tpu.memory_space<vmem>>, vector<1x32xf32>
    %88 = vector.broadcast %87 : vector<1x32xf32> to vector<362x32xf32>
    %89 = arith.addf %86, %88 : vector<362x32xf32>
    %cst_67 = arith.constant 0.000000e+00 : f32
    %90 = vector.broadcast %cst_67 : f32 to vector<362x32xf32>
    %91 = arith.cmpf oge, %89, %90 : vector<362x32xf32>
    %cst_68 = arith.constant 2.000000e-01 : f32
    %92 = vector.broadcast %cst_68 : f32 to vector<362x32xf32>
    %93 = arith.mulf %92, %89 : vector<362x32xf32>
    %94 = arith.select %91, %89, %93 : vector<362x32xi1>, vector<362x32xf32>
    %95 = arith.truncf %94 : vector<362x32xf32> to vector<362x32xbf16>
    %96 = vector.extract_strided_slice %95 {offsets = [0, 0], sizes = [360, 32], strides = [1, 1]} : vector<362x32xbf16> to vector<360x32xbf16>
    %97 = vector.extract_strided_slice %95 {offsets = [1, 0], sizes = [360, 32], strides = [1, 1]} : vector<362x32xbf16> to vector<360x32xbf16>
    %98 = vector.extract_strided_slice %95 {offsets = [2, 0], sizes = [360, 32], strides = [1, 1]} : vector<362x32xbf16> to vector<360x32xbf16>
    %99 = tpu.concatenate %96, %97, %98 in 1 : vector<360x32xbf16>, vector<360x32xbf16>, vector<360x32xbf16> -> vector<360x96xbf16>
    %c0_69 = arith.constant 0 : index
    %c0_70 = arith.constant 0 : index
    %100 = vector.load %arg9[%c0_69, %c0_70] : memref<464x96xbf16, #tpu.memory_space<vmem>>, vector<360x96xbf16>
    tpu.vector_store %arg9[%c0_69, %c0_70], %99 {strides = array<i32>} : memref<464x96xbf16, #tpu.memory_space<vmem>>, vector<360x96xbf16>,
    %c0_71 = arith.constant 0 : index
    %c0_72 = arith.constant 0 : index
    %101 = vector.load %arg9[%c0_71, %c0_72] : memref<464x96xbf16, #tpu.memory_space<vmem>>, vector<328x96xbf16>
    %c0_73 = arith.constant 0 : index
    %c0_74 = arith.constant 0 : index
    %c0_75 = arith.constant 0 : index
    %102 = vector.load %arg5[%c0_73, %c0_74, %c0_75] : memref<3x96x128xbf16, #tpu.memory_space<vmem>>, vector<1x96x128xbf16>
    %103 = vector.shape_cast %102 : vector<1x96x128xbf16> to vector<96x128xbf16>
    %cst_76 = arith.constant dense<0.000000e+00> : vector<328x128xf32>
    %104 = tpu.matmul %101, %103, %cst_76 {dimension_numbers = #tpu.dot_dimension_numbers<[1], [0], [0], [1], [0, 0, 1, 1], [], []>} : vector<328x96xbf16>, vector<96x128xbf16>, vector<328x128xf32> -> vector<328x128xf32>
    %c16_77 = arith.constant 16 : index
    %c0_78 = arith.constant 0 : index
    %105 = vector.load %arg9[%c16_77, %c0_78] : memref<464x96xbf16, #tpu.memory_space<vmem>>, vector<328x96xbf16>
    %c1_79 = arith.constant 1 : index
    %c0_80 = arith.constant 0 : index
    %c0_81 = arith.constant 0 : index
    %106 = vector.load %arg5[%c1_79, %c0_80, %c0_81] : memref<3x96x128xbf16, #tpu.memory_space<vmem>>, vector<1x96x128xbf16>
    %107 = vector.shape_cast %106 : vector<1x96x128xbf16> to vector<96x128xbf16>
    %cst_82 = arith.constant dense<0.000000e+00> : vector<328x128xf32>
    %108 = tpu.matmul %105, %107, %cst_82 {dimension_numbers = #tpu.dot_dimension_numbers<[1], [0], [0], [1], [0, 0, 1, 1], [], []>} : vector<328x96xbf16>, vector<96x128xbf16>, vector<328x128xf32> -> vector<328x128xf32>
    %109 = arith.addf %104, %108 : vector<328x128xf32>
    %c32_83 = arith.constant 32 : index
    %c0_84 = arith.constant 0 : index
    %110 = vector.load %arg9[%c32_83, %c0_84] : memref<464x96xbf16, #tpu.memory_space<vmem>>, vector<328x96xbf16>
    %c2_85 = arith.constant 2 : index
    %c0_86 = arith.constant 0 : index
    %c0_87 = arith.constant 0 : index
    %111 = vector.load %arg5[%c2_85, %c0_86, %c0_87] : memref<3x96x128xbf16, #tpu.memory_space<vmem>>, vector<1x96x128xbf16>
    %112 = vector.shape_cast %111 : vector<1x96x128xbf16> to vector<96x128xbf16>
    %cst_88 = arith.constant dense<0.000000e+00> : vector<328x128xf32>
    %113 = tpu.matmul %110, %112, %cst_88 {dimension_numbers = #tpu.dot_dimension_numbers<[1], [0], [0], [1], [0, 0, 1, 1], [], []>} : vector<328x96xbf16>, vector<96x128xbf16>, vector<328x128xf32> -> vector<328x128xf32>
    %114 = arith.addf %109, %113 : vector<328x128xf32>
    %c4_89 = arith.constant 4 : index
    %c0_90 = arith.constant 0 : index
    %115 = vector.load %arg6[%c4_89, %c0_90] : memref<5x128xf32, #tpu.memory_space<vmem>>, vector<1x128xf32>
    %116 = vector.broadcast %115 : vector<1x128xf32> to vector<328x128xf32>
    %117 = arith.addf %114, %116 : vector<328x128xf32>
    %118 = math.tanh %117 : vector<328x128xf32>
    %c0_91 = arith.constant 0 : index
    %c0_92 = arith.constant 0 : index
    %119 = vector.load %arg2[%c0_91, %c0_92] : memref<328x128xf32, #tpu.memory_space<vmem>>, vector<328x128xf32>
    %120 = arith.addf %118, %119 : vector<328x128xf32>
    %c0_93 = arith.constant 0 : index
    %c0_94 = arith.constant 0 : index
    %121 = vector.load %arg7[%c0_93, %c0_94] : memref<328x128xf32, #tpu.memory_space<vmem>>, vector<328x128xf32>
    tpu.vector_store %arg7[%c0_93, %c0_94], %120 {strides = array<i32>} : memref<328x128xf32, #tpu.memory_space<vmem>>, vector<328x128xf32>,
    return
  }
  func.func @transform_0(%arg0: i32) -> (i32, i32) {
    %c0_i32 = arith.constant 0 : i32
    %c0_i32_0 = arith.constant 0 : i32
    %c0_i32_1 = arith.constant 0 : i32
    return %c0_i32, %c0_i32_0 : i32, i32
  }
  func.func @transform_1(%arg0: i32) -> (i32, i32) {
    %c0_i32 = arith.constant 0 : i32
    %c0_i32_0 = arith.constant 0 : i32
    %c0_i32_1 = arith.constant 0 : i32
    return %c0_i32, %c0_i32_0 : i32, i32
  }
  func.func @transform_2(%arg0: i32) -> (i32, i32) {
    %c0_i32 = arith.constant 0 : i32
    %c0_i32_0 = arith.constant 0 : i32
    %c0_i32_1 = arith.constant 0 : i32
    return %c0_i32, %c0_i32_0 : i32, i32
  }
  func.func @transform_3(%arg0: i32) -> (i32, i32, i32) {
    %c0_i32 = arith.constant 0 : i32
    %c0_i32_0 = arith.constant 0 : i32
    %c0_i32_1 = arith.constant 0 : i32
    %c0_i32_2 = arith.constant 0 : i32
    return %c0_i32, %c0_i32_0, %c0_i32_1 : i32, i32, i32
  }
  func.func @transform_4(%arg0: i32) -> (i32, i32, i32) {
    %c0_i32 = arith.constant 0 : i32
    %c0_i32_0 = arith.constant 0 : i32
    %c0_i32_1 = arith.constant 0 : i32
    %c0_i32_2 = arith.constant 0 : i32
    return %c0_i32, %c0_i32_0, %c0_i32_1 : i32, i32, i32
  }
  func.func @transform_5(%arg0: i32) -> (i32, i32) {
    %c0_i32 = arith.constant 0 : i32
    %c0_i32_0 = arith.constant 0 : i32
    %c0_i32_1 = arith.constant 0 : i32
    return %c0_i32, %c0_i32_0 : i32, i32
  }
  func.func @transform_6(%arg0: i32) -> (i32, i32) {
    %c0_i32 = arith.constant 0 : i32
    %c0_i32_0 = arith.constant 0 : i32
    %c0_i32_1 = arith.constant 0 : i32
    return %c0_i32, %c0_i32_0 : i32, i32
  }
}

</mosaic_0001>

<llo_original>
// kernel: forward_pallas.1
$region0: #{forward_pallas.1}
  #allocation0 [shape = 'u32[]', space=smem, size = 0x4, offset = 0x4, fixed_abs, tag = 'smem constant byte address 0x4 - core index']
  #allocation1 [shape = 'u32[72,128]{1,0:T(1,128)}', space=vmem, size = 0x9000, scoped, tag = 'internal scratch']
  #allocation2 [shape = 'bf16[464,96]{1,0:T(8,128)(2,1)}', space=vmem, size = 0x1d000, scoped, tag = 'scratch operand']
  #allocation3 [shape = 'bf16[464,96]{1,0:T(8,128)(2,1)}', space=vmem, size = 0x1d000, scoped, tag = 'scratch operand']
  %s0 = inlined_call_operand.vmem [shape: bf16[464,36], index: 0, kind: input, shape index: {}]
  %s1 = inlined_call_operand.vmem [shape: f32[328,128], index: 1, kind: input, shape index: {}]
  %s2 = inlined_call_operand.vmem [shape: bf16[36,32], index: 2, kind: input, shape index: {}]
  %s3 = inlined_call_operand.vmem [shape: bf16[9,96,32], index: 3, kind: input, shape index: {}]
  %s4 = inlined_call_operand.vmem [shape: bf16[3,96,128], index: 4, kind: input, shape index: {}]
  %s5 = inlined_call_operand.vmem [shape: f32[5,128], index: 5, kind: input, shape index: {}]
  %s6 = inlined_call_operand.vmem [shape: f32[328,128], index: 6, kind: output, shape index: {}]
  %s7 = sld [smem:[#allocation0]]
  $region34: #{forward_pallas.1} parent=0
    _
  %s9 = ssub.s32 1, %s7
  %s10 = scalar_select 0, %s9, %s7
  // Predicated region
  $region2: #{forward_pallas.1} parent=0 // pred_check
    _
  $region3: #{forward_pallas.1} parent=0 // pred_check_branch
    %12 = sbr.rel (0) target = $region5
  $region4: #{forward_pallas.1} parent=0 // pred_region
    _
  $region5: #{forward_pallas.1} parent=0 // pred_fallthru
    _
  // Predicated region
  $region6: #{forward_pallas.1} parent=0 // pred_check
    _
  $region7: #{forward_pallas.1} parent=0 // pred_check_branch
    %14 = sbr.rel (0) target = $region9
  $region8: #{forward_pallas.1} parent=0 // pred_region
    _
  $region9: #{forward_pallas.1} parent=0 // pred_fallthru
    _
  // Predicated region
  $region10: #{forward_pallas.1} parent=0 // pred_check
    _
  $region11: #{forward_pallas.1} parent=0 // pred_check_branch
    %16 = sbr.rel (0) target = $region13
  $region12: #{forward_pallas.1} parent=0 // pred_region
    _
  $region13: #{forward_pallas.1} parent=0 // pred_fallthru
    _
  // Predicated region
  $region14: #{forward_pallas.1} parent=0 // pred_check
    _
  $region15: #{forward_pallas.1} parent=0 // pred_check_branch
    %18 = sbr.rel (0) target = $region17
  $region16: #{forward_pallas.1} parent=0 // pred_region
    _
  $region17: #{forward_pallas.1} parent=0 // pred_fallthru
    _
  // Predicated region
  $region18: #{forward_pallas.1} parent=0 // pred_check
    _
  $region19: #{forward_pallas.1} parent=0 // pred_check_branch
    %20 = sbr.rel (0) target = $region21
  $region20: #{forward_pallas.1} parent=0 // pred_region
    _
  $region21: #{forward_pallas.1} parent=0 // pred_fallthru
    _
  // Predicated region
  $region22: #{forward_pallas.1} parent=0 // pred_check
    _
  $region23: #{forward_pallas.1} parent=0 // pred_check_branch
    %22 = sbr.rel (0) target = $region25
  $region24: #{forward_pallas.1} parent=0 // pred_region
    _
  $region25: #{forward_pallas.1} parent=0 // pred_fallthru
    _
  %v24 = vld [vmem:[%s0] sm:$0xf]
  %v25 = vld [vmem:[%s0 + $0x4] sm:$0xf]
  %v26 = vld [vmem:[%s0 + $0x8] sm:$0xf]
  %v27 = vld [vmem:[%s0 + $0xc] sm:$0xf]
  %v28 = vld [vmem:[%s0 + $0x10] sm:$0xf]
  %v29 = vld [vmem:[%s0 + $0x14] sm:$0xf]
  %v30 = vld [vmem:[%s0 + $0x18] sm:$0xf]
  %v31 = vld [vmem:[%s0 + $0x1c] sm:$0xf]
  %v32 = vld [vmem:[%s0 + $0x20] sm:$0xf]
  %v33 = vld [vmem:[%s0 + $0x24] sm:$0xf]
  %v34 = vld [vmem:[%s0 + $0x28] sm:$0xf]
  %v35 = vld [vmem:[%s0 + $0x2c] sm:$0xf]
  %v36 = vld [vmem:[%s0 + $0x30] sm:$0xf]
  %v37 = vld [vmem:[%s0 + $0x34] sm:$0xf]
  %v38 = vld [vmem:[%s0 + $0x38] sm:$0xf]
  %v39 = vld [vmem:[%s0 + $0x3c] sm:$0xf]
  %v40 = vld [vmem:[%s0 + $0x40] sm:$0xf]
  %v41 = vld [vmem:[%s0 + $0x44] sm:$0xf]
  %v42 = vld [vmem:[%s0 + $0x48] sm:$0xf]
  %v43 = vld [vmem:[%s0 + $0x4c] sm:$0xf]
  %v44 = vld [vmem:[%s0 + $0x50] sm:$0xf]
  %v45 = vld [vmem:[%s0 + $0x54] sm:$0xf]
  %v46 = vld [vmem:[%s0 + $0x58] sm:$0xf]
  %v47 = vld [vmem:[%s0 + $0x5c] sm:$0xf]
  %v48 = vld [vmem:[%s0 + $0x60] sm:$0xf]
  %v49 = vld [vmem:[%s0 + $0x64] sm:$0xf]
  %v50 = vld [vmem:[%s0 + $0x68] sm:$0xf]
  %v51 = vld [vmem:[%s0 + $0x6c] sm:$0xf]
  %v52 = vld [vmem:[%s0 + $0x70] sm:$0xf]
  %v53 = vld [vmem:[%s0 + $0x74] sm:$0xf]
  %v54 = vld [vmem:[%s0 + $0x78] sm:$0xf]
  %v55 = vld [vmem:[%s0 + $0x7c] sm:$0xf]
  %v56 = vld [vmem:[%s0 + $0x80] sm:$0xf]
  %v57 = vld [vmem:[%s0 + $0x84] sm:$0xf]
  %v58 = vld [vmem:[%s0 + $0x88] sm:$0xf]
  %v59 = vld [vmem:[%s0 + $0x8c] sm:$0xf]
  %v60 = vld [vmem:[%s0 + $0x90] sm:$0xf]
  %v61 = vld [vmem:[%s0 + $0x94] sm:$0xf]
  %v62 = vld [vmem:[%s0 + $0x98] sm:$0xf]
  %v63 = vld [vmem:[%s0 + $0x9c] sm:$0xf]
  %v64 = vld [vmem:[%s0 + $0xa0] sm:$0xf]
  %v65 = vld [vmem:[%s0 + $0xa4] sm:$0xf]
  %v66 = vld [vmem:[%s0 + $0xa8] sm:$0xf]
  %v67 = vld [vmem:[%s0 + $0xac] sm:$0xf]
  %v68 = vld [vmem:[%s0 + $0xb0] sm:$0xf]
  %v69 = vld [vmem:[%s0 + $0xb4] sm:$0xf]
  %v70 = vld [vmem:[%s0 + $0xb8] sm:$0xf]
  %v71 = vld [vmem:[%s0 + $0xbc] sm:$0xf]
  %v72 = vld [vmem:[%s0 + $0xc0] sm:$0xf]
  %v73 = vld [vmem:[%s0 + $0xc4] sm:$0xf]
  %v74 = vld [vmem:[%s0 + $0xc8] sm:$0xf]
  %v75 = vld [vmem:[%s0 + $0xcc] sm:$0xf]
  %v76 = vld [vmem:[%s0 + $0xd0] sm:$0xf]
  %v77 = vld [vmem:[%s0 + $0xd4] sm:$0xf]
  %v78 = vld [vmem:[%s0 + $0xd8] sm:$0xf]
  %v79 = vld [vmem:[%s0 + $0xdc] sm:$0xf]
  %v80 = vld [vmem:[%s0 + $0xe0] sm:$0xf]
  %v81 = vld [vmem:[%s0 + $0xe4] sm:$0xf]
  %v82 = vld [vmem:[%s2] sm:$0xf]
  %v83 = vld [vmem:[%s2 + $0x4] sm:$0xf]
  %v84 = vld [vmem:[%s2 + $0x8] sm:$0xf]
  %v85 = vld [vmem:[%s2 + $0xc] sm:$0xf]
  %v86 = vld [vmem:[%s2 + $0x10] sm:$0x3]
  %v87 = vld [vmem:[%s5] sm:$0x1]
  %v88 = vperm.slane %v87, 0
  %v147 = vunpack.c.l.b16 %v24
  %v148 = vunpack.c.l.b16 %v25
  %v149 = vunpack.c.l.b16 %v26
  %v150 = vunpack.c.l.b16 %v27
  %v151 = vunpack.c.l.b16 %v28
  %v152 = vunpack.c.l.b16 %v29
  %v153 = vunpack.c.l.b16 %v30
  %v154 = vunpack.c.l.b16 %v31
  %v155 = vunpack.c.l.b16 %v32
  %v156 = vunpack.c.l.b16 %v33
  %v157 = vunpack.c.l.b16 %v34
  %v158 = vunpack.c.l.b16 %v35
  %v159 = vunpack.c.l.b16 %v36
  %v160 = vunpack.c.l.b16 %v37
  %v161 = vunpack.c.l.b16 %v38
  %v162 = vunpack.c.l.b16 %v39
  %v163 = vunpack.c.l.b16 %v40
  %v164 = vunpack.c.l.b16 %v41
  %v165 = vunpack.c.l.b16 %v42
  %v166 = vunpack.c.l.b16 %v43
  %v167 = vunpack.c.l.b16 %v44
  %v168 = vunpack.c.l.b16 %v45
  %v169 = vunpack.c.l.b16 %v46
  %v170 = vunpack.c.l.b16 %v47
  %v171 = vunpack.c.l.b16 %v48
  %v172 = vunpack.c.l.b16 %v49
  %v173 = vunpack.c.l.b16 %v50
  %v174 = vunpack.c.l.b16 %v51
  %v175 = vunpack.c.l.b16 %v52
  %v176 = vunpack.c.l.b16 %v53
  %v177 = vunpack.c.l.b16 %v54
  %v178 = vunpack.c.l.b16 %v55
  %v179 = vunpack.c.l.b16 %v56
  %v180 = vunpack.c.l.b16 %v57
  %v181 = vunpack.c.l.b16 %v58
  %v182 = vunpack.c.l.b16 %v59
  %v183 = vunpack.c.l.b16 %v60
  %v184 = vunpack.c.l.b16 %v61
  %v185 = vunpack.c.l.b16 %v62
  %v186 = vunpack.c.l.b16 %v63
  %v187 = vunpack.c.l.b16 %v64
  %v188 = vunpack.c.l.b16 %v65
  %v189 = vunpack.c.l.b16 %v66
  %v190 = vunpack.c.l.b16 %v67
  %v191 = vunpack.c.l.b16 %v68
  %v192 = vunpack.c.l.b16 %v69
  %v193 = vunpack.c.l.b16 %v70
  %v194 = vunpack.c.l.b16 %v71
  %v195 = vunpack.c.l.b16 %v72
  %v196 = vunpack.c.l.b16 %v73
  %v197 = vunpack.c.l.b16 %v74
  %v198 = vunpack.c.l.b16 %v75
  %v199 = vunpack.c.l.b16 %v76
  %v200 = vunpack.c.l.b16 %v77
  %v201 = vunpack.c.l.b16 %v78
  %v202 = vunpack.c.l.b16 %v79
  %v203 = vunpack.c.l.b16 %v80
  %v204 = vunpack.c.l.b16 %v81
  %v205 = vpack.c.b16 %v148, %v147
  %v206 = vpack.c.b16 %v150, %v149
  %v207 = vpack.c.b16 %v152, %v151
  %v208 = vpack.c.b16 %v154, %v153
  %v209 = vpack.c.b16 %v156, %v155
  %v210 = vpack.c.b16 %v158, %v157
  %v211 = vpack.c.b16 %v160, %v159
  %v212 = vpack.c.b16 %v162, %v161
  %v213 = vpack.c.b16 %v164, %v163
  %v214 = vpack.c.b16 %v166, %v165
  %v215 = vpack.c.b16 %v168, %v167
  %v216 = vpack.c.b16 %v170, %v169
  %v217 = vpack.c.b16 %v172, %v171
  %v218 = vpack.c.b16 %v174, %v173
  %v219 = vpack.c.b16 %v176, %v175
  %v220 = vpack.c.b16 %v178, %v177
  %v221 = vpack.c.b16 %v180, %v179
  %v222 = vpack.c.b16 %v182, %v181
  %v223 = vpack.c.b16 %v184, %v183
  %v224 = vpack.c.b16 %v186, %v185
  %v225 = vpack.c.b16 %v188, %v187
  %v226 = vpack.c.b16 %v190, %v189
  %v227 = vpack.c.b16 %v192, %v191
  %v228 = vpack.c.b16 %v194, %v193
  %v229 = vpack.c.b16 %v196, %v195
  %v230 = vpack.c.b16 %v198, %v197
  %v231 = vpack.c.b16 %v200, %v199
  %v232 = vpack.c.b16 %v202, %v201
  %v233 = vpack.c.b16 %v204, %v203
  %v239 = vunpack.c.l.b16 %v82
  %v240 = vunpack.c.l.b16 %v83
  %v241 = vunpack.c.l.b16 %v84
  %v242 = vunpack.c.l.b16 %v85
  %v243 = vunpack.c.l.b16 %v86
  %v244 = vpack.c.b16 %v240, %v239
  %v245 = vpack.c.b16 %v242, %v241
  %v246 = vpack.c.b16 %v243, %v243
  %vm249 = vcmask 293888
  %v251 = vsel %vm249, %v205, 0
  %v254 = vsel %vm249, %v206, 0
  %v257 = vsel %vm249, %v207, 0
  %v260 = vsel %vm249, %v208, 0
  %v263 = vsel %vm249, %v209, 0
  %v266 = vsel %vm249, %v210, 0
  %v269 = vsel %vm249, %v211, 0
  %v272 = vsel %vm249, %v212, 0
  %v275 = vsel %vm249, %v213, 0
  %v278 = vsel %vm249, %v214, 0
  %v281 = vsel %vm249, %v215, 0
  %v284 = vsel %vm249, %v216, 0
  %v287 = vsel %vm249, %v217, 0
  %v290 = vsel %vm249, %v218, 0
  %v293 = vsel %vm249, %v219, 0
  %v296 = vsel %vm249, %v220, 0
  %v299 = vsel %vm249, %v221, 0
  %v302 = vsel %vm249, %v222, 0
  %v305 = vsel %vm249, %v223, 0
  %v308 = vsel %vm249, %v224, 0
  %v311 = vsel %vm249, %v225, 0
  %v314 = vsel %vm249, %v226, 0
  %v317 = vsel %vm249, %v227, 0
  %v320 = vsel %vm249, %v228, 0
  %v323 = vsel %vm249, %v229, 0
  %v326 = vsel %vm249, %v230, 0
  %v329 = vsel %vm249, %v231, 0
  %v332 = vsel %vm249, %v232, 0
  %v335 = vsel %vm249, %v233, 0
  %vm337 = vcmask 1041408
  %v339 = vsel %vm337, %v246, 0
  %341 = vmatpush.bf16.msra.mxu0 0
  %342 = vmatpush.bf16.msra.mxu0 0
  %343 = vmatpush.bf16.msra.mxu0 0
  %344 = vmatpush.bf16.msra.mxu0 0
  %345 = vmatpush.bf16.msra.mxu0 0
  %346 = vmatpush.bf16.msra.mxu0 %v339
  %347 = vmatpush.bf16.msra.mxu0 %v245
  %348 = vmatpush.bf16.msra.mxu0 %v244
  %349 = vmatmul.bf16.gmra.mxu0 %v251
  %v350 = vpop.f32.mrf.mxu0
  %v351 = vadd.f32 %v88, %v350
  %v352 = vpop.f32.mrf.mxu0
  %v353 = vadd.f32 %v88, %v352
  %354 = vmatmul.bf16.gmra.mxu0 %v254
  %v355 = vpop.f32.mrf.mxu0
  %v356 = vadd.f32 %v88, %v355
  %v357 = vpop.f32.mrf.mxu0
  %v358 = vadd.f32 %v88, %v357
  %359 = vmatmul.bf16.gmra.mxu0 %v257
  %v360 = vpop.f32.mrf.mxu0
  %v361 = vadd.f32 %v88, %v360
  %v362 = vpop.f32.mrf.mxu0
  %v363 = vadd.f32 %v88, %v362
  %364 = vmatmul.bf16.gmra.mxu0 %v260
  %v365 = vpop.f32.mrf.mxu0
  %v366 = vadd.f32 %v88, %v365
  %v367 = vpop.f32.mrf.mxu0
  %v368 = vadd.f32 %v88, %v367
  %369 = vmatmul.bf16.gmra.mxu0 %v263
  %v370 = vpop.f32.mrf.mxu0
  %v371 = vadd.f32 %v88, %v370
  %v372 = vpop.f32.mrf.mxu0
  %v373 = vadd.f32 %v88, %v372
  %374 = vmatmul.bf16.gmra.mxu0 %v266
  %v375 = vpop.f32.mrf.mxu0
  %v376 = vadd.f32 %v88, %v375
  %v377 = vpop.f32.mrf.mxu0
  %v378 = vadd.f32 %v88, %v377
  %379 = vmatmul.bf16.gmra.mxu0 %v269
  %v380 = vpop.f32.mrf.mxu0
  %v381 = vadd.f32 %v88, %v380
  %v382 = vpop.f32.mrf.mxu0
  %v383 = vadd.f32 %v88, %v382
  %384 = vmatmul.bf16.gmra.mxu0 %v272
  %v385 = vpop.f32.mrf.mxu0
  %v386 = vadd.f32 %v88, %v385
  %v387 = vpop.f32.mrf.mxu0
  %v388 = vadd.f32 %v88, %v387
  %389 = vmatmul.bf16.gmra.mxu0 %v275
  %v390 = vpop.f32.mrf.mxu0
  %v391 = vadd.f32 %v88, %v390
  %v392 = vpop.f32.mrf.mxu0
  %v393 = vadd.f32 %v88, %v392
  %394 = vmatmul.bf16.gmra.mxu0 %v278
  %v395 = vpop.f32.mrf.mxu0
  %v396 = vadd.f32 %v88, %v395
  %v397 = vpop.f32.mrf.mxu0
  %v398 = vadd.f32 %v88, %v397
  %399 = vmatmul.bf16.gmra.mxu0 %v281
  %v400 = vpop.f32.mrf.mxu0
  %v401 = vadd.f32 %v88, %v400
  %v402 = vpop.f32.mrf.mxu0
  %v403 = vadd.f32 %v88, %v402
  %404 = vmatmul.bf16.gmra.mxu0 %v284
  %v405 = vpop.f32.mrf.mxu0
  %v406 = vadd.f32 %v88, %v405
  %v407 = vpop.f32.mrf.mxu0
  %v408 = vadd.f32 %v88, %v407
  %409 = vmatmul.bf16.gmra.mxu0 %v287
  %v410 = vpop.f32.mrf.mxu0
  %v411 = vadd.f32 %v88, %v410
  %v412 = vpop.f32.mrf.mxu0
  %v413 = vadd.f32 %v88, %v412
  %414 = vmatmul.bf16.gmra.mxu0 %v290
  %v415 = vpop.f32.mrf.mxu0
  %v416 = vadd.f32 %v88, %v415
  %v417 = vpop.f32.mrf.mxu0
  %v418 = vadd.f32 %v88, %v417
  %419 = vmatmul.bf16.gmra.mxu0 %v293
  %v420 = vpop.f32.mrf.mxu0
  %v421 = vadd.f32 %v88, %v420
  %v422 = vpop.f32.mrf.mxu0
  %v423 = vadd.f32 %v88, %v422
  %424 = vmatmul.bf16.gmra.mxu0 %v296
  %v425 = vpop.f32.mrf.mxu0
  %v426 = vadd.f32 %v88, %v425
  %v427 = vpop.f32.mrf.mxu0
  %v428 = vadd.f32 %v88, %v427
  %429 = vmatmul.bf16.gmra.mxu0 %v299
  %v430 = vpop.f32.mrf.mxu0
  %v431 = vadd.f32 %v88, %v430
  %v432 = vpop.f32.mrf.mxu0
  %v433 = vadd.f32 %v88, %v432
  %434 = vmatmul.bf16.gmra.mxu0 %v302
  %v435 = vpop.f32.mrf.mxu0
  %v436 = vadd.f32 %v88, %v435
  %v437 = vpop.f32.mrf.mxu0
  %v438 = vadd.f32 %v88, %v437
  %439 = vmatmul.bf16.gmra.mxu0 %v305
  %v440 = vpop.f32.mrf.mxu0
  %v441 = vadd.f32 %v88, %v440
  %v442 = vpop.f32.mrf.mxu0
  %v443 = vadd.f32 %v88, %v442
  %444 = vmatmul.bf16.gmra.mxu0 %v308
  %v445 = vpop.f32.mrf.mxu0
  %v446 = vadd.f32 %v88, %v445
  %v447 = vpop.f32.mrf.mxu0
  %v448 = vadd.f32 %v88, %v447
  %449 = vmatmul.bf16.gmra.mxu0 %v311
  %v450 = vpop.f32.mrf.mxu0
  %v451 = vadd.f32 %v88, %v450
  %v452 = vpop.f32.mrf.mxu0
  %v453 = vadd.f32 %v88, %v452
  %454 = vmatmul.bf16.gmra.mxu0 %v314
  %v455 = vpop.f32.mrf.mxu0
  %v456 = vadd.f32 %v88, %v455
  %v457 = vpop.f32.mrf.mxu0
  %v458 = vadd.f32 %v88, %v457
  %459 = vmatmul.bf16.gmra.mxu0 %v317
  %v460 = vpop.f32.mrf.mxu0
  %v461 = vadd.f32 %v88, %v460
  %v462 = vpop.f32.mrf.mxu0
  %v463 = vadd.f32 %v88, %v462
  %464 = vmatmul.bf16.gmra.mxu0 %v320
  %v465 = vpop.f32.mrf.mxu0
  %v466 = vadd.f32 %v88, %v465
  %v467 = vpop.f32.mrf.mxu0
  %v468 = vadd.f32 %v88, %v467
  %469 = vmatmul.bf16.gmra.mxu0 %v323
  %v470 = vpop.f32.mrf.mxu0
  %v471 = vadd.f32 %v88, %v470
  %v472 = vpop.f32.mrf.mxu0
  %v473 = vadd.f32 %v88, %v472
  %474 = vmatmul.bf16.gmra.mxu0 %v326
  %v475 = vpop.f32.mrf.mxu0
  %v476 = vadd.f32 %v88, %v475
  %v477 = vpop.f32.mrf.mxu0
  %v478 = vadd.f32 %v88, %v477
  %479 = vmatmul.bf16.gmra.mxu0 %v329
  %v480 = vpop.f32.mrf.mxu0
  %v481 = vadd.f32 %v88, %v480
  %v482 = vpop.f32.mrf.mxu0
  %v483 = vadd.f32 %v88, %v482
  %484 = vmatmul.bf16.gmra.mxu0 %v332
  %v485 = vpop.f32.mrf.mxu0
  %v486 = vadd.f32 %v88, %v485
  %v487 = vpop.f32.mrf.mxu0
  %v488 = vadd.f32 %v88, %v487
  %489 = vmatmul.bf16.gmra.mxu0 %v335
  %v490 = vpop.f32.mrf.mxu0
  %v491 = vadd.f32 %v88, %v490
  %v492 = vpop.f32.mrf.mxu0
  %v493 = vadd.f32 %v88, %v492
  %494 = vdwg.mxu0
  %vm495 = vcmp.ge.f32.partialorder %v351, 0.0
  %vm496 = vcmp.ge.f32.partialorder %v353, 0.0
  %vm497 = vcmp.ge.f32.partialorder %v356, 0.0
  %vm498 = vcmp.ge.f32.partialorder %v358, 0.0
  %vm499 = vcmp.ge.f32.partialorder %v361, 0.0
  %vm500 = vcmp.ge.f32.partialorder %v363, 0.0
  %vm501 = vcmp.ge.f32.partialorder %v366, 0.0
  %vm502 = vcmp.ge.f32.partialorder %v368, 0.0
  %vm503 = vcmp.ge.f32.partialorder %v371, 0.0
  %vm504 = vcmp.ge.f32.partialorder %v373, 0.0
  %vm505 = vcmp.ge.f32.partialorder %v376, 0.0
  %vm506 = vcmp.ge.f32.partialorder %v378, 0.0
  %vm507 = vcmp.ge.f32.partialorder %v381, 0.0
  %vm508 = vcmp.ge.f32.partialorder %v383, 0.0
  %vm509 = vcmp.ge.f32.partialorder %v386, 0.0
  %vm510 = vcmp.ge.f32.partialorder %v388, 0.0
  %vm511 = vcmp.ge.f32.partialorder %v391, 0.0
  %vm512 = vcmp.ge.f32.partialorder %v393, 0.0
  %vm513 = vcmp.ge.f32.partialorder %v396, 0.0
  %vm514 = vcmp.ge.f32.partialorder %v398, 0.0
  %vm515 = vcmp.ge.f32.partialorder %v401, 0.0
  %vm516 = vcmp.ge.f32.partialorder %v403, 0.0
  %vm517 = vcmp.ge.f32.partialorder %v406, 0.0
  %vm518 = vcmp.ge.f32.partialorder %v408, 0.0
  %vm519 = vcmp.ge.f32.partialorder %v411, 0.0
  %vm520 = vcmp.ge.f32.partialorder %v413, 0.0
  %vm521 = vcmp.ge.f32.partialorder %v416, 0.0
  %vm522 = vcmp.ge.f32.partialorder %v418, 0.0
  %vm523 = vcmp.ge.f32.partialorder %v421, 0.0
  %vm524 = vcmp.ge.f32.partialorder %v423, 0.0
  %vm525 = vcmp.ge.f32.partialorder %v426, 0.0
  %vm526 = vcmp.ge.f32.partialorder %v428, 0.0
  %vm527 = vcmp.ge.f32.partialorder %v431, 0.0
  %vm528 = vcmp.ge.f32.partialorder %v433, 0.0
  %vm529 = vcmp.ge.f32.partialorder %v436, 0.0
  %vm530 = vcmp.ge.f32.partialorder %v438, 0.0
  %vm531 = vcmp.ge.f32.partialorder %v441, 0.0
  %vm532 = vcmp.ge.f32.partialorder %v443, 0.0
  %vm533 = vcmp.ge.f32.partialorder %v446, 0.0
  %vm534 = vcmp.ge.f32.partialorder %v448, 0.0
  %vm535 = vcmp.ge.f32.partialorder %v451, 0.0
  %vm536 = vcmp.ge.f32.partialorder %v453, 0.0
  %vm537 = vcmp.ge.f32.partialorder %v456, 0.0
  %vm538 = vcmp.ge.f32.partialorder %v458, 0.0
  %vm539 = vcmp.ge.f32.partialorder %v461, 0.0
  %vm540 = vcmp.ge.f32.partialorder %v463, 0.0
  %vm541 = vcmp.ge.f32.partialorder %v466, 0.0
  %vm542 = vcmp.ge.f32.partialorder %v468, 0.0
  %vm543 = vcmp.ge.f32.partialorder %v471, 0.0
  %vm544 = vcmp.ge.f32.partialorder %v473, 0.0
  %vm545 = vcmp.ge.f32.partialorder %v476, 0.0
  %vm546 = vcmp.ge.f32.partialorder %v478, 0.0
  %vm547 = vcmp.ge.f32.partialorder %v481, 0.0
  %vm548 = vcmp.ge.f32.partialorder %v483, 0.0
  %vm549 = vcmp.ge.f32.partialorder %v486, 0.0
  %vm550 = vcmp.ge.f32.partialorder %v488, 0.0
  %vm551 = vcmp.ge.f32.partialorder %v491, 0.0
  %vm552 = vcmp.ge.f32.partialorder %v493, 0.0
  %v553 = vmul.f32 %v351, 0.2
  %v554 = vmul.f32 %v353, 0.2
  %v555 = vmul.f32 %v356, 0.2
  %v556 = vmul.f32 %v358, 0.2
  %v557 = vmul.f32 %v361, 0.2
  %v558 = vmul.f32 %v363, 0.2
  %v559 = vmul.f32 %v366, 0.2
  %v560 = vmul.f32 %v368, 0.2
  %v561 = vmul.f32 %v371, 0.2
  %v562 = vmul.f32 %v373, 0.2
  %v563 = vmul.f32 %v376, 0.2
  %v564 = vmul.f32 %v378, 0.2
  %v565 = vmul.f32 %v381, 0.2
  %v566 = vmul.f32 %v383, 0.2
  %v567 = vmul.f32 %v386, 0.2
  %v568 = vmul.f32 %v388, 0.2
  %v569 = vmul.f32 %v391, 0.2
  %v570 = vmul.f32 %v393, 0.2
  %v571 = vmul.f32 %v396, 0.2
  %v572 = vmul.f32 %v398, 0.2
  %v573 = vmul.f32 %v401, 0.2
  %v574 = vmul.f32 %v403, 0.2
  %v575 = vmul.f32 %v406, 0.2
  %v576 = vmul.f32 %v408, 0.2
  %v577 = vmul.f32 %v411, 0.2
  %v578 = vmul.f32 %v413, 0.2
  %v579 = vmul.f32 %v416, 0.2
  %v580 = vmul.f32 %v418, 0.2
  %v581 = vmul.f32 %v421, 0.2
  %v582 = vmul.f32 %v423, 0.2
  %v583 = vmul.f32 %v426, 0.2
  %v584 = vmul.f32 %v428, 0.2
  %v585 = vmul.f32 %v431, 0.2
  %v586 = vmul.f32 %v433, 0.2
  %v587 = vmul.f32 %v436, 0.2
  %v588 = vmul.f32 %v438, 0.2
  %v589 = vmul.f32 %v441, 0.2
  %v590 = vmul.f32 %v443, 0.2
  %v591 = vmul.f32 %v446, 0.2
  %v592 = vmul.f32 %v448, 0.2
  %v593 = vmul.f32 %v451, 0.2
  %v594 = vmul.f32 %v453, 0.2
  %v595 = vmul.f32 %v456, 0.2
  %v596 = vmul.f32 %v458, 0.2
  %v597 = vmul.f32 %v461, 0.2
  %v598 = vmul.f32 %v463, 0.2
  %v599 = vmul.f32 %v466, 0.2
  %v600 = vmul.f32 %v468, 0.2
  %v601 = vmul.f32 %v471, 0.2
  %v602 = vmul.f32 %v473, 0.2
  %v603 = vmul.f32 %v476, 0.2
  %v604 = vmul.f32 %v478, 0.2
  %v605 = vmul.f32 %v481, 0.2
  %v606 = vmul.f32 %v483, 0.2
  %v607 = vmul.f32 %v486, 0.2
  %v608 = vmul.f32 %v488, 0.2
  %v609 = vmul.f32 %v491, 0.2
  %v610 = vmul.f32 %v493, 0.2
  %v611 = vsel %vm495, %v351, %v553
  %v612 = vsel %vm496, %v353, %v554
  %v613 = vsel %vm497, %v356, %v555
  %v614 = vsel %vm498, %v358, %v556
  %v615 = vsel %vm499, %v361, %v557
  %v616 = vsel %vm500, %v363, %v558
  %v617 = vsel %vm501, %v366, %v559
  %v618 = vsel %vm502, %v368, %v560
  %v619 = vsel %vm503, %v371, %v561
  %v620 = vsel %vm504, %v373, %v562
  %v621 = vsel %vm505, %v376, %v563
  %v622 = vsel %vm506, %v378, %v564
  %v623 = vsel %vm507, %v381, %v565
  %v624 = vsel %vm508, %v383, %v566
  %v625 = vsel %vm509, %v386, %v567
  %v626 = vsel %vm510, %v388, %v568
  %v627 = vsel %vm511, %v391, %v569
  %v628 = vsel %vm512, %v393, %v570
  %v629 = vsel %vm513, %v396, %v571
  %v630 = vsel %vm514, %v398, %v572
  %v631 = vsel %vm515, %v401, %v573
  %v632 = vsel %vm516, %v403, %v574
  %v633 = vsel %vm517, %v406, %v575
  %v634 = vsel %vm518, %v408, %v576
  %v635 = vsel %vm519, %v411, %v577
  %v636 = vsel %vm520, %v413, %v578
  %v637 = vsel %vm521, %v416, %v579
  %v638 = vsel %vm522, %v418, %v580
  %v639 = vsel %vm523, %v421, %v581
  %v640 = vsel %vm524, %v423, %v582
  %v641 = vsel %vm525, %v426, %v583
  %v642 = vsel %vm526, %v428, %v584
  %v643 = vsel %vm527, %v431, %v585
  %v644 = vsel %vm528, %v433, %v586
  %v645 = vsel %vm529, %v436, %v587
  %v646 = vsel %vm530, %v438, %v588
  %v647 = vsel %vm531, %v441, %v589
  %v648 = vsel %vm532, %v443, %v590
  %v649 = vsel %vm533, %v446, %v591
  %v650 = vsel %vm534, %v448, %v592
  %v651 = vsel %vm535, %v451, %v593
  %v652 = vsel %vm536, %v453, %v594
  %v653 = vsel %vm537, %v456, %v595
  %v654 = vsel %vm538, %v458, %v596
  %v655 = vsel %vm539, %v461, %v597
  %v656 = vsel %vm540, %v463, %v598
  %v657 = vsel %vm541, %v466, %v599
  %v658 = vsel %vm542, %v468, %v600
  %v659 = vsel %vm543, %v471, %v601
  %v660 = vsel %vm544, %v473, %v602
  %v661 = vsel %vm545, %v476, %v603
  %v662 = vsel %vm546, %v478, %v604
  %v663 = vsel %vm547, %v481, %v605
  %v664 = vsel %vm548, %v483, %v606
  %v665 = vsel %vm549, %v486, %v607
  %v666 = vsel %vm550, %v488, %v608
  %v667 = vsel %vm551, %v491, %v609
  %v668 = vsel %vm552, %v493, %v610
  %v669 = vpack.c.bf16 %v611, %v611
  %v670 = vpack.c.bf16 %v612, %v612
  %v671 = vpack.c.bf16 %v613, %v613
  %v672 = vpack.c.bf16 %v614, %v614
  %v673 = vpack.c.bf16 %v615, %v615
  %v674 = vpack.c.bf16 %v616, %v616
  %v675 = vpack.c.bf16 %v617, %v617
  %v676 = vpack.c.bf16 %v618, %v618
  %v677 = vpack.c.bf16 %v619, %v619
  %v678 = vpack.c.bf16 %v620, %v620
  %v679 = vpack.c.bf16 %v621, %v621
  %v680 = vpack.c.bf16 %v622, %v622
  %v681 = vpack.c.bf16 %v623, %v623
  %v682 = vpack.c.bf16 %v624, %v624
  %v683 = vpack.c.bf16 %v625, %v625
  %v684 = vpack.c.bf16 %v626, %v626
  %v685 = vpack.c.bf16 %v627, %v627
  %v686 = vpack.c.bf16 %v628, %v628
  %v687 = vpack.c.bf16 %v629, %v629
  %v688 = vpack.c.bf16 %v630, %v630
  %v689 = vpack.c.bf16 %v631, %v631
  %v690 = vpack.c.bf16 %v632, %v632
  %v691 = vpack.c.bf16 %v633, %v633
  %v692 = vpack.c.bf16 %v634, %v634
  %v693 = vpack.c.bf16 %v635, %v635
  %v694 = vpack.c.bf16 %v636, %v636
  %v695 = vpack.c.bf16 %v637, %v637
  %v696 = vpack.c.bf16 %v638, %v638
  %v697 = vpack.c.bf16 %v639, %v639
  %v698 = vpack.c.bf16 %v640, %v640
  %v699 = vpack.c.bf16 %v641, %v641
  %v700 = vpack.c.bf16 %v642, %v642
  %v701 = vpack.c.bf16 %v643, %v643
  %v702 = vpack.c.bf16 %v644, %v644
  %v703 = vpack.c.bf16 %v645, %v645
  %v704 = vpack.c.bf16 %v646, %v646
  %v705 = vpack.c.bf16 %v647, %v647
  %v706 = vpack.c.bf16 %v648, %v648
  %v707 = vpack.c.bf16 %v649, %v649
  %v708 = vpack.c.bf16 %v650, %v650
  %v709 = vpack.c.bf16 %v651, %v651
  %v710 = vpack.c.bf16 %v652, %v652
  %v711 = vpack.c.bf16 %v653, %v653
  %v712 = vpack.c.bf16 %v654, %v654
  %v713 = vpack.c.bf16 %v655, %v655
  %v714 = vpack.c.bf16 %v656, %v656
  %v715 = vpack.c.bf16 %v657, %v657
  %v716 = vpack.c.bf16 %v658, %v658
  %v717 = vpack.c.bf16 %v659, %v659
  %v718 = vpack.c.bf16 %v660, %v660
  %v719 = vpack.c.bf16 %v661, %v661
  %v720 = vpack.c.bf16 %v662, %v662
  %v721 = vpack.c.bf16 %v663, %v663
  %v722 = vpack.c.bf16 %v664, %v664
  %v723 = vpack.c.bf16 %v665, %v665
  %v724 = vpack.c.bf16 %v666, %v666
  %v725 = vpack.c.bf16 %v667, %v667
  %v726 = vpack.c.bf16 %v668, %v668
  %v785 = vunpack.c.l.b16 %v669
  %v786 = vunpack.c.l.b16 %v670
  %v787 = vunpack.c.l.b16 %v671
  %v788 = vunpack.c.l.b16 %v672
  %v789 = vunpack.c.l.b16 %v673
  %v790 = vunpack.c.l.b16 %v674
  %v791 = vunpack.c.l.b16 %v675
  %v792 = vunpack.c.l.b16 %v676
  %v793 = vunpack.c.l.b16 %v677
  %v794 = vunpack.c.l.b16 %v678
  %v795 = vunpack.c.l.b16 %v679
  %v796 = vunpack.c.l.b16 %v680
  %v797 = vunpack.c.l.b16 %v681
  %v798 = vunpack.c.l.b16 %v682
  %v799 = vunpack.c.l.b16 %v683
  %v800 = vunpack.c.l.b16 %v684
  %v801 = vunpack.c.l.b16 %v685
  %v802 = vunpack.c.l.b16 %v686
  %v803 = vunpack.c.l.b16 %v687
  %v804 = vunpack.c.l.b16 %v688
  %v805 = vunpack.c.l.b16 %v689
  %v806 = vunpack.c.l.b16 %v690
  %v807 = vunpack.c.l.b16 %v691
  %v808 = vunpack.c.l.b16 %v692
  %v809 = vunpack.c.l.b16 %v693
  %v810 = vunpack.c.l.b16 %v694
  %v811 = vunpack.c.l.b16 %v695
  %v812 = vunpack.c.l.b16 %v696
  %v813 = vunpack.c.l.b16 %v697
  %v814 = vunpack.c.l.b16 %v698
  %v815 = vunpack.c.l.b16 %v699
  %v816 = vunpack.c.l.b16 %v700
  %v817 = vunpack.c.l.b16 %v701
  %v818 = vunpack.c.l.b16 %v702
  %v819 = vunpack.c.l.b16 %v703
  %v820 = vunpack.c.l.b16 %v704
  %v821 = vunpack.c.l.b16 %v705
  %v822 = vunpack.c.l.b16 %v706
  %v823 = vunpack.c.l.b16 %v707
  %v824 = vunpack.c.l.b16 %v708
  %v825 = vunpack.c.l.b16 %v709
  %v826 = vunpack.c.l.b16 %v710
  %v827 = vunpack.c.l.b16 %v711
  %v828 = vunpack.c.l.b16 %v712
  %v829 = vunpack.c.l.b16 %v713
  %v830 = vunpack.c.l.b16 %v714
  %v831 = vunpack.c.l.b16 %v715
  %v832 = vunpack.c.l.b16 %v716
  %v833 = vunpack.c.l.b16 %v717
  %v834 = vunpack.c.l.b16 %v718
  %v835 = vunpack.c.l.b16 %v719
  %v836 = vunpack.c.l.b16 %v720
  %v837 = vunpack.c.l.b16 %v721
  %v838 = vunpack.c.l.b16 %v722
  %v839 = vunpack.c.l.b16 %v723
  %v840 = vunpack.c.l.b16 %v724
  %v841 = vunpack.c.l.b16 %v725
  %v842 = vunpack.c.l.b16 %v726
  %v843 = vpack.c.b16 %v786, %v785
  %v844 = vpack.c.b16 %v788, %v787
  %v845 = vpack.c.b16 %v790, %v789
  %v846 = vpack.c.b16 %v792, %v791
  %v847 = vpack.c.b16 %v794, %v793
  %v848 = vpack.c.b16 %v796, %v795
  %v849 = vpack.c.b16 %v798, %v797
  %v850 = vpack.c.b16 %v800, %v799
  %v851 = vpack.c.b16 %v802, %v801
  %v852 = vpack.c.b16 %v804, %v803
  %v853 = vpack.c.b16 %v806, %v805
  %v854 = vpack.c.b16 %v808, %v807
  %v855 = vpack.c.b16 %v810, %v809
  %v856 = vpack.c.b16 %v812, %v811
  %v857 = vpack.c.b16 %v814, %v813
  %v858 = vpack.c.b16 %v816, %v815
  %v859 = vpack.c.b16 %v818, %v817
  %v860 = vpack.c.b16 %v820, %v819
  %v861 = vpack.c.b16 %v822, %v821
  %v862 = vpack.c.b16 %v824, %v823
  %v863 = vpack.c.b16 %v826, %v825
  %v864 = vpack.c.b16 %v828, %v827
  %v865 = vpack.c.b16 %v830, %v829
  %v866 = vpack.c.b16 %v832, %v831
  %v867 = vpack.c.b16 %v834, %v833
  %v868 = vpack.c.b16 %v836, %v835
  %v869 = vpack.c.b16 %v838, %v837
  %v870 = vpack.c.b16 %v840, %v839
  %v871 = vpack.c.b16 %v842, %v841
  %vm872 = vsmask.f32 7424
  %v874 = vshrl.u32 %v843, 16
  %v876 = vshll.u32 %v843, 16
  %v878 = vrot.slane %v876, 1
  %v879 = vor.u32 %v874, %v878
  %v881 = vshll.u32 %v844, 16
  %v883 = vrot.slane %v881, 1
  %v884 = vsel %vm872, %v879, %v883
  %v885 = vshrl.u32 %v844, 16
  %v887 = vor.u32 %v885, %v883
  %v889 = vshll.u32 %v845, 16
  %v891 = vrot.slane %v889, 1
  %v892 = vsel %vm872, %v887, %v891
  %v893 = vshrl.u32 %v845, 16
  %v895 = vor.u32 %v893, %v891
  %v897 = vshll.u32 %v846, 16
  %v899 = vrot.slane %v897, 1
  %v900 = vsel %vm872, %v895, %v899
  %v901 = vshrl.u32 %v846, 16
  %v903 = vor.u32 %v901, %v899
  %v905 = vshll.u32 %v847, 16
  %v907 = vrot.slane %v905, 1
  %v908 = vsel %vm872, %v903, %v907
  %v909 = vshrl.u32 %v847, 16
  %v911 = vor.u32 %v909, %v907
  %v913 = vshll.u32 %v848, 16
  %v915 = vrot.slane %v913, 1
  %v916 = vsel %vm872, %v911, %v915
  %v917 = vshrl.u32 %v848, 16
  %v919 = vor.u32 %v917, %v915
  %v921 = vshll.u32 %v849, 16
  %v923 = vrot.slane %v921, 1
  %v924 = vsel %vm872, %v919, %v923
  %v925 = vshrl.u32 %v849, 16
  %v927 = vor.u32 %v925, %v923
  %v929 = vshll.u32 %v850, 16
  %v931 = vrot.slane %v929, 1
  %v932 = vsel %vm872, %v927, %v931
  %v933 = vshrl.u32 %v850, 16
  %v935 = vor.u32 %v933, %v931
  %v937 = vshll.u32 %v851, 16
  %v939 = vrot.slane %v937, 1
  %v940 = vsel %vm872, %v935, %v939
  %v941 = vshrl.u32 %v851, 16
  %v943 = vor.u32 %v941, %v939
  %v945 = vshll.u32 %v852, 16
  %v947 = vrot.slane %v945, 1
  %v948 = vsel %vm872, %v943, %v947
  %v949 = vshrl.u32 %v852, 16
  %v951 = vor.u32 %v949, %v947
  %v953 = vshll.u32 %v853, 16
  %v955 = vrot.slane %v953, 1
  %v956 = vsel %vm872, %v951, %v955
  %v957 = vshrl.u32 %v853, 16
  %v959 = vor.u32 %v957, %v955
  %v961 = vshll.u32 %v854, 16
  %v963 = vrot.slane %v961, 1
  %v964 = vsel %vm872, %v959, %v963
  %v965 = vshrl.u32 %v854, 16
  %v967 = vor.u32 %v965, %v963
  %v969 = vshll.u32 %v855, 16
  %v971 = vrot.slane %v969, 1
  %v972 = vsel %vm872, %v967, %v971
  %v973 = vshrl.u32 %v855, 16
  %v975 = vor.u32 %v973, %v971
  %v977 = vshll.u32 %v856, 16
  %v979 = vrot.slane %v977, 1
  %v980 = vsel %vm872, %v975, %v979
  %v981 = vshrl.u32 %v856, 16
  %v983 = vor.u32 %v981, %v979
  %v985 = vshll.u32 %v857, 16
  %v987 = vrot.slane %v985, 1
  %v988 = vsel %vm872, %v983, %v987
  %v989 = vshrl.u32 %v857, 16
  %v991 = vor.u32 %v989, %v987
  %v993 = vshll.u32 %v858, 16
  %v995 = vrot.slane %v993, 1
  %v996 = vsel %vm872, %v991, %v995
  %v997 = vshrl.u32 %v858, 16
  %v999 = vor.u32 %v997, %v995
  %v1001 = vshll.u32 %v859, 16
  %v1003 = vrot.slane %v1001, 1
  %v1004 = vsel %vm872, %v999, %v1003
  %v1005 = vshrl.u32 %v859, 16
  %v1007 = vor.u32 %v1005, %v1003
  %v1009 = vshll.u32 %v860, 16
  %v1011 = vrot.slane %v1009, 1
  %v1012 = vsel %vm872, %v1007, %v1011
  %v1013 = vshrl.u32 %v860, 16
  %v1015 = vor.u32 %v1013, %v1011
  %v1017 = vshll.u32 %v861, 16
  %v1019 = vrot.slane %v1017, 1
  %v1020 = vsel %vm872, %v1015, %v1019
  %v1021 = vshrl.u32 %v861, 16
  %v1023 = vor.u32 %v1021, %v1019
  %v1025 = vshll.u32 %v862, 16
  %v1027 = vrot.slane %v1025, 1
  %v1028 = vsel %vm872, %v1023, %v1027
  %v1029 = vshrl.u32 %v862, 16
  %v1031 = vor.u32 %v1029, %v1027
  %v1033 = vshll.u32 %v863, 16
  %v1035 = vrot.slane %v1033, 1
  %v1036 = vsel %vm872, %v1031, %v1035
  %v1037 = vshrl.u32 %v863, 16
  %v1039 = vor.u32 %v1037, %v1035
  %v1041 = vshll.u32 %v864, 16
  %v1043 = vrot.slane %v1041, 1
  %v1044 = vsel %vm872, %v1039, %v1043
  %v1045 = vshrl.u32 %v864, 16
  %v1047 = vor.u32 %v1045, %v1043
  %v1049 = vshll.u32 %v865, 16
  %v1051 = vrot.slane %v1049, 1
  %v1052 = vsel %vm872, %v1047, %v1051
  %v1053 = vshrl.u32 %v865, 16
  %v1055 = vor.u32 %v1053, %v1051
  %v1057 = vshll.u32 %v866, 16
  %v1059 = vrot.slane %v1057, 1
  %v1060 = vsel %vm872, %v1055, %v1059
  %v1061 = vshrl.u32 %v866, 16
  %v1063 = vor.u32 %v1061, %v1059
  %v1065 = vshll.u32 %v867, 16
  %v1067 = vrot.slane %v1065, 1
  %v1068 = vsel %vm872, %v1063, %v1067
  %v1069 = vshrl.u32 %v867, 16
  %v1071 = vor.u32 %v1069, %v1067
  %v1073 = vshll.u32 %v868, 16
  %v1075 = vrot.slane %v1073, 1
  %v1076 = vsel %vm872, %v1071, %v1075
  %v1077 = vshrl.u32 %v868, 16
  %v1079 = vor.u32 %v1077, %v1075
  %v1081 = vshll.u32 %v869, 16
  %v1083 = vrot.slane %v1081, 1
  %v1084 = vsel %vm872, %v1079, %v1083
  %v1085 = vshrl.u32 %v869, 16
  %v1087 = vor.u32 %v1085, %v1083
  %v1089 = vshll.u32 %v870, 16
  %v1091 = vrot.slane %v1089, 1
  %v1092 = vsel %vm872, %v1087, %v1091
  %v1093 = vshrl.u32 %v870, 16
  %v1095 = vor.u32 %v1093, %v1091
  %v1097 = vshll.u32 %v871, 16
  %v1099 = vrot.slane %v1097, 1
  %v1100 = vsel %vm872, %v1095, %v1099
  %v1101 = vshrl.u32 %v871, 16
  %v1103 = vor.u32 %v1101, %v1099
  %1104 = vrot.lane.b32.xlu0 %v884, 32
  %v1105 = vpop.permute.xlu0 %1104
  %1106 = vrot.lane.b32.xlu0 %v892, 32
  %v1107 = vpop.permute.xlu0 %1106
  %1108 = vrot.lane.b32.xlu0 %v900, 32
  %v1109 = vpop.permute.xlu0 %1108
  %1110 = vrot.lane.b32.xlu0 %v908, 32
  %v1111 = vpop.permute.xlu0 %1110
  %1112 = vrot.lane.b32.xlu0 %v916, 32
  %v1113 = vpop.permute.xlu0 %1112
  %1114 = vrot.lane.b32.xlu0 %v924, 32
  %v1115 = vpop.permute.xlu0 %1114
  %1116 = vrot.lane.b32.xlu0 %v932, 32
  %v1117 = vpop.permute.xlu0 %1116
  %1118 = vrot.lane.b32.xlu0 %v940, 32
  %v1119 = vpop.permute.xlu0 %1118
  %1120 = vrot.lane.b32.xlu0 %v948, 32
  %v1121 = vpop.permute.xlu0 %1120
  %1122 = vrot.lane.b32.xlu0 %v956, 32
  %v1123 = vpop.permute.xlu0 %1122
  %1124 = vrot.lane.b32.xlu0 %v964, 32
  %v1125 = vpop.permute.xlu0 %1124
  %1126 = vrot.lane.b32.xlu0 %v972, 32
  %v1127 = vpop.permute.xlu0 %1126
  %1128 = vrot.lane.b32.xlu0 %v980, 32
  %v1129 = vpop.permute.xlu0 %1128
  %1130 = vrot.lane.b32.xlu0 %v988, 32
  %v1131 = vpop.permute.xlu0 %1130
  %1132 = vrot.lane.b32.xlu0 %v996, 32
  %v1133 = vpop.permute.xlu0 %1132
  %1134 = vrot.lane.b32.xlu0 %v1004, 32
  %v1135 = vpop.permute.xlu0 %1134
  %1136 = vrot.lane.b32.xlu0 %v1012, 32
  %v1137 = vpop.permute.xlu0 %1136
  %1138 = vrot.lane.b32.xlu0 %v1020, 32
  %v1139 = vpop.permute.xlu0 %1138
  %1140 = vrot.lane.b32.xlu0 %v1028, 32
  %v1141 = vpop.permute.xlu0 %1140
  %1142 = vrot.lane.b32.xlu0 %v1036, 32
  %v1143 = vpop.permute.xlu0 %1142
  %1144 = vrot.lane.b32.xlu0 %v1044, 32
  %v1145 = vpop.permute.xlu0 %1144
  %1146 = vrot.lane.b32.xlu0 %v1052, 32
  %v1147 = vpop.permute.xlu0 %1146
  %1148 = vrot.lane.b32.xlu0 %v1060, 32
  %v1149 = vpop.permute.xlu0 %1148
  %1150 = vrot.lane.b32.xlu0 %v1068, 32
  %v1151 = vpop.permute.xlu0 %1150
  %1152 = vrot.lane.b32.xlu0 %v1076, 32
  %v1153 = vpop.permute.xlu0 %1152
  %1154 = vrot.lane.b32.xlu0 %v1084, 32
  %v1155 = vpop.permute.xlu0 %1154
  %1156 = vrot.lane.b32.xlu0 %v1092, 32
  %v1157 = vpop.permute.xlu0 %1156
  %1158 = vrot.lane.b32.xlu0 %v1100, 32
  %v1159 = vpop.permute.xlu0 %1158
  %1160 = vrot.lane.b32.xlu0 %v1103, 32
  %v1161 = vpop.permute.xlu0 %1160
  %vm1162 = vcmask 1046528
  %v1163 = vrot.slane %v843, 1
  %v1164 = vrot.slane %v844, 1
  %v1165 = vsel %vm1162, %v1163, %v1164
  %v1166 = vrot.slane %v845, 1
  %v1167 = vsel %vm1162, %v1164, %v1166
  %v1168 = vrot.slane %v846, 1
  %v1169 = vsel %vm1162, %v1166, %v1168
  %v1170 = vrot.slane %v847, 1
  %v1171 = vsel %vm1162, %v1168, %v1170
  %v1172 = vrot.slane %v848, 1
  %v1173 = vsel %vm1162, %v1170, %v1172
  %v1174 = vrot.slane %v849, 1
  %v1175 = vsel %vm1162, %v1172, %v1174
  %v1176 = vrot.slane %v850, 1
  %v1177 = vsel %vm1162, %v1174, %v1176
  %v1178 = vrot.slane %v851, 1
  %v1179 = vsel %vm1162, %v1176, %v1178
  %v1180 = vrot.slane %v852, 1
  %v1181 = vsel %vm1162, %v1178, %v1180
  %v1182 = vrot.slane %v853, 1
  %v1183 = vsel %vm1162, %v1180, %v1182
  %v1184 = vrot.slane %v854, 1
  %v1185 = vsel %vm1162, %v1182, %v1184
  %v1186 = vrot.slane %v855, 1
  %v1187 = vsel %vm1162, %v1184, %v1186
  %v1188 = vrot.slane %v856, 1
  %v1189 = vsel %vm1162, %v1186, %v1188
  %v1190 = vrot.slane %v857, 1
  %v1191 = vsel %vm1162, %v1188, %v1190
  %v1192 = vrot.slane %v858, 1
  %v1193 = vsel %vm1162, %v1190, %v1192
  %v1194 = vrot.slane %v859, 1
  %v1195 = vsel %vm1162, %v1192, %v1194
  %v1196 = vrot.slane %v860, 1
  %v1197 = vsel %vm1162, %v1194, %v1196
  %v1198 = vrot.slane %v861, 1
  %v1199 = vsel %vm1162, %v1196, %v1198
  %v1200 = vrot.slane %v862, 1
  %v1201 = vsel %vm1162, %v1198, %v1200
  %v1202 = vrot.slane %v863, 1
  %v1203 = vsel %vm1162, %v1200, %v1202
  %v1204 = vrot.slane %v864, 1
  %v1205 = vsel %vm1162, %v1202, %v1204
  %v1206 = vrot.slane %v865, 1
  %v1207 = vsel %vm1162, %v1204, %v1206
  %v1208 = vrot.slane %v866, 1
  %v1209 = vsel %vm1162, %v1206, %v1208
  %v1210 = vrot.slane %v867, 1
  %v1211 = vsel %vm1162, %v1208, %v1210
  %v1212 = vrot.slane %v868, 1
  %v1213 = vsel %vm1162, %v1210, %v1212
  %v1214 = vrot.slane %v869, 1
  %v1215 = vsel %vm1162, %v1212, %v1214
  %v1216 = vrot.slane %v870, 1
  %v1217 = vsel %vm1162, %v1214, %v1216
  %v1218 = vrot.slane %v871, 1
  %v1219 = vsel %vm1162, %v1216, %v1218
  %1220 = vrot.lane.b32.xlu0 %v1165, 64
  %v1221 = vpop.permute.xlu0 %1220
  %1222 = vrot.lane.b32.xlu0 %v1167, 64
  %v1223 = vpop.permute.xlu0 %1222
  %1224 = vrot.lane.b32.xlu0 %v1169, 64
  %v1225 = vpop.permute.xlu0 %1224
  %1226 = vrot.lane.b32.xlu0 %v1171, 64
  %v1227 = vpop.permute.xlu0 %1226
  %1228 = vrot.lane.b32.xlu0 %v1173, 64
  %v1229 = vpop.permute.xlu0 %1228
  %1230 = vrot.lane.b32.xlu0 %v1175, 64
  %v1231 = vpop.permute.xlu0 %1230
  %1232 = vrot.lane.b32.xlu0 %v1177, 64
  %v1233 = vpop.permute.xlu0 %1232
  %1234 = vrot.lane.b32.xlu0 %v1179, 64
  %v1235 = vpop.permute.xlu0 %1234
  %1236 = vrot.lane.b32.xlu0 %v1181, 64
  %v1237 = vpop.permute.xlu0 %1236
  %1238 = vrot.lane.b32.xlu0 %v1183, 64
  %v1239 = vpop.permute.xlu0 %1238
  %1240 = vrot.lane.b32.xlu0 %v1185, 64
  %v1241 = vpop.permute.xlu0 %1240
  %1242 = vrot.lane.b32.xlu0 %v1187, 64
  %v1243 = vpop.permute.xlu0 %1242
  %1244 = vrot.lane.b32.xlu0 %v1189, 64
  %v1245 = vpop.permute.xlu0 %1244
  %1246 = vrot.lane.b32.xlu0 %v1191, 64
  %v1247 = vpop.permute.xlu0 %1246
  %1248 = vrot.lane.b32.xlu0 %v1193, 64
  %v1249 = vpop.permute.xlu0 %1248
  %1250 = vrot.lane.b32.xlu0 %v1195, 64
  %v1251 = vpop.permute.xlu0 %1250
  %1252 = vrot.lane.b32.xlu0 %v1197, 64
  %v1253 = vpop.permute.xlu0 %1252
  %1254 = vrot.lane.b32.xlu0 %v1199, 64
  %v1255 = vpop.permute.xlu0 %1254
  %1256 = vrot.lane.b32.xlu0 %v1201, 64
  %v1257 = vpop.permute.xlu0 %1256
  %1258 = vrot.lane.b32.xlu0 %v1203, 64
  %v1259 = vpop.permute.xlu0 %1258
  %1260 = vrot.lane.b32.xlu0 %v1205, 64
  %v1261 = vpop.permute.xlu0 %1260
  %1262 = vrot.lane.b32.xlu0 %v1207, 64
  %v1263 = vpop.permute.xlu0 %1262
  %1264 = vrot.lane.b32.xlu0 %v1209, 64
  %v1265 = vpop.permute.xlu0 %1264
  %1266 = vrot.lane.b32.xlu0 %v1211, 64
  %v1267 = vpop.permute.xlu0 %1266
  %1268 = vrot.lane.b32.xlu0 %v1213, 64
  %v1269 = vpop.permute.xlu0 %1268
  %1270 = vrot.lane.b32.xlu0 %v1215, 64
  %v1271 = vpop.permute.xlu0 %1270
  %1272 = vrot.lane.b32.xlu0 %v1217, 64
  %v1273 = vpop.permute.xlu0 %1272
  %1274 = vrot.lane.b32.xlu0 %v1219, 64
  %v1275 = vpop.permute.xlu0 %1274
  %1276 = vrot.lane.b32.xlu0 %v1218, 64
  %v1277 = vpop.permute.xlu0 %1276
  %vm1278 = vcmask 261120
  %v1280 = vsel %vm1278, %v843, %v1105
  %v1282 = vsel %vm1278, %v844, %v1107
  %v1284 = vsel %vm1278, %v845, %v1109
  %v1286 = vsel %vm1278, %v846, %v1111
  %v1288 = vsel %vm1278, %v847, %v1113
  %v1290 = vsel %vm1278, %v848, %v1115
  %v1292 = vsel %vm1278, %v849, %v1117
  %v1294 = vsel %vm1278, %v850, %v1119
  %v1296 = vsel %vm1278, %v851, %v1121
  %v1298 = vsel %vm1278, %v852, %v1123
  %v1300 = vsel %vm1278, %v853, %v1125
  %v1302 = vsel %vm1278, %v854, %v1127
  %v1304 = vsel %vm1278, %v855, %v1129
  %v1306 = vsel %vm1278, %v856, %v1131
  %v1308 = vsel %vm1278, %v857, %v1133
  %v1310 = vsel %vm1278, %v858, %v1135
  %v1312 = vsel %vm1278, %v859, %v1137
  %v1314 = vsel %vm1278, %v860, %v1139
  %v1316 = vsel %vm1278, %v861, %v1141
  %v1318 = vsel %vm1278, %v862, %v1143
  %v1320 = vsel %vm1278, %v863, %v1145
  %v1322 = vsel %vm1278, %v864, %v1147
  %v1324 = vsel %vm1278, %v865, %v1149
  %v1326 = vsel %vm1278, %v866, %v1151
  %v1328 = vsel %vm1278, %v867, %v1153
  %v1330 = vsel %vm1278, %v868, %v1155
  %v1332 = vsel %vm1278, %v869, %v1157
  %v1334 = vsel %vm1278, %v870, %v1159
  %v1336 = vsel %vm1278, %v871, %v1161
  %vm1337 = vcmask 523264
  %v1339 = vsel %vm1337, %v1280, %v1221
  %v1341 = vsel %vm1337, %v1282, %v1223
  %v1343 = vsel %vm1337, %v1284, %v1225
  %v1345 = vsel %vm1337, %v1286, %v1227
  %v1347 = vsel %vm1337, %v1288, %v1229
  %v1349 = vsel %vm1337, %v1290, %v1231
  %v1351 = vsel %vm1337, %v1292, %v1233
  %v1353 = vsel %vm1337, %v1294, %v1235
  %v1355 = vsel %vm1337, %v1296, %v1237
  %v1357 = vsel %vm1337, %v1298, %v1239
  %v1359 = vsel %vm1337, %v1300, %v1241
  %v1361 = vsel %vm1337, %v1302, %v1243
  %v1363 = vsel %vm1337, %v1304, %v1245
  %v1365 = vsel %vm1337, %v1306, %v1247
  %v1367 = vsel %vm1337, %v1308, %v1249
  %v1369 = vsel %vm1337, %v1310, %v1251
  %v1371 = vsel %vm1337, %v1312, %v1253
  %v1373 = vsel %vm1337, %v1314, %v1255
  %v1375 = vsel %vm1337, %v1316, %v1257
  %v1377 = vsel %vm1337, %v1318, %v1259
  %v1379 = vsel %vm1337, %v1320, %v1261
  %v1381 = vsel %vm1337, %v1322, %v1263
  %v1383 = vsel %vm1337, %v1324, %v1265
  %v1385 = vsel %vm1337, %v1326, %v1267
  %v1387 = vsel %vm1337, %v1328, %v1269
  %v1389 = vsel %vm1337, %v1330, %v1271
  %v1391 = vsel %vm1337, %v1332, %v1273
  %v1393 = vsel %vm1337, %v1334, %v1275
  %v1395 = vsel %vm1337, %v1336, %v1277
  %v1425 = vunpack.c.l.b16 %v1339
  %v1426 = vunpack.c.h.b16 %v1339
  %v1427 = vunpack.c.l.b16 %v1341
  %v1428 = vunpack.c.h.b16 %v1341
  %v1429 = vunpack.c.l.b16 %v1343
  %v1430 = vunpack.c.h.b16 %v1343
  %v1431 = vunpack.c.l.b16 %v1345
  %v1432 = vunpack.c.h.b16 %v1345
  %v1433 = vunpack.c.l.b16 %v1347
  %v1434 = vunpack.c.h.b16 %v1347
  %v1435 = vunpack.c.l.b16 %v1349
  %v1436 = vunpack.c.h.b16 %v1349
  %v1437 = vunpack.c.l.b16 %v1351
  %v1438 = vunpack.c.h.b16 %v1351
  %v1439 = vunpack.c.l.b16 %v1353
  %v1440 = vunpack.c.h.b16 %v1353
  %v1441 = vunpack.c.l.b16 %v1355
  %v1442 = vunpack.c.h.b16 %v1355
  %v1443 = vunpack.c.l.b16 %v1357
  %v1444 = vunpack.c.h.b16 %v1357
  %v1445 = vunpack.c.l.b16 %v1359
  %v1446 = vunpack.c.h.b16 %v1359
  %v1447 = vunpack.c.l.b16 %v1361
  %v1448 = vunpack.c.h.b16 %v1361
  %v1449 = vunpack.c.l.b16 %v1363
  %v1450 = vunpack.c.h.b16 %v1363
  %v1451 = vunpack.c.l.b16 %v1365
  %v1452 = vunpack.c.h.b16 %v1365
  %v1453 = vunpack.c.l.b16 %v1367
  %v1454 = vunpack.c.h.b16 %v1367
  %v1455 = vunpack.c.l.b16 %v1369
  %v1456 = vunpack.c.h.b16 %v1369
  %v1457 = vunpack.c.l.b16 %v1371
  %v1458 = vunpack.c.h.b16 %v1371
  %v1459 = vunpack.c.l.b16 %v1373
  %v1460 = vunpack.c.h.b16 %v1373
  %v1461 = vunpack.c.l.b16 %v1375
  %v1462 = vunpack.c.h.b16 %v1375
  %v1463 = vunpack.c.l.b16 %v1377
  %v1464 = vunpack.c.h.b16 %v1377
  %v1465 = vunpack.c.l.b16 %v1379
  %v1466 = vunpack.c.h.b16 %v1379
  %v1467 = vunpack.c.l.b16 %v1381
  %v1468 = vunpack.c.h.b16 %v1381
  %v1469 = vunpack.c.l.b16 %v1383
  %v1470 = vunpack.c.h.b16 %v1383
  %v1471 = vunpack.c.l.b16 %v1385
  %v1472 = vunpack.c.h.b16 %v1385
  %v1473 = vunpack.c.l.b16 %v1387
  %v1474 = vunpack.c.h.b16 %v1387
  %v1475 = vunpack.c.l.b16 %v1389
  %v1476 = vunpack.c.h.b16 %v1389
  %v1477 = vunpack.c.l.b16 %v1391
  %v1478 = vunpack.c.h.b16 %v1391
  %v1479 = vunpack.c.l.b16 %v1393
  %v1480 = vunpack.c.h.b16 %v1393
  %v1481 = vunpack.c.l.b16 %v1395
  %v1482 = vunpack.c.h.b16 %v1395
  %v1483 = vpack.c.b16 %v1425, %v1425
  %v1484 = vpack.c.b16 %v1426, %v1426
  %v1485 = vpack.c.b16 %v1427, %v1427
  %v1486 = vpack.c.b16 %v1428, %v1428
  %v1487 = vpack.c.b16 %v1429, %v1429
  %v1488 = vpack.c.b16 %v1430, %v1430
  %v1489 = vpack.c.b16 %v1431, %v1431
  %v1490 = vpack.c.b16 %v1432, %v1432
  %v1491 = vpack.c.b16 %v1433, %v1433
  %v1492 = vpack.c.b16 %v1434, %v1434
  %v1493 = vpack.c.b16 %v1435, %v1435
  %v1494 = vpack.c.b16 %v1436, %v1436
  %v1495 = vpack.c.b16 %v1437, %v1437
  %v1496 = vpack.c.b16 %v1438, %v1438
  %v1497 = vpack.c.b16 %v1439, %v1439
  %v1498 = vpack.c.b16 %v1440, %v1440
  %v1499 = vpack.c.b16 %v1441, %v1441
  %v1500 = vpack.c.b16 %v1442, %v1442
  %v1501 = vpack.c.b16 %v1443, %v1443
  %v1502 = vpack.c.b16 %v1444, %v1444
  %v1503 = vpack.c.b16 %v1445, %v1445
  %v1504 = vpack.c.b16 %v1446, %v1446
  %v1505 = vpack.c.b16 %v1447, %v1447
  %v1506 = vpack.c.b16 %v1448, %v1448
  %v1507 = vpack.c.b16 %v1449, %v1449
  %v1508 = vpack.c.b16 %v1450, %v1450
  %v1509 = vpack.c.b16 %v1451, %v1451
  %v1510 = vpack.c.b16 %v1452, %v1452
  %v1511 = vpack.c.b16 %v1453, %v1453
  %v1512 = vpack.c.b16 %v1454, %v1454
  %v1513 = vpack.c.b16 %v1455, %v1455
  %v1514 = vpack.c.b16 %v1456, %v1456
  %v1515 = vpack.c.b16 %v1457, %v1457
  %v1516 = vpack.c.b16 %v1458, %v1458
  %v1517 = vpack.c.b16 %v1459, %v1459
  %v1518 = vpack.c.b16 %v1460, %v1460
  %v1519 = vpack.c.b16 %v1461, %v1461
  %v1520 = vpack.c.b16 %v1462, %v1462
  %v1521 = vpack.c.b16 %v1463, %v1463
  %v1522 = vpack.c.b16 %v1464, %v1464
  %v1523 = vpack.c.b16 %v1465, %v1465
  %v1524 = vpack.c.b16 %v1466, %v1466
  %v1525 = vpack.c.b16 %v1467, %v1467
  %v1526 = vpack.c.b16 %v1468, %v1468
  %v1527 = vpack.c.b16 %v1469, %v1469
  %v1528 = vpack.c.b16 %v1470, %v1470
  %v1529 = vpack.c.b16 %v1471, %v1471
  %v1530 = vpack.c.b16 %v1472, %v1472
  %v1531 = vpack.c.b16 %v1473, %v1473
  %v1532 = vpack.c.b16 %v1474, %v1474
  %v1533 = vpack.c.b16 %v1475, %v1475
  %v1534 = vpack.c.b16 %v1476, %v1476
  %v1535 = vpack.c.b16 %v1477, %v1477
  %v1536 = vpack.c.b16 %v1478, %v1478
  %v1537 = vpack.c.b16 %v1479, %v1479
  %v1538 = vpack.c.b16 %v1480, %v1480
  %v1539 = vpack.c.b16 %v1481, %v1481
  %v1540 = vpack.c.b16 %v1482, %v1482
  %vm1599 = vcmask 781312
  %1600 = vst.msk [vmem:[#allocation2] sm:$0xf] %vm1599, %v1483
  %1601 = vst.msk [vmem:[#allocation2 + $0x4] sm:$0xf] %vm1599, %v1484
  %1602 = vst.msk [vmem:[#allocation2 + $0x8] sm:$0xf] %vm1599, %v1485
  %1603 = vst.msk [vmem:[#allocation2 + $0xc] sm:$0xf] %vm1599, %v1486
  %1604 = vst.msk [vmem:[#allocation2 + $0x10] sm:$0xf] %vm1599, %v1487
  %1605 = vst.msk [vmem:[#allocation2 + $0x14] sm:$0xf] %vm1599, %v1488
  %1606 = vst.msk [vmem:[#allocation2 + $0x18] sm:$0xf] %vm1599, %v1489
  %1607 = vst.msk [vmem:[#allocation2 + $0x1c] sm:$0xf] %vm1599, %v1490
  %1608 = vst.msk [vmem:[#allocation2 + $0x20] sm:$0xf] %vm1599, %v1491
  %1609 = vst.msk [vmem:[#allocation2 + $0x24] sm:$0xf] %vm1599, %v1492
  %1610 = vst.msk [vmem:[#allocation2 + $0x28] sm:$0xf] %vm1599, %v1493
  %1611 = vst.msk [vmem:[#allocation2 + $0x2c] sm:$0xf] %vm1599, %v1494
  %1612 = vst.msk [vmem:[#allocation2 + $0x30] sm:$0xf] %vm1599, %v1495
  %1613 = vst.msk [vmem:[#allocation2 + $0x34] sm:$0xf] %vm1599, %v1496
  %1614 = vst.msk [vmem:[#allocation2 + $0x38] sm:$0xf] %vm1599, %v1497
  %1615 = vst.msk [vmem:[#allocation2 + $0x3c] sm:$0xf] %vm1599, %v1498
  %1616 = vst.msk [vmem:[#allocation2 + $0x40] sm:$0xf] %vm1599, %v1499
  %1617 = vst.msk [vmem:[#allocation2 + $0x44] sm:$0xf] %vm1599, %v1500
  %1618 = vst.msk [vmem:[#allocation2 + $0x48] sm:$0xf] %vm1599, %v1501
  %1619 = vst.msk [vmem:[#allocation2 + $0x4c] sm:$0xf] %vm1599, %v1502
  %1620 = vst.msk [vmem:[#allocation2 + $0x50] sm:$0xf] %vm1599, %v1503
  %1621 = vst.msk [vmem:[#allocation2 + $0x54] sm:$0xf] %vm1599, %v1504
  %1622 = vst.msk [vmem:[#allocation2 + $0x58] sm:$0xf] %vm1599, %v1505
  %1623 = vst.msk [vmem:[#allocation2 + $0x5c] sm:$0xf] %vm1599, %v1506
  %1624 = vst.msk [vmem:[#allocation2 + $0x60] sm:$0xf] %vm1599, %v1507
  %1625 = vst.msk [vmem:[#allocation2 + $0x64] sm:$0xf] %vm1599, %v1508
  %1626 = vst.msk [vmem:[#allocation2 + $0x68] sm:$0xf] %vm1599, %v1509
  %1627 = vst.msk [vmem:[#allocation2 + $0x6c] sm:$0xf] %vm1599, %v1510
  %1628 = vst.msk [vmem:[#allocation2 + $0x70] sm:$0xf] %vm1599, %v1511
  %1629 = vst.msk [vmem:[#allocation2 + $0x74] sm:$0xf] %vm1599, %v1512
  %1630 = vst.msk [vmem:[#allocation2 + $0x78] sm:$0xf] %vm1599, %v1513
  %1631 = vst.msk [vmem:[#allocation2 + $0x7c] sm:$0xf] %vm1599, %v1514
  %1632 = vst.msk [vmem:[#allocation2 + $0x80] sm:$0xf] %vm1599, %v1515
  %1633 = vst.msk [vmem:[#allocation2 + $0x84] sm:$0xf] %vm1599, %v1516
  %1634 = vst.msk [vmem:[#allocation2 + $0x88] sm:$0xf] %vm1599, %v1517
  %1635 = vst.msk [vmem:[#allocation2 + $0x8c] sm:$0xf] %vm1599, %v1518
  %1636 = vst.msk [vmem:[#allocation2 + $0x90] sm:$0xf] %vm1599, %v1519
  %1637 = vst.msk [vmem:[#allocation2 + $0x94] sm:$0xf] %vm1599, %v1520
  %1638 = vst.msk [vmem:[#allocation2 + $0x98] sm:$0xf] %vm1599, %v1521
  %1639 = vst.msk [vmem:[#allocation2 + $0x9c] sm:$0xf] %vm1599, %v1522
  %1640 = vst.msk [vmem:[#allocation2 + $0xa0] sm:$0xf] %vm1599, %v1523
  %1641 = vst.msk [vmem:[#allocation2 + $0xa4] sm:$0xf] %vm1599, %v1524
  %1642 = vst.msk [vmem:[#allocation2 + $0xa8] sm:$0xf] %vm1599, %v1525
  %1643 = vst.msk [vmem:[#allocation2 + $0xac] sm:$0xf] %vm1599, %v1526
  %1644 = vst.msk [vmem:[#allocation2 + $0xb0] sm:$0xf] %vm1599, %v1527
  %1645 = vst.msk [vmem:[#allocation2 + $0xb4] sm:$0xf] %vm1599, %v1528
  %1646 = vst.msk [vmem:[#allocation2 + $0xb8] sm:$0xf] %vm1599, %v1529
  %1647 = vst.msk [vmem:[#allocation2 + $0xbc] sm:$0xf] %vm1599, %v1530
  %1648 = vst.msk [vmem:[#allocation2 + $0xc0] sm:$0xf] %vm1599, %v1531
  %1649 = vst.msk [vmem:[#allocation2 + $0xc4] sm:$0xf] %vm1599, %v1532
  %1650 = vst.msk [vmem:[#allocation2 + $0xc8] sm:$0xf] %vm1599, %v1533
  %1651 = vst.msk [vmem:[#allocation2 + $0xcc] sm:$0xf] %vm1599, %v1534
  %1652 = vst.msk [vmem:[#allocation2 + $0xd0] sm:$0xf] %vm1599, %v1535
  %1653 = vst.msk [vmem:[#allocation2 + $0xd4] sm:$0xf] %vm1599, %v1536
  %1654 = vst.msk [vmem:[#allocation2 + $0xd8] sm:$0xf] %vm1599, %v1537
  %1655 = vst.msk [vmem:[#allocation2 + $0xdc] sm:$0xf] %vm1599, %v1538
  %1656 = vst.msk [vmem:[#allocation2 + $0xe0] sm:$0xf] %vm1599, %v1539
  %vm1657 = vcmask 780288
  %1658 = vst.msk [vmem:[#allocation2 + $0xe4] sm:$0x7] %vm1657, %v1540
  %v1659 = vld [vmem:[#allocation2] sm:$0xf]
  %v1660 = vld [vmem:[#allocation2 + $0x4] sm:$0xf]
  %v1661 = vld [vmem:[#allocation2 + $0x8] sm:$0xf]
  %v1662 = vld [vmem:[#allocation2 + $0xc] sm:$0xf]
  %v1663 = vld [vmem:[#allocation2 + $0x10] sm:$0xf]
  %v1664 = vld [vmem:[#allocation2 + $0x14] sm:$0xf]
  %v1665 = vld [vmem:[#allocation2 + $0x18] sm:$0xf]
  %v1666 = vld [vmem:[#allocation2 + $0x1c] sm:$0xf]
  %v1667 = vld [vmem:[#allocation2 + $0x20] sm:$0xf]
  %v1668 = vld [vmem:[#allocation2 + $0x24] sm:$0xf]
  %v1669 = vld [vmem:[#allocation2 + $0x28] sm:$0xf]
  %v1670 = vld [vmem:[#allocation2 + $0x2c] sm:$0xf]
  %v1671 = vld [vmem:[#allocation2 + $0x30] sm:$0xf]
  %v1672 = vld [vmem:[#allocation2 + $0x34] sm:$0xf]
  %v1673 = vld [vmem:[#allocation2 + $0x38] sm:$0xf]
  %v1674 = vld [vmem:[#allocation2 + $0x3c] sm:$0xf]
  %v1675 = vld [vmem:[#allocation2 + $0x40] sm:$0xf]
  %v1676 = vld [vmem:[#allocation2 + $0x44] sm:$0xf]
  %v1677 = vld [vmem:[#allocation2 + $0x48] sm:$0xf]
  %v1678 = vld [vmem:[#allocation2 + $0x4c] sm:$0xf]
  %v1679 = vld [vmem:[#allocation2 + $0x50] sm:$0xf]
  %v1680 = vld [vmem:[#allocation2 + $0x54] sm:$0xf]
  %v1681 = vld [vmem:[#allocation2 + $0x58] sm:$0xf]
  %v1682 = vld [vmem:[#allocation2 + $0x5c] sm:$0xf]
  %v1683 = vld [vmem:[#allocation2 + $0x60] sm:$0xf]
  %v1684 = vld [vmem:[#allocation2 + $0x64] sm:$0xf]
  %v1685 = vld [vmem:[#allocation2 + $0x68] sm:$0xf]
  %v1686 = vld [vmem:[#allocation2 + $0x6c] sm:$0xf]
  %v1687 = vld [vmem:[#allocation2 + $0x70] sm:$0xf]
  %v1688 = vld [vmem:[#allocation2 + $0x74] sm:$0xf]
  %v1689 = vld [vmem:[#allocation2 + $0x78] sm:$0xf]
  %v1690 = vld [vmem:[#allocation2 + $0x7c] sm:$0xf]
  %v1691 = vld [vmem:[#allocation2 + $0x80] sm:$0xf]
  %v1692 = vld [vmem:[#allocation2 + $0x84] sm:$0xf]
  %v1693 = vld [vmem:[#allocation2 + $0x88] sm:$0xf]
  %v1694 = vld [vmem:[#allocation2 + $0x8c] sm:$0xf]
  %v1695 = vld [vmem:[#allocation2 + $0x90] sm:$0xf]
  %v1696 = vld [vmem:[#allocation2 + $0x94] sm:$0xf]
  %v1697 = vld [vmem:[#allocation2 + $0x98] sm:$0xf]
  %v1698 = vld [vmem:[#allocation2 + $0x9c] sm:$0xf]
  %v1699 = vld [vmem:[#allocation2 + $0xa0] sm:$0xf]
  %v1700 = vld [vmem:[#allocation2 + $0xa4] sm:$0xf]
  %v1701 = vld [vmem:[#allocation2 + $0xa8] sm:$0xf]
  %v1702 = vld [vmem:[#allocation2 + $0xac] sm:$0xf]
  %v1703 = vld [vmem:[#allocation2 + $0xb0] sm:$0xf]
  %v1704 = vld [vmem:[#allocation2 + $0xb4] sm:$0xf]
  %v1705 = vld [vmem:[#allocation2 + $0xb8] sm:$0xf]
  %v1706 = vld [vmem:[#allocation2 + $0xbc] sm:$0xf]
  %v1707 = vld [vmem:[#allocation2 + $0xc0] sm:$0xf]
  %v1708 = vld [vmem:[#allocation2 + $0xc4] sm:$0xf]
  %v1709 = vld [vmem:[#allocation2 + $0xc8] sm:$0xf]
  %v1710 = vld [vmem:[#allocation2 + $0xcc] sm:$0xf]
  %v1711 = vld [vmem:[#allocation2 + $0xd0] sm:$0xf]
  %v1712 = vld [vmem:[#allocation2 + $0xd4] sm:$0x7]
  %v1713 = vld [vmem:[%s3] sm:$0xf]
  %v1714 = vld [vmem:[%s3 + $0x4] sm:$0xf]
  %v1715 = vld [vmem:[%s3 + $0x8] sm:$0xf]
  %v1716 = vld [vmem:[%s3 + $0xc] sm:$0xf]
  %v1717 = vld [vmem:[%s3 + $0x10] sm:$0xf]
  %v1718 = vld [vmem:[%s3 + $0x14] sm:$0xf]
  %v1719 = vld [vmem:[%s3 + $0x18] sm:$0xf]
  %v1720 = vld [vmem:[%s3 + $0x1c] sm:$0xf]
  %v1721 = vld [vmem:[%s3 + $0x20] sm:$0xf]
  %v1722 = vld [vmem:[%s3 + $0x24] sm:$0xf]
  %v1723 = vld [vmem:[%s3 + $0x28] sm:$0xf]
  %v1724 = vld [vmem:[%s3 + $0x2c] sm:$0xf]
  %v1725 = vld [vmem:[#allocation2 + $0xd4] sm:$0xf]
  %v1726 = vld [vmem:[#allocation2 + $0xd8] sm:$0xf]
  %v1727 = vld [vmem:[#allocation2 + $0xdc] sm:$0x7]
  %s1728 = scalar_lea.vmem %s3, 48
  %v1729 = vld [vmem:[%s1728] sm:$0xf]
  %v1730 = vld [vmem:[%s1728 + $0x4] sm:$0xf]
  %v1731 = vld [vmem:[%s1728 + $0x8] sm:$0xf]
  %v1732 = vld [vmem:[%s1728 + $0xc] sm:$0xf]
  %v1733 = vld [vmem:[%s1728 + $0x10] sm:$0xf]
  %v1734 = vld [vmem:[%s1728 + $0x14] sm:$0xf]
  %v1735 = vld [vmem:[%s1728 + $0x18] sm:$0xf]
  %v1736 = vld [vmem:[%s1728 + $0x1c] sm:$0xf]
  %v1737 = vld [vmem:[%s1728 + $0x20] sm:$0xf]
  %v1738 = vld [vmem:[%s1728 + $0x24] sm:$0xf]
  %v1739 = vld [vmem:[%s1728 + $0x28] sm:$0xf]
  %v1740 = vld [vmem:[%s1728 + $0x2c] sm:$0xf]
  %v1795 = vunpack.c.l.b16 %v1661
  %v1796 = vunpack.c.l.b16 %v1662
  %v1797 = vunpack.c.l.b16 %v1663
  %v1798 = vunpack.c.l.b16 %v1664
  %v1799 = vunpack.c.l.b16 %v1665
  %v1800 = vunpack.c.l.b16 %v1666
  %v1801 = vunpack.c.l.b16 %v1667
  %v1802 = vunpack.c.l.b16 %v1668
  %v1803 = vunpack.c.l.b16 %v1669
  %v1804 = vunpack.c.l.b16 %v1670
  %v1805 = vunpack.c.l.b16 %v1671
  %v1806 = vunpack.c.l.b16 %v1672
  %v1807 = vunpack.c.l.b16 %v1673
  %v1808 = vunpack.c.l.b16 %v1674
  %v1809 = vunpack.c.l.b16 %v1675
  %v1810 = vunpack.c.l.b16 %v1676
  %v1811 = vunpack.c.l.b16 %v1677
  %v1812 = vunpack.c.l.b16 %v1678
  %v1813 = vunpack.c.l.b16 %v1679
  %v1814 = vunpack.c.l.b16 %v1680
  %v1815 = vunpack.c.l.b16 %v1681
  %v1816 = vunpack.c.l.b16 %v1682
  %v1817 = vunpack.c.l.b16 %v1683
  %v1818 = vunpack.c.l.b16 %v1684
  %v1819 = vunpack.c.l.b16 %v1685
  %v1820 = vunpack.c.l.b16 %v1686
  %v1821 = vunpack.c.l.b16 %v1687
  %v1822 = vunpack.c.l.b16 %v1688
  %v1823 = vunpack.c.l.b16 %v1689
  %v1824 = vunpack.c.l.b16 %v1690
  %v1825 = vunpack.c.l.b16 %v1691
  %v1826 = vunpack.c.l.b16 %v1692
  %v1827 = vunpack.c.l.b16 %v1693
  %v1828 = vunpack.c.l.b16 %v1694
  %v1829 = vunpack.c.l.b16 %v1695
  %v1830 = vunpack.c.l.b16 %v1696
  %v1831 = vunpack.c.l.b16 %v1697
  %v1832 = vunpack.c.l.b16 %v1698
  %v1833 = vunpack.c.l.b16 %v1699
  %v1834 = vunpack.c.l.b16 %v1700
  %v1835 = vunpack.c.l.b16 %v1701
  %v1836 = vunpack.c.l.b16 %v1702
  %v1837 = vunpack.c.l.b16 %v1703
  %v1838 = vunpack.c.l.b16 %v1704
  %v1839 = vunpack.c.l.b16 %v1705
  %v1840 = vunpack.c.l.b16 %v1706
  %v1841 = vunpack.c.l.b16 %v1707
  %v1842 = vunpack.c.l.b16 %v1708
  %v1843 = vunpack.c.l.b16 %v1709
  %v1844 = vunpack.c.l.b16 %v1710
  %v1845 = vunpack.c.l.b16 %v1711
  %v1846 = vunpack.c.l.b16 %v1725
  %v1847 = vunpack.c.l.b16 %v1726
  %v1848 = vunpack.c.l.b16 %v1727
  %v1849 = vpack.c.b16 %v1796, %v1795
  %v1850 = vpack.c.b16 %v1798, %v1797
  %v1851 = vpack.c.b16 %v1800, %v1799
  %v1852 = vpack.c.b16 %v1802, %v1801
  %v1853 = vpack.c.b16 %v1804, %v1803
  %v1854 = vpack.c.b16 %v1806, %v1805
  %v1855 = vpack.c.b16 %v1808, %v1807
  %v1856 = vpack.c.b16 %v1810, %v1809
  %v1857 = vpack.c.b16 %v1812, %v1811
  %v1858 = vpack.c.b16 %v1814, %v1813
  %v1859 = vpack.c.b16 %v1816, %v1815
  %v1860 = vpack.c.b16 %v1818, %v1817
  %v1861 = vpack.c.b16 %v1820, %v1819
  %v1862 = vpack.c.b16 %v1822, %v1821
  %v1863 = vpack.c.b16 %v1824, %v1823
  %v1864 = vpack.c.b16 %v1826, %v1825
  %v1865 = vpack.c.b16 %v1828, %v1827
  %v1866 = vpack.c.b16 %v1830, %v1829
  %v1867 = vpack.c.b16 %v1832, %v1831
  %v1868 = vpack.c.b16 %v1834, %v1833
  %v1869 = vpack.c.b16 %v1836, %v1835
  %v1870 = vpack.c.b16 %v1838, %v1837
  %v1871 = vpack.c.b16 %v1840, %v1839
  %v1872 = vpack.c.b16 %v1842, %v1841
  %v1873 = vpack.c.b16 %v1844, %v1843
  %v1874 = vpack.c.b16 %v1846, %v1845
  %v1875 = vpack.c.b16 %v1848, %v1847
  %v1888 = vunpack.c.l.b16 %v1729
  %v1889 = vunpack.c.l.b16 %v1730
  %v1890 = vunpack.c.l.b16 %v1731
  %v1891 = vunpack.c.l.b16 %v1732
  %v1892 = vunpack.c.l.b16 %v1733
  %v1893 = vunpack.c.l.b16 %v1734
  %v1894 = vunpack.c.l.b16 %v1735
  %v1895 = vunpack.c.l.b16 %v1736
  %v1896 = vunpack.c.l.b16 %v1737
  %v1897 = vunpack.c.l.b16 %v1738
  %v1898 = vunpack.c.l.b16 %v1739
  %v1899 = vunpack.c.l.b16 %v1740
  %v1900 = vpack.c.b16 %v1889, %v1888
  %v1901 = vpack.c.b16 %v1891, %v1890
  %v1902 = vpack.c.b16 %v1893, %v1892
  %v1903 = vpack.c.b16 %v1895, %v1894
  %v1904 = vpack.c.b16 %v1897, %v1896
  %v1905 = vpack.c.b16 %v1899, %v1898
  %vm1912 = vcmask 785408
  %v1914 = vsel %vm1912, %v1849, 0
  %v1917 = vsel %vm1912, %v1850, 0
  %v1920 = vsel %vm1912, %v1851, 0
  %v1923 = vsel %vm1912, %v1852, 0
  %v1926 = vsel %vm1912, %v1853, 0
  %v1929 = vsel %vm1912, %v1854, 0
  %v1932 = vsel %vm1912, %v1855, 0
  %v1935 = vsel %vm1912, %v1856, 0
  %v1938 = vsel %vm1912, %v1857, 0
  %v1941 = vsel %vm1912, %v1858, 0
  %v1944 = vsel %vm1912, %v1859, 0
  %v1947 = vsel %vm1912, %v1860, 0
  %v1950 = vsel %vm1912, %v1861, 0
  %v1953 = vsel %vm1912, %v1862, 0
  %v1956 = vsel %vm1912, %v1863, 0
  %v1959 = vsel %vm1912, %v1864, 0
  %v1962 = vsel %vm1912, %v1865, 0
  %v1965 = vsel %vm1912, %v1866, 0
  %v1968 = vsel %vm1912, %v1867, 0
  %v1971 = vsel %vm1912, %v1868, 0
  %v1974 = vsel %vm1912, %v1869, 0
  %v1977 = vsel %vm1912, %v1870, 0
  %v1980 = vsel %vm1912, %v1871, 0
  %v1983 = vsel %vm1912, %v1872, 0
  %v1986 = vsel %vm1912, %v1873, 0
  %v1989 = vsel %vm1912, %v1874, 0
  %v1992 = vsel %vm1912, %v1875, 0
  %1994 = vmatpush.bf16.msra.mxu0 0
  %1995 = vmatpush.bf16.msra.mxu0 0
  %1996 = vmatpush.bf16.msra.mxu0 %v1905
  %1997 = vmatpush.bf16.msra.mxu0 %v1904
  %1998 = vmatpush.bf16.msra.mxu0 %v1903
  %1999 = vmatpush.bf16.msra.mxu0 %v1902
  %2000 = vmatpush.bf16.msra.mxu0 %v1901
  %2001 = vmatpush.bf16.msra.mxu0 %v1900
  %2002 = vmatmul.bf16.gmra.mxu0 %v1914
  %v2003 = vpop.f32.mrf.mxu0
  %v2004 = vadd.f32 0.0, %v2003
  %v2005 = vpop.f32.mrf.mxu0
  %v2006 = vadd.f32 0.0, %v2005
  %2007 = vmatmul.bf16.gmra.mxu0 %v1917
  %v2008 = vpop.f32.mrf.mxu0
  %v2009 = vadd.f32 0.0, %v2008
  %v2010 = vpop.f32.mrf.mxu0
  %v2011 = vadd.f32 0.0, %v2010
  %2012 = vmatmul.bf16.gmra.mxu0 %v1920
  %v2013 = vpop.f32.mrf.mxu0
  %v2014 = vadd.f32 0.0, %v2013
  %v2015 = vpop.f32.mrf.mxu0
  %v2016 = vadd.f32 0.0, %v2015
  %2017 = vmatmul.bf16.gmra.mxu0 %v1923
  %v2018 = vpop.f32.mrf.mxu0
  %v2019 = vadd.f32 0.0, %v2018
  %v2020 = vpop.f32.mrf.mxu0
  %v2021 = vadd.f32 0.0, %v2020
  %2022 = vmatmul.bf16.gmra.mxu0 %v1926
  %v2023 = vpop.f32.mrf.mxu0
  %v2024 = vadd.f32 0.0, %v2023
  %v2025 = vpop.f32.mrf.mxu0
  %v2026 = vadd.f32 0.0, %v2025
  %2027 = vmatmul.bf16.gmra.mxu0 %v1929
  %v2028 = vpop.f32.mrf.mxu0
  %v2029 = vadd.f32 0.0, %v2028
  %v2030 = vpop.f32.mrf.mxu0
  %v2031 = vadd.f32 0.0, %v2030
  %2032 = vmatmul.bf16.gmra.mxu0 %v1932
  %v2033 = vpop.f32.mrf.mxu0
  %v2034 = vadd.f32 0.0, %v2033
  %v2035 = vpop.f32.mrf.mxu0
  %v2036 = vadd.f32 0.0, %v2035
  %2037 = vmatmul.bf16.gmra.mxu0 %v1935
  %v2038 = vpop.f32.mrf.mxu0
  %v2039 = vadd.f32 0.0, %v2038
  %v2040 = vpop.f32.mrf.mxu0
  %v2041 = vadd.f32 0.0, %v2040
  %2042 = vmatmul.bf16.gmra.mxu0 %v1938
  %v2043 = vpop.f32.mrf.mxu0
  %v2044 = vadd.f32 0.0, %v2043
  %v2045 = vpop.f32.mrf.mxu0
  %v2046 = vadd.f32 0.0, %v2045
  %2047 = vmatmul.bf16.gmra.mxu0 %v1941
  %v2048 = vpop.f32.mrf.mxu0
  %v2049 = vadd.f32 0.0, %v2048
  %v2050 = vpop.f32.mrf.mxu0
  %v2051 = vadd.f32 0.0, %v2050
  %2052 = vmatmul.bf16.gmra.mxu0 %v1944
  %v2053 = vpop.f32.mrf.mxu0
  %v2054 = vadd.f32 0.0, %v2053
  %v2055 = vpop.f32.mrf.mxu0
  %v2056 = vadd.f32 0.0, %v2055
  %2057 = vmatmul.bf16.gmra.mxu0 %v1947
  %v2058 = vpop.f32.mrf.mxu0
  %v2059 = vadd.f32 0.0, %v2058
  %v2060 = vpop.f32.mrf.mxu0
  %v2061 = vadd.f32 0.0, %v2060
  %2062 = vmatmul.bf16.gmra.mxu0 %v1950
  %v2063 = vpop.f32.mrf.mxu0
  %v2064 = vadd.f32 0.0, %v2063
  %v2065 = vpop.f32.mrf.mxu0
  %v2066 = vadd.f32 0.0, %v2065
  %2067 = vmatmul.bf16.gmra.mxu0 %v1953
  %v2068 = vpop.f32.mrf.mxu0
  %v2069 = vadd.f32 0.0, %v2068
  %v2070 = vpop.f32.mrf.mxu0
  %v2071 = vadd.f32 0.0, %v2070
  %2072 = vmatmul.bf16.gmra.mxu0 %v1956
  %v2073 = vpop.f32.mrf.mxu0
  %v2074 = vadd.f32 0.0, %v2073
  %v2075 = vpop.f32.mrf.mxu0
  %v2076 = vadd.f32 0.0, %v2075
  %2077 = vmatmul.bf16.gmra.mxu0 %v1959
  %v2078 = vpop.f32.mrf.mxu0
  %v2079 = vadd.f32 0.0, %v2078
  %v2080 = vpop.f32.mrf.mxu0
  %v2081 = vadd.f32 0.0, %v2080
  %2082 = vmatmul.bf16.gmra.mxu0 %v1962
  %v2083 = vpop.f32.mrf.mxu0
  %v2084 = vadd.f32 0.0, %v2083
  %v2085 = vpop.f32.mrf.mxu0
  %v2086 = vadd.f32 0.0, %v2085
  %2087 = vmatmul.bf16.gmra.mxu0 %v1965
  %v2088 = vpop.f32.mrf.mxu0
  %v2089 = vadd.f32 0.0, %v2088
  %v2090 = vpop.f32.mrf.mxu0
  %v2091 = vadd.f32 0.0, %v2090
  %2092 = vmatmul.bf16.gmra.mxu0 %v1968
  %v2093 = vpop.f32.mrf.mxu0
  %v2094 = vadd.f32 0.0, %v2093
  %v2095 = vpop.f32.mrf.mxu0
  %v2096 = vadd.f32 0.0, %v2095
  %2097 = vmatmul.bf16.gmra.mxu0 %v1971
  %v2098 = vpop.f32.mrf.mxu0
  %v2099 = vadd.f32 0.0, %v2098
  %v2100 = vpop.f32.mrf.mxu0
  %v2101 = vadd.f32 0.0, %v2100
  %2102 = vmatmul.bf16.gmra.mxu0 %v1974
  %v2103 = vpop.f32.mrf.mxu0
  %v2104 = vadd.f32 0.0, %v2103
  %v2105 = vpop.f32.mrf.mxu0
  %v2106 = vadd.f32 0.0, %v2105
  %2107 = vmatmul.bf16.gmra.mxu0 %v1977
  %v2108 = vpop.f32.mrf.mxu0
  %v2109 = vadd.f32 0.0, %v2108
  %v2110 = vpop.f32.mrf.mxu0
  %v2111 = vadd.f32 0.0, %v2110
  %2112 = vmatmul.bf16.gmra.mxu0 %v1980
  %v2113 = vpop.f32.mrf.mxu0
  %v2114 = vadd.f32 0.0, %v2113
  %v2115 = vpop.f32.mrf.mxu0
  %v2116 = vadd.f32 0.0, %v2115
  %2117 = vmatmul.bf16.gmra.mxu0 %v1983
  %v2118 = vpop.f32.mrf.mxu0
  %v2119 = vadd.f32 0.0, %v2118
  %v2120 = vpop.f32.mrf.mxu0
  %v2121 = vadd.f32 0.0, %v2120
  %2122 = vmatmul.bf16.gmra.mxu0 %v1986
  %v2123 = vpop.f32.mrf.mxu0
  %v2124 = vadd.f32 0.0, %v2123
  %v2125 = vpop.f32.mrf.mxu0
  %v2126 = vadd.f32 0.0, %v2125
  %2127 = vmatmul.bf16.gmra.mxu0 %v1989
  %v2128 = vpop.f32.mrf.mxu0
  %v2129 = vadd.f32 0.0, %v2128
  %v2130 = vpop.f32.mrf.mxu0
  %v2131 = vadd.f32 0.0, %v2130
  %2132 = vmatmul.bf16.gmra.mxu0 %v1992
  %v2133 = vpop.f32.mrf.mxu0
  %v2134 = vadd.f32 0.0, %v2133
  %v2135 = vpop.f32.mrf.mxu0
  %v2136 = vadd.f32 0.0, %v2135
  %2137 = vdwg.mxu0
  %v2141 = vunpack.c.l.b16 %v1659
  %v2142 = vunpack.c.l.b16 %v1660
  %v2143 = vunpack.c.l.b16 %v1712
  %v2144 = vpack.c.b16 %v2142, %v2141
  %v2145 = vpack.c.b16 %v2143, %v1845
  %v2158 = vunpack.c.l.b16 %v1713
  %v2159 = vunpack.c.l.b16 %v1714
  %v2160 = vunpack.c.l.b16 %v1715
  %v2161 = vunpack.c.l.b16 %v1716
  %v2162 = vunpack.c.l.b16 %v1717
  %v2163 = vunpack.c.l.b16 %v1718
  %v2164 = vunpack.c.l.b16 %v1719
  %v2165 = vunpack.c.l.b16 %v1720
  %v2166 = vunpack.c.l.b16 %v1721
  %v2167 = vunpack.c.l.b16 %v1722
  %v2168 = vunpack.c.l.b16 %v1723
  %v2169 = vunpack.c.l.b16 %v1724
  %v2170 = vpack.c.b16 %v2159, %v2158
  %v2171 = vpack.c.b16 %v2161, %v2160
  %v2172 = vpack.c.b16 %v2163, %v2162
  %v2173 = vpack.c.b16 %v2165, %v2164
  %v2174 = vpack.c.b16 %v2167, %v2166
  %v2175 = vpack.c.b16 %v2169, %v2168
  %v2183 = vsel %vm1912, %v2144, 0
  %v2186 = vsel %vm1912, %v2145, 0
  %2188 = vmatpush.bf16.msra.mxu0 0
  %2189 = vmatpush.bf16.msra.mxu0 0
  %2190 = vmatpush.bf16.msra.mxu0 %v2175
  %2191 = vmatpush.bf16.msra.mxu0 %v2174
  %2192 = vmatpush.bf16.msra.mxu0 %v2173
  %2193 = vmatpush.bf16.msra.mxu0 %v2172
  %2194 = vmatpush.bf16.msra.mxu0 %v2171
  %2195 = vmatpush.bf16.msra.mxu0 %v2170
  %2196 = vmatmul.bf16.gmra.mxu0 %v2183
  %v2197 = vpop.f32.mrf.mxu0
  %v2198 = vadd.f32 %v2004, %v2197
  %v2199 = vpop.f32.mrf.mxu0
  %v2200 = vadd.f32 %v2006, %v2199
  %2201 = vmatmul.bf16.gmra.mxu0 %v1914
  %v2202 = vpop.f32.mrf.mxu0
  %v2203 = vadd.f32 %v2009, %v2202
  %v2204 = vpop.f32.mrf.mxu0
  %v2205 = vadd.f32 %v2011, %v2204
  %2206 = vmatmul.bf16.gmra.mxu0 %v1917
  %v2207 = vpop.f32.mrf.mxu0
  %v2208 = vadd.f32 %v2014, %v2207
  %v2209 = vpop.f32.mrf.mxu0
  %v2210 = vadd.f32 %v2016, %v2209
  %2211 = vmatmul.bf16.gmra.mxu0 %v1920
  %v2212 = vpop.f32.mrf.mxu0
  %v2213 = vadd.f32 %v2019, %v2212
  %v2214 = vpop.f32.mrf.mxu0
  %v2215 = vadd.f32 %v2021, %v2214
  %2216 = vmatmul.bf16.gmra.mxu0 %v1923
  %v2217 = vpop.f32.mrf.mxu0
  %v2218 = vadd.f32 %v2024, %v2217
  %v2219 = vpop.f32.mrf.mxu0
  %v2220 = vadd.f32 %v2026, %v2219
  %2221 = vmatmul.bf16.gmra.mxu0 %v1926
  %v2222 = vpop.f32.mrf.mxu0
  %v2223 = vadd.f32 %v2029, %v2222
  %v2224 = vpop.f32.mrf.mxu0
  %v2225 = vadd.f32 %v2031, %v2224
  %2226 = vmatmul.bf16.gmra.mxu0 %v1929
  %v2227 = vpop.f32.mrf.mxu0
  %v2228 = vadd.f32 %v2034, %v2227
  %v2229 = vpop.f32.mrf.mxu0
  %v2230 = vadd.f32 %v2036, %v2229
  %2231 = vmatmul.bf16.gmra.mxu0 %v1932
  %v2232 = vpop.f32.mrf.mxu0
  %v2233 = vadd.f32 %v2039, %v2232
  %v2234 = vpop.f32.mrf.mxu0
  %v2235 = vadd.f32 %v2041, %v2234
  %2236 = vmatmul.bf16.gmra.mxu0 %v1935
  %v2237 = vpop.f32.mrf.mxu0
  %v2238 = vadd.f32 %v2044, %v2237
  %v2239 = vpop.f32.mrf.mxu0
  %v2240 = vadd.f32 %v2046, %v2239
  %2241 = vmatmul.bf16.gmra.mxu0 %v1938
  %v2242 = vpop.f32.mrf.mxu0
  %v2243 = vadd.f32 %v2049, %v2242
  %v2244 = vpop.f32.mrf.mxu0
  %v2245 = vadd.f32 %v2051, %v2244
  %2246 = vmatmul.bf16.gmra.mxu0 %v1941
  %v2247 = vpop.f32.mrf.mxu0
  %v2248 = vadd.f32 %v2054, %v2247
  %v2249 = vpop.f32.mrf.mxu0
  %v2250 = vadd.f32 %v2056, %v2249
  %2251 = vmatmul.bf16.gmra.mxu0 %v1944
  %v2252 = vpop.f32.mrf.mxu0
  %v2253 = vadd.f32 %v2059, %v2252
  %v2254 = vpop.f32.mrf.mxu0
  %v2255 = vadd.f32 %v2061, %v2254
  %2256 = vmatmul.bf16.gmra.mxu0 %v1947
  %v2257 = vpop.f32.mrf.mxu0
  %v2258 = vadd.f32 %v2064, %v2257
  %v2259 = vpop.f32.mrf.mxu0
  %v2260 = vadd.f32 %v2066, %v2259
  %2261 = vmatmul.bf16.gmra.mxu0 %v1950
  %v2262 = vpop.f32.mrf.mxu0
  %v2263 = vadd.f32 %v2069, %v2262
  %v2264 = vpop.f32.mrf.mxu0
  %v2265 = vadd.f32 %v2071, %v2264
  %2266 = vmatmul.bf16.gmra.mxu0 %v1953
  %v2267 = vpop.f32.mrf.mxu0
  %v2268 = vadd.f32 %v2074, %v2267
  %v2269 = vpop.f32.mrf.mxu0
  %v2270 = vadd.f32 %v2076, %v2269
  %2271 = vmatmul.bf16.gmra.mxu0 %v1956
  %v2272 = vpop.f32.mrf.mxu0
  %v2273 = vadd.f32 %v2079, %v2272
  %v2274 = vpop.f32.mrf.mxu0
  %v2275 = vadd.f32 %v2081, %v2274
  %2276 = vmatmul.bf16.gmra.mxu0 %v1959
  %v2277 = vpop.f32.mrf.mxu0
  %v2278 = vadd.f32 %v2084, %v2277
  %v2279 = vpop.f32.mrf.mxu0
  %v2280 = vadd.f32 %v2086, %v2279
  %2281 = vmatmul.bf16.gmra.mxu0 %v1962
  %v2282 = vpop.f32.mrf.mxu0
  %v2283 = vadd.f32 %v2089, %v2282
  %v2284 = vpop.f32.mrf.mxu0
  %v2285 = vadd.f32 %v2091, %v2284
  %2286 = vmatmul.bf16.gmra.mxu0 %v1965
  %v2287 = vpop.f32.mrf.mxu0
  %v2288 = vadd.f32 %v2094, %v2287
  %v2289 = vpop.f32.mrf.mxu0
  %v2290 = vadd.f32 %v2096, %v2289
  %2291 = vmatmul.bf16.gmra.mxu0 %v1968
  %v2292 = vpop.f32.mrf.mxu0
  %v2293 = vadd.f32 %v2099, %v2292
  %v2294 = vpop.f32.mrf.mxu0
  %v2295 = vadd.f32 %v2101, %v2294
  %2296 = vmatmul.bf16.gmra.mxu0 %v1971
  %v2297 = vpop.f32.mrf.mxu0
  %v2298 = vadd.f32 %v2104, %v2297
  %v2299 = vpop.f32.mrf.mxu0
  %v2300 = vadd.f32 %v2106, %v2299
  %2301 = vmatmul.bf16.gmra.mxu0 %v1974
  %v2302 = vpop.f32.mrf.mxu0
  %v2303 = vadd.f32 %v2109, %v2302
  %v2304 = vpop.f32.mrf.mxu0
  %v2305 = vadd.f32 %v2111, %v2304
  %2306 = vmatmul.bf16.gmra.mxu0 %v1977
  %v2307 = vpop.f32.mrf.mxu0
  %v2308 = vadd.f32 %v2114, %v2307
  %v2309 = vpop.f32.mrf.mxu0
  %v2310 = vadd.f32 %v2116, %v2309
  %2311 = vmatmul.bf16.gmra.mxu0 %v1980
  %v2312 = vpop.f32.mrf.mxu0
  %v2313 = vadd.f32 %v2119, %v2312
  %v2314 = vpop.f32.mrf.mxu0
  %v2315 = vadd.f32 %v2121, %v2314
  %2316 = vmatmul.bf16.gmra.mxu0 %v1983
  %v2317 = vpop.f32.mrf.mxu0
  %v2318 = vadd.f32 %v2124, %v2317
  %v2319 = vpop.f32.mrf.mxu0
  %v2320 = vadd.f32 %v2126, %v2319
  %2321 = vmatmul.bf16.gmra.mxu0 %v1986
  %v2322 = vpop.f32.mrf.mxu0
  %v2323 = vadd.f32 %v2129, %v2322
  %v2324 = vpop.f32.mrf.mxu0
  %v2325 = vadd.f32 %v2131, %v2324
  %2326 = vmatmul.bf16.gmra.mxu0 %v2186
  %v2327 = vpop.f32.mrf.mxu0
  %v2328 = vadd.f32 %v2134, %v2327
  %v2329 = vpop.f32.mrf.mxu0
  %v2330 = vadd.f32 %v2136, %v2329
  %2331 = vdwg.mxu0
  %v2332 = vld [vmem:[#allocation2 + $0x10] sm:$0xf]
  %v2333 = vld [vmem:[#allocation2 + $0x14] sm:$0xf]
  %v2334 = vld [vmem:[#allocation2 + $0x18] sm:$0xf]
  %v2335 = vld [vmem:[#allocation2 + $0x1c] sm:$0xf]
  %v2336 = vld [vmem:[#allocation2 + $0x20] sm:$0xf]
  %v2337 = vld [vmem:[#allocation2 + $0x24] sm:$0xf]
  %v2338 = vld [vmem:[#allocation2 + $0x28] sm:$0xf]
  %v2339 = vld [vmem:[#allocation2 + $0x2c] sm:$0xf]
  %v2340 = vld [vmem:[#allocation2 + $0x30] sm:$0xf]
  %v2341 = vld [vmem:[#allocation2 + $0x34] sm:$0xf]
  %v2342 = vld [vmem:[#allocation2 + $0x38] sm:$0xf]
  %v2343 = vld [vmem:[#allocation2 + $0x3c] sm:$0xf]
  %v2344 = vld [vmem:[#allocation2 + $0x40] sm:$0xf]
  %v2345 = vld [vmem:[#allocation2 + $0x44] sm:$0xf]
  %v2346 = vld [vmem:[#allocation2 + $0x48] sm:$0xf]
  %v2347 = vld [vmem:[#allocation2 + $0x4c] sm:$0xf]
  %v2348 = vld [vmem:[#allocation2 + $0x50] sm:$0xf]
  %v2349 = vld [vmem:[#allocation2 + $0x54] sm:$0xf]
  %v2350 = vld [vmem:[#allocation2 + $0x58] sm:$0xf]
  %v2351 = vld [vmem:[#allocation2 + $0x5c] sm:$0xf]
  %v2352 = vld [vmem:[#allocation2 + $0x60] sm:$0xf]
  %v2353 = vld [vmem:[#allocation2 + $0x64] sm:$0xf]
  %v2354 = vld [vmem:[#allocation2 + $0x68] sm:$0xf]
  %v2355 = vld [vmem:[#allocation2 + $0x6c] sm:$0xf]
  %v2356 = vld [vmem:[#allocation2 + $0x70] sm:$0xf]
  %v2357 = vld [vmem:[#allocation2 + $0x74] sm:$0xf]
  %v2358 = vld [vmem:[#allocation2 + $0x78] sm:$0xf]
  %v2359 = vld [vmem:[#allocation2 + $0x7c] sm:$0xf]
  %v2360 = vld [vmem:[#allocation2 + $0x80] sm:$0xf]
  %v2361 = vld [vmem:[#allocation2 + $0x84] sm:$0xf]
  %v2362 = vld [vmem:[#allocation2 + $0x88] sm:$0xf]
  %v2363 = vld [vmem:[#allocation2 + $0x8c] sm:$0xf]
  %v2364 = vld [vmem:[#allocation2 + $0x90] sm:$0xf]
  %v2365 = vld [vmem:[#allocation2 + $0x94] sm:$0xf]
  %v2366 = vld [vmem:[#allocation2 + $0x98] sm:$0xf]
  %v2367 = vld [vmem:[#allocation2 + $0x9c] sm:$0xf]
  %v2368 = vld [vmem:[#allocation2 + $0xa0] sm:$0xf]
  %v2369 = vld [vmem:[#allocation2 + $0xa4] sm:$0xf]
  %v2370 = vld [vmem:[#allocation2 + $0xa8] sm:$0xf]
  %v2371 = vld [vmem:[#allocation2 + $0xac] sm:$0xf]
  %v2372 = vld [vmem:[#allocation2 + $0xb0] sm:$0xf]
  %v2373 = vld [vmem:[#allocation2 + $0xb4] sm:$0xf]
  %v2374 = vld [vmem:[#allocation2 + $0xb8] sm:$0xf]
  %v2375 = vld [vmem:[#allocation2 + $0xbc] sm:$0xf]
  %v2376 = vld [vmem:[#allocation2 + $0xc0] sm:$0xf]
  %v2377 = vld [vmem:[#allocation2 + $0xc4] sm:$0xf]
  %v2378 = vld [vmem:[#allocation2 + $0xc8] sm:$0xf]
  %v2379 = vld [vmem:[#allocation2 + $0xcc] sm:$0xf]
  %v2380 = vld [vmem:[#allocation2 + $0xd0] sm:$0xf]
  %v2381 = vld [vmem:[#allocation2 + $0xd4] sm:$0xf]
  %v2382 = vld [vmem:[#allocation2 + $0xd8] sm:$0xf]
  %v2383 = vld [vmem:[#allocation2 + $0xdc] sm:$0xf]
  %v2384 = vld [vmem:[#allocation2 + $0xe0] sm:$0xf]
  %v2385 = vld [vmem:[#allocation2 + $0xe4] sm:$0x7]
  %s2386 = scalar_lea.vmem %s3, 96
  %v2387 = vld [vmem:[%s2386] sm:$0xf]
  %v2388 = vld [vmem:[%s2386 + $0x4] sm:$0xf]
  %v2389 = vld [vmem:[%s2386 + $0x8] sm:$0xf]
  %v2390 = vld [vmem:[%s2386 + $0xc] sm:$0xf]
  %v2391 = vld [vmem:[%s2386 + $0x10] sm:$0xf]
  %v2392 = vld [vmem:[%s2386 + $0x14] sm:$0xf]
  %v2393 = vld [vmem:[%s2386 + $0x18] sm:$0xf]
  %v2394 = vld [vmem:[%s2386 + $0x1c] sm:$0xf]
  %v2395 = vld [vmem:[%s2386 + $0x20] sm:$0xf]
  %v2396 = vld [vmem:[%s2386 + $0x24] sm:$0xf]
  %v2397 = vld [vmem:[%s2386 + $0x28] sm:$0xf]
  %v2398 = vld [vmem:[%s2386 + $0x2c] sm:$0xf]
  %v2453 = vunpack.c.l.b16 %v2332
  %v2454 = vunpack.c.l.b16 %v2333
  %v2455 = vunpack.c.l.b16 %v2334
  %v2456 = vunpack.c.l.b16 %v2335
  %v2457 = vunpack.c.l.b16 %v2336
  %v2458 = vunpack.c.l.b16 %v2337
  %v2459 = vunpack.c.l.b16 %v2338
  %v2460 = vunpack.c.l.b16 %v2339
  %v2461 = vunpack.c.l.b16 %v2340
  %v2462 = vunpack.c.l.b16 %v2341
  %v2463 = vunpack.c.l.b16 %v2342
  %v2464 = vunpack.c.l.b16 %v2343
  %v2465 = vunpack.c.l.b16 %v2344
  %v2466 = vunpack.c.l.b16 %v2345
  %v2467 = vunpack.c.l.b16 %v2346
  %v2468 = vunpack.c.l.b16 %v2347
  %v2469 = vunpack.c.l.b16 %v2348
  %v2470 = vunpack.c.l.b16 %v2349
  %v2471 = vunpack.c.l.b16 %v2350
  %v2472 = vunpack.c.l.b16 %v2351
  %v2473 = vunpack.c.l.b16 %v2352
  %v2474 = vunpack.c.l.b16 %v2353
  %v2475 = vunpack.c.l.b16 %v2354
  %v2476 = vunpack.c.l.b16 %v2355
  %v2477 = vunpack.c.l.b16 %v2356
  %v2478 = vunpack.c.l.b16 %v2357
  %v2479 = vunpack.c.l.b16 %v2358
  %v2480 = vunpack.c.l.b16 %v2359
  %v2481 = vunpack.c.l.b16 %v2360
  %v2482 = vunpack.c.l.b16 %v2361
  %v2483 = vunpack.c.l.b16 %v2362
  %v2484 = vunpack.c.l.b16 %v2363
  %v2485 = vunpack.c.l.b16 %v2364
  %v2486 = vunpack.c.l.b16 %v2365
  %v2487 = vunpack.c.l.b16 %v2366
  %v2488 = vunpack.c.l.b16 %v2367
  %v2489 = vunpack.c.l.b16 %v2368
  %v2490 = vunpack.c.l.b16 %v2369
  %v2491 = vunpack.c.l.b16 %v2370
  %v2492 = vunpack.c.l.b16 %v2371
  %v2493 = vunpack.c.l.b16 %v2372
  %v2494 = vunpack.c.l.b16 %v2373
  %v2495 = vunpack.c.l.b16 %v2374
  %v2496 = vunpack.c.l.b16 %v2375
  %v2497 = vunpack.c.l.b16 %v2376
  %v2498 = vunpack.c.l.b16 %v2377
  %v2499 = vunpack.c.l.b16 %v2378
  %v2500 = vunpack.c.l.b16 %v2379
  %v2501 = vunpack.c.l.b16 %v2380
  %v2502 = vunpack.c.l.b16 %v2381
  %v2503 = vunpack.c.l.b16 %v2382
  %v2504 = vunpack.c.l.b16 %v2383
  %v2505 = vunpack.c.l.b16 %v2384
  %v2506 = vunpack.c.l.b16 %v2385
  %v2507 = vpack.c.b16 %v2454, %v2453
  %v2508 = vpack.c.b16 %v2456, %v2455
  %v2509 = vpack.c.b16 %v2458, %v2457
  %v2510 = vpack.c.b16 %v2460, %v2459
  %v2511 = vpack.c.b16 %v2462, %v2461
  %v2512 = vpack.c.b16 %v2464, %v2463
  %v2513 = vpack.c.b16 %v2466, %v2465
  %v2514 = vpack.c.b16 %v2468, %v2467
  %v2515 = vpack.c.b16 %v2470, %v2469
  %v2516 = vpack.c.b16 %v2472, %v2471
  %v2517 = vpack.c.b16 %v2474, %v2473
  %v2518 = vpack.c.b16 %v2476, %v2475
  %v2519 = vpack.c.b16 %v2478, %v2477
  %v2520 = vpack.c.b16 %v2480, %v2479
  %v2521 = vpack.c.b16 %v2482, %v2481
  %v2522 = vpack.c.b16 %v2484, %v2483
  %v2523 = vpack.c.b16 %v2486, %v2485
  %v2524 = vpack.c.b16 %v2488, %v2487
  %v2525 = vpack.c.b16 %v2490, %v2489
  %v2526 = vpack.c.b16 %v2492, %v2491
  %v2527 = vpack.c.b16 %v2494, %v2493
  %v2528 = vpack.c.b16 %v2496, %v2495
  %v2529 = vpack.c.b16 %v2498, %v2497
  %v2530 = vpack.c.b16 %v2500, %v2499
  %v2531 = vpack.c.b16 %v2502, %v2501
  %v2532 = vpack.c.b16 %v2504, %v2503
  %v2533 = vpack.c.b16 %v2506, %v2505
  %v2546 = vunpack.c.l.b16 %v2387
  %v2547 = vunpack.c.l.b16 %v2388
  %v2548 = vunpack.c.l.b16 %v2389
  %v2549 = vunpack.c.l.b16 %v2390
  %v2550 = vunpack.c.l.b16 %v2391
  %v2551 = vunpack.c.l.b16 %v2392
  %v2552 = vunpack.c.l.b16 %v2393
  %v2553 = vunpack.c.l.b16 %v2394
  %v2554 = vunpack.c.l.b16 %v2395
  %v2555 = vunpack.c.l.b16 %v2396
  %v2556 = vunpack.c.l.b16 %v2397
  %v2557 = vunpack.c.l.b16 %v2398
  %v2558 = vpack.c.b16 %v2547, %v2546
  %v2559 = vpack.c.b16 %v2549, %v2548
  %v2560 = vpack.c.b16 %v2551, %v2550
  %v2561 = vpack.c.b16 %v2553, %v2552
  %v2562 = vpack.c.b16 %v2555, %v2554
  %v2563 = vpack.c.b16 %v2557, %v2556
  %v2571 = vsel %vm1912, %v2507, 0
  %v2574 = vsel %vm1912, %v2508, 0
  %v2577 = vsel %vm1912, %v2509, 0
  %v2580 = vsel %vm1912, %v2510, 0
  %v2583 = vsel %vm1912, %v2511, 0
  %v2586 = vsel %vm1912, %v2512, 0
  %v2589 = vsel %vm1912, %v2513, 0
  %v2592 = vsel %vm1912, %v2514, 0
  %v2595 = vsel %vm1912, %v2515, 0
  %v2598 = vsel %vm1912, %v2516, 0
  %v2601 = vsel %vm1912, %v2517, 0
  %v2604 = vsel %vm1912, %v2518, 0
  %v2607 = vsel %vm1912, %v2519, 0
  %v2610 = vsel %vm1912, %v2520, 0
  %v2613 = vsel %vm1912, %v2521, 0
  %v2616 = vsel %vm1912, %v2522, 0
  %v2619 = vsel %vm1912, %v2523, 0
  %v2622 = vsel %vm1912, %v2524, 0
  %v2625 = vsel %vm1912, %v2525, 0
  %v2628 = vsel %vm1912, %v2526, 0
  %v2631 = vsel %vm1912, %v2527, 0
  %v2634 = vsel %vm1912, %v2528, 0
  %v2637 = vsel %vm1912, %v2529, 0
  %v2640 = vsel %vm1912, %v2530, 0
  %v2643 = vsel %vm1912, %v2531, 0
  %v2646 = vsel %vm1912, %v2532, 0
  %v2649 = vsel %vm1912, %v2533, 0
  %2651 = vmatpush.bf16.msra.mxu0 0
  %2652 = vmatpush.bf16.msra.mxu0 0
  %2653 = vmatpush.bf16.msra.mxu0 %v2563
  %2654 = vmatpush.bf16.msra.mxu0 %v2562
  %2655 = vmatpush.bf16.msra.mxu0 %v2561
  %2656 = vmatpush.bf16.msra.mxu0 %v2560
  %2657 = vmatpush.bf16.msra.mxu0 %v2559
  %2658 = vmatpush.bf16.msra.mxu0 %v2558
  %2659 = vmatmul.bf16.gmra.mxu0 %v2571
  %v2660 = vpop.f32.mrf.mxu0
  %v2661 = vadd.f32 0.0, %v2660
  %v2662 = vpop.f32.mrf.mxu0
  %v2663 = vadd.f32 0.0, %v2662
  %2664 = vmatmul.bf16.gmra.mxu0 %v2574
  %v2665 = vpop.f32.mrf.mxu0
  %v2666 = vadd.f32 0.0, %v2665
  %v2667 = vpop.f32.mrf.mxu0
  %v2668 = vadd.f32 0.0, %v2667
  %2669 = vmatmul.bf16.gmra.mxu0 %v2577
  %v2670 = vpop.f32.mrf.mxu0
  %v2671 = vadd.f32 0.0, %v2670
  %v2672 = vpop.f32.mrf.mxu0
  %v2673 = vadd.f32 0.0, %v2672
  %2674 = vmatmul.bf16.gmra.mxu0 %v2580
  %v2675 = vpop.f32.mrf.mxu0
  %v2676 = vadd.f32 0.0, %v2675
  %v2677 = vpop.f32.mrf.mxu0
  %v2678 = vadd.f32 0.0, %v2677
  %2679 = vmatmul.bf16.gmra.mxu0 %v2583
  %v2680 = vpop.f32.mrf.mxu0
  %v2681 = vadd.f32 0.0, %v2680
  %v2682 = vpop.f32.mrf.mxu0
  %v2683 = vadd.f32 0.0, %v2682
  %2684 = vmatmul.bf16.gmra.mxu0 %v2586
  %v2685 = vpop.f32.mrf.mxu0
  %v2686 = vadd.f32 0.0, %v2685
  %v2687 = vpop.f32.mrf.mxu0
  %v2688 = vadd.f32 0.0, %v2687
  %2689 = vmatmul.bf16.gmra.mxu0 %v2589
  %v2690 = vpop.f32.mrf.mxu0
  %v2691 = vadd.f32 0.0, %v2690
  %v2692 = vpop.f32.mrf.mxu0
  %v2693 = vadd.f32 0.0, %v2692
  %2694 = vmatmul.bf16.gmra.mxu0 %v2592
  %v2695 = vpop.f32.mrf.mxu0
  %v2696 = vadd.f32 0.0, %v2695
  %v2697 = vpop.f32.mrf.mxu0
  %v2698 = vadd.f32 0.0, %v2697
  %2699 = vmatmul.bf16.gmra.mxu0 %v2595
  %v2700 = vpop.f32.mrf.mxu0
  %v2701 = vadd.f32 0.0, %v2700
  %v2702 = vpop.f32.mrf.mxu0
  %v2703 = vadd.f32 0.0, %v2702
  %2704 = vmatmul.bf16.gmra.mxu0 %v2598
  %v2705 = vpop.f32.mrf.mxu0
  %v2706 = vadd.f32 0.0, %v2705
  %v2707 = vpop.f32.mrf.mxu0
  %v2708 = vadd.f32 0.0, %v2707
  %2709 = vmatmul.bf16.gmra.mxu0 %v2601
  %v2710 = vpop.f32.mrf.mxu0
  %v2711 = vadd.f32 0.0, %v2710
  %v2712 = vpop.f32.mrf.mxu0
  %v2713 = vadd.f32 0.0, %v2712
  %2714 = vmatmul.bf16.gmra.mxu0 %v2604
  %v2715 = vpop.f32.mrf.mxu0
  %v2716 = vadd.f32 0.0, %v2715
  %v2717 = vpop.f32.mrf.mxu0
  %v2718 = vadd.f32 0.0, %v2717
  %2719 = vmatmul.bf16.gmra.mxu0 %v2607
  %v2720 = vpop.f32.mrf.mxu0
  %v2721 = vadd.f32 0.0, %v2720
  %v2722 = vpop.f32.mrf.mxu0
  %v2723 = vadd.f32 0.0, %v2722
  %2724 = vmatmul.bf16.gmra.mxu0 %v2610
  %v2725 = vpop.f32.mrf.mxu0
  %v2726 = vadd.f32 0.0, %v2725
  %v2727 = vpop.f32.mrf.mxu0
  %v2728 = vadd.f32 0.0, %v2727
  %2729 = vmatmul.bf16.gmra.mxu0 %v2613
  %v2730 = vpop.f32.mrf.mxu0
  %v2731 = vadd.f32 0.0, %v2730
  %v2732 = vpop.f32.mrf.mxu0
  %v2733 = vadd.f32 0.0, %v2732
  %2734 = vmatmul.bf16.gmra.mxu0 %v2616
  %v2735 = vpop.f32.mrf.mxu0
  %v2736 = vadd.f32 0.0, %v2735
  %v2737 = vpop.f32.mrf.mxu0
  %v2738 = vadd.f32 0.0, %v2737
  %2739 = vmatmul.bf16.gmra.mxu0 %v2619
  %v2740 = vpop.f32.mrf.mxu0
  %v2741 = vadd.f32 0.0, %v2740
  %v2742 = vpop.f32.mrf.mxu0
  %v2743 = vadd.f32 0.0, %v2742
  %2744 = vmatmul.bf16.gmra.mxu0 %v2622
  %v2745 = vpop.f32.mrf.mxu0
  %v2746 = vadd.f32 0.0, %v2745
  %v2747 = vpop.f32.mrf.mxu0
  %v2748 = vadd.f32 0.0, %v2747
  %2749 = vmatmul.bf16.gmra.mxu0 %v2625
  %v2750 = vpop.f32.mrf.mxu0
  %v2751 = vadd.f32 0.0, %v2750
  %v2752 = vpop.f32.mrf.mxu0
  %v2753 = vadd.f32 0.0, %v2752
  %2754 = vmatmul.bf16.gmra.mxu0 %v2628
  %v2755 = vpop.f32.mrf.mxu0
  %v2756 = vadd.f32 0.0, %v2755
  %v2757 = vpop.f32.mrf.mxu0
  %v2758 = vadd.f32 0.0, %v2757
  %2759 = vmatmul.bf16.gmra.mxu0 %v2631
  %v2760 = vpop.f32.mrf.mxu0
  %v2761 = vadd.f32 0.0, %v2760
  %v2762 = vpop.f32.mrf.mxu0
  %v2763 = vadd.f32 0.0, %v2762
  %2764 = vmatmul.bf16.gmra.mxu0 %v2634
  %v2765 = vpop.f32.mrf.mxu0
  %v2766 = vadd.f32 0.0, %v2765
  %v2767 = vpop.f32.mrf.mxu0
  %v2768 = vadd.f32 0.0, %v2767
  %2769 = vmatmul.bf16.gmra.mxu0 %v2637
  %v2770 = vpop.f32.mrf.mxu0
  %v2771 = vadd.f32 0.0, %v2770
  %v2772 = vpop.f32.mrf.mxu0
  %v2773 = vadd.f32 0.0, %v2772
  %2774 = vmatmul.bf16.gmra.mxu0 %v2640
  %v2775 = vpop.f32.mrf.mxu0
  %v2776 = vadd.f32 0.0, %v2775
  %v2777 = vpop.f32.mrf.mxu0
  %v2778 = vadd.f32 0.0, %v2777
  %2779 = vmatmul.bf16.gmra.mxu0 %v2643
  %v2780 = vpop.f32.mrf.mxu0
  %v2781 = vadd.f32 0.0, %v2780
  %v2782 = vpop.f32.mrf.mxu0
  %v2783 = vadd.f32 0.0, %v2782
  %2784 = vmatmul.bf16.gmra.mxu0 %v2646
  %v2785 = vpop.f32.mrf.mxu0
  %v2786 = vadd.f32 0.0, %v2785
  %v2787 = vpop.f32.mrf.mxu0
  %v2788 = vadd.f32 0.0, %v2787
  %2789 = vmatmul.bf16.gmra.mxu0 %v2649
  %v2790 = vpop.f32.mrf.mxu0
  %v2791 = vadd.f32 0.0, %v2790
  %v2792 = vpop.f32.mrf.mxu0
  %v2793 = vadd.f32 0.0, %v2792
  %2794 = vdwg.mxu0
  %v2795 = vadd.f32 %v2198, %v2661
  %v2796 = vadd.f32 %v2200, %v2663
  %v2797 = vadd.f32 %v2203, %v2666
  %v2798 = vadd.f32 %v2205, %v2668
  %v2799 = vadd.f32 %v2208, %v2671
  %v2800 = vadd.f32 %v2210, %v2673
  %v2801 = vadd.f32 %v2213, %v2676
  %v2802 = vadd.f32 %v2215, %v2678
  %v2803 = vadd.f32 %v2218, %v2681
  %v2804 = vadd.f32 %v2220, %v2683
  %v2805 = vadd.f32 %v2223, %v2686
  %v2806 = vadd.f32 %v2225, %v2688
  %v2807 = vadd.f32 %v2228, %v2691
  %v2808 = vadd.f32 %v2230, %v2693
  %v2809 = vadd.f32 %v2233, %v2696
  %v2810 = vadd.f32 %v2235, %v2698
  %v2811 = vadd.f32 %v2238, %v2701
  %v2812 = vadd.f32 %v2240, %v2703
  %v2813 = vadd.f32 %v2243, %v2706
  %v2814 = vadd.f32 %v2245, %v2708
  %v2815 = vadd.f32 %v2248, %v2711
  %v2816 = vadd.f32 %v2250, %v2713
  %v2817 = vadd.f32 %v2253, %v2716
  %v2818 = vadd.f32 %v2255, %v2718
  %v2819 = vadd.f32 %v2258, %v2721
  %v2820 = vadd.f32 %v2260, %v2723
  %v2821 = vadd.f32 %v2263, %v2726
  %v2822 = vadd.f32 %v2265, %v2728
  %v2823 = vadd.f32 %v2268, %v2731
  %v2824 = vadd.f32 %v2270, %v2733
  %v2825 = vadd.f32 %v2273, %v2736
  %v2826 = vadd.f32 %v2275, %v2738
  %v2827 = vadd.f32 %v2278, %v2741
  %v2828 = vadd.f32 %v2280, %v2743
  %v2829 = vadd.f32 %v2283, %v2746
  %v2830 = vadd.f32 %v2285, %v2748
  %v2831 = vadd.f32 %v2288, %v2751
  %v2832 = vadd.f32 %v2290, %v2753
  %v2833 = vadd.f32 %v2293, %v2756
  %v2834 = vadd.f32 %v2295, %v2758
  %v2835 = vadd.f32 %v2298, %v2761
  %v2836 = vadd.f32 %v2300, %v2763
  %v2837 = vadd.f32 %v2303, %v2766
  %v2838 = vadd.f32 %v2305, %v2768
  %v2839 = vadd.f32 %v2308, %v2771
  %v2840 = vadd.f32 %v2310, %v2773
  %v2841 = vadd.f32 %v2313, %v2776
  %v2842 = vadd.f32 %v2315, %v2778
  %v2843 = vadd.f32 %v2318, %v2781
  %v2844 = vadd.f32 %v2320, %v2783
  %v2845 = vadd.f32 %v2323, %v2786
  %v2846 = vadd.f32 %v2325, %v2788
  %v2847 = vadd.f32 %v2328, %v2791
  %v2848 = vadd.f32 %v2330, %v2793
  %v2849 = vld [vmem:[%s5 + $0x1] sm:$0x1]
  %v2850 = vperm.slane %v2849, 0
  %v2851 = vadd.f32 %v2795, %v2850
  %v2852 = vadd.f32 %v2796, %v2850
  %v2853 = vadd.f32 %v2797, %v2850
  %v2854 = vadd.f32 %v2798, %v2850
  %v2855 = vadd.f32 %v2799, %v2850
  %v2856 = vadd.f32 %v2800, %v2850
  %v2857 = vadd.f32 %v2801, %v2850
  %v2858 = vadd.f32 %v2802, %v2850
  %v2859 = vadd.f32 %v2803, %v2850
  %v2860 = vadd.f32 %v2804, %v2850
  %v2861 = vadd.f32 %v2805, %v2850
  %v2862 = vadd.f32 %v2806, %v2850
  %v2863 = vadd.f32 %v2807, %v2850
  %v2864 = vadd.f32 %v2808, %v2850
  %v2865 = vadd.f32 %v2809, %v2850
  %v2866 = vadd.f32 %v2810, %v2850
  %v2867 = vadd.f32 %v2811, %v2850
  %v2868 = vadd.f32 %v2812, %v2850
  %v2869 = vadd.f32 %v2813, %v2850
  %v2870 = vadd.f32 %v2814, %v2850
  %v2871 = vadd.f32 %v2815, %v2850
  %v2872 = vadd.f32 %v2816, %v2850
  %v2873 = vadd.f32 %v2817, %v2850
  %v2874 = vadd.f32 %v2818, %v2850
  %v2875 = vadd.f32 %v2819, %v2850
  %v2876 = vadd.f32 %v2820, %v2850
  %v2877 = vadd.f32 %v2821, %v2850
  %v2878 = vadd.f32 %v2822, %v2850
  %v2879 = vadd.f32 %v2823, %v2850
  %v2880 = vadd.f32 %v2824, %v2850
  %v2881 = vadd.f32 %v2825, %v2850
  %v2882 = vadd.f32 %v2826, %v2850
  %v2883 = vadd.f32 %v2827, %v2850
  %v2884 = vadd.f32 %v2828, %v2850
  %v2885 = vadd.f32 %v2829, %v2850
  %v2886 = vadd.f32 %v2830, %v2850
  %v2887 = vadd.f32 %v2831, %v2850
  %v2888 = vadd.f32 %v2832, %v2850
  %v2889 = vadd.f32 %v2833, %v2850
  %v2890 = vadd.f32 %v2834, %v2850
  %v2891 = vadd.f32 %v2835, %v2850
  %v2892 = vadd.f32 %v2836, %v2850
  %v2893 = vadd.f32 %v2837, %v2850
  %v2894 = vadd.f32 %v2838, %v2850
  %v2895 = vadd.f32 %v2839, %v2850
  %v2896 = vadd.f32 %v2840, %v2850
  %v2897 = vadd.f32 %v2841, %v2850
  %v2898 = vadd.f32 %v2842, %v2850
  %v2899 = vadd.f32 %v2843, %v2850
  %v2900 = vadd.f32 %v2844, %v2850
  %v2901 = vadd.f32 %v2845, %v2850
  %v2902 = vadd.f32 %v2846, %v2850
  %v2903 = vadd.f32 %v2847, %v2850
  %v2904 = vadd.f32 %v2848, %v2850
  %vm2905 = vcmp.ge.f32.partialorder %v2851, 0.0
  %vm2906 = vcmp.ge.f32.partialorder %v2852, 0.0
  %vm2907 = vcmp.ge.f32.partialorder %v2853, 0.0
  %vm2908 = vcmp.ge.f32.partialorder %v2854, 0.0
  %vm2909 = vcmp.ge.f32.partialorder %v2855, 0.0
  %vm2910 = vcmp.ge.f32.partialorder %v2856, 0.0
  %vm2911 = vcmp.ge.f32.partialorder %v2857, 0.0
  %vm2912 = vcmp.ge.f32.partialorder %v2858, 0.0
  %vm2913 = vcmp.ge.f32.partialorder %v2859, 0.0
  %vm2914 = vcmp.ge.f32.partialorder %v2860, 0.0
  %vm2915 = vcmp.ge.f32.partialorder %v2861, 0.0
  %vm2916 = vcmp.ge.f32.partialorder %v2862, 0.0
  %vm2917 = vcmp.ge.f32.partialorder %v2863, 0.0
  %vm2918 = vcmp.ge.f32.partialorder %v2864, 0.0
  %vm2919 = vcmp.ge.f32.partialorder %v2865, 0.0
  %vm2920 = vcmp.ge.f32.partialorder %v2866, 0.0
  %vm2921 = vcmp.ge.f32.partialorder %v2867, 0.0
  %vm2922 = vcmp.ge.f32.partialorder %v2868, 0.0
  %vm2923 = vcmp.ge.f32.partialorder %v2869, 0.0
  %vm2924 = vcmp.ge.f32.partialorder %v2870, 0.0
  %vm2925 = vcmp.ge.f32.partialorder %v2871, 0.0
  %vm2926 = vcmp.ge.f32.partialorder %v2872, 0.0
  %vm2927 = vcmp.ge.f32.partialorder %v2873, 0.0
  %vm2928 = vcmp.ge.f32.partialorder %v2874, 0.0
  %vm2929 = vcmp.ge.f32.partialorder %v2875, 0.0
  %vm2930 = vcmp.ge.f32.partialorder %v2876, 0.0
  %vm2931 = vcmp.ge.f32.partialorder %v2877, 0.0
  %vm2932 = vcmp.ge.f32.partialorder %v2878, 0.0
  %vm2933 = vcmp.ge.f32.partialorder %v2879, 0.0
  %vm2934 = vcmp.ge.f32.partialorder %v2880, 0.0
  %vm2935 = vcmp.ge.f32.partialorder %v2881, 0.0
  %vm2936 = vcmp.ge.f32.partialorder %v2882, 0.0
  %vm2937 = vcmp.ge.f32.partialorder %v2883, 0.0
  %vm2938 = vcmp.ge.f32.partialorder %v2884, 0.0
  %vm2939 = vcmp.ge.f32.partialorder %v2885, 0.0
  %vm2940 = vcmp.ge.f32.partialorder %v2886, 0.0
  %vm2941 = vcmp.ge.f32.partialorder %v2887, 0.0
  %vm2942 = vcmp.ge.f32.partialorder %v2888, 0.0
  %vm2943 = vcmp.ge.f32.partialorder %v2889, 0.0
  %vm2944 = vcmp.ge.f32.partialorder %v2890, 0.0
  %vm2945 = vcmp.ge.f32.partialorder %v2891, 0.0
  %vm2946 = vcmp.ge.f32.partialorder %v2892, 0.0
  %vm2947 = vcmp.ge.f32.partialorder %v2893, 0.0
  %vm2948 = vcmp.ge.f32.partialorder %v2894, 0.0
  %vm2949 = vcmp.ge.f32.partialorder %v2895, 0.0
  %vm2950 = vcmp.ge.f32.partialorder %v2896, 0.0
  %vm2951 = vcmp.ge.f32.partialorder %v2897, 0.0
  %vm2952 = vcmp.ge.f32.partialorder %v2898, 0.0
  %vm2953 = vcmp.ge.f32.partialorder %v2899, 0.0
  %vm2954 = vcmp.ge.f32.partialorder %v2900, 0.0
  %vm2955 = vcmp.ge.f32.partialorder %v2901, 0.0
  %vm2956 = vcmp.ge.f32.partialorder %v2902, 0.0
  %vm2957 = vcmp.ge.f32.partialorder %v2903, 0.0
  %vm2958 = vcmp.ge.f32.partialorder %v2904, 0.0
  %v2959 = vmul.f32 %v2851, 0.2
  %v2960 = vmul.f32 %v2852, 0.2
  %v2961 = vmul.f32 %v2853, 0.2
  %v2962 = vmul.f32 %v2854, 0.2
  %v2963 = vmul.f32 %v2855, 0.2
  %v2964 = vmul.f32 %v2856, 0.2
  %v2965 = vmul.f32 %v2857, 0.2
  %v2966 = vmul.f32 %v2858, 0.2
  %v2967 = vmul.f32 %v2859, 0.2
  %v2968 = vmul.f32 %v2860, 0.2
  %v2969 = vmul.f32 %v2861, 0.2
  %v2970 = vmul.f32 %v2862, 0.2
  %v2971 = vmul.f32 %v2863, 0.2
  %v2972 = vmul.f32 %v2864, 0.2
  %v2973 = vmul.f32 %v2865, 0.2
  %v2974 = vmul.f32 %v2866, 0.2
  %v2975 = vmul.f32 %v2867, 0.2
  %v2976 = vmul.f32 %v2868, 0.2
  %v2977 = vmul.f32 %v2869, 0.2
  %v2978 = vmul.f32 %v2870, 0.2
  %v2979 = vmul.f32 %v2871, 0.2
  %v2980 = vmul.f32 %v2872, 0.2
  %v2981 = vmul.f32 %v2873, 0.2
  %v2982 = vmul.f32 %v2874, 0.2
  %v2983 = vmul.f32 %v2875, 0.2
  %v2984 = vmul.f32 %v2876, 0.2
  %v2985 = vmul.f32 %v2877, 0.2
  %v2986 = vmul.f32 %v2878, 0.2
  %v2987 = vmul.f32 %v2879, 0.2
  %v2988 = vmul.f32 %v2880, 0.2
  %v2989 = vmul.f32 %v2881, 0.2
  %v2990 = vmul.f32 %v2882, 0.2
  %v2991 = vmul.f32 %v2883, 0.2
  %v2992 = vmul.f32 %v2884, 0.2
  %v2993 = vmul.f32 %v2885, 0.2
  %v2994 = vmul.f32 %v2886, 0.2
  %v2995 = vmul.f32 %v2887, 0.2
  %v2996 = vmul.f32 %v2888, 0.2
  %v2997 = vmul.f32 %v2889, 0.2
  %v2998 = vmul.f32 %v2890, 0.2
  %v2999 = vmul.f32 %v2891, 0.2
  %v3000 = vmul.f32 %v2892, 0.2
  %v3001 = vmul.f32 %v2893, 0.2
  %v3002 = vmul.f32 %v2894, 0.2
  %v3003 = vmul.f32 %v2895, 0.2
  %v3004 = vmul.f32 %v2896, 0.2
  %v3005 = vmul.f32 %v2897, 0.2
  %v3006 = vmul.f32 %v2898, 0.2
  %v3007 = vmul.f32 %v2899, 0.2
  %v3008 = vmul.f32 %v2900, 0.2
  %v3009 = vmul.f32 %v2901, 0.2
  %v3010 = vmul.f32 %v2902, 0.2
  %v3011 = vmul.f32 %v2903, 0.2
  %v3012 = vmul.f32 %v2904, 0.2
  %v3013 = vsel %vm2905, %v2851, %v2959
  %v3014 = vsel %vm2906, %v2852, %v2960
  %v3015 = vsel %vm2907, %v2853, %v2961
  %v3016 = vsel %vm2908, %v2854, %v2962
  %v3017 = vsel %vm2909, %v2855, %v2963
  %v3018 = vsel %vm2910, %v2856, %v2964
  %v3019 = vsel %vm2911, %v2857, %v2965
  %v3020 = vsel %vm2912, %v2858, %v2966
  %v3021 = vsel %vm2913, %v2859, %v2967
  %v3022 = vsel %vm2914, %v2860, %v2968
  %v3023 = vsel %vm2915, %v2861, %v2969
  %v3024 = vsel %vm2916, %v2862, %v2970
  %v3025 = vsel %vm2917, %v2863, %v2971
  %v3026 = vsel %vm2918, %v2864, %v2972
  %v3027 = vsel %vm2919, %v2865, %v2973
  %v3028 = vsel %vm2920, %v2866, %v2974
  %v3029 = vsel %vm2921, %v2867, %v2975
  %v3030 = vsel %vm2922, %v2868, %v2976
  %v3031 = vsel %vm2923, %v2869, %v2977
  %v3032 = vsel %vm2924, %v2870, %v2978
  %v3033 = vsel %vm2925, %v2871, %v2979
  %v3034 = vsel %vm2926, %v2872, %v2980
  %v3035 = vsel %vm2927, %v2873, %v2981
  %v3036 = vsel %vm2928, %v2874, %v2982
  %v3037 = vsel %vm2929, %v2875, %v2983
  %v3038 = vsel %vm2930, %v2876, %v2984
  %v3039 = vsel %vm2931, %v2877, %v2985
  %v3040 = vsel %vm2932, %v2878, %v2986
  %v3041 = vsel %vm2933, %v2879, %v2987
  %v3042 = vsel %vm2934, %v2880, %v2988
  %v3043 = vsel %vm2935, %v2881, %v2989
  %v3044 = vsel %vm2936, %v2882, %v2990
  %v3045 = vsel %vm2937, %v2883, %v2991
  %v3046 = vsel %vm2938, %v2884, %v2992
  %v3047 = vsel %vm2939, %v2885, %v2993
  %v3048 = vsel %vm2940, %v2886, %v2994
  %v3049 = vsel %vm2941, %v2887, %v2995
  %v3050 = vsel %vm2942, %v2888, %v2996
  %v3051 = vsel %vm2943, %v2889, %v2997
  %v3052 = vsel %vm2944, %v2890, %v2998
  %v3053 = vsel %vm2945, %v2891, %v2999
  %v3054 = vsel %vm2946, %v2892, %v3000
  %v3055 = vsel %vm2947, %v2893, %v3001
  %v3056 = vsel %vm2948, %v2894, %v3002
  %v3057 = vsel %vm2949, %v2895, %v3003
  %v3058 = vsel %vm2950, %v2896, %v3004
  %v3059 = vsel %vm2951, %v2897, %v3005
  %v3060 = vsel %vm2952, %v2898, %v3006
  %v3061 = vsel %vm2953, %v2899, %v3007
  %v3062 = vsel %vm2954, %v2900, %v3008
  %v3063 = vsel %vm2955, %v2901, %v3009
  %v3064 = vsel %vm2956, %v2902, %v3010
  %v3065 = vsel %vm2957, %v2903, %v3011
  %v3066 = vsel %vm2958, %v2904, %v3012
  %v3067 = vpack.c.bf16 %v3013, %v3013
  %v3068 = vpack.c.bf16 %v3014, %v3014
  %v3069 = vpack.c.bf16 %v3015, %v3015
  %v3070 = vpack.c.bf16 %v3016, %v3016
  %v3071 = vpack.c.bf16 %v3017, %v3017
  %v3072 = vpack.c.bf16 %v3018, %v3018
  %v3073 = vpack.c.bf16 %v3019, %v3019
  %v3074 = vpack.c.bf16 %v3020, %v3020
  %v3075 = vpack.c.bf16 %v3021, %v3021
  %v3076 = vpack.c.bf16 %v3022, %v3022
  %v3077 = vpack.c.bf16 %v3023, %v3023
  %v3078 = vpack.c.bf16 %v3024, %v3024
  %v3079 = vpack.c.bf16 %v3025, %v3025
  %v3080 = vpack.c.bf16 %v3026, %v3026
  %v3081 = vpack.c.bf16 %v3027, %v3027
  %v3082 = vpack.c.bf16 %v3028, %v3028
  %v3083 = vpack.c.bf16 %v3029, %v3029
  %v3084 = vpack.c.bf16 %v3030, %v3030
  %v3085 = vpack.c.bf16 %v3031, %v3031
  %v3086 = vpack.c.bf16 %v3032, %v3032
  %v3087 = vpack.c.bf16 %v3033, %v3033
  %v3088 = vpack.c.bf16 %v3034, %v3034
  %v3089 = vpack.c.bf16 %v3035, %v3035
  %v3090 = vpack.c.bf16 %v3036, %v3036
  %v3091 = vpack.c.bf16 %v3037, %v3037
  %v3092 = vpack.c.bf16 %v3038, %v3038
  %v3093 = vpack.c.bf16 %v3039, %v3039
  %v3094 = vpack.c.bf16 %v3040, %v3040
  %v3095 = vpack.c.bf16 %v3041, %v3041
  %v3096 = vpack.c.bf16 %v3042, %v3042
  %v3097 = vpack.c.bf16 %v3043, %v3043
  %v3098 = vpack.c.bf16 %v3044, %v3044
  %v3099 = vpack.c.bf16 %v3045, %v3045
  %v3100 = vpack.c.bf16 %v3046, %v3046
  %v3101 = vpack.c.bf16 %v3047, %v3047
  %v3102 = vpack.c.bf16 %v3048, %v3048
  %v3103 = vpack.c.bf16 %v3049, %v3049
  %v3104 = vpack.c.bf16 %v3050, %v3050
  %v3105 = vpack.c.bf16 %v3051, %v3051
  %v3106 = vpack.c.bf16 %v3052, %v3052
  %v3107 = vpack.c.bf16 %v3053, %v3053
  %v3108 = vpack.c.bf16 %v3054, %v3054
  %v3109 = vpack.c.bf16 %v3055, %v3055
  %v3110 = vpack.c.bf16 %v3056, %v3056
  %v3111 = vpack.c.bf16 %v3057, %v3057
  %v3112 = vpack.c.bf16 %v3058, %v3058
  %v3113 = vpack.c.bf16 %v3059, %v3059
  %v3114 = vpack.c.bf16 %v3060, %v3060
  %v3115 = vpack.c.bf16 %v3061, %v3061
  %v3116 = vpack.c.bf16 %v3062, %v3062
  %v3117 = vpack.c.bf16 %v3063, %v3063
  %v3118 = vpack.c.bf16 %v3064, %v3064
  %v3119 = vpack.c.bf16 %v3065, %v3065
  %v3120 = vpack.c.bf16 %v3066, %v3066
  %v3175 = vunpack.c.l.b16 %v3067
  %v3176 = vunpack.c.l.b16 %v3068
  %v3177 = vunpack.c.l.b16 %v3069
  %v3178 = vunpack.c.l.b16 %v3070
  %v3179 = vunpack.c.l.b16 %v3071
  %v3180 = vunpack.c.l.b16 %v3072
  %v3181 = vunpack.c.l.b16 %v3073
  %v3182 = vunpack.c.l.b16 %v3074
  %v3183 = vunpack.c.l.b16 %v3075
  %v3184 = vunpack.c.l.b16 %v3076
  %v3185 = vunpack.c.l.b16 %v3077
  %v3186 = vunpack.c.l.b16 %v3078
  %v3187 = vunpack.c.l.b16 %v3079
  %v3188 = vunpack.c.l.b16 %v3080
  %v3189 = vunpack.c.l.b16 %v3081
  %v3190 = vunpack.c.l.b16 %v3082
  %v3191 = vunpack.c.l.b16 %v3083
  %v3192 = vunpack.c.l.b16 %v3084
  %v3193 = vunpack.c.l.b16 %v3085
  %v3194 = vunpack.c.l.b16 %v3086
  %v3195 = vunpack.c.l.b16 %v3087
  %v3196 = vunpack.c.l.b16 %v3088
  %v3197 = vunpack.c.l.b16 %v3089
  %v3198 = vunpack.c.l.b16 %v3090
  %v3199 = vunpack.c.l.b16 %v3091
  %v3200 = vunpack.c.l.b16 %v3092
  %v3201 = vunpack.c.l.b16 %v3093
  %v3202 = vunpack.c.l.b16 %v3094
  %v3203 = vunpack.c.l.b16 %v3095
  %v3204 = vunpack.c.l.b16 %v3096
  %v3205 = vunpack.c.l.b16 %v3097
  %v3206 = vunpack.c.l.b16 %v3098
  %v3207 = vunpack.c.l.b16 %v3099
  %v3208 = vunpack.c.l.b16 %v3100
  %v3209 = vunpack.c.l.b16 %v3101
  %v3210 = vunpack.c.l.b16 %v3102
  %v3211 = vunpack.c.l.b16 %v3103
  %v3212 = vunpack.c.l.b16 %v3104
  %v3213 = vunpack.c.l.b16 %v3105
  %v3214 = vunpack.c.l.b16 %v3106
  %v3215 = vunpack.c.l.b16 %v3107
  %v3216 = vunpack.c.l.b16 %v3108
  %v3217 = vunpack.c.l.b16 %v3109
  %v3218 = vunpack.c.l.b16 %v3110
  %v3219 = vunpack.c.l.b16 %v3111
  %v3220 = vunpack.c.l.b16 %v3112
  %v3221 = vunpack.c.l.b16 %v3113
  %v3222 = vunpack.c.l.b16 %v3114
  %v3223 = vunpack.c.l.b16 %v3115
  %v3224 = vunpack.c.l.b16 %v3116
  %v3225 = vunpack.c.l.b16 %v3117
  %v3226 = vunpack.c.l.b16 %v3118
  %v3227 = vunpack.c.l.b16 %v3119
  %v3228 = vunpack.c.l.b16 %v3120
  %v3229 = vpack.c.b16 %v3176, %v3175
  %v3230 = vpack.c.b16 %v3178, %v3177
  %v3231 = vpack.c.b16 %v3180, %v3179
  %v3232 = vpack.c.b16 %v3182, %v3181
  %v3233 = vpack.c.b16 %v3184, %v3183
  %v3234 = vpack.c.b16 %v3186, %v3185
  %v3235 = vpack.c.b16 %v3188, %v3187
  %v3236 = vpack.c.b16 %v3190, %v3189
  %v3237 = vpack.c.b16 %v3192, %v3191
  %v3238 = vpack.c.b16 %v3194, %v3193
  %v3239 = vpack.c.b16 %v3196, %v3195
  %v3240 = vpack.c.b16 %v3198, %v3197
  %v3241 = vpack.c.b16 %v3200, %v3199
  %v3242 = vpack.c.b16 %v3202, %v3201
  %v3243 = vpack.c.b16 %v3204, %v3203
  %v3244 = vpack.c.b16 %v3206, %v3205
  %v3245 = vpack.c.b16 %v3208, %v3207
  %v3246 = vpack.c.b16 %v3210, %v3209
  %v3247 = vpack.c.b16 %v3212, %v3211
  %v3248 = vpack.c.b16 %v3214, %v3213
  %v3249 = vpack.c.b16 %v3216, %v3215
  %v3250 = vpack.c.b16 %v3218, %v3217
  %v3251 = vpack.c.b16 %v3220, %v3219
  %v3252 = vpack.c.b16 %v3222, %v3221
  %v3253 = vpack.c.b16 %v3224, %v3223
  %v3254 = vpack.c.b16 %v3226, %v3225
  %v3255 = vpack.c.b16 %v3228, %v3227
  %v3257 = vshrl.u32 %v3229, 16
  %v3259 = vshll.u32 %v3229, 16
  %v3261 = vrot.slane %v3259, 1
  %v3262 = vor.u32 %v3257, %v3261
  %v3264 = vshll.u32 %v3230, 16
  %v3266 = vrot.slane %v3264, 1
  %v3267 = vsel %vm872, %v3262, %v3266
  %v3268 = vshrl.u32 %v3230, 16
  %v3270 = vor.u32 %v3268, %v3266
  %v3272 = vshll.u32 %v3231, 16
  %v3274 = vrot.slane %v3272, 1
  %v3275 = vsel %vm872, %v3270, %v3274
  %v3276 = vshrl.u32 %v3231, 16
  %v3278 = vor.u32 %v3276, %v3274
  %v3280 = vshll.u32 %v3232, 16
  %v3282 = vrot.slane %v3280, 1
  %v3283 = vsel %vm872, %v3278, %v3282
  %v3284 = vshrl.u32 %v3232, 16
  %v3286 = vor.u32 %v3284, %v3282
  %v3288 = vshll.u32 %v3233, 16
  %v3290 = vrot.slane %v3288, 1
  %v3291 = vsel %vm872, %v3286, %v3290
  %v3292 = vshrl.u32 %v3233, 16
  %v3294 = vor.u32 %v3292, %v3290
  %v3296 = vshll.u32 %v3234, 16
  %v3298 = vrot.slane %v3296, 1
  %v3299 = vsel %vm872, %v3294, %v3298
  %v3300 = vshrl.u32 %v3234, 16
  %v3302 = vor.u32 %v3300, %v3298
  %v3304 = vshll.u32 %v3235, 16
  %v3306 = vrot.slane %v3304, 1
  %v3307 = vsel %vm872, %v3302, %v3306
  %v3308 = vshrl.u32 %v3235, 16
  %v3310 = vor.u32 %v3308, %v3306
  %v3312 = vshll.u32 %v3236, 16
  %v3314 = vrot.slane %v3312, 1
  %v3315 = vsel %vm872, %v3310, %v3314
  %v3316 = vshrl.u32 %v3236, 16
  %v3318 = vor.u32 %v3316, %v3314
  %v3320 = vshll.u32 %v3237, 16
  %v3322 = vrot.slane %v3320, 1
  %v3323 = vsel %vm872, %v3318, %v3322
  %v3324 = vshrl.u32 %v3237, 16
  %v3326 = vor.u32 %v3324, %v3322
  %v3328 = vshll.u32 %v3238, 16
  %v3330 = vrot.slane %v3328, 1
  %v3331 = vsel %vm872, %v3326, %v3330
  %v3332 = vshrl.u32 %v3238, 16
  %v3334 = vor.u32 %v3332, %v3330
  %v3336 = vshll.u32 %v3239, 16
  %v3338 = vrot.slane %v3336, 1
  %v3339 = vsel %vm872, %v3334, %v3338
  %v3340 = vshrl.u32 %v3239, 16
  %v3342 = vor.u32 %v3340, %v3338
  %v3344 = vshll.u32 %v3240, 16
  %v3346 = vrot.slane %v3344, 1
  %v3347 = vsel %vm872, %v3342, %v3346
  %v3348 = vshrl.u32 %v3240, 16
  %v3350 = vor.u32 %v3348, %v3346
  %v3352 = vshll.u32 %v3241, 16
  %v3354 = vrot.slane %v3352, 1
  %v3355 = vsel %vm872, %v3350, %v3354
  %v3356 = vshrl.u32 %v3241, 16
  %v3358 = vor.u32 %v3356, %v3354
  %v3360 = vshll.u32 %v3242, 16
  %v3362 = vrot.slane %v3360, 1
  %v3363 = vsel %vm872, %v3358, %v3362
  %v3364 = vshrl.u32 %v3242, 16
  %v3366 = vor.u32 %v3364, %v3362
  %v3368 = vshll.u32 %v3243, 16
  %v3370 = vrot.slane %v3368, 1
  %v3371 = vsel %vm872, %v3366, %v3370
  %v3372 = vshrl.u32 %v3243, 16
  %v3374 = vor.u32 %v3372, %v3370
  %v3376 = vshll.u32 %v3244, 16
  %v3378 = vrot.slane %v3376, 1
  %v3379 = vsel %vm872, %v3374, %v3378
  %v3380 = vshrl.u32 %v3244, 16
  %v3382 = vor.u32 %v3380, %v3378
  %v3384 = vshll.u32 %v3245, 16
  %v3386 = vrot.slane %v3384, 1
  %v3387 = vsel %vm872, %v3382, %v3386
  %v3388 = vshrl.u32 %v3245, 16
  %v3390 = vor.u32 %v3388, %v3386
  %v3392 = vshll.u32 %v3246, 16
  %v3394 = vrot.slane %v3392, 1
  %v3395 = vsel %vm872, %v3390, %v3394
  %v3396 = vshrl.u32 %v3246, 16
  %v3398 = vor.u32 %v3396, %v3394
  %v3400 = vshll.u32 %v3247, 16
  %v3402 = vrot.slane %v3400, 1
  %v3403 = vsel %vm872, %v3398, %v3402
  %v3404 = vshrl.u32 %v3247, 16
  %v3406 = vor.u32 %v3404, %v3402
  %v3408 = vshll.u32 %v3248, 16
  %v3410 = vrot.slane %v3408, 1
  %v3411 = vsel %vm872, %v3406, %v3410
  %v3412 = vshrl.u32 %v3248, 16
  %v3414 = vor.u32 %v3412, %v3410
  %v3416 = vshll.u32 %v3249, 16
  %v3418 = vrot.slane %v3416, 1
  %v3419 = vsel %vm872, %v3414, %v3418
  %v3420 = vshrl.u32 %v3249, 16
  %v3422 = vor.u32 %v3420, %v3418
  %v3424 = vshll.u32 %v3250, 16
  %v3426 = vrot.slane %v3424, 1
  %v3427 = vsel %vm872, %v3422, %v3426
  %v3428 = vshrl.u32 %v3250, 16
  %v3430 = vor.u32 %v3428, %v3426
  %v3432 = vshll.u32 %v3251, 16
  %v3434 = vrot.slane %v3432, 1
  %v3435 = vsel %vm872, %v3430, %v3434
  %v3436 = vshrl.u32 %v3251, 16
  %v3438 = vor.u32 %v3436, %v3434
  %v3440 = vshll.u32 %v3252, 16
  %v3442 = vrot.slane %v3440, 1
  %v3443 = vsel %vm872, %v3438, %v3442
  %v3444 = vshrl.u32 %v3252, 16
  %v3446 = vor.u32 %v3444, %v3442
  %v3448 = vshll.u32 %v3253, 16
  %v3450 = vrot.slane %v3448, 1
  %v3451 = vsel %vm872, %v3446, %v3450
  %v3452 = vshrl.u32 %v3253, 16
  %v3454 = vor.u32 %v3452, %v3450
  %v3456 = vshll.u32 %v3254, 16
  %v3458 = vrot.slane %v3456, 1
  %v3459 = vsel %vm872, %v3454, %v3458
  %v3460 = vshrl.u32 %v3254, 16
  %v3462 = vor.u32 %v3460, %v3458
  %v3464 = vshll.u32 %v3255, 16
  %v3466 = vrot.slane %v3464, 1
  %v3467 = vsel %vm872, %v3462, %v3466
  %v3468 = vshrl.u32 %v3255, 16
  %v3470 = vor.u32 %v3468, %v3466
  %3471 = vrot.lane.b32.xlu0 %v3267, 32
  %v3472 = vpop.permute.xlu0 %3471
  %3473 = vrot.lane.b32.xlu0 %v3275, 32
  %v3474 = vpop.permute.xlu0 %3473
  %3475 = vrot.lane.b32.xlu0 %v3283, 32
  %v3476 = vpop.permute.xlu0 %3475
  %3477 = vrot.lane.b32.xlu0 %v3291, 32
  %v3478 = vpop.permute.xlu0 %3477
  %3479 = vrot.lane.b32.xlu0 %v3299, 32
  %v3480 = vpop.permute.xlu0 %3479
  %3481 = vrot.lane.b32.xlu0 %v3307, 32
  %v3482 = vpop.permute.xlu0 %3481
  %3483 = vrot.lane.b32.xlu0 %v3315, 32
  %v3484 = vpop.permute.xlu0 %3483
  %3485 = vrot.lane.b32.xlu0 %v3323, 32
  %v3486 = vpop.permute.xlu0 %3485
  %3487 = vrot.lane.b32.xlu0 %v3331, 32
  %v3488 = vpop.permute.xlu0 %3487
  %3489 = vrot.lane.b32.xlu0 %v3339, 32
  %v3490 = vpop.permute.xlu0 %3489
  %3491 = vrot.lane.b32.xlu0 %v3347, 32
  %v3492 = vpop.permute.xlu0 %3491
  %3493 = vrot.lane.b32.xlu0 %v3355, 32
  %v3494 = vpop.permute.xlu0 %3493
  %3495 = vrot.lane.b32.xlu0 %v3363, 32
  %v3496 = vpop.permute.xlu0 %3495
  %3497 = vrot.lane.b32.xlu0 %v3371, 32
  %v3498 = vpop.permute.xlu0 %3497
  %3499 = vrot.lane.b32.xlu0 %v3379, 32
  %v3500 = vpop.permute.xlu0 %3499
  %3501 = vrot.lane.b32.xlu0 %v3387, 32
  %v3502 = vpop.permute.xlu0 %3501
  %3503 = vrot.lane.b32.xlu0 %v3395, 32
  %v3504 = vpop.permute.xlu0 %3503
  %3505 = vrot.lane.b32.xlu0 %v3403, 32
  %v3506 = vpop.permute.xlu0 %3505
  %3507 = vrot.lane.b32.xlu0 %v3411, 32
  %v3508 = vpop.permute.xlu0 %3507
  %3509 = vrot.lane.b32.xlu0 %v3419, 32
  %v3510 = vpop.permute.xlu0 %3509
  %3511 = vrot.lane.b32.xlu0 %v3427, 32
  %v3512 = vpop.permute.xlu0 %3511
  %3513 = vrot.lane.b32.xlu0 %v3435, 32
  %v3514 = vpop.permute.xlu0 %3513
  %3515 = vrot.lane.b32.xlu0 %v3443, 32
  %v3516 = vpop.permute.xlu0 %3515
  %3517 = vrot.lane.b32.xlu0 %v3451, 32
  %v3518 = vpop.permute.xlu0 %3517
  %3519 = vrot.lane.b32.xlu0 %v3459, 32
  %v3520 = vpop.permute.xlu0 %3519
  %3521 = vrot.lane.b32.xlu0 %v3467, 32
  %v3522 = vpop.permute.xlu0 %3521
  %3523 = vrot.lane.b32.xlu0 %v3470, 32
  %v3524 = vpop.permute.xlu0 %3523
  %v3525 = vrot.slane %v3229, 1
  %v3526 = vrot.slane %v3230, 1
  %v3527 = vsel %vm1162, %v3525, %v3526
  %v3528 = vrot.slane %v3231, 1
  %v3529 = vsel %vm1162, %v3526, %v3528
  %v3530 = vrot.slane %v3232, 1
  %v3531 = vsel %vm1162, %v3528, %v3530
  %v3532 = vrot.slane %v3233, 1
  %v3533 = vsel %vm1162, %v3530, %v3532
  %v3534 = vrot.slane %v3234, 1
  %v3535 = vsel %vm1162, %v3532, %v3534
  %v3536 = vrot.slane %v3235, 1
  %v3537 = vsel %vm1162, %v3534, %v3536
  %v3538 = vrot.slane %v3236, 1
  %v3539 = vsel %vm1162, %v3536, %v3538
  %v3540 = vrot.slane %v3237, 1
  %v3541 = vsel %vm1162, %v3538, %v3540
  %v3542 = vrot.slane %v3238, 1
  %v3543 = vsel %vm1162, %v3540, %v3542
  %v3544 = vrot.slane %v3239, 1
  %v3545 = vsel %vm1162, %v3542, %v3544
  %v3546 = vrot.slane %v3240, 1
  %v3547 = vsel %vm1162, %v3544, %v3546
  %v3548 = vrot.slane %v3241, 1
  %v3549 = vsel %vm1162, %v3546, %v3548
  %v3550 = vrot.slane %v3242, 1
  %v3551 = vsel %vm1162, %v3548, %v3550
  %v3552 = vrot.slane %v3243, 1
  %v3553 = vsel %vm1162, %v3550, %v3552
  %v3554 = vrot.slane %v3244, 1
  %v3555 = vsel %vm1162, %v3552, %v3554
  %v3556 = vrot.slane %v3245, 1
  %v3557 = vsel %vm1162, %v3554, %v3556
  %v3558 = vrot.slane %v3246, 1
  %v3559 = vsel %vm1162, %v3556, %v3558
  %v3560 = vrot.slane %v3247, 1
  %v3561 = vsel %vm1162, %v3558, %v3560
  %v3562 = vrot.slane %v3248, 1
  %v3563 = vsel %vm1162, %v3560, %v3562
  %v3564 = vrot.slane %v3249, 1
  %v3565 = vsel %vm1162, %v3562, %v3564
  %v3566 = vrot.slane %v3250, 1
  %v3567 = vsel %vm1162, %v3564, %v3566
  %v3568 = vrot.slane %v3251, 1
  %v3569 = vsel %vm1162, %v3566, %v3568
  %v3570 = vrot.slane %v3252, 1
  %v3571 = vsel %vm1162, %v3568, %v3570
  %v3572 = vrot.slane %v3253, 1
  %v3573 = vsel %vm1162, %v3570, %v3572
  %v3574 = vrot.slane %v3254, 1
  %v3575 = vsel %vm1162, %v3572, %v3574
  %v3576 = vrot.slane %v3255, 1
  %v3577 = vsel %vm1162, %v3574, %v3576
  %3578 = vrot.lane.b32.xlu0 %v3527, 64
  %v3579 = vpop.permute.xlu0 %3578
  %3580 = vrot.lane.b32.xlu0 %v3529, 64
  %v3581 = vpop.permute.xlu0 %3580
  %3582 = vrot.lane.b32.xlu0 %v3531, 64
  %v3583 = vpop.permute.xlu0 %3582
  %3584 = vrot.lane.b32.xlu0 %v3533, 64
  %v3585 = vpop.permute.xlu0 %3584
  %3586 = vrot.lane.b32.xlu0 %v3535, 64
  %v3587 = vpop.permute.xlu0 %3586
  %3588 = vrot.lane.b32.xlu0 %v3537, 64
  %v3589 = vpop.permute.xlu0 %3588
  %3590 = vrot.lane.b32.xlu0 %v3539, 64
  %v3591 = vpop.permute.xlu0 %3590
  %3592 = vrot.lane.b32.xlu0 %v3541, 64
  %v3593 = vpop.permute.xlu0 %3592
  %3594 = vrot.lane.b32.xlu0 %v3543, 64
  %v3595 = vpop.permute.xlu0 %3594
  %3596 = vrot.lane.b32.xlu0 %v3545, 64
  %v3597 = vpop.permute.xlu0 %3596
  %3598 = vrot.lane.b32.xlu0 %v3547, 64
  %v3599 = vpop.permute.xlu0 %3598
  %3600 = vrot.lane.b32.xlu0 %v3549, 64
  %v3601 = vpop.permute.xlu0 %3600
  %3602 = vrot.lane.b32.xlu0 %v3551, 64
  %v3603 = vpop.permute.xlu0 %3602
  %3604 = vrot.lane.b32.xlu0 %v3553, 64
  %v3605 = vpop.permute.xlu0 %3604
  %3606 = vrot.lane.b32.xlu0 %v3555, 64
  %v3607 = vpop.permute.xlu0 %3606
  %3608 = vrot.lane.b32.xlu0 %v3557, 64
  %v3609 = vpop.permute.xlu0 %3608
  %3610 = vrot.lane.b32.xlu0 %v3559, 64
  %v3611 = vpop.permute.xlu0 %3610
  %3612 = vrot.lane.b32.xlu0 %v3561, 64
  %v3613 = vpop.permute.xlu0 %3612
  %3614 = vrot.lane.b32.xlu0 %v3563, 64
  %v3615 = vpop.permute.xlu0 %3614
  %3616 = vrot.lane.b32.xlu0 %v3565, 64
  %v3617 = vpop.permute.xlu0 %3616
  %3618 = vrot.lane.b32.xlu0 %v3567, 64
  %v3619 = vpop.permute.xlu0 %3618
  %3620 = vrot.lane.b32.xlu0 %v3569, 64
  %v3621 = vpop.permute.xlu0 %3620
  %3622 = vrot.lane.b32.xlu0 %v3571, 64
  %v3623 = vpop.permute.xlu0 %3622
  %3624 = vrot.lane.b32.xlu0 %v3573, 64
  %v3625 = vpop.permute.xlu0 %3624
  %3626 = vrot.lane.b32.xlu0 %v3575, 64
  %v3627 = vpop.permute.xlu0 %3626
  %3628 = vrot.lane.b32.xlu0 %v3577, 64
  %v3629 = vpop.permute.xlu0 %3628
  %3630 = vrot.lane.b32.xlu0 %v3576, 64
  %v3631 = vpop.permute.xlu0 %3630
  %v3633 = vsel %vm1278, %v3229, %v3472
  %v3635 = vsel %vm1278, %v3230, %v3474
  %v3637 = vsel %vm1278, %v3231, %v3476
  %v3639 = vsel %vm1278, %v3232, %v3478
  %v3641 = vsel %vm1278, %v3233, %v3480
  %v3643 = vsel %vm1278, %v3234, %v3482
  %v3645 = vsel %vm1278, %v3235, %v3484
  %v3647 = vsel %vm1278, %v3236, %v3486
  %v3649 = vsel %vm1278, %v3237, %v3488
  %v3651 = vsel %vm1278, %v3238, %v3490
  %v3653 = vsel %vm1278, %v3239, %v3492
  %v3655 = vsel %vm1278, %v3240, %v3494
  %v3657 = vsel %vm1278, %v3241, %v3496
  %v3659 = vsel %vm1278, %v3242, %v3498
  %v3661 = vsel %vm1278, %v3243, %v3500
  %v3663 = vsel %vm1278, %v3244, %v3502
  %v3665 = vsel %vm1278, %v3245, %v3504
  %v3667 = vsel %vm1278, %v3246, %v3506
  %v3669 = vsel %vm1278, %v3247, %v3508
  %v3671 = vsel %vm1278, %v3248, %v3510
  %v3673 = vsel %vm1278, %v3249, %v3512
  %v3675 = vsel %vm1278, %v3250, %v3514
  %v3677 = vsel %vm1278, %v3251, %v3516
  %v3679 = vsel %vm1278, %v3252, %v3518
  %v3681 = vsel %vm1278, %v3253, %v3520
  %v3683 = vsel %vm1278, %v3254, %v3522
  %v3685 = vsel %vm1278, %v3255, %v3524
  %v3687 = vsel %vm1337, %v3633, %v3579
  %v3689 = vsel %vm1337, %v3635, %v3581
  %v3691 = vsel %vm1337, %v3637, %v3583
  %v3693 = vsel %vm1337, %v3639, %v3585
  %v3695 = vsel %vm1337, %v3641, %v3587
  %v3697 = vsel %vm1337, %v3643, %v3589
  %v3699 = vsel %vm1337, %v3645, %v3591
  %v3701 = vsel %vm1337, %v3647, %v3593
  %v3703 = vsel %vm1337, %v3649, %v3595
  %v3705 = vsel %vm1337, %v3651, %v3597
  %v3707 = vsel %vm1337, %v3653, %v3599
  %v3709 = vsel %vm1337, %v3655, %v3601
  %v3711 = vsel %vm1337, %v3657, %v3603
  %v3713 = vsel %vm1337, %v3659, %v3605
  %v3715 = vsel %vm1337, %v3661, %v3607
  %v3717 = vsel %vm1337, %v3663, %v3609
  %v3719 = vsel %vm1337, %v3665, %v3611
  %v3721 = vsel %vm1337, %v3667, %v3613
  %v3723 = vsel %vm1337, %v3669, %v3615
  %v3725 = vsel %vm1337, %v3671, %v3617
  %v3727 = vsel %vm1337, %v3673, %v3619
  %v3729 = vsel %vm1337, %v3675, %v3621
  %v3731 = vsel %vm1337, %v3677, %v3623
  %v3733 = vsel %vm1337, %v3679, %v3625
  %v3735 = vsel %vm1337, %v3681, %v3627
  %v3737 = vsel %vm1337, %v3683, %v3629
  %v3739 = vsel %vm1337, %v3685, %v3631
  %v3767 = vunpack.c.l.b16 %v3687
  %v3768 = vunpack.c.h.b16 %v3687
  %v3769 = vunpack.c.l.b16 %v3689
  %v3770 = vunpack.c.h.b16 %v3689
  %v3771 = vunpack.c.l.b16 %v3691
  %v3772 = vunpack.c.h.b16 %v3691
  %v3773 = vunpack.c.l.b16 %v3693
  %v3774 = vunpack.c.h.b16 %v3693
  %v3775 = vunpack.c.l.b16 %v3695
  %v3776 = vunpack.c.h.b16 %v3695
  %v3777 = vunpack.c.l.b16 %v3697
  %v3778 = vunpack.c.h.b16 %v3697
  %v3779 = vunpack.c.l.b16 %v3699
  %v3780 = vunpack.c.h.b16 %v3699
  %v3781 = vunpack.c.l.b16 %v3701
  %v3782 = vunpack.c.h.b16 %v3701
  %v3783 = vunpack.c.l.b16 %v3703
  %v3784 = vunpack.c.h.b16 %v3703
  %v3785 = vunpack.c.l.b16 %v3705
  %v3786 = vunpack.c.h.b16 %v3705
  %v3787 = vunpack.c.l.b16 %v3707
  %v3788 = vunpack.c.h.b16 %v3707
  %v3789 = vunpack.c.l.b16 %v3709
  %v3790 = vunpack.c.h.b16 %v3709
  %v3791 = vunpack.c.l.b16 %v3711
  %v3792 = vunpack.c.h.b16 %v3711
  %v3793 = vunpack.c.l.b16 %v3713
  %v3794 = vunpack.c.h.b16 %v3713
  %v3795 = vunpack.c.l.b16 %v3715
  %v3796 = vunpack.c.h.b16 %v3715
  %v3797 = vunpack.c.l.b16 %v3717
  %v3798 = vunpack.c.h.b16 %v3717
  %v3799 = vunpack.c.l.b16 %v3719
  %v3800 = vunpack.c.h.b16 %v3719
  %v3801 = vunpack.c.l.b16 %v3721
  %v3802 = vunpack.c.h.b16 %v3721
  %v3803 = vunpack.c.l.b16 %v3723
  %v3804 = vunpack.c.h.b16 %v3723
  %v3805 = vunpack.c.l.b16 %v3725
  %v3806 = vunpack.c.h.b16 %v3725
  %v3807 = vunpack.c.l.b16 %v3727
  %v3808 = vunpack.c.h.b16 %v3727
  %v3809 = vunpack.c.l.b16 %v3729
  %v3810 = vunpack.c.h.b16 %v3729
  %v3811 = vunpack.c.l.b16 %v3731
  %v3812 = vunpack.c.h.b16 %v3731
  %v3813 = vunpack.c.l.b16 %v3733
  %v3814 = vunpack.c.h.b16 %v3733
  %v3815 = vunpack.c.l.b16 %v3735
  %v3816 = vunpack.c.h.b16 %v3735
  %v3817 = vunpack.c.l.b16 %v3737
  %v3818 = vunpack.c.h.b16 %v3737
  %v3819 = vunpack.c.l.b16 %v3739
  %v3820 = vunpack.c.h.b16 %v3739
  %v3821 = vpack.c.b16 %v3767, %v3767
  %v3822 = vpack.c.b16 %v3768, %v3768
  %v3823 = vpack.c.b16 %v3769, %v3769
  %v3824 = vpack.c.b16 %v3770, %v3770
  %v3825 = vpack.c.b16 %v3771, %v3771
  %v3826 = vpack.c.b16 %v3772, %v3772
  %v3827 = vpack.c.b16 %v3773, %v3773
  %v3828 = vpack.c.b16 %v3774, %v3774
  %v3829 = vpack.c.b16 %v3775, %v3775
  %v3830 = vpack.c.b16 %v3776, %v3776
  %v3831 = vpack.c.b16 %v3777, %v3777
  %v3832 = vpack.c.b16 %v3778, %v3778
  %v3833 = vpack.c.b16 %v3779, %v3779
  %v3834 = vpack.c.b16 %v3780, %v3780
  %v3835 = vpack.c.b16 %v3781, %v3781
  %v3836 = vpack.c.b16 %v3782, %v3782
  %v3837 = vpack.c.b16 %v3783, %v3783
  %v3838 = vpack.c.b16 %v3784, %v3784
  %v3839 = vpack.c.b16 %v3785, %v3785
  %v3840 = vpack.c.b16 %v3786, %v3786
  %v3841 = vpack.c.b16 %v3787, %v3787
  %v3842 = vpack.c.b16 %v3788, %v3788
  %v3843 = vpack.c.b16 %v3789, %v3789
  %v3844 = vpack.c.b16 %v3790, %v3790
  %v3845 = vpack.c.b16 %v3791, %v3791
  %v3846 = vpack.c.b16 %v3792, %v3792
  %v3847 = vpack.c.b16 %v3793, %v3793
  %v3848 = vpack.c.b16 %v3794, %v3794
  %v3849 = vpack.c.b16 %v3795, %v3795
  %v3850 = vpack.c.b16 %v3796, %v3796
  %v3851 = vpack.c.b16 %v3797, %v3797
  %v3852 = vpack.c.b16 %v3798, %v3798
  %v3853 = vpack.c.b16 %v3799, %v3799
  %v3854 = vpack.c.b16 %v3800, %v3800
  %v3855 = vpack.c.b16 %v3801, %v3801
  %v3856 = vpack.c.b16 %v3802, %v3802
  %v3857 = vpack.c.b16 %v3803, %v3803
  %v3858 = vpack.c.b16 %v3804, %v3804
  %v3859 = vpack.c.b16 %v3805, %v3805
  %v3860 = vpack.c.b16 %v3806, %v3806
  %v3861 = vpack.c.b16 %v3807, %v3807
  %v3862 = vpack.c.b16 %v3808, %v3808
  %v3863 = vpack.c.b16 %v3809, %v3809
  %v3864 = vpack.c.b16 %v3810, %v3810
  %v3865 = vpack.c.b16 %v3811, %v3811
  %v3866 = vpack.c.b16 %v3812, %v3812
  %v3867 = vpack.c.b16 %v3813, %v3813
  %v3868 = vpack.c.b16 %v3814, %v3814
  %v3869 = vpack.c.b16 %v3815, %v3815
  %v3870 = vpack.c.b16 %v3816, %v3816
  %v3871 = vpack.c.b16 %v3817, %v3817
  %v3872 = vpack.c.b16 %v3818, %v3818
  %v3873 = vpack.c.b16 %v3819, %v3819
  %v3874 = vpack.c.b16 %v3820, %v3820
  %3929 = vst.msk [vmem:[#allocation3] sm:$0xf] %vm1599, %v3821
  %3930 = vst.msk [vmem:[#allocation3 + $0x4] sm:$0xf] %vm1599, %v3822
  %3931 = vst.msk [vmem:[#allocation3 + $0x8] sm:$0xf] %vm1599, %v3823
  %3932 = vst.msk [vmem:[#allocation3 + $0xc] sm:$0xf] %vm1599, %v3824
  %3933 = vst.msk [vmem:[#allocation3 + $0x10] sm:$0xf] %vm1599, %v3825
  %3934 = vst.msk [vmem:[#allocation3 + $0x14] sm:$0xf] %vm1599, %v3826
  %3935 = vst.msk [vmem:[#allocation3 + $0x18] sm:$0xf] %vm1599, %v3827
  %3936 = vst.msk [vmem:[#allocation3 + $0x1c] sm:$0xf] %vm1599, %v3828
  %3937 = vst.msk [vmem:[#allocation3 + $0x20] sm:$0xf] %vm1599, %v3829
  %3938 = vst.msk [vmem:[#allocation3 + $0x24] sm:$0xf] %vm1599, %v3830
  %3939 = vst.msk [vmem:[#allocation3 + $0x28] sm:$0xf] %vm1599, %v3831
  %3940 = vst.msk [vmem:[#allocation3 + $0x2c] sm:$0xf] %vm1599, %v3832
  %3941 = vst.msk [vmem:[#allocation3 + $0x30] sm:$0xf] %vm1599, %v3833
  %3942 = vst.msk [vmem:[#allocation3 + $0x34] sm:$0xf] %vm1599, %v3834
  %3943 = vst.msk [vmem:[#allocation3 + $0x38] sm:$0xf] %vm1599, %v3835
  %3944 = vst.msk [vmem:[#allocation3 + $0x3c] sm:$0xf] %vm1599, %v3836
  %3945 = vst.msk [vmem:[#allocation3 + $0x40] sm:$0xf] %vm1599, %v3837
  %3946 = vst.msk [vmem:[#allocation3 + $0x44] sm:$0xf] %vm1599, %v3838
  %3947 = vst.msk [vmem:[#allocation3 + $0x48] sm:$0xf] %vm1599, %v3839
  %3948 = vst.msk [vmem:[#allocation3 + $0x4c] sm:$0xf] %vm1599, %v3840
  %3949 = vst.msk [vmem:[#allocation3 + $0x50] sm:$0xf] %vm1599, %v3841
  %3950 = vst.msk [vmem:[#allocation3 + $0x54] sm:$0xf] %vm1599, %v3842
  %3951 = vst.msk [vmem:[#allocation3 + $0x58] sm:$0xf] %vm1599, %v3843
  %3952 = vst.msk [vmem:[#allocation3 + $0x5c] sm:$0xf] %vm1599, %v3844
  %3953 = vst.msk [vmem:[#allocation3 + $0x60] sm:$0xf] %vm1599, %v3845
  %3954 = vst.msk [vmem:[#allocation3 + $0x64] sm:$0xf] %vm1599, %v3846
  %3955 = vst.msk [vmem:[#allocation3 + $0x68] sm:$0xf] %vm1599, %v3847
  %3956 = vst.msk [vmem:[#allocation3 + $0x6c] sm:$0xf] %vm1599, %v3848
  %3957 = vst.msk [vmem:[#allocation3 + $0x70] sm:$0xf] %vm1599, %v3849
  %3958 = vst.msk [vmem:[#allocation3 + $0x74] sm:$0xf] %vm1599, %v3850
  %3959 = vst.msk [vmem:[#allocation3 + $0x78] sm:$0xf] %vm1599, %v3851
  %3960 = vst.msk [vmem:[#allocation3 + $0x7c] sm:$0xf] %vm1599, %v3852
  %3961 = vst.msk [vmem:[#allocation3 + $0x80] sm:$0xf] %vm1599, %v3853
  %3962 = vst.msk [vmem:[#allocation3 + $0x84] sm:$0xf] %vm1599, %v3854
  %3963 = vst.msk [vmem:[#allocation3 + $0x88] sm:$0xf] %vm1599, %v3855
  %3964 = vst.msk [vmem:[#allocation3 + $0x8c] sm:$0xf] %vm1599, %v3856
  %3965 = vst.msk [vmem:[#allocation3 + $0x90] sm:$0xf] %vm1599, %v3857
  %3966 = vst.msk [vmem:[#allocation3 + $0x94] sm:$0xf] %vm1599, %v3858
  %3967 = vst.msk [vmem:[#allocation3 + $0x98] sm:$0xf] %vm1599, %v3859
  %3968 = vst.msk [vmem:[#allocation3 + $0x9c] sm:$0xf] %vm1599, %v3860
  %3969 = vst.msk [vmem:[#allocation3 + $0xa0] sm:$0xf] %vm1599, %v3861
  %3970 = vst.msk [vmem:[#allocation3 + $0xa4] sm:$0xf] %vm1599, %v3862
  %3971 = vst.msk [vmem:[#allocation3 + $0xa8] sm:$0xf] %vm1599, %v3863
  %3972 = vst.msk [vmem:[#allocation3 + $0xac] sm:$0xf] %vm1599, %v3864
  %3973 = vst.msk [vmem:[#allocation3 + $0xb0] sm:$0xf] %vm1599, %v3865
  %3974 = vst.msk [vmem:[#allocation3 + $0xb4] sm:$0xf] %vm1599, %v3866
  %3975 = vst.msk [vmem:[#allocation3 + $0xb8] sm:$0xf] %vm1599, %v3867
  %3976 = vst.msk [vmem:[#allocation3 + $0xbc] sm:$0xf] %vm1599, %v3868
  %3977 = vst.msk [vmem:[#allocation3 + $0xc0] sm:$0xf] %vm1599, %v3869
  %3978 = vst.msk [vmem:[#allocation3 + $0xc4] sm:$0xf] %vm1599, %v3870
  %3979 = vst.msk [vmem:[#allocation3 + $0xc8] sm:$0xf] %vm1599, %v3871
  %3980 = vst.msk [vmem:[#allocation3 + $0xcc] sm:$0xf] %vm1599, %v3872
  %3981 = vst.msk [vmem:[#allocation3 + $0xd0] sm:$0xf] %vm1599, %v3873
  %vm3982 = vcmask 779264
  %3983 = vst.msk [vmem:[#allocation3 + $0xd4] sm:$0x3] %vm3982, %v3874
  %v3984 = vld [vmem:[#allocation3] sm:$0xf]
  %v3985 = vld [vmem:[#allocation3 + $0x4] sm:$0xf]
  %v3986 = vld [vmem:[#allocation3 + $0x8] sm:$0xf]
  %v3987 = vld [vmem:[#allocation3 + $0xc] sm:$0xf]
  %v3988 = vld [vmem:[#allocation3 + $0x10] sm:$0xf]
  %v3989 = vld [vmem:[#allocation3 + $0x14] sm:$0xf]
  %v3990 = vld [vmem:[#allocation3 + $0x18] sm:$0xf]
  %v3991 = vld [vmem:[#allocation3 + $0x1c] sm:$0xf]
  %v3992 = vld [vmem:[#allocation3 + $0x20] sm:$0xf]
  %v3993 = vld [vmem:[#allocation3 + $0x24] sm:$0xf]
  %v3994 = vld [vmem:[#allocation3 + $0x28] sm:$0xf]
  %v3995 = vld [vmem:[#allocation3 + $0x2c] sm:$0xf]
  %v3996 = vld [vmem:[#allocation3 + $0x30] sm:$0xf]
  %v3997 = vld [vmem:[#allocation3 + $0x34] sm:$0xf]
  %v3998 = vld [vmem:[#allocation3 + $0x38] sm:$0xf]
  %v3999 = vld [vmem:[#allocation3 + $0x3c] sm:$0xf]
  %v4000 = vld [vmem:[#allocation3 + $0x40] sm:$0xf]
  %v4001 = vld [vmem:[#allocation3 + $0x44] sm:$0xf]
  %v4002 = vld [vmem:[#allocation3 + $0x48] sm:$0xf]
  %v4003 = vld [vmem:[#allocation3 + $0x4c] sm:$0xf]
  %v4004 = vld [vmem:[#allocation3 + $0x50] sm:$0xf]
  %v4005 = vld [vmem:[#allocation3 + $0x54] sm:$0xf]
  %v4006 = vld [vmem:[#allocation3 + $0x58] sm:$0xf]
  %v4007 = vld [vmem:[#allocation3 + $0x5c] sm:$0xf]
  %v4008 = vld [vmem:[#allocation3 + $0x60] sm:$0xf]
  %v4009 = vld [vmem:[#allocation3 + $0x64] sm:$0xf]
  %v4010 = vld [vmem:[#allocation3 + $0x68] sm:$0xf]
  %v4011 = vld [vmem:[#allocation3 + $0x6c] sm:$0xf]
  %v4012 = vld [vmem:[#allocation3 + $0x70] sm:$0xf]
  %v4013 = vld [vmem:[#allocation3 + $0x74] sm:$0xf]
  %v4014 = vld [vmem:[#allocation3 + $0x78] sm:$0xf]
  %v4015 = vld [vmem:[#allocation3 + $0x7c] sm:$0xf]
  %v4016 = vld [vmem:[#allocation3 + $0x80] sm:$0xf]
  %v4017 = vld [vmem:[#allocation3 + $0x84] sm:$0xf]
  %v4018 = vld [vmem:[#allocation3 + $0x88] sm:$0xf]
  %v4019 = vld [vmem:[#allocation3 + $0x8c] sm:$0xf]
  %v4020 = vld [vmem:[#allocation3 + $0x90] sm:$0xf]
  %v4021 = vld [vmem:[#allocation3 + $0x94] sm:$0xf]
  %v4022 = vld [vmem:[#allocation3 + $0x98] sm:$0xf]
  %v4023 = vld [vmem:[#allocation3 + $0x9c] sm:$0xf]
  %v4024 = vld [vmem:[#allocation3 + $0xa0] sm:$0xf]
  %v4025 = vld [vmem:[#allocation3 + $0xa4] sm:$0xf]
  %v4026 = vld [vmem:[#allocation3 + $0xa8] sm:$0xf]
  %v4027 = vld [vmem:[#allocation3 + $0xac] sm:$0xf]
  %v4028 = vld [vmem:[#allocation3 + $0xb0] sm:$0xf]
  %v4029 = vld [vmem:[#allocation3 + $0xb4] sm:$0xf]
  %v4030 = vld [vmem:[#allocation3 + $0xb8] sm:$0xf]
  %v4031 = vld [vmem:[#allocation3 + $0xbc] sm:$0xf]
  %v4032 = vld [vmem:[#allocation3 + $0xc0] sm:$0xf]
  %v4033 = vld [vmem:[#allocation3 + $0xc4] sm:$0x3]
  %s4034 = scalar_lea.vmem %s3, 144
  %v4035 = vld [vmem:[%s4034] sm:$0xf]
  %v4036 = vld [vmem:[%s4034 + $0x4] sm:$0xf]
  %v4037 = vld [vmem:[%s4034 + $0x8] sm:$0xf]
  %v4038 = vld [vmem:[%s4034 + $0xc] sm:$0xf]
  %v4039 = vld [vmem:[%s4034 + $0x10] sm:$0xf]
  %v4040 = vld [vmem:[%s4034 + $0x14] sm:$0xf]
  %v4041 = vld [vmem:[%s4034 + $0x18] sm:$0xf]
  %v4042 = vld [vmem:[%s4034 + $0x1c] sm:$0xf]
  %v4043 = vld [vmem:[%s4034 + $0x20] sm:$0xf]
  %v4044 = vld [vmem:[%s4034 + $0x24] sm:$0xf]
  %v4045 = vld [vmem:[%s4034 + $0x28] sm:$0xf]
  %v4046 = vld [vmem:[%s4034 + $0x2c] sm:$0xf]
  %v4047 = vld [vmem:[#allocation3 + $0xc4] sm:$0xf]
  %v4048 = vld [vmem:[#allocation3 + $0xc8] sm:$0xf]
  %v4049 = vld [vmem:[#allocation3 + $0xcc] sm:$0x3]
  %s4050 = scalar_lea.vmem %s3, 192
  %v4051 = vld [vmem:[%s4050] sm:$0xf]
  %v4052 = vld [vmem:[%s4050 + $0x4] sm:$0xf]
  %v4053 = vld [vmem:[%s4050 + $0x8] sm:$0xf]
  %v4054 = vld [vmem:[%s4050 + $0xc] sm:$0xf]
  %v4055 = vld [vmem:[%s4050 + $0x10] sm:$0xf]
  %v4056 = vld [vmem:[%s4050 + $0x14] sm:$0xf]
  %v4057 = vld [vmem:[%s4050 + $0x18] sm:$0xf]
  %v4058 = vld [vmem:[%s4050 + $0x1c] sm:$0xf]
  %v4059 = vld [vmem:[%s4050 + $0x20] sm:$0xf]
  %v4060 = vld [vmem:[%s4050 + $0x24] sm:$0xf]
  %v4061 = vld [vmem:[%s4050 + $0x28] sm:$0xf]
  %v4062 = vld [vmem:[%s4050 + $0x2c] sm:$0xf]
  %v4113 = vunpack.c.l.b16 %v3986
  %v4114 = vunpack.c.l.b16 %v3987
  %v4115 = vunpack.c.l.b16 %v3988
  %v4116 = vunpack.c.l.b16 %v3989
  %v4117 = vunpack.c.l.b16 %v3990
  %v4118 = vunpack.c.l.b16 %v3991
  %v4119 = vunpack.c.l.b16 %v3992
  %v4120 = vunpack.c.l.b16 %v3993
  %v4121 = vunpack.c.l.b16 %v3994
  %v4122 = vunpack.c.l.b16 %v3995
  %v4123 = vunpack.c.l.b16 %v3996
  %v4124 = vunpack.c.l.b16 %v3997
  %v4125 = vunpack.c.l.b16 %v3998
  %v4126 = vunpack.c.l.b16 %v3999
  %v4127 = vunpack.c.l.b16 %v4000
  %v4128 = vunpack.c.l.b16 %v4001
  %v4129 = vunpack.c.l.b16 %v4002
  %v4130 = vunpack.c.l.b16 %v4003
  %v4131 = vunpack.c.l.b16 %v4004
  %v4132 = vunpack.c.l.b16 %v4005
  %v4133 = vunpack.c.l.b16 %v4006
  %v4134 = vunpack.c.l.b16 %v4007
  %v4135 = vunpack.c.l.b16 %v4008
  %v4136 = vunpack.c.l.b16 %v4009
  %v4137 = vunpack.c.l.b16 %v4010
  %v4138 = vunpack.c.l.b16 %v4011
  %v4139 = vunpack.c.l.b16 %v4012
  %v4140 = vunpack.c.l.b16 %v4013
  %v4141 = vunpack.c.l.b16 %v4014
  %v4142 = vunpack.c.l.b16 %v4015
  %v4143 = vunpack.c.l.b16 %v4016
  %v4144 = vunpack.c.l.b16 %v4017
  %v4145 = vunpack.c.l.b16 %v4018
  %v4146 = vunpack.c.l.b16 %v4019
  %v4147 = vunpack.c.l.b16 %v4020
  %v4148 = vunpack.c.l.b16 %v4021
  %v4149 = vunpack.c.l.b16 %v4022
  %v4150 = vunpack.c.l.b16 %v4023
  %v4151 = vunpack.c.l.b16 %v4024
  %v4152 = vunpack.c.l.b16 %v4025
  %v4153 = vunpack.c.l.b16 %v4026
  %v4154 = vunpack.c.l.b16 %v4027
  %v4155 = vunpack.c.l.b16 %v4028
  %v4156 = vunpack.c.l.b16 %v4029
  %v4157 = vunpack.c.l.b16 %v4030
  %v4158 = vunpack.c.l.b16 %v4031
  %v4159 = vunpack.c.l.b16 %v4032
  %v4160 = vunpack.c.l.b16 %v4047
  %v4161 = vunpack.c.l.b16 %v4048
  %v4162 = vunpack.c.l.b16 %v4049
  %v4163 = vpack.c.b16 %v4114, %v4113
  %v4164 = vpack.c.b16 %v4116, %v4115
  %v4165 = vpack.c.b16 %v4118, %v4117
  %v4166 = vpack.c.b16 %v4120, %v4119
  %v4167 = vpack.c.b16 %v4122, %v4121
  %v4168 = vpack.c.b16 %v4124, %v4123
  %v4169 = vpack.c.b16 %v4126, %v4125
  %v4170 = vpack.c.b16 %v4128, %v4127
  %v4171 = vpack.c.b16 %v4130, %v4129
  %v4172 = vpack.c.b16 %v4132, %v4131
  %v4173 = vpack.c.b16 %v4134, %v4133
  %v4174 = vpack.c.b16 %v4136, %v4135
  %v4175 = vpack.c.b16 %v4138, %v4137
  %v4176 = vpack.c.b16 %v4140, %v4139
  %v4177 = vpack.c.b16 %v4142, %v4141
  %v4178 = vpack.c.b16 %v4144, %v4143
  %v4179 = vpack.c.b16 %v4146, %v4145
  %v4180 = vpack.c.b16 %v4148, %v4147
  %v4181 = vpack.c.b16 %v4150, %v4149
  %v4182 = vpack.c.b16 %v4152, %v4151
  %v4183 = vpack.c.b16 %v4154, %v4153
  %v4184 = vpack.c.b16 %v4156, %v4155
  %v4185 = vpack.c.b16 %v4158, %v4157
  %v4186 = vpack.c.b16 %v4160, %v4159
  %v4187 = vpack.c.b16 %v4162, %v4161
  %v4200 = vunpack.c.l.b16 %v4051
  %v4201 = vunpack.c.l.b16 %v4052
  %v4202 = vunpack.c.l.b16 %v4053
  %v4203 = vunpack.c.l.b16 %v4054
  %v4204 = vunpack.c.l.b16 %v4055
  %v4205 = vunpack.c.l.b16 %v4056
  %v4206 = vunpack.c.l.b16 %v4057
  %v4207 = vunpack.c.l.b16 %v4058
  %v4208 = vunpack.c.l.b16 %v4059
  %v4209 = vunpack.c.l.b16 %v4060
  %v4210 = vunpack.c.l.b16 %v4061
  %v4211 = vunpack.c.l.b16 %v4062
  %v4212 = vpack.c.b16 %v4201, %v4200
  %v4213 = vpack.c.b16 %v4203, %v4202
  %v4214 = vpack.c.b16 %v4205, %v4204
  %v4215 = vpack.c.b16 %v4207, %v4206
  %v4216 = vpack.c.b16 %v4209, %v4208
  %v4217 = vpack.c.b16 %v4211, %v4210
  %v4225 = vsel %vm1912, %v4163, 0
  %v4228 = vsel %vm1912, %v4164, 0
  %v4231 = vsel %vm1912, %v4165, 0
  %v4234 = vsel %vm1912, %v4166, 0
  %v4237 = vsel %vm1912, %v4167, 0
  %v4240 = vsel %vm1912, %v4168, 0
  %v4243 = vsel %vm1912, %v4169, 0
  %v4246 = vsel %vm1912, %v4170, 0
  %v4249 = vsel %vm1912, %v4171, 0
  %v4252 = vsel %vm1912, %v4172, 0
  %v4255 = vsel %vm1912, %v4173, 0
  %v4258 = vsel %vm1912, %v4174, 0
  %v4261 = vsel %vm1912, %v4175, 0
  %v4264 = vsel %vm1912, %v4176, 0
  %v4267 = vsel %vm1912, %v4177, 0
  %v4270 = vsel %vm1912, %v4178, 0
  %v4273 = vsel %vm1912, %v4179, 0
  %v4276 = vsel %vm1912, %v4180, 0
  %v4279 = vsel %vm1912, %v4181, 0
  %v4282 = vsel %vm1912, %v4182, 0
  %v4285 = vsel %vm1912, %v4183, 0
  %v4288 = vsel %vm1912, %v4184, 0
  %v4291 = vsel %vm1912, %v4185, 0
  %v4294 = vsel %vm1912, %v4186, 0
  %v4297 = vsel %vm1912, %v4187, 0
  %4299 = vmatpush.bf16.msra.mxu0 0
  %4300 = vmatpush.bf16.msra.mxu0 0
  %4301 = vmatpush.bf16.msra.mxu0 %v4217
  %4302 = vmatpush.bf16.msra.mxu0 %v4216
  %4303 = vmatpush.bf16.msra.mxu0 %v4215
  %4304 = vmatpush.bf16.msra.mxu0 %v4214
  %4305 = vmatpush.bf16.msra.mxu0 %v4213
  %4306 = vmatpush.bf16.msra.mxu0 %v4212
  %4307 = vmatmul.bf16.gmra.mxu0 %v4225
  %v4308 = vpop.f32.mrf.mxu0
  %v4309 = vadd.f32 0.0, %v4308
  %v4310 = vpop.f32.mrf.mxu0
  %v4311 = vadd.f32 0.0, %v4310
  %4312 = vmatmul.bf16.gmra.mxu0 %v4228
  %v4313 = vpop.f32.mrf.mxu0
  %v4314 = vadd.f32 0.0, %v4313
  %v4315 = vpop.f32.mrf.mxu0
  %v4316 = vadd.f32 0.0, %v4315
  %4317 = vmatmul.bf16.gmra.mxu0 %v4231
  %v4318 = vpop.f32.mrf.mxu0
  %v4319 = vadd.f32 0.0, %v4318
  %v4320 = vpop.f32.mrf.mxu0
  %v4321 = vadd.f32 0.0, %v4320
  %4322 = vmatmul.bf16.gmra.mxu0 %v4234
  %v4323 = vpop.f32.mrf.mxu0
  %v4324 = vadd.f32 0.0, %v4323
  %v4325 = vpop.f32.mrf.mxu0
  %v4326 = vadd.f32 0.0, %v4325
  %4327 = vmatmul.bf16.gmra.mxu0 %v4237
  %v4328 = vpop.f32.mrf.mxu0
  %v4329 = vadd.f32 0.0, %v4328
  %v4330 = vpop.f32.mrf.mxu0
  %v4331 = vadd.f32 0.0, %v4330
  %4332 = vmatmul.bf16.gmra.mxu0 %v4240
  %v4333 = vpop.f32.mrf.mxu0
  %v4334 = vadd.f32 0.0, %v4333
  %v4335 = vpop.f32.mrf.mxu0
  %v4336 = vadd.f32 0.0, %v4335
  %4337 = vmatmul.bf16.gmra.mxu0 %v4243
  %v4338 = vpop.f32.mrf.mxu0
  %v4339 = vadd.f32 0.0, %v4338
  %v4340 = vpop.f32.mrf.mxu0
  %v4341 = vadd.f32 0.0, %v4340
  %4342 = vmatmul.bf16.gmra.mxu0 %v4246
  %v4343 = vpop.f32.mrf.mxu0
  %v4344 = vadd.f32 0.0, %v4343
  %v4345 = vpop.f32.mrf.mxu0
  %v4346 = vadd.f32 0.0, %v4345
  %4347 = vmatmul.bf16.gmra.mxu0 %v4249
  %v4348 = vpop.f32.mrf.mxu0
  %v4349 = vadd.f32 0.0, %v4348
  %v4350 = vpop.f32.mrf.mxu0
  %v4351 = vadd.f32 0.0, %v4350
  %4352 = vmatmul.bf16.gmra.mxu0 %v4252
  %v4353 = vpop.f32.mrf.mxu0
  %v4354 = vadd.f32 0.0, %v4353
  %v4355 = vpop.f32.mrf.mxu0
  %v4356 = vadd.f32 0.0, %v4355
  %4357 = vmatmul.bf16.gmra.mxu0 %v4255
  %v4358 = vpop.f32.mrf.mxu0
  %v4359 = vadd.f32 0.0, %v4358
  %v4360 = vpop.f32.mrf.mxu0
  %v4361 = vadd.f32 0.0, %v4360
  %4362 = vmatmul.bf16.gmra.mxu0 %v4258
  %v4363 = vpop.f32.mrf.mxu0
  %v4364 = vadd.f32 0.0, %v4363
  %v4365 = vpop.f32.mrf.mxu0
  %v4366 = vadd.f32 0.0, %v4365
  %4367 = vmatmul.bf16.gmra.mxu0 %v4261
  %v4368 = vpop.f32.mrf.mxu0
  %v4369 = vadd.f32 0.0, %v4368
  %v4370 = vpop.f32.mrf.mxu0
  %v4371 = vadd.f32 0.0, %v4370
  %4372 = vmatmul.bf16.gmra.mxu0 %v4264
  %v4373 = vpop.f32.mrf.mxu0
  %v4374 = vadd.f32 0.0, %v4373
  %v4375 = vpop.f32.mrf.mxu0
  %v4376 = vadd.f32 0.0, %v4375
  %4377 = vmatmul.bf16.gmra.mxu0 %v4267
  %v4378 = vpop.f32.mrf.mxu0
  %v4379 = vadd.f32 0.0, %v4378
  %v4380 = vpop.f32.mrf.mxu0
  %v4381 = vadd.f32 0.0, %v4380
  %4382 = vmatmul.bf16.gmra.mxu0 %v4270
  %v4383 = vpop.f32.mrf.mxu0
  %v4384 = vadd.f32 0.0, %v4383
  %v4385 = vpop.f32.mrf.mxu0
  %v4386 = vadd.f32 0.0, %v4385
  %4387 = vmatmul.bf16.gmra.mxu0 %v4273
  %v4388 = vpop.f32.mrf.mxu0
  %v4389 = vadd.f32 0.0, %v4388
  %v4390 = vpop.f32.mrf.mxu0
  %v4391 = vadd.f32 0.0, %v4390
  %4392 = vmatmul.bf16.gmra.mxu0 %v4276
  %v4393 = vpop.f32.mrf.mxu0
  %v4394 = vadd.f32 0.0, %v4393
  %v4395 = vpop.f32.mrf.mxu0
  %v4396 = vadd.f32 0.0, %v4395
  %4397 = vmatmul.bf16.gmra.mxu0 %v4279
  %v4398 = vpop.f32.mrf.mxu0
  %v4399 = vadd.f32 0.0, %v4398
  %v4400 = vpop.f32.mrf.mxu0
  %v4401 = vadd.f32 0.0, %v4400
  %4402 = vmatmul.bf16.gmra.mxu0 %v4282
  %v4403 = vpop.f32.mrf.mxu0
  %v4404 = vadd.f32 0.0, %v4403
  %v4405 = vpop.f32.mrf.mxu0
  %v4406 = vadd.f32 0.0, %v4405
  %4407 = vmatmul.bf16.gmra.mxu0 %v4285
  %v4408 = vpop.f32.mrf.mxu0
  %v4409 = vadd.f32 0.0, %v4408
  %v4410 = vpop.f32.mrf.mxu0
  %v4411 = vadd.f32 0.0, %v4410
  %4412 = vmatmul.bf16.gmra.mxu0 %v4288
  %v4413 = vpop.f32.mrf.mxu0
  %v4414 = vadd.f32 0.0, %v4413
  %v4415 = vpop.f32.mrf.mxu0
  %v4416 = vadd.f32 0.0, %v4415
  %4417 = vmatmul.bf16.gmra.mxu0 %v4291
  %v4418 = vpop.f32.mrf.mxu0
  %v4419 = vadd.f32 0.0, %v4418
  %v4420 = vpop.f32.mrf.mxu0
  %v4421 = vadd.f32 0.0, %v4420
  %4422 = vmatmul.bf16.gmra.mxu0 %v4294
  %v4423 = vpop.f32.mrf.mxu0
  %v4424 = vadd.f32 0.0, %v4423
  %v4425 = vpop.f32.mrf.mxu0
  %v4426 = vadd.f32 0.0, %v4425
  %4427 = vmatmul.bf16.gmra.mxu0 %v4297
  %v4428 = vpop.f32.mrf.mxu0
  %v4429 = vadd.f32 0.0, %v4428
  %v4430 = vpop.f32.mrf.mxu0
  %v4431 = vadd.f32 0.0, %v4430
  %4432 = vdwg.mxu0
  %v4436 = vunpack.c.l.b16 %v3984
  %v4437 = vunpack.c.l.b16 %v3985
  %v4438 = vunpack.c.l.b16 %v4033
  %v4439 = vpack.c.b16 %v4437, %v4436
  %v4440 = vpack.c.b16 %v4438, %v4159
  %v4453 = vunpack.c.l.b16 %v4035
  %v4454 = vunpack.c.l.b16 %v4036
  %v4455 = vunpack.c.l.b16 %v4037
  %v4456 = vunpack.c.l.b16 %v4038
  %v4457 = vunpack.c.l.b16 %v4039
  %v4458 = vunpack.c.l.b16 %v4040
  %v4459 = vunpack.c.l.b16 %v4041
  %v4460 = vunpack.c.l.b16 %v4042
  %v4461 = vunpack.c.l.b16 %v4043
  %v4462 = vunpack.c.l.b16 %v4044
  %v4463 = vunpack.c.l.b16 %v4045
  %v4464 = vunpack.c.l.b16 %v4046
  %v4465 = vpack.c.b16 %v4454, %v4453
  %v4466 = vpack.c.b16 %v4456, %v4455
  %v4467 = vpack.c.b16 %v4458, %v4457
  %v4468 = vpack.c.b16 %v4460, %v4459
  %v4469 = vpack.c.b16 %v4462, %v4461
  %v4470 = vpack.c.b16 %v4464, %v4463
  %v4478 = vsel %vm1912, %v4439, 0
  %v4481 = vsel %vm1912, %v4440, 0
  %4483 = vmatpush.bf16.msra.mxu0 0
  %4484 = vmatpush.bf16.msra.mxu0 0
  %4485 = vmatpush.bf16.msra.mxu0 %v4470
  %4486 = vmatpush.bf16.msra.mxu0 %v4469
  %4487 = vmatpush.bf16.msra.mxu0 %v4468
  %4488 = vmatpush.bf16.msra.mxu0 %v4467
  %4489 = vmatpush.bf16.msra.mxu0 %v4466
  %4490 = vmatpush.bf16.msra.mxu0 %v4465
  %4491 = vmatmul.bf16.gmra.mxu0 %v4478
  %v4492 = vpop.f32.mrf.mxu0
  %v4493 = vadd.f32 %v4309, %v4492
  %v4494 = vpop.f32.mrf.mxu0
  %v4495 = vadd.f32 %v4311, %v4494
  %4496 = vmatmul.bf16.gmra.mxu0 %v4225
  %v4497 = vpop.f32.mrf.mxu0
  %v4498 = vadd.f32 %v4314, %v4497
  %v4499 = vpop.f32.mrf.mxu0
  %v4500 = vadd.f32 %v4316, %v4499
  %4501 = vmatmul.bf16.gmra.mxu0 %v4228
  %v4502 = vpop.f32.mrf.mxu0
  %v4503 = vadd.f32 %v4319, %v4502
  %v4504 = vpop.f32.mrf.mxu0
  %v4505 = vadd.f32 %v4321, %v4504
  %4506 = vmatmul.bf16.gmra.mxu0 %v4231
  %v4507 = vpop.f32.mrf.mxu0
  %v4508 = vadd.f32 %v4324, %v4507
  %v4509 = vpop.f32.mrf.mxu0
  %v4510 = vadd.f32 %v4326, %v4509
  %4511 = vmatmul.bf16.gmra.mxu0 %v4234
  %v4512 = vpop.f32.mrf.mxu0
  %v4513 = vadd.f32 %v4329, %v4512
  %v4514 = vpop.f32.mrf.mxu0
  %v4515 = vadd.f32 %v4331, %v4514
  %4516 = vmatmul.bf16.gmra.mxu0 %v4237
  %v4517 = vpop.f32.mrf.mxu0
  %v4518 = vadd.f32 %v4334, %v4517
  %v4519 = vpop.f32.mrf.mxu0
  %v4520 = vadd.f32 %v4336, %v4519
  %4521 = vmatmul.bf16.gmra.mxu0 %v4240
  %v4522 = vpop.f32.mrf.mxu0
  %v4523 = vadd.f32 %v4339, %v4522
  %v4524 = vpop.f32.mrf.mxu0
  %v4525 = vadd.f32 %v4341, %v4524
  %4526 = vmatmul.bf16.gmra.mxu0 %v4243
  %v4527 = vpop.f32.mrf.mxu0
  %v4528 = vadd.f32 %v4344, %v4527
  %v4529 = vpop.f32.mrf.mxu0
  %v4530 = vadd.f32 %v4346, %v4529
  %4531 = vmatmul.bf16.gmra.mxu0 %v4246
  %v4532 = vpop.f32.mrf.mxu0
  %v4533 = vadd.f32 %v4349, %v4532
  %v4534 = vpop.f32.mrf.mxu0
  %v4535 = vadd.f32 %v4351, %v4534
  %4536 = vmatmul.bf16.gmra.mxu0 %v4249
  %v4537 = vpop.f32.mrf.mxu0
  %v4538 = vadd.f32 %v4354, %v4537
  %v4539 = vpop.f32.mrf.mxu0
  %v4540 = vadd.f32 %v4356, %v4539
  %4541 = vmatmul.bf16.gmra.mxu0 %v4252
  %v4542 = vpop.f32.mrf.mxu0
  %v4543 = vadd.f32 %v4359, %v4542
  %v4544 = vpop.f32.mrf.mxu0
  %v4545 = vadd.f32 %v4361, %v4544
  %4546 = vmatmul.bf16.gmra.mxu0 %v4255
  %v4547 = vpop.f32.mrf.mxu0
  %v4548 = vadd.f32 %v4364, %v4547
  %v4549 = vpop.f32.mrf.mxu0
  %v4550 = vadd.f32 %v4366, %v4549
  %4551 = vmatmul.bf16.gmra.mxu0 %v4258
  %v4552 = vpop.f32.mrf.mxu0
  %v4553 = vadd.f32 %v4369, %v4552
  %v4554 = vpop.f32.mrf.mxu0
  %v4555 = vadd.f32 %v4371, %v4554
  %4556 = vmatmul.bf16.gmra.mxu0 %v4261
  %v4557 = vpop.f32.mrf.mxu0
  %v4558 = vadd.f32 %v4374, %v4557
  %v4559 = vpop.f32.mrf.mxu0
  %v4560 = vadd.f32 %v4376, %v4559
  %4561 = vmatmul.bf16.gmra.mxu0 %v4264
  %v4562 = vpop.f32.mrf.mxu0
  %v4563 = vadd.f32 %v4379, %v4562
  %v4564 = vpop.f32.mrf.mxu0
  %v4565 = vadd.f32 %v4381, %v4564
  %4566 = vmatmul.bf16.gmra.mxu0 %v4267
  %v4567 = vpop.f32.mrf.mxu0
  %v4568 = vadd.f32 %v4384, %v4567
  %v4569 = vpop.f32.mrf.mxu0
  %v4570 = vadd.f32 %v4386, %v4569
  %4571 = vmatmul.bf16.gmra.mxu0 %v4270
  %v4572 = vpop.f32.mrf.mxu0
  %v4573 = vadd.f32 %v4389, %v4572
  %v4574 = vpop.f32.mrf.mxu0
  %v4575 = vadd.f32 %v4391, %v4574
  %4576 = vmatmul.bf16.gmra.mxu0 %v4273
  %v4577 = vpop.f32.mrf.mxu0
  %v4578 = vadd.f32 %v4394, %v4577
  %v4579 = vpop.f32.mrf.mxu0
  %v4580 = vadd.f32 %v4396, %v4579
  %4581 = vmatmul.bf16.gmra.mxu0 %v4276
  %v4582 = vpop.f32.mrf.mxu0
  %v4583 = vadd.f32 %v4399, %v4582
  %v4584 = vpop.f32.mrf.mxu0
  %v4585 = vadd.f32 %v4401, %v4584
  %4586 = vmatmul.bf16.gmra.mxu0 %v4279
  %v4587 = vpop.f32.mrf.mxu0
  %v4588 = vadd.f32 %v4404, %v4587
  %v4589 = vpop.f32.mrf.mxu0
  %v4590 = vadd.f32 %v4406, %v4589
  %4591 = vmatmul.bf16.gmra.mxu0 %v4282
  %v4592 = vpop.f32.mrf.mxu0
  %v4593 = vadd.f32 %v4409, %v4592
  %v4594 = vpop.f32.mrf.mxu0
  %v4595 = vadd.f32 %v4411, %v4594
  %4596 = vmatmul.bf16.gmra.mxu0 %v4285
  %v4597 = vpop.f32.mrf.mxu0
  %v4598 = vadd.f32 %v4414, %v4597
  %v4599 = vpop.f32.mrf.mxu0
  %v4600 = vadd.f32 %v4416, %v4599
  %4601 = vmatmul.bf16.gmra.mxu0 %v4288
  %v4602 = vpop.f32.mrf.mxu0
  %v4603 = vadd.f32 %v4419, %v4602
  %v4604 = vpop.f32.mrf.mxu0
  %v4605 = vadd.f32 %v4421, %v4604
  %4606 = vmatmul.bf16.gmra.mxu0 %v4291
  %v4607 = vpop.f32.mrf.mxu0
  %v4608 = vadd.f32 %v4424, %v4607
  %v4609 = vpop.f32.mrf.mxu0
  %v4610 = vadd.f32 %v4426, %v4609
  %4611 = vmatmul.bf16.gmra.mxu0 %v4481
  %v4612 = vpop.f32.mrf.mxu0
  %v4613 = vadd.f32 %v4429, %v4612
  %v4614 = vpop.f32.mrf.mxu0
  %v4615 = vadd.f32 %v4431, %v4614
  %4616 = vdwg.mxu0
  %v4617 = vld [vmem:[#allocation3 + $0x10] sm:$0xf]
  %v4618 = vld [vmem:[#allocation3 + $0x14] sm:$0xf]
  %v4619 = vld [vmem:[#allocation3 + $0x18] sm:$0xf]
  %v4620 = vld [vmem:[#allocation3 + $0x1c] sm:$0xf]
  %v4621 = vld [vmem:[#allocation3 + $0x20] sm:$0xf]
  %v4622 = vld [vmem:[#allocation3 + $0x24] sm:$0xf]
  %v4623 = vld [vmem:[#allocation3 + $0x28] sm:$0xf]
  %v4624 = vld [vmem:[#allocation3 + $0x2c] sm:$0xf]
  %v4625 = vld [vmem:[#allocation3 + $0x30] sm:$0xf]
  %v4626 = vld [vmem:[#allocation3 + $0x34] sm:$0xf]
  %v4627 = vld [vmem:[#allocation3 + $0x38] sm:$0xf]
  %v4628 = vld [vmem:[#allocation3 + $0x3c] sm:$0xf]
  %v4629 = vld [vmem:[#allocation3 + $0x40] sm:$0xf]
  %v4630 = vld [vmem:[#allocation3 + $0x44] sm:$0xf]
  %v4631 = vld [vmem:[#allocation3 + $0x48] sm:$0xf]
  %v4632 = vld [vmem:[#allocation3 + $0x4c] sm:$0xf]
  %v4633 = vld [vmem:[#allocation3 + $0x50] sm:$0xf]
  %v4634 = vld [vmem:[#allocation3 + $0x54] sm:$0xf]
  %v4635 = vld [vmem:[#allocation3 + $0x58] sm:$0xf]
  %v4636 = vld [vmem:[#allocation3 + $0x5c] sm:$0xf]
  %v4637 = vld [vmem:[#allocation3 + $0x60] sm:$0xf]
  %v4638 = vld [vmem:[#allocation3 + $0x64] sm:$0xf]
  %v4639 = vld [vmem:[#allocation3 + $0x68] sm:$0xf]
  %v4640 = vld [vmem:[#allocation3 + $0x6c] sm:$0xf]
  %v4641 = vld [vmem:[#allocation3 + $0x70] sm:$0xf]
  %v4642 = vld [vmem:[#allocation3 + $0x74] sm:$0xf]
  %v4643 = vld [vmem:[#allocation3 + $0x78] sm:$0xf]
  %v4644 = vld [vmem:[#allocation3 + $0x7c] sm:$0xf]
  %v4645 = vld [vmem:[#allocation3 + $0x80] sm:$0xf]
  %v4646 = vld [vmem:[#allocation3 + $0x84] sm:$0xf]
  %v4647 = vld [vmem:[#allocation3 + $0x88] sm:$0xf]
  %v4648 = vld [vmem:[#allocation3 + $0x8c] sm:$0xf]
  %v4649 = vld [vmem:[#allocation3 + $0x90] sm:$0xf]
  %v4650 = vld [vmem:[#allocation3 + $0x94] sm:$0xf]
  %v4651 = vld [vmem:[#allocation3 + $0x98] sm:$0xf]
  %v4652 = vld [vmem:[#allocation3 + $0x9c] sm:$0xf]
  %v4653 = vld [vmem:[#allocation3 + $0xa0] sm:$0xf]
  %v4654 = vld [vmem:[#allocation3 + $0xa4] sm:$0xf]
  %v4655 = vld [vmem:[#allocation3 + $0xa8] sm:$0xf]
  %v4656 = vld [vmem:[#allocation3 + $0xac] sm:$0xf]
  %v4657 = vld [vmem:[#allocation3 + $0xb0] sm:$0xf]
  %v4658 = vld [vmem:[#allocation3 + $0xb4] sm:$0xf]
  %v4659 = vld [vmem:[#allocation3 + $0xb8] sm:$0xf]
  %v4660 = vld [vmem:[#allocation3 + $0xbc] sm:$0xf]
  %v4661 = vld [vmem:[#allocation3 + $0xc0] sm:$0xf]
  %v4662 = vld [vmem:[#allocation3 + $0xc4] sm:$0xf]
  %v4663 = vld [vmem:[#allocation3 + $0xc8] sm:$0xf]
  %v4664 = vld [vmem:[#allocation3 + $0xcc] sm:$0xf]
  %v4665 = vld [vmem:[#allocation3 + $0xd0] sm:$0xf]
  %v4666 = vld [vmem:[#allocation3 + $0xd4] sm:$0x3]
  %s4667 = scalar_lea.vmem %s3, 240
  %v4668 = vld [vmem:[%s4667] sm:$0xf]
  %v4669 = vld [vmem:[%s4667 + $0x4] sm:$0xf]
  %v4670 = vld [vmem:[%s4667 + $0x8] sm:$0xf]
  %v4671 = vld [vmem:[%s4667 + $0xc] sm:$0xf]
  %v4672 = vld [vmem:[%s4667 + $0x10] sm:$0xf]
  %v4673 = vld [vmem:[%s4667 + $0x14] sm:$0xf]
  %v4674 = vld [vmem:[%s4667 + $0x18] sm:$0xf]
  %v4675 = vld [vmem:[%s4667 + $0x1c] sm:$0xf]
  %v4676 = vld [vmem:[%s4667 + $0x20] sm:$0xf]
  %v4677 = vld [vmem:[%s4667 + $0x24] sm:$0xf]
  %v4678 = vld [vmem:[%s4667 + $0x28] sm:$0xf]
  %v4679 = vld [vmem:[%s4667 + $0x2c] sm:$0xf]
  %v4730 = vunpack.c.l.b16 %v4617
  %v4731 = vunpack.c.l.b16 %v4618
  %v4732 = vunpack.c.l.b16 %v4619
  %v4733 = vunpack.c.l.b16 %v4620
  %v4734 = vunpack.c.l.b16 %v4621
  %v4735 = vunpack.c.l.b16 %v4622
  %v4736 = vunpack.c.l.b16 %v4623
  %v4737 = vunpack.c.l.b16 %v4624
  %v4738 = vunpack.c.l.b16 %v4625
  %v4739 = vunpack.c.l.b16 %v4626
  %v4740 = vunpack.c.l.b16 %v4627
  %v4741 = vunpack.c.l.b16 %v4628
  %v4742 = vunpack.c.l.b16 %v4629
  %v4743 = vunpack.c.l.b16 %v4630
  %v4744 = vunpack.c.l.b16 %v4631
  %v4745 = vunpack.c.l.b16 %v4632
  %v4746 = vunpack.c.l.b16 %v4633
  %v4747 = vunpack.c.l.b16 %v4634
  %v4748 = vunpack.c.l.b16 %v4635
  %v4749 = vunpack.c.l.b16 %v4636
  %v4750 = vunpack.c.l.b16 %v4637
  %v4751 = vunpack.c.l.b16 %v4638
  %v4752 = vunpack.c.l.b16 %v4639
  %v4753 = vunpack.c.l.b16 %v4640
  %v4754 = vunpack.c.l.b16 %v4641
  %v4755 = vunpack.c.l.b16 %v4642
  %v4756 = vunpack.c.l.b16 %v4643
  %v4757 = vunpack.c.l.b16 %v4644
  %v4758 = vunpack.c.l.b16 %v4645
  %v4759 = vunpack.c.l.b16 %v4646
  %v4760 = vunpack.c.l.b16 %v4647
  %v4761 = vunpack.c.l.b16 %v4648
  %v4762 = vunpack.c.l.b16 %v4649
  %v4763 = vunpack.c.l.b16 %v4650
  %v4764 = vunpack.c.l.b16 %v4651
  %v4765 = vunpack.c.l.b16 %v4652
  %v4766 = vunpack.c.l.b16 %v4653
  %v4767 = vunpack.c.l.b16 %v4654
  %v4768 = vunpack.c.l.b16 %v4655
  %v4769 = vunpack.c.l.b16 %v4656
  %v4770 = vunpack.c.l.b16 %v4657
  %v4771 = vunpack.c.l.b16 %v4658
  %v4772 = vunpack.c.l.b16 %v4659
  %v4773 = vunpack.c.l.b16 %v4660
  %v4774 = vunpack.c.l.b16 %v4661
  %v4775 = vunpack.c.l.b16 %v4662
  %v4776 = vunpack.c.l.b16 %v4663
  %v4777 = vunpack.c.l.b16 %v4664
  %v4778 = vunpack.c.l.b16 %v4665
  %v4779 = vunpack.c.l.b16 %v4666
  %v4780 = vpack.c.b16 %v4731, %v4730
  %v4781 = vpack.c.b16 %v4733, %v4732
  %v4782 = vpack.c.b16 %v4735, %v4734
  %v4783 = vpack.c.b16 %v4737, %v4736
  %v4784 = vpack.c.b16 %v4739, %v4738
  %v4785 = vpack.c.b16 %v4741, %v4740
  %v4786 = vpack.c.b16 %v4743, %v4742
  %v4787 = vpack.c.b16 %v4745, %v4744
  %v4788 = vpack.c.b16 %v4747, %v4746
  %v4789 = vpack.c.b16 %v4749, %v4748
  %v4790 = vpack.c.b16 %v4751, %v4750
  %v4791 = vpack.c.b16 %v4753, %v4752
  %v4792 = vpack.c.b16 %v4755, %v4754
  %v4793 = vpack.c.b16 %v4757, %v4756
  %v4794 = vpack.c.b16 %v4759, %v4758
  %v4795 = vpack.c.b16 %v4761, %v4760
  %v4796 = vpack.c.b16 %v4763, %v4762
  %v4797 = vpack.c.b16 %v4765, %v4764
  %v4798 = vpack.c.b16 %v4767, %v4766
  %v4799 = vpack.c.b16 %v4769, %v4768
  %v4800 = vpack.c.b16 %v4771, %v4770
  %v4801 = vpack.c.b16 %v4773, %v4772
  %v4802 = vpack.c.b16 %v4775, %v4774
  %v4803 = vpack.c.b16 %v4777, %v4776
  %v4804 = vpack.c.b16 %v4779, %v4778
  %v4817 = vunpack.c.l.b16 %v4668
  %v4818 = vunpack.c.l.b16 %v4669
  %v4819 = vunpack.c.l.b16 %v4670
  %v4820 = vunpack.c.l.b16 %v4671
  %v4821 = vunpack.c.l.b16 %v4672
  %v4822 = vunpack.c.l.b16 %v4673
  %v4823 = vunpack.c.l.b16 %v4674
  %v4824 = vunpack.c.l.b16 %v4675
  %v4825 = vunpack.c.l.b16 %v4676
  %v4826 = vunpack.c.l.b16 %v4677
  %v4827 = vunpack.c.l.b16 %v4678
  %v4828 = vunpack.c.l.b16 %v4679
  %v4829 = vpack.c.b16 %v4818, %v4817
  %v4830 = vpack.c.b16 %v4820, %v4819
  %v4831 = vpack.c.b16 %v4822, %v4821
  %v4832 = vpack.c.b16 %v4824, %v4823
  %v4833 = vpack.c.b16 %v4826, %v4825
  %v4834 = vpack.c.b16 %v4828, %v4827
  %v4842 = vsel %vm1912, %v4780, 0
  %v4845 = vsel %vm1912, %v4781, 0
  %v4848 = vsel %vm1912, %v4782, 0
  %v4851 = vsel %vm1912, %v4783, 0
  %v4854 = vsel %vm1912, %v4784, 0
  %v4857 = vsel %vm1912, %v4785, 0
  %v4860 = vsel %vm1912, %v4786, 0
  %v4863 = vsel %vm1912, %v4787, 0
  %v4866 = vsel %vm1912, %v4788, 0
  %v4869 = vsel %vm1912, %v4789, 0
  %v4872 = vsel %vm1912, %v4790, 0
  %v4875 = vsel %vm1912, %v4791, 0
  %v4878 = vsel %vm1912, %v4792, 0
  %v4881 = vsel %vm1912, %v4793, 0
  %v4884 = vsel %vm1912, %v4794, 0
  %v4887 = vsel %vm1912, %v4795, 0
  %v4890 = vsel %vm1912, %v4796, 0
  %v4893 = vsel %vm1912, %v4797, 0
  %v4896 = vsel %vm1912, %v4798, 0
  %v4899 = vsel %vm1912, %v4799, 0
  %v4902 = vsel %vm1912, %v4800, 0
  %v4905 = vsel %vm1912, %v4801, 0
  %v4908 = vsel %vm1912, %v4802, 0
  %v4911 = vsel %vm1912, %v4803, 0
  %v4914 = vsel %vm1912, %v4804, 0
  %4916 = vmatpush.bf16.msra.mxu0 0
  %4917 = vmatpush.bf16.msra.mxu0 0
  %4918 = vmatpush.bf16.msra.mxu0 %v4834
  %4919 = vmatpush.bf16.msra.mxu0 %v4833
  %4920 = vmatpush.bf16.msra.mxu0 %v4832
  %4921 = vmatpush.bf16.msra.mxu0 %v4831
  %4922 = vmatpush.bf16.msra.mxu0 %v4830
  %4923 = vmatpush.bf16.msra.mxu0 %v4829
  %4924 = vmatmul.bf16.gmra.mxu0 %v4842
  %v4925 = vpop.f32.mrf.mxu0
  %v4926 = vadd.f32 0.0, %v4925
  %v4927 = vpop.f32.mrf.mxu0
  %v4928 = vadd.f32 0.0, %v4927
  %4929 = vmatmul.bf16.gmra.mxu0 %v4845
  %v4930 = vpop.f32.mrf.mxu0
  %v4931 = vadd.f32 0.0, %v4930
  %v4932 = vpop.f32.mrf.mxu0
  %v4933 = vadd.f32 0.0, %v4932
  %4934 = vmatmul.bf16.gmra.mxu0 %v4848
  %v4935 = vpop.f32.mrf.mxu0
  %v4936 = vadd.f32 0.0, %v4935
  %v4937 = vpop.f32.mrf.mxu0
  %v4938 = vadd.f32 0.0, %v4937
  %4939 = vmatmul.bf16.gmra.mxu0 %v4851
  %v4940 = vpop.f32.mrf.mxu0
  %v4941 = vadd.f32 0.0, %v4940
  %v4942 = vpop.f32.mrf.mxu0
  %v4943 = vadd.f32 0.0, %v4942
  %4944 = vmatmul.bf16.gmra.mxu0 %v4854
  %v4945 = vpop.f32.mrf.mxu0
  %v4946 = vadd.f32 0.0, %v4945
  %v4947 = vpop.f32.mrf.mxu0
  %v4948 = vadd.f32 0.0, %v4947
  %4949 = vmatmul.bf16.gmra.mxu0 %v4857
  %v4950 = vpop.f32.mrf.mxu0
  %v4951 = vadd.f32 0.0, %v4950
  %v4952 = vpop.f32.mrf.mxu0
  %v4953 = vadd.f32 0.0, %v4952
  %4954 = vmatmul.bf16.gmra.mxu0 %v4860
  %v4955 = vpop.f32.mrf.mxu0
  %v4956 = vadd.f32 0.0, %v4955
  %v4957 = vpop.f32.mrf.mxu0
  %v4958 = vadd.f32 0.0, %v4957
  %4959 = vmatmul.bf16.gmra.mxu0 %v4863
  %v4960 = vpop.f32.mrf.mxu0
  %v4961 = vadd.f32 0.0, %v4960
  %v4962 = vpop.f32.mrf.mxu0
  %v4963 = vadd.f32 0.0, %v4962
  %4964 = vmatmul.bf16.gmra.mxu0 %v4866
  %v4965 = vpop.f32.mrf.mxu0
  %v4966 = vadd.f32 0.0, %v4965
  %v4967 = vpop.f32.mrf.mxu0
  %v4968 = vadd.f32 0.0, %v4967
  %4969 = vmatmul.bf16.gmra.mxu0 %v4869
  %v4970 = vpop.f32.mrf.mxu0
  %v4971 = vadd.f32 0.0, %v4970
  %v4972 = vpop.f32.mrf.mxu0
  %v4973 = vadd.f32 0.0, %v4972
  %4974 = vmatmul.bf16.gmra.mxu0 %v4872
  %v4975 = vpop.f32.mrf.mxu0
  %v4976 = vadd.f32 0.0, %v4975
  %v4977 = vpop.f32.mrf.mxu0
  %v4978 = vadd.f32 0.0, %v4977
  %4979 = vmatmul.bf16.gmra.mxu0 %v4875
  %v4980 = vpop.f32.mrf.mxu0
  %v4981 = vadd.f32 0.0, %v4980
  %v4982 = vpop.f32.mrf.mxu0
  %v4983 = vadd.f32 0.0, %v4982
  %4984 = vmatmul.bf16.gmra.mxu0 %v4878
  %v4985 = vpop.f32.mrf.mxu0
  %v4986 = vadd.f32 0.0, %v4985
  %v4987 = vpop.f32.mrf.mxu0
  %v4988 = vadd.f32 0.0, %v4987
  %4989 = vmatmul.bf16.gmra.mxu0 %v4881
  %v4990 = vpop.f32.mrf.mxu0
  %v4991 = vadd.f32 0.0, %v4990
  %v4992 = vpop.f32.mrf.mxu0
  %v4993 = vadd.f32 0.0, %v4992
  %4994 = vmatmul.bf16.gmra.mxu0 %v4884
  %v4995 = vpop.f32.mrf.mxu0
  %v4996 = vadd.f32 0.0, %v4995
  %v4997 = vpop.f32.mrf.mxu0
  %v4998 = vadd.f32 0.0, %v4997
  %4999 = vmatmul.bf16.gmra.mxu0 %v4887
  %v5000 = vpop.f32.mrf.mxu0
  %v5001 = vadd.f32 0.0, %v5000
  %v5002 = vpop.f32.mrf.mxu0
  %v5003 = vadd.f32 0.0, %v5002
  %5004 = vmatmul.bf16.gmra.mxu0 %v4890
  %v5005 = vpop.f32.mrf.mxu0
  %v5006 = vadd.f32 0.0, %v5005
  %v5007 = vpop.f32.mrf.mxu0
  %v5008 = vadd.f32 0.0, %v5007
  %5009 = vmatmul.bf16.gmra.mxu0 %v4893
  %v5010 = vpop.f32.mrf.mxu0
  %v5011 = vadd.f32 0.0, %v5010
  %v5012 = vpop.f32.mrf.mxu0
  %v5013 = vadd.f32 0.0, %v5012
  %5014 = vmatmul.bf16.gmra.mxu0 %v4896
  %v5015 = vpop.f32.mrf.mxu0
  %v5016 = vadd.f32 0.0, %v5015
  %v5017 = vpop.f32.mrf.mxu0
  %v5018 = vadd.f32 0.0, %v5017
  %5019 = vmatmul.bf16.gmra.mxu0 %v4899
  %v5020 = vpop.f32.mrf.mxu0
  %v5021 = vadd.f32 0.0, %v5020
  %v5022 = vpop.f32.mrf.mxu0
  %v5023 = vadd.f32 0.0, %v5022
  %5024 = vmatmul.bf16.gmra.mxu0 %v4902
  %v5025 = vpop.f32.mrf.mxu0
  %v5026 = vadd.f32 0.0, %v5025
  %v5027 = vpop.f32.mrf.mxu0
  %v5028 = vadd.f32 0.0, %v5027
  %5029 = vmatmul.bf16.gmra.mxu0 %v4905
  %v5030 = vpop.f32.mrf.mxu0
  %v5031 = vadd.f32 0.0, %v5030
  %v5032 = vpop.f32.mrf.mxu0
  %v5033 = vadd.f32 0.0, %v5032
  %5034 = vmatmul.bf16.gmra.mxu0 %v4908
  %v5035 = vpop.f32.mrf.mxu0
  %v5036 = vadd.f32 0.0, %v5035
  %v5037 = vpop.f32.mrf.mxu0
  %v5038 = vadd.f32 0.0, %v5037
  %5039 = vmatmul.bf16.gmra.mxu0 %v4911
  %v5040 = vpop.f32.mrf.mxu0
  %v5041 = vadd.f32 0.0, %v5040
  %v5042 = vpop.f32.mrf.mxu0
  %v5043 = vadd.f32 0.0, %v5042
  %5044 = vmatmul.bf16.gmra.mxu0 %v4914
  %v5045 = vpop.f32.mrf.mxu0
  %v5046 = vadd.f32 0.0, %v5045
  %v5047 = vpop.f32.mrf.mxu0
  %v5048 = vadd.f32 0.0, %v5047
  %5049 = vdwg.mxu0
  %v5050 = vadd.f32 %v4493, %v4926
  %v5051 = vadd.f32 %v4495, %v4928
  %v5052 = vadd.f32 %v4498, %v4931
  %v5053 = vadd.f32 %v4500, %v4933
  %v5054 = vadd.f32 %v4503, %v4936
  %v5055 = vadd.f32 %v4505, %v4938
  %v5056 = vadd.f32 %v4508, %v4941
  %v5057 = vadd.f32 %v4510, %v4943
  %v5058 = vadd.f32 %v4513, %v4946
  %v5059 = vadd.f32 %v4515, %v4948
  %v5060 = vadd.f32 %v4518, %v4951
  %v5061 = vadd.f32 %v4520, %v4953
  %v5062 = vadd.f32 %v4523, %v4956
  %v5063 = vadd.f32 %v4525, %v4958
  %v5064 = vadd.f32 %v4528, %v4961
  %v5065 = vadd.f32 %v4530, %v4963
  %v5066 = vadd.f32 %v4533, %v4966
  %v5067 = vadd.f32 %v4535, %v4968
  %v5068 = vadd.f32 %v4538, %v4971
  %v5069 = vadd.f32 %v4540, %v4973
  %v5070 = vadd.f32 %v4543, %v4976
  %v5071 = vadd.f32 %v4545, %v4978
  %v5072 = vadd.f32 %v4548, %v4981
  %v5073 = vadd.f32 %v4550, %v4983
  %v5074 = vadd.f32 %v4553, %v4986
  %v5075 = vadd.f32 %v4555, %v4988
  %v5076 = vadd.f32 %v4558, %v4991
  %v5077 = vadd.f32 %v4560, %v4993
  %v5078 = vadd.f32 %v4563, %v4996
  %v5079 = vadd.f32 %v4565, %v4998
  %v5080 = vadd.f32 %v4568, %v5001
  %v5081 = vadd.f32 %v4570, %v5003
  %v5082 = vadd.f32 %v4573, %v5006
  %v5083 = vadd.f32 %v4575, %v5008
  %v5084 = vadd.f32 %v4578, %v5011
  %v5085 = vadd.f32 %v4580, %v5013
  %v5086 = vadd.f32 %v4583, %v5016
  %v5087 = vadd.f32 %v4585, %v5018
  %v5088 = vadd.f32 %v4588, %v5021
  %v5089 = vadd.f32 %v4590, %v5023
  %v5090 = vadd.f32 %v4593, %v5026
  %v5091 = vadd.f32 %v4595, %v5028
  %v5092 = vadd.f32 %v4598, %v5031
  %v5093 = vadd.f32 %v4600, %v5033
  %v5094 = vadd.f32 %v4603, %v5036
  %v5095 = vadd.f32 %v4605, %v5038
  %v5096 = vadd.f32 %v4608, %v5041
  %v5097 = vadd.f32 %v4610, %v5043
  %v5098 = vadd.f32 %v4613, %v5046
  %v5099 = vadd.f32 %v4615, %v5048
  %v5100 = vld [vmem:[%s5 + $0x2] sm:$0x1]
  %v5101 = vperm.slane %v5100, 0
  %v5102 = vadd.f32 %v5050, %v5101
  %v5103 = vadd.f32 %v5051, %v5101
  %v5104 = vadd.f32 %v5052, %v5101
  %v5105 = vadd.f32 %v5053, %v5101
  %v5106 = vadd.f32 %v5054, %v5101
  %v5107 = vadd.f32 %v5055, %v5101
  %v5108 = vadd.f32 %v5056, %v5101
  %v5109 = vadd.f32 %v5057, %v5101
  %v5110 = vadd.f32 %v5058, %v5101
  %v5111 = vadd.f32 %v5059, %v5101
  %v5112 = vadd.f32 %v5060, %v5101
  %v5113 = vadd.f32 %v5061, %v5101
  %v5114 = vadd.f32 %v5062, %v5101
  %v5115 = vadd.f32 %v5063, %v5101
  %v5116 = vadd.f32 %v5064, %v5101
  %v5117 = vadd.f32 %v5065, %v5101
  %v5118 = vadd.f32 %v5066, %v5101
  %v5119 = vadd.f32 %v5067, %v5101
  %v5120 = vadd.f32 %v5068, %v5101
  %v5121 = vadd.f32 %v5069, %v5101
  %v5122 = vadd.f32 %v5070, %v5101
  %v5123 = vadd.f32 %v5071, %v5101
  %v5124 = vadd.f32 %v5072, %v5101
  %v5125 = vadd.f32 %v5073, %v5101
  %v5126 = vadd.f32 %v5074, %v5101
  %v5127 = vadd.f32 %v5075, %v5101
  %v5128 = vadd.f32 %v5076, %v5101
  %v5129 = vadd.f32 %v5077, %v5101
  %v5130 = vadd.f32 %v5078, %v5101
  %v5131 = vadd.f32 %v5079, %v5101
  %v5132 = vadd.f32 %v5080, %v5101
  %v5133 = vadd.f32 %v5081, %v5101
  %v5134 = vadd.f32 %v5082, %v5101
  %v5135 = vadd.f32 %v5083, %v5101
  %v5136 = vadd.f32 %v5084, %v5101
  %v5137 = vadd.f32 %v5085, %v5101
  %v5138 = vadd.f32 %v5086, %v5101
  %v5139 = vadd.f32 %v5087, %v5101
  %v5140 = vadd.f32 %v5088, %v5101
  %v5141 = vadd.f32 %v5089, %v5101
  %v5142 = vadd.f32 %v5090, %v5101
  %v5143 = vadd.f32 %v5091, %v5101
  %v5144 = vadd.f32 %v5092, %v5101
  %v5145 = vadd.f32 %v5093, %v5101
  %v5146 = vadd.f32 %v5094, %v5101
  %v5147 = vadd.f32 %v5095, %v5101
  %v5148 = vadd.f32 %v5096, %v5101
  %v5149 = vadd.f32 %v5097, %v5101
  %v5150 = vadd.f32 %v5098, %v5101
  %v5151 = vadd.f32 %v5099, %v5101
  %vm5152 = vcmp.ge.f32.partialorder %v5102, 0.0
  %vm5153 = vcmp.ge.f32.partialorder %v5103, 0.0
  %vm5154 = vcmp.ge.f32.partialorder %v5104, 0.0
  %vm5155 = vcmp.ge.f32.partialorder %v5105, 0.0
  %vm5156 = vcmp.ge.f32.partialorder %v5106, 0.0
  %vm5157 = vcmp.ge.f32.partialorder %v5107, 0.0
  %vm5158 = vcmp.ge.f32.partialorder %v5108, 0.0
  %vm5159 = vcmp.ge.f32.partialorder %v5109, 0.0
  %vm5160 = vcmp.ge.f32.partialorder %v5110, 0.0
  %vm5161 = vcmp.ge.f32.partialorder %v5111, 0.0
  %vm5162 = vcmp.ge.f32.partialorder %v5112, 0.0
  %vm5163 = vcmp.ge.f32.partialorder %v5113, 0.0
  %vm5164 = vcmp.ge.f32.partialorder %v5114, 0.0
  %vm5165 = vcmp.ge.f32.partialorder %v5115, 0.0
  %vm5166 = vcmp.ge.f32.partialorder %v5116, 0.0
  %vm5167 = vcmp.ge.f32.partialorder %v5117, 0.0
  %vm5168 = vcmp.ge.f32.partialorder %v5118, 0.0
  %vm5169 = vcmp.ge.f32.partialorder %v5119, 0.0
  %vm5170 = vcmp.ge.f32.partialorder %v5120, 0.0
  %vm5171 = vcmp.ge.f32.partialorder %v5121, 0.0
  %vm5172 = vcmp.ge.f32.partialorder %v5122, 0.0
  %vm5173 = vcmp.ge.f32.partialorder %v5123, 0.0
  %vm5174 = vcmp.ge.f32.partialorder %v5124, 0.0
  %vm5175 = vcmp.ge.f32.partialorder %v5125, 0.0
  %vm5176 = vcmp.ge.f32.partialorder %v5126, 0.0
  %vm5177 = vcmp.ge.f32.partialorder %v5127, 0.0
  %vm5178 = vcmp.ge.f32.partialorder %v5128, 0.0
  %vm5179 = vcmp.ge.f32.partialorder %v5129, 0.0
  %vm5180 = vcmp.ge.f32.partialorder %v5130, 0.0
  %vm5181 = vcmp.ge.f32.partialorder %v5131, 0.0
  %vm5182 = vcmp.ge.f32.partialorder %v5132, 0.0
  %vm5183 = vcmp.ge.f32.partialorder %v5133, 0.0
  %vm5184 = vcmp.ge.f32.partialorder %v5134, 0.0
  %vm5185 = vcmp.ge.f32.partialorder %v5135, 0.0
  %vm5186 = vcmp.ge.f32.partialorder %v5136, 0.0
  %vm5187 = vcmp.ge.f32.partialorder %v5137, 0.0
  %vm5188 = vcmp.ge.f32.partialorder %v5138, 0.0
  %vm5189 = vcmp.ge.f32.partialorder %v5139, 0.0
  %vm5190 = vcmp.ge.f32.partialorder %v5140, 0.0
  %vm5191 = vcmp.ge.f32.partialorder %v5141, 0.0
  %vm5192 = vcmp.ge.f32.partialorder %v5142, 0.0
  %vm5193 = vcmp.ge.f32.partialorder %v5143, 0.0
  %vm5194 = vcmp.ge.f32.partialorder %v5144, 0.0
  %vm5195 = vcmp.ge.f32.partialorder %v5145, 0.0
  %vm5196 = vcmp.ge.f32.partialorder %v5146, 0.0
  %vm5197 = vcmp.ge.f32.partialorder %v5147, 0.0
  %vm5198 = vcmp.ge.f32.partialorder %v5148, 0.0
  %vm5199 = vcmp.ge.f32.partialorder %v5149, 0.0
  %vm5200 = vcmp.ge.f32.partialorder %v5150, 0.0
  %vm5201 = vcmp.ge.f32.partialorder %v5151, 0.0
  %v5202 = vmul.f32 %v5102, 0.2
  %v5203 = vmul.f32 %v5103, 0.2
  %v5204 = vmul.f32 %v5104, 0.2
  %v5205 = vmul.f32 %v5105, 0.2
  %v5206 = vmul.f32 %v5106, 0.2
  %v5207 = vmul.f32 %v5107, 0.2
  %v5208 = vmul.f32 %v5108, 0.2
  %v5209 = vmul.f32 %v5109, 0.2
  %v5210 = vmul.f32 %v5110, 0.2
  %v5211 = vmul.f32 %v5111, 0.2
  %v5212 = vmul.f32 %v5112, 0.2
  %v5213 = vmul.f32 %v5113, 0.2
  %v5214 = vmul.f32 %v5114, 0.2
  %v5215 = vmul.f32 %v5115, 0.2
  %v5216 = vmul.f32 %v5116, 0.2
  %v5217 = vmul.f32 %v5117, 0.2
  %v5218 = vmul.f32 %v5118, 0.2
  %v5219 = vmul.f32 %v5119, 0.2
  %v5220 = vmul.f32 %v5120, 0.2
  %v5221 = vmul.f32 %v5121, 0.2
  %v5222 = vmul.f32 %v5122, 0.2
  %v5223 = vmul.f32 %v5123, 0.2
  %v5224 = vmul.f32 %v5124, 0.2
  %v5225 = vmul.f32 %v5125, 0.2
  %v5226 = vmul.f32 %v5126, 0.2
  %v5227 = vmul.f32 %v5127, 0.2
  %v5228 = vmul.f32 %v5128, 0.2
  %v5229 = vmul.f32 %v5129, 0.2
  %v5230 = vmul.f32 %v5130, 0.2
  %v5231 = vmul.f32 %v5131, 0.2
  %v5232 = vmul.f32 %v5132, 0.2
  %v5233 = vmul.f32 %v5133, 0.2
  %v5234 = vmul.f32 %v5134, 0.2
  %v5235 = vmul.f32 %v5135, 0.2
  %v5236 = vmul.f32 %v5136, 0.2
  %v5237 = vmul.f32 %v5137, 0.2
  %v5238 = vmul.f32 %v5138, 0.2
  %v5239 = vmul.f32 %v5139, 0.2
  %v5240 = vmul.f32 %v5140, 0.2
  %v5241 = vmul.f32 %v5141, 0.2
  %v5242 = vmul.f32 %v5142, 0.2
  %v5243 = vmul.f32 %v5143, 0.2
  %v5244 = vmul.f32 %v5144, 0.2
  %v5245 = vmul.f32 %v5145, 0.2
  %v5246 = vmul.f32 %v5146, 0.2
  %v5247 = vmul.f32 %v5147, 0.2
  %v5248 = vmul.f32 %v5148, 0.2
  %v5249 = vmul.f32 %v5149, 0.2
  %v5250 = vmul.f32 %v5150, 0.2
  %v5251 = vmul.f32 %v5151, 0.2
  %v5252 = vsel %vm5152, %v5102, %v5202
  %v5253 = vsel %vm5153, %v5103, %v5203
  %v5254 = vsel %vm5154, %v5104, %v5204
  %v5255 = vsel %vm5155, %v5105, %v5205
  %v5256 = vsel %vm5156, %v5106, %v5206
  %v5257 = vsel %vm5157, %v5107, %v5207
  %v5258 = vsel %vm5158, %v5108, %v5208
  %v5259 = vsel %vm5159, %v5109, %v5209
  %v5260 = vsel %vm5160, %v5110, %v5210
  %v5261 = vsel %vm5161, %v5111, %v5211
  %v5262 = vsel %vm5162, %v5112, %v5212
  %v5263 = vsel %vm5163, %v5113, %v5213
  %v5264 = vsel %vm5164, %v5114, %v5214
  %v5265 = vsel %vm5165, %v5115, %v5215
  %v5266 = vsel %vm5166, %v5116, %v5216
  %v5267 = vsel %vm5167, %v5117, %v5217
  %v5268 = vsel %vm5168, %v5118, %v5218
  %v5269 = vsel %vm5169, %v5119, %v5219
  %v5270 = vsel %vm5170, %v5120, %v5220
  %v5271 = vsel %vm5171, %v5121, %v5221
  %v5272 = vsel %vm5172, %v5122, %v5222
  %v5273 = vsel %vm5173, %v5123, %v5223
  %v5274 = vsel %vm5174, %v5124, %v5224
  %v5275 = vsel %vm5175, %v5125, %v5225
  %v5276 = vsel %vm5176, %v5126, %v5226
  %v5277 = vsel %vm5177, %v5127, %v5227
  %v5278 = vsel %vm5178, %v5128, %v5228
  %v5279 = vsel %vm5179, %v5129, %v5229
  %v5280 = vsel %vm5180, %v5130, %v5230
  %v5281 = vsel %vm5181, %v5131, %v5231
  %v5282 = vsel %vm5182, %v5132, %v5232
  %v5283 = vsel %vm5183, %v5133, %v5233
  %v5284 = vsel %vm5184, %v5134, %v5234
  %v5285 = vsel %vm5185, %v5135, %v5235
  %v5286 = vsel %vm5186, %v5136, %v5236
  %v5287 = vsel %vm5187, %v5137, %v5237
  %v5288 = vsel %vm5188, %v5138, %v5238
  %v5289 = vsel %vm5189, %v5139, %v5239
  %v5290 = vsel %vm5190, %v5140, %v5240
  %v5291 = vsel %vm5191, %v5141, %v5241
  %v5292 = vsel %vm5192, %v5142, %v5242
  %v5293 = vsel %vm5193, %v5143, %v5243
  %v5294 = vsel %vm5194, %v5144, %v5244
  %v5295 = vsel %vm5195, %v5145, %v5245
  %v5296 = vsel %vm5196, %v5146, %v5246
  %v5297 = vsel %vm5197, %v5147, %v5247
  %v5298 = vsel %vm5198, %v5148, %v5248
  %v5299 = vsel %vm5199, %v5149, %v5249
  %v5300 = vsel %vm5200, %v5150, %v5250
  %v5301 = vsel %vm5201, %v5151, %v5251
  %v5302 = vpack.c.bf16 %v5252, %v5252
  %v5303 = vpack.c.bf16 %v5253, %v5253
  %v5304 = vpack.c.bf16 %v5254, %v5254
  %v5305 = vpack.c.bf16 %v5255, %v5255
  %v5306 = vpack.c.bf16 %v5256, %v5256
  %v5307 = vpack.c.bf16 %v5257, %v5257
  %v5308 = vpack.c.bf16 %v5258, %v5258
  %v5309 = vpack.c.bf16 %v5259, %v5259
  %v5310 = vpack.c.bf16 %v5260, %v5260
  %v5311 = vpack.c.bf16 %v5261, %v5261
  %v5312 = vpack.c.bf16 %v5262, %v5262
  %v5313 = vpack.c.bf16 %v5263, %v5263
  %v5314 = vpack.c.bf16 %v5264, %v5264
  %v5315 = vpack.c.bf16 %v5265, %v5265
  %v5316 = vpack.c.bf16 %v5266, %v5266
  %v5317 = vpack.c.bf16 %v5267, %v5267
  %v5318 = vpack.c.bf16 %v5268, %v5268
  %v5319 = vpack.c.bf16 %v5269, %v5269
  %v5320 = vpack.c.bf16 %v5270, %v5270
  %v5321 = vpack.c.bf16 %v5271, %v5271
  %v5322 = vpack.c.bf16 %v5272, %v5272
  %v5323 = vpack.c.bf16 %v5273, %v5273
  %v5324 = vpack.c.bf16 %v5274, %v5274
  %v5325 = vpack.c.bf16 %v5275, %v5275
  %v5326 = vpack.c.bf16 %v5276, %v5276
  %v5327 = vpack.c.bf16 %v5277, %v5277
  %v5328 = vpack.c.bf16 %v5278, %v5278
  %v5329 = vpack.c.bf16 %v5279, %v5279
  %v5330 = vpack.c.bf16 %v5280, %v5280
  %v5331 = vpack.c.bf16 %v5281, %v5281
  %v5332 = vpack.c.bf16 %v5282, %v5282
  %v5333 = vpack.c.bf16 %v5283, %v5283
  %v5334 = vpack.c.bf16 %v5284, %v5284
  %v5335 = vpack.c.bf16 %v5285, %v5285
  %v5336 = vpack.c.bf16 %v5286, %v5286
  %v5337 = vpack.c.bf16 %v5287, %v5287
  %v5338 = vpack.c.bf16 %v5288, %v5288
  %v5339 = vpack.c.bf16 %v5289, %v5289
  %v5340 = vpack.c.bf16 %v5290, %v5290
  %v5341 = vpack.c.bf16 %v5291, %v5291
  %v5342 = vpack.c.bf16 %v5292, %v5292
  %v5343 = vpack.c.bf16 %v5293, %v5293
  %v5344 = vpack.c.bf16 %v5294, %v5294
  %v5345 = vpack.c.bf16 %v5295, %v5295
  %v5346 = vpack.c.bf16 %v5296, %v5296
  %v5347 = vpack.c.bf16 %v5297, %v5297
  %v5348 = vpack.c.bf16 %v5298, %v5298
  %v5349 = vpack.c.bf16 %v5299, %v5299
  %v5350 = vpack.c.bf16 %v5300, %v5300
  %v5351 = vpack.c.bf16 %v5301, %v5301
  %v5402 = vunpack.c.l.b16 %v5302
  %v5403 = vunpack.c.l.b16 %v5303
  %v5404 = vunpack.c.l.b16 %v5304
  %v5405 = vunpack.c.l.b16 %v5305
  %v5406 = vunpack.c.l.b16 %v5306
  %v5407 = vunpack.c.l.b16 %v5307
  %v5408 = vunpack.c.l.b16 %v5308
  %v5409 = vunpack.c.l.b16 %v5309
  %v5410 = vunpack.c.l.b16 %v5310
  %v5411 = vunpack.c.l.b16 %v5311
  %v5412 = vunpack.c.l.b16 %v5312
  %v5413 = vunpack.c.l.b16 %v5313
  %v5414 = vunpack.c.l.b16 %v5314
  %v5415 = vunpack.c.l.b16 %v5315
  %v5416 = vunpack.c.l.b16 %v5316
  %v5417 = vunpack.c.l.b16 %v5317
  %v5418 = vunpack.c.l.b16 %v5318
  %v5419 = vunpack.c.l.b16 %v5319
  %v5420 = vunpack.c.l.b16 %v5320
  %v5421 = vunpack.c.l.b16 %v5321
  %v5422 = vunpack.c.l.b16 %v5322
  %v5423 = vunpack.c.l.b16 %v5323
  %v5424 = vunpack.c.l.b16 %v5324
  %v5425 = vunpack.c.l.b16 %v5325
  %v5426 = vunpack.c.l.b16 %v5326
  %v5427 = vunpack.c.l.b16 %v5327
  %v5428 = vunpack.c.l.b16 %v5328
  %v5429 = vunpack.c.l.b16 %v5329
  %v5430 = vunpack.c.l.b16 %v5330
  %v5431 = vunpack.c.l.b16 %v5331
  %v5432 = vunpack.c.l.b16 %v5332
  %v5433 = vunpack.c.l.b16 %v5333
  %v5434 = vunpack.c.l.b16 %v5334
  %v5435 = vunpack.c.l.b16 %v5335
  %v5436 = vunpack.c.l.b16 %v5336
  %v5437 = vunpack.c.l.b16 %v5337
  %v5438 = vunpack.c.l.b16 %v5338
  %v5439 = vunpack.c.l.b16 %v5339
  %v5440 = vunpack.c.l.b16 %v5340
  %v5441 = vunpack.c.l.b16 %v5341
  %v5442 = vunpack.c.l.b16 %v5342
  %v5443 = vunpack.c.l.b16 %v5343
  %v5444 = vunpack.c.l.b16 %v5344
  %v5445 = vunpack.c.l.b16 %v5345
  %v5446 = vunpack.c.l.b16 %v5346
  %v5447 = vunpack.c.l.b16 %v5347
  %v5448 = vunpack.c.l.b16 %v5348
  %v5449 = vunpack.c.l.b16 %v5349
  %v5450 = vunpack.c.l.b16 %v5350
  %v5451 = vunpack.c.l.b16 %v5351
  %v5452 = vpack.c.b16 %v5403, %v5402
  %v5453 = vpack.c.b16 %v5405, %v5404
  %v5454 = vpack.c.b16 %v5407, %v5406
  %v5455 = vpack.c.b16 %v5409, %v5408
  %v5456 = vpack.c.b16 %v5411, %v5410
  %v5457 = vpack.c.b16 %v5413, %v5412
  %v5458 = vpack.c.b16 %v5415, %v5414
  %v5459 = vpack.c.b16 %v5417, %v5416
  %v5460 = vpack.c.b16 %v5419, %v5418
  %v5461 = vpack.c.b16 %v5421, %v5420
  %v5462 = vpack.c.b16 %v5423, %v5422
  %v5463 = vpack.c.b16 %v5425, %v5424
  %v5464 = vpack.c.b16 %v5427, %v5426
  %v5465 = vpack.c.b16 %v5429, %v5428
  %v5466 = vpack.c.b16 %v5431, %v5430
  %v5467 = vpack.c.b16 %v5433, %v5432
  %v5468 = vpack.c.b16 %v5435, %v5434
  %v5469 = vpack.c.b16 %v5437, %v5436
  %v5470 = vpack.c.b16 %v5439, %v5438
  %v5471 = vpack.c.b16 %v5441, %v5440
  %v5472 = vpack.c.b16 %v5443, %v5442
  %v5473 = vpack.c.b16 %v5445, %v5444
  %v5474 = vpack.c.b16 %v5447, %v5446
  %v5475 = vpack.c.b16 %v5449, %v5448
  %v5476 = vpack.c.b16 %v5451, %v5450
  %v5478 = vshrl.u32 %v5452, 16
  %v5480 = vshll.u32 %v5452, 16
  %v5482 = vrot.slane %v5480, 1
  %v5483 = vor.u32 %v5478, %v5482
  %v5485 = vshll.u32 %v5453, 16
  %v5487 = vrot.slane %v5485, 1
  %v5488 = vsel %vm872, %v5483, %v5487
  %v5489 = vshrl.u32 %v5453, 16
  %v5491 = vor.u32 %v5489, %v5487
  %v5493 = vshll.u32 %v5454, 16
  %v5495 = vrot.slane %v5493, 1
  %v5496 = vsel %vm872, %v5491, %v5495
  %v5497 = vshrl.u32 %v5454, 16
  %v5499 = vor.u32 %v5497, %v5495
  %v5501 = vshll.u32 %v5455, 16
  %v5503 = vrot.slane %v5501, 1
  %v5504 = vsel %vm872, %v5499, %v5503
  %v5505 = vshrl.u32 %v5455, 16
  %v5507 = vor.u32 %v5505, %v5503
  %v5509 = vshll.u32 %v5456, 16
  %v5511 = vrot.slane %v5509, 1
  %v5512 = vsel %vm872, %v5507, %v5511
  %v5513 = vshrl.u32 %v5456, 16
  %v5515 = vor.u32 %v5513, %v5511
  %v5517 = vshll.u32 %v5457, 16
  %v5519 = vrot.slane %v5517, 1
  %v5520 = vsel %vm872, %v5515, %v5519
  %v5521 = vshrl.u32 %v5457, 16
  %v5523 = vor.u32 %v5521, %v5519
  %v5525 = vshll.u32 %v5458, 16
  %v5527 = vrot.slane %v5525, 1
  %v5528 = vsel %vm872, %v5523, %v5527
  %v5529 = vshrl.u32 %v5458, 16
  %v5531 = vor.u32 %v5529, %v5527
  %v5533 = vshll.u32 %v5459, 16
  %v5535 = vrot.slane %v5533, 1
  %v5536 = vsel %vm872, %v5531, %v5535
  %v5537 = vshrl.u32 %v5459, 16
  %v5539 = vor.u32 %v5537, %v5535
  %v5541 = vshll.u32 %v5460, 16
  %v5543 = vrot.slane %v5541, 1
  %v5544 = vsel %vm872, %v5539, %v5543
  %v5545 = vshrl.u32 %v5460, 16
  %v5547 = vor.u32 %v5545, %v5543
  %v5549 = vshll.u32 %v5461, 16
  %v5551 = vrot.slane %v5549, 1
  %v5552 = vsel %vm872, %v5547, %v5551
  %v5553 = vshrl.u32 %v5461, 16
  %v5555 = vor.u32 %v5553, %v5551
  %v5557 = vshll.u32 %v5462, 16
  %v5559 = vrot.slane %v5557, 1
  %v5560 = vsel %vm872, %v5555, %v5559
  %v5561 = vshrl.u32 %v5462, 16
  %v5563 = vor.u32 %v5561, %v5559
  %v5565 = vshll.u32 %v5463, 16
  %v5567 = vrot.slane %v5565, 1
  %v5568 = vsel %vm872, %v5563, %v5567
  %v5569 = vshrl.u32 %v5463, 16
  %v5571 = vor.u32 %v5569, %v5567
  %v5573 = vshll.u32 %v5464, 16
  %v5575 = vrot.slane %v5573, 1
  %v5576 = vsel %vm872, %v5571, %v5575
  %v5577 = vshrl.u32 %v5464, 16
  %v5579 = vor.u32 %v5577, %v5575
  %v5581 = vshll.u32 %v5465, 16
  %v5583 = vrot.slane %v5581, 1
  %v5584 = vsel %vm872, %v5579, %v5583
  %v5585 = vshrl.u32 %v5465, 16
  %v5587 = vor.u32 %v5585, %v5583
  %v5589 = vshll.u32 %v5466, 16
  %v5591 = vrot.slane %v5589, 1
  %v5592 = vsel %vm872, %v5587, %v5591
  %v5593 = vshrl.u32 %v5466, 16
  %v5595 = vor.u32 %v5593, %v5591
  %v5597 = vshll.u32 %v5467, 16
  %v5599 = vrot.slane %v5597, 1
  %v5600 = vsel %vm872, %v5595, %v5599
  %v5601 = vshrl.u32 %v5467, 16
  %v5603 = vor.u32 %v5601, %v5599
  %v5605 = vshll.u32 %v5468, 16
  %v5607 = vrot.slane %v5605, 1
  %v5608 = vsel %vm872, %v5603, %v5607
  %v5609 = vshrl.u32 %v5468, 16
  %v5611 = vor.u32 %v5609, %v5607
  %v5613 = vshll.u32 %v5469, 16
  %v5615 = vrot.slane %v5613, 1
  %v5616 = vsel %vm872, %v5611, %v5615
  %v5617 = vshrl.u32 %v5469, 16
  %v5619 = vor.u32 %v5617, %v5615
  %v5621 = vshll.u32 %v5470, 16
  %v5623 = vrot.slane %v5621, 1
  %v5624 = vsel %vm872, %v5619, %v5623
  %v5625 = vshrl.u32 %v5470, 16
  %v5627 = vor.u32 %v5625, %v5623
  %v5629 = vshll.u32 %v5471, 16
  %v5631 = vrot.slane %v5629, 1
  %v5632 = vsel %vm872, %v5627, %v5631
  %v5633 = vshrl.u32 %v5471, 16
  %v5635 = vor.u32 %v5633, %v5631
  %v5637 = vshll.u32 %v5472, 16
  %v5639 = vrot.slane %v5637, 1
  %v5640 = vsel %vm872, %v5635, %v5639
  %v5641 = vshrl.u32 %v5472, 16
  %v5643 = vor.u32 %v5641, %v5639
  %v5645 = vshll.u32 %v5473, 16
  %v5647 = vrot.slane %v5645, 1
  %v5648 = vsel %vm872, %v5643, %v5647
  %v5649 = vshrl.u32 %v5473, 16
  %v5651 = vor.u32 %v5649, %v5647
  %v5653 = vshll.u32 %v5474, 16
  %v5655 = vrot.slane %v5653, 1
  %v5656 = vsel %vm872, %v5651, %v5655
  %v5657 = vshrl.u32 %v5474, 16
  %v5659 = vor.u32 %v5657, %v5655
  %v5661 = vshll.u32 %v5475, 16
  %v5663 = vrot.slane %v5661, 1
  %v5664 = vsel %vm872, %v5659, %v5663
  %v5665 = vshrl.u32 %v5475, 16
  %v5667 = vor.u32 %v5665, %v5663
  %v5669 = vshll.u32 %v5476, 16
  %v5671 = vrot.slane %v5669, 1
  %v5672 = vsel %vm872, %v5667, %v5671
  %v5673 = vshrl.u32 %v5476, 16
  %v5675 = vor.u32 %v5673, %v5671
  %5676 = vrot.lane.b32.xlu0 %v5488, 32
  %v5677 = vpop.permute.xlu0 %5676
  %5678 = vrot.lane.b32.xlu0 %v5496, 32
  %v5679 = vpop.permute.xlu0 %5678
  %5680 = vrot.lane.b32.xlu0 %v5504, 32
  %v5681 = vpop.permute.xlu0 %5680
  %5682 = vrot.lane.b32.xlu0 %v5512, 32
  %v5683 = vpop.permute.xlu0 %5682
  %5684 = vrot.lane.b32.xlu0 %v5520, 32
  %v5685 = vpop.permute.xlu0 %5684
  %5686 = vrot.lane.b32.xlu0 %v5528, 32
  %v5687 = vpop.permute.xlu0 %5686
  %5688 = vrot.lane.b32.xlu0 %v5536, 32
  %v5689 = vpop.permute.xlu0 %5688
  %5690 = vrot.lane.b32.xlu0 %v5544, 32
  %v5691 = vpop.permute.xlu0 %5690
  %5692 = vrot.lane.b32.xlu0 %v5552, 32
  %v5693 = vpop.permute.xlu0 %5692
  %5694 = vrot.lane.b32.xlu0 %v5560, 32
  %v5695 = vpop.permute.xlu0 %5694
  %5696 = vrot.lane.b32.xlu0 %v5568, 32
  %v5697 = vpop.permute.xlu0 %5696
  %5698 = vrot.lane.b32.xlu0 %v5576, 32
  %v5699 = vpop.permute.xlu0 %5698
  %5700 = vrot.lane.b32.xlu0 %v5584, 32
  %v5701 = vpop.permute.xlu0 %5700
  %5702 = vrot.lane.b32.xlu0 %v5592, 32
  %v5703 = vpop.permute.xlu0 %5702
  %5704 = vrot.lane.b32.xlu0 %v5600, 32
  %v5705 = vpop.permute.xlu0 %5704
  %5706 = vrot.lane.b32.xlu0 %v5608, 32
  %v5707 = vpop.permute.xlu0 %5706
  %5708 = vrot.lane.b32.xlu0 %v5616, 32
  %v5709 = vpop.permute.xlu0 %5708
  %5710 = vrot.lane.b32.xlu0 %v5624, 32
  %v5711 = vpop.permute.xlu0 %5710
  %5712 = vrot.lane.b32.xlu0 %v5632, 32
  %v5713 = vpop.permute.xlu0 %5712
  %5714 = vrot.lane.b32.xlu0 %v5640, 32
  %v5715 = vpop.permute.xlu0 %5714
  %5716 = vrot.lane.b32.xlu0 %v5648, 32
  %v5717 = vpop.permute.xlu0 %5716
  %5718 = vrot.lane.b32.xlu0 %v5656, 32
  %v5719 = vpop.permute.xlu0 %5718
  %5720 = vrot.lane.b32.xlu0 %v5664, 32
  %v5721 = vpop.permute.xlu0 %5720
  %5722 = vrot.lane.b32.xlu0 %v5672, 32
  %v5723 = vpop.permute.xlu0 %5722
  %5724 = vrot.lane.b32.xlu0 %v5675, 32
  %v5725 = vpop.permute.xlu0 %5724
  %v5726 = vrot.slane %v5452, 1
  %v5727 = vrot.slane %v5453, 1
  %v5728 = vsel %vm1162, %v5726, %v5727
  %v5729 = vrot.slane %v5454, 1
  %v5730 = vsel %vm1162, %v5727, %v5729
  %v5731 = vrot.slane %v5455, 1
  %v5732 = vsel %vm1162, %v5729, %v5731
  %v5733 = vrot.slane %v5456, 1
  %v5734 = vsel %vm1162, %v5731, %v5733
  %v5735 = vrot.slane %v5457, 1
  %v5736 = vsel %vm1162, %v5733, %v5735
  %v5737 = vrot.slane %v5458, 1
  %v5738 = vsel %vm1162, %v5735, %v5737
  %v5739 = vrot.slane %v5459, 1
  %v5740 = vsel %vm1162, %v5737, %v5739
  %v5741 = vrot.slane %v5460, 1
  %v5742 = vsel %vm1162, %v5739, %v5741
  %v5743 = vrot.slane %v5461, 1
  %v5744 = vsel %vm1162, %v5741, %v5743
  %v5745 = vrot.slane %v5462, 1
  %v5746 = vsel %vm1162, %v5743, %v5745
  %v5747 = vrot.slane %v5463, 1
  %v5748 = vsel %vm1162, %v5745, %v5747
  %v5749 = vrot.slane %v5464, 1
  %v5750 = vsel %vm1162, %v5747, %v5749
  %v5751 = vrot.slane %v5465, 1
  %v5752 = vsel %vm1162, %v5749, %v5751
  %v5753 = vrot.slane %v5466, 1
  %v5754 = vsel %vm1162, %v5751, %v5753
  %v5755 = vrot.slane %v5467, 1
  %v5756 = vsel %vm1162, %v5753, %v5755
  %v5757 = vrot.slane %v5468, 1
  %v5758 = vsel %vm1162, %v5755, %v5757
  %v5759 = vrot.slane %v5469, 1
  %v5760 = vsel %vm1162, %v5757, %v5759
  %v5761 = vrot.slane %v5470, 1
  %v5762 = vsel %vm1162, %v5759, %v5761
  %v5763 = vrot.slane %v5471, 1
  %v5764 = vsel %vm1162, %v5761, %v5763
  %v5765 = vrot.slane %v5472, 1
  %v5766 = vsel %vm1162, %v5763, %v5765
  %v5767 = vrot.slane %v5473, 1
  %v5768 = vsel %vm1162, %v5765, %v5767
  %v5769 = vrot.slane %v5474, 1
  %v5770 = vsel %vm1162, %v5767, %v5769
  %v5771 = vrot.slane %v5475, 1
  %v5772 = vsel %vm1162, %v5769, %v5771
  %v5773 = vrot.slane %v5476, 1
  %v5774 = vsel %vm1162, %v5771, %v5773
  %5775 = vrot.lane.b32.xlu0 %v5728, 64
  %v5776 = vpop.permute.xlu0 %5775
  %5777 = vrot.lane.b32.xlu0 %v5730, 64
  %v5778 = vpop.permute.xlu0 %5777
  %5779 = vrot.lane.b32.xlu0 %v5732, 64
  %v5780 = vpop.permute.xlu0 %5779
  %5781 = vrot.lane.b32.xlu0 %v5734, 64
  %v5782 = vpop.permute.xlu0 %5781
  %5783 = vrot.lane.b32.xlu0 %v5736, 64
  %v5784 = vpop.permute.xlu0 %5783
  %5785 = vrot.lane.b32.xlu0 %v5738, 64
  %v5786 = vpop.permute.xlu0 %5785
  %5787 = vrot.lane.b32.xlu0 %v5740, 64
  %v5788 = vpop.permute.xlu0 %5787
  %5789 = vrot.lane.b32.xlu0 %v5742, 64
  %v5790 = vpop.permute.xlu0 %5789
  %5791 = vrot.lane.b32.xlu0 %v5744, 64
  %v5792 = vpop.permute.xlu0 %5791
  %5793 = vrot.lane.b32.xlu0 %v5746, 64
  %v5794 = vpop.permute.xlu0 %5793
  %5795 = vrot.lane.b32.xlu0 %v5748, 64
  %v5796 = vpop.permute.xlu0 %5795
  %5797 = vrot.lane.b32.xlu0 %v5750, 64
  %v5798 = vpop.permute.xlu0 %5797
  %5799 = vrot.lane.b32.xlu0 %v5752, 64
  %v5800 = vpop.permute.xlu0 %5799
  %5801 = vrot.lane.b32.xlu0 %v5754, 64
  %v5802 = vpop.permute.xlu0 %5801
  %5803 = vrot.lane.b32.xlu0 %v5756, 64
  %v5804 = vpop.permute.xlu0 %5803
  %5805 = vrot.lane.b32.xlu0 %v5758, 64
  %v5806 = vpop.permute.xlu0 %5805
  %5807 = vrot.lane.b32.xlu0 %v5760, 64
  %v5808 = vpop.permute.xlu0 %5807
  %5809 = vrot.lane.b32.xlu0 %v5762, 64
  %v5810 = vpop.permute.xlu0 %5809
  %5811 = vrot.lane.b32.xlu0 %v5764, 64
  %v5812 = vpop.permute.xlu0 %5811
  %5813 = vrot.lane.b32.xlu0 %v5766, 64
  %v5814 = vpop.permute.xlu0 %5813
  %5815 = vrot.lane.b32.xlu0 %v5768, 64
  %v5816 = vpop.permute.xlu0 %5815
  %5817 = vrot.lane.b32.xlu0 %v5770, 64
  %v5818 = vpop.permute.xlu0 %5817
  %5819 = vrot.lane.b32.xlu0 %v5772, 64
  %v5820 = vpop.permute.xlu0 %5819
  %5821 = vrot.lane.b32.xlu0 %v5774, 64
  %v5822 = vpop.permute.xlu0 %5821
  %5823 = vrot.lane.b32.xlu0 %v5773, 64
  %v5824 = vpop.permute.xlu0 %5823
  %v5826 = vsel %vm1278, %v5452, %v5677
  %v5828 = vsel %vm1278, %v5453, %v5679
  %v5830 = vsel %vm1278, %v5454, %v5681
  %v5832 = vsel %vm1278, %v5455, %v5683
  %v5834 = vsel %vm1278, %v5456, %v5685
  %v5836 = vsel %vm1278, %v5457, %v5687
  %v5838 = vsel %vm1278, %v5458, %v5689
  %v5840 = vsel %vm1278, %v5459, %v5691
  %v5842 = vsel %vm1278, %v5460, %v5693
  %v5844 = vsel %vm1278, %v5461, %v5695
  %v5846 = vsel %vm1278, %v5462, %v5697
  %v5848 = vsel %vm1278, %v5463, %v5699
  %v5850 = vsel %vm1278, %v5464, %v5701
  %v5852 = vsel %vm1278, %v5465, %v5703
  %v5854 = vsel %vm1278, %v5466, %v5705
  %v5856 = vsel %vm1278, %v5467, %v5707
  %v5858 = vsel %vm1278, %v5468, %v5709
  %v5860 = vsel %vm1278, %v5469, %v5711
  %v5862 = vsel %vm1278, %v5470, %v5713
  %v5864 = vsel %vm1278, %v5471, %v5715
  %v5866 = vsel %vm1278, %v5472, %v5717
  %v5868 = vsel %vm1278, %v5473, %v5719
  %v5870 = vsel %vm1278, %v5474, %v5721
  %v5872 = vsel %vm1278, %v5475, %v5723
  %v5874 = vsel %vm1278, %v5476, %v5725
  %v5876 = vsel %vm1337, %v5826, %v5776
  %v5878 = vsel %vm1337, %v5828, %v5778
  %v5880 = vsel %vm1337, %v5830, %v5780
  %v5882 = vsel %vm1337, %v5832, %v5782
  %v5884 = vsel %vm1337, %v5834, %v5784
  %v5886 = vsel %vm1337, %v5836, %v5786
  %v5888 = vsel %vm1337, %v5838, %v5788
  %v5890 = vsel %vm1337, %v5840, %v5790
  %v5892 = vsel %vm1337, %v5842, %v5792
  %v5894 = vsel %vm1337, %v5844, %v5794
  %v5896 = vsel %vm1337, %v5846, %v5796
  %v5898 = vsel %vm1337, %v5848, %v5798
  %v5900 = vsel %vm1337, %v5850, %v5800
  %v5902 = vsel %vm1337, %v5852, %v5802
  %v5904 = vsel %vm1337, %v5854, %v5804
  %v5906 = vsel %vm1337, %v5856, %v5806
  %v5908 = vsel %vm1337, %v5858, %v5808
  %v5910 = vsel %vm1337, %v5860, %v5810
  %v5912 = vsel %vm1337, %v5862, %v5812
  %v5914 = vsel %vm1337, %v5864, %v5814
  %v5916 = vsel %vm1337, %v5866, %v5816
  %v5918 = vsel %vm1337, %v5868, %v5818
  %v5920 = vsel %vm1337, %v5870, %v5820
  %v5922 = vsel %vm1337, %v5872, %v5822
  %v5924 = vsel %vm1337, %v5874, %v5824
  %v5950 = vunpack.c.l.b16 %v5876
  %v5951 = vunpack.c.h.b16 %v5876
  %v5952 = vunpack.c.l.b16 %v5878
  %v5953 = vunpack.c.h.b16 %v5878
  %v5954 = vunpack.c.l.b16 %v5880
  %v5955 = vunpack.c.h.b16 %v5880
  %v5956 = vunpack.c.l.b16 %v5882
  %v5957 = vunpack.c.h.b16 %v5882
  %v5958 = vunpack.c.l.b16 %v5884
  %v5959 = vunpack.c.h.b16 %v5884
  %v5960 = vunpack.c.l.b16 %v5886
  %v5961 = vunpack.c.h.b16 %v5886
  %v5962 = vunpack.c.l.b16 %v5888
  %v5963 = vunpack.c.h.b16 %v5888
  %v5964 = vunpack.c.l.b16 %v5890
  %v5965 = vunpack.c.h.b16 %v5890
  %v5966 = vunpack.c.l.b16 %v5892
  %v5967 = vunpack.c.h.b16 %v5892
  %v5968 = vunpack.c.l.b16 %v5894
  %v5969 = vunpack.c.h.b16 %v5894
  %v5970 = vunpack.c.l.b16 %v5896
  %v5971 = vunpack.c.h.b16 %v5896
  %v5972 = vunpack.c.l.b16 %v5898
  %v5973 = vunpack.c.h.b16 %v5898
  %v5974 = vunpack.c.l.b16 %v5900
  %v5975 = vunpack.c.h.b16 %v5900
  %v5976 = vunpack.c.l.b16 %v5902
  %v5977 = vunpack.c.h.b16 %v5902
  %v5978 = vunpack.c.l.b16 %v5904
  %v5979 = vunpack.c.h.b16 %v5904
  %v5980 = vunpack.c.l.b16 %v5906
  %v5981 = vunpack.c.h.b16 %v5906
  %v5982 = vunpack.c.l.b16 %v5908
  %v5983 = vunpack.c.h.b16 %v5908
  %v5984 = vunpack.c.l.b16 %v5910
  %v5985 = vunpack.c.h.b16 %v5910
  %v5986 = vunpack.c.l.b16 %v5912
  %v5987 = vunpack.c.h.b16 %v5912
  %v5988 = vunpack.c.l.b16 %v5914
  %v5989 = vunpack.c.h.b16 %v5914
  %v5990 = vunpack.c.l.b16 %v5916
  %v5991 = vunpack.c.h.b16 %v5916
  %v5992 = vunpack.c.l.b16 %v5918
  %v5993 = vunpack.c.h.b16 %v5918
  %v5994 = vunpack.c.l.b16 %v5920
  %v5995 = vunpack.c.h.b16 %v5920
  %v5996 = vunpack.c.l.b16 %v5922
  %v5997 = vunpack.c.h.b16 %v5922
  %v5998 = vunpack.c.l.b16 %v5924
  %v5999 = vunpack.c.h.b16 %v5924
  %v6000 = vpack.c.b16 %v5950, %v5950
  %v6001 = vpack.c.b16 %v5951, %v5951
  %v6002 = vpack.c.b16 %v5952, %v5952
  %v6003 = vpack.c.b16 %v5953, %v5953
  %v6004 = vpack.c.b16 %v5954, %v5954
  %v6005 = vpack.c.b16 %v5955, %v5955
  %v6006 = vpack.c.b16 %v5956, %v5956
  %v6007 = vpack.c.b16 %v5957, %v5957
  %v6008 = vpack.c.b16 %v5958, %v5958
  %v6009 = vpack.c.b16 %v5959, %v5959
  %v6010 = vpack.c.b16 %v5960, %v5960
  %v6011 = vpack.c.b16 %v5961, %v5961
  %v6012 = vpack.c.b16 %v5962, %v5962
  %v6013 = vpack.c.b16 %v5963, %v5963
  %v6014 = vpack.c.b16 %v5964, %v5964
  %v6015 = vpack.c.b16 %v5965, %v5965
  %v6016 = vpack.c.b16 %v5966, %v5966
  %v6017 = vpack.c.b16 %v5967, %v5967
  %v6018 = vpack.c.b16 %v5968, %v5968
  %v6019 = vpack.c.b16 %v5969, %v5969
  %v6020 = vpack.c.b16 %v5970, %v5970
  %v6021 = vpack.c.b16 %v5971, %v5971
  %v6022 = vpack.c.b16 %v5972, %v5972
  %v6023 = vpack.c.b16 %v5973, %v5973
  %v6024 = vpack.c.b16 %v5974, %v5974
  %v6025 = vpack.c.b16 %v5975, %v5975
  %v6026 = vpack.c.b16 %v5976, %v5976
  %v6027 = vpack.c.b16 %v5977, %v5977
  %v6028 = vpack.c.b16 %v5978, %v5978
  %v6029 = vpack.c.b16 %v5979, %v5979
  %v6030 = vpack.c.b16 %v5980, %v5980
  %v6031 = vpack.c.b16 %v5981, %v5981
  %v6032 = vpack.c.b16 %v5982, %v5982
  %v6033 = vpack.c.b16 %v5983, %v5983
  %v6034 = vpack.c.b16 %v5984, %v5984
  %v6035 = vpack.c.b16 %v5985, %v5985
  %v6036 = vpack.c.b16 %v5986, %v5986
  %v6037 = vpack.c.b16 %v5987, %v5987
  %v6038 = vpack.c.b16 %v5988, %v5988
  %v6039 = vpack.c.b16 %v5989, %v5989
  %v6040 = vpack.c.b16 %v5990, %v5990
  %v6041 = vpack.c.b16 %v5991, %v5991
  %v6042 = vpack.c.b16 %v5992, %v5992
  %v6043 = vpack.c.b16 %v5993, %v5993
  %v6044 = vpack.c.b16 %v5994, %v5994
  %v6045 = vpack.c.b16 %v5995, %v5995
  %v6046 = vpack.c.b16 %v5996, %v5996
  %v6047 = vpack.c.b16 %v5997, %v5997
  %v6048 = vpack.c.b16 %v5998, %v5998
  %v6049 = vpack.c.b16 %v5999, %v5999
  %6100 = vst.msk [vmem:[#allocation2] sm:$0xf] %vm1599, %v6000
  %6101 = vst.msk [vmem:[#allocation2 + $0x4] sm:$0xf] %vm1599, %v6001
  %6102 = vst.msk [vmem:[#allocation2 + $0x8] sm:$0xf] %vm1599, %v6002
  %6103 = vst.msk [vmem:[#allocation2 + $0xc] sm:$0xf] %vm1599, %v6003
  %6104 = vst.msk [vmem:[#allocation2 + $0x10] sm:$0xf] %vm1599, %v6004
  %6105 = vst.msk [vmem:[#allocation2 + $0x14] sm:$0xf] %vm1599, %v6005
  %6106 = vst.msk [vmem:[#allocation2 + $0x18] sm:$0xf] %vm1599, %v6006
  %6107 = vst.msk [vmem:[#allocation2 + $0x1c] sm:$0xf] %vm1599, %v6007
  %6108 = vst.msk [vmem:[#allocation2 + $0x20] sm:$0xf] %vm1599, %v6008
  %6109 = vst.msk [vmem:[#allocation2 + $0x24] sm:$0xf] %vm1599, %v6009
  %6110 = vst.msk [vmem:[#allocation2 + $0x28] sm:$0xf] %vm1599, %v6010
  %6111 = vst.msk [vmem:[#allocation2 + $0x2c] sm:$0xf] %vm1599, %v6011
  %6112 = vst.msk [vmem:[#allocation2 + $0x30] sm:$0xf] %vm1599, %v6012
  %6113 = vst.msk [vmem:[#allocation2 + $0x34] sm:$0xf] %vm1599, %v6013
  %6114 = vst.msk [vmem:[#allocation2 + $0x38] sm:$0xf] %vm1599, %v6014
  %6115 = vst.msk [vmem:[#allocation2 + $0x3c] sm:$0xf] %vm1599, %v6015
  %6116 = vst.msk [vmem:[#allocation2 + $0x40] sm:$0xf] %vm1599, %v6016
  %6117 = vst.msk [vmem:[#allocation2 + $0x44] sm:$0xf] %vm1599, %v6017
  %6118 = vst.msk [vmem:[#allocation2 + $0x48] sm:$0xf] %vm1599, %v6018
  %6119 = vst.msk [vmem:[#allocation2 + $0x4c] sm:$0xf] %vm1599, %v6019
  %6120 = vst.msk [vmem:[#allocation2 + $0x50] sm:$0xf] %vm1599, %v6020
  %6121 = vst.msk [vmem:[#allocation2 + $0x54] sm:$0xf] %vm1599, %v6021
  %6122 = vst.msk [vmem:[#allocation2 + $0x58] sm:$0xf] %vm1599, %v6022
  %6123 = vst.msk [vmem:[#allocation2 + $0x5c] sm:$0xf] %vm1599, %v6023
  %6124 = vst.msk [vmem:[#allocation2 + $0x60] sm:$0xf] %vm1599, %v6024
  %6125 = vst.msk [vmem:[#allocation2 + $0x64] sm:$0xf] %vm1599, %v6025
  %6126 = vst.msk [vmem:[#allocation2 + $0x68] sm:$0xf] %vm1599, %v6026
  %6127 = vst.msk [vmem:[#allocation2 + $0x6c] sm:$0xf] %vm1599, %v6027
  %6128 = vst.msk [vmem:[#allocation2 + $0x70] sm:$0xf] %vm1599, %v6028
  %6129 = vst.msk [vmem:[#allocation2 + $0x74] sm:$0xf] %vm1599, %v6029
  %6130 = vst.msk [vmem:[#allocation2 + $0x78] sm:$0xf] %vm1599, %v6030
  %6131 = vst.msk [vmem:[#allocation2 + $0x7c] sm:$0xf] %vm1599, %v6031
  %6132 = vst.msk [vmem:[#allocation2 + $0x80] sm:$0xf] %vm1599, %v6032
  %6133 = vst.msk [vmem:[#allocation2 + $0x84] sm:$0xf] %vm1599, %v6033
  %6134 = vst.msk [vmem:[#allocation2 + $0x88] sm:$0xf] %vm1599, %v6034
  %6135 = vst.msk [vmem:[#allocation2 + $0x8c] sm:$0xf] %vm1599, %v6035
  %6136 = vst.msk [vmem:[#allocation2 + $0x90] sm:$0xf] %vm1599, %v6036
  %6137 = vst.msk [vmem:[#allocation2 + $0x94] sm:$0xf] %vm1599, %v6037
  %6138 = vst.msk [vmem:[#allocation2 + $0x98] sm:$0xf] %vm1599, %v6038
  %6139 = vst.msk [vmem:[#allocation2 + $0x9c] sm:$0xf] %vm1599, %v6039
  %6140 = vst.msk [vmem:[#allocation2 + $0xa0] sm:$0xf] %vm1599, %v6040
  %6141 = vst.msk [vmem:[#allocation2 + $0xa4] sm:$0xf] %vm1599, %v6041
  %6142 = vst.msk [vmem:[#allocation2 + $0xa8] sm:$0xf] %vm1599, %v6042
  %6143 = vst.msk [vmem:[#allocation2 + $0xac] sm:$0xf] %vm1599, %v6043
  %6144 = vst.msk [vmem:[#allocation2 + $0xb0] sm:$0xf] %vm1599, %v6044
  %6145 = vst.msk [vmem:[#allocation2 + $0xb4] sm:$0xf] %vm1599, %v6045
  %6146 = vst.msk [vmem:[#allocation2 + $0xb8] sm:$0xf] %vm1599, %v6046
  %6147 = vst.msk [vmem:[#allocation2 + $0xbc] sm:$0xf] %vm1599, %v6047
  %6148 = vst.msk [vmem:[#allocation2 + $0xc0] sm:$0xf] %vm1599, %v6048
  %vm6149 = vcmask 778240
  %6150 = vst.msk [vmem:[#allocation2 + $0xc4] sm:$0x1] %vm6149, %v6049
  %v6151 = vld [vmem:[#allocation2] sm:$0xf]
  %v6152 = vld [vmem:[#allocation2 + $0x4] sm:$0xf]
  %v6153 = vld [vmem:[#allocation2 + $0x8] sm:$0xf]
  %v6154 = vld [vmem:[#allocation2 + $0xc] sm:$0xf]
  %v6155 = vld [vmem:[#allocation2 + $0x10] sm:$0xf]
  %v6156 = vld [vmem:[#allocation2 + $0x14] sm:$0xf]
  %v6157 = vld [vmem:[#allocation2 + $0x18] sm:$0xf]
  %v6158 = vld [vmem:[#allocation2 + $0x1c] sm:$0xf]
  %v6159 = vld [vmem:[#allocation2 + $0x20] sm:$0xf]
  %v6160 = vld [vmem:[#allocation2 + $0x24] sm:$0xf]
  %v6161 = vld [vmem:[#allocation2 + $0x28] sm:$0xf]
  %v6162 = vld [vmem:[#allocation2 + $0x2c] sm:$0xf]
  %v6163 = vld [vmem:[#allocation2 + $0x30] sm:$0xf]
  %v6164 = vld [vmem:[#allocation2 + $0x34] sm:$0xf]
  %v6165 = vld [vmem:[#allocation2 + $0x38] sm:$0xf]
  %v6166 = vld [vmem:[#allocation2 + $0x3c] sm:$0xf]
  %v6167 = vld [vmem:[#allocation2 + $0x40] sm:$0xf]
  %v6168 = vld [vmem:[#allocation2 + $0x44] sm:$0xf]
  %v6169 = vld [vmem:[#allocation2 + $0x48] sm:$0xf]
  %v6170 = vld [vmem:[#allocation2 + $0x4c] sm:$0xf]
  %v6171 = vld [vmem:[#allocation2 + $0x50] sm:$0xf]
  %v6172 = vld [vmem:[#allocation2 + $0x54] sm:$0xf]
  %v6173 = vld [vmem:[#allocation2 + $0x58] sm:$0xf]
  %v6174 = vld [vmem:[#allocation2 + $0x5c] sm:$0xf]
  %v6175 = vld [vmem:[#allocation2 + $0x60] sm:$0xf]
  %v6176 = vld [vmem:[#allocation2 + $0x64] sm:$0xf]
  %v6177 = vld [vmem:[#allocation2 + $0x68] sm:$0xf]
  %v6178 = vld [vmem:[#allocation2 + $0x6c] sm:$0xf]
  %v6179 = vld [vmem:[#allocation2 + $0x70] sm:$0xf]
  %v6180 = vld [vmem:[#allocation2 + $0x74] sm:$0xf]
  %v6181 = vld [vmem:[#allocation2 + $0x78] sm:$0xf]
  %v6182 = vld [vmem:[#allocation2 + $0x7c] sm:$0xf]
  %v6183 = vld [vmem:[#allocation2 + $0x80] sm:$0xf]
  %v6184 = vld [vmem:[#allocation2 + $0x84] sm:$0xf]
  %v6185 = vld [vmem:[#allocation2 + $0x88] sm:$0xf]
  %v6186 = vld [vmem:[#allocation2 + $0x8c] sm:$0xf]
  %v6187 = vld [vmem:[#allocation2 + $0x90] sm:$0xf]
  %v6188 = vld [vmem:[#allocation2 + $0x94] sm:$0xf]
  %v6189 = vld [vmem:[#allocation2 + $0x98] sm:$0xf]
  %v6190 = vld [vmem:[#allocation2 + $0x9c] sm:$0xf]
  %v6191 = vld [vmem:[#allocation2 + $0xa0] sm:$0xf]
  %v6192 = vld [vmem:[#allocation2 + $0xa4] sm:$0xf]
  %v6193 = vld [vmem:[#allocation2 + $0xa8] sm:$0xf]
  %v6194 = vld [vmem:[#allocation2 + $0xac] sm:$0xf]
  %v6195 = vld [vmem:[#allocation2 + $0xb0] sm:$0xf]
  %v6196 = vld [vmem:[#allocation2 + $0xb4] sm:$0x1]
  %s6197 = scalar_lea.vmem %s3, 288
  %v6198 = vld [vmem:[%s6197] sm:$0xf]
  %v6199 = vld [vmem:[%s6197 + $0x4] sm:$0xf]
  %v6200 = vld [vmem:[%s6197 + $0x8] sm:$0xf]
  %v6201 = vld [vmem:[%s6197 + $0xc] sm:$0xf]
  %v6202 = vld [vmem:[%s6197 + $0x10] sm:$0xf]
  %v6203 = vld [vmem:[%s6197 + $0x14] sm:$0xf]
  %v6204 = vld [vmem:[%s6197 + $0x18] sm:$0xf]
  %v6205 = vld [vmem:[%s6197 + $0x1c] sm:$0xf]
  %v6206 = vld [vmem:[%s6197 + $0x20] sm:$0xf]
  %v6207 = vld [vmem:[%s6197 + $0x24] sm:$0xf]
  %v6208 = vld [vmem:[%s6197 + $0x28] sm:$0xf]
  %v6209 = vld [vmem:[%s6197 + $0x2c] sm:$0xf]
  %v6210 = vld [vmem:[#allocation2 + $0xb4] sm:$0xf]
  %v6211 = vld [vmem:[#allocation2 + $0xb8] sm:$0xf]
  %v6212 = vld [vmem:[#allocation2 + $0xbc] sm:$0x1]
  %s6213 = scalar_lea.vmem %s3, 336
  %v6214 = vld [vmem:[%s6213] sm:$0xf]
  %v6215 = vld [vmem:[%s6213 + $0x4] sm:$0xf]
  %v6216 = vld [vmem:[%s6213 + $0x8] sm:$0xf]
  %v6217 = vld [vmem:[%s6213 + $0xc] sm:$0xf]
  %v6218 = vld [vmem:[%s6213 + $0x10] sm:$0xf]
  %v6219 = vld [vmem:[%s6213 + $0x14] sm:$0xf]
  %v6220 = vld [vmem:[%s6213 + $0x18] sm:$0xf]
  %v6221 = vld [vmem:[%s6213 + $0x1c] sm:$0xf]
  %v6222 = vld [vmem:[%s6213 + $0x20] sm:$0xf]
  %v6223 = vld [vmem:[%s6213 + $0x24] sm:$0xf]
  %v6224 = vld [vmem:[%s6213 + $0x28] sm:$0xf]
  %v6225 = vld [vmem:[%s6213 + $0x2c] sm:$0xf]
  %v6272 = vunpack.c.l.b16 %v6153
  %v6273 = vunpack.c.l.b16 %v6154
  %v6274 = vunpack.c.l.b16 %v6155
  %v6275 = vunpack.c.l.b16 %v6156
  %v6276 = vunpack.c.l.b16 %v6157
  %v6277 = vunpack.c.l.b16 %v6158
  %v6278 = vunpack.c.l.b16 %v6159
  %v6279 = vunpack.c.l.b16 %v6160
  %v6280 = vunpack.c.l.b16 %v6161
  %v6281 = vunpack.c.l.b16 %v6162
  %v6282 = vunpack.c.l.b16 %v6163
  %v6283 = vunpack.c.l.b16 %v6164
  %v6284 = vunpack.c.l.b16 %v6165
  %v6285 = vunpack.c.l.b16 %v6166
  %v6286 = vunpack.c.l.b16 %v6167
  %v6287 = vunpack.c.l.b16 %v6168
  %v6288 = vunpack.c.l.b16 %v6169
  %v6289 = vunpack.c.l.b16 %v6170
  %v6290 = vunpack.c.l.b16 %v6171
  %v6291 = vunpack.c.l.b16 %v6172
  %v6292 = vunpack.c.l.b16 %v6173
  %v6293 = vunpack.c.l.b16 %v6174
  %v6294 = vunpack.c.l.b16 %v6175
  %v6295 = vunpack.c.l.b16 %v6176
  %v6296 = vunpack.c.l.b16 %v6177
  %v6297 = vunpack.c.l.b16 %v6178
  %v6298 = vunpack.c.l.b16 %v6179
  %v6299 = vunpack.c.l.b16 %v6180
  %v6300 = vunpack.c.l.b16 %v6181
  %v6301 = vunpack.c.l.b16 %v6182
  %v6302 = vunpack.c.l.b16 %v6183
  %v6303 = vunpack.c.l.b16 %v6184
  %v6304 = vunpack.c.l.b16 %v6185
  %v6305 = vunpack.c.l.b16 %v6186
  %v6306 = vunpack.c.l.b16 %v6187
  %v6307 = vunpack.c.l.b16 %v6188
  %v6308 = vunpack.c.l.b16 %v6189
  %v6309 = vunpack.c.l.b16 %v6190
  %v6310 = vunpack.c.l.b16 %v6191
  %v6311 = vunpack.c.l.b16 %v6192
  %v6312 = vunpack.c.l.b16 %v6193
  %v6313 = vunpack.c.l.b16 %v6194
  %v6314 = vunpack.c.l.b16 %v6195
  %v6315 = vunpack.c.l.b16 %v6210
  %v6316 = vunpack.c.l.b16 %v6211
  %v6317 = vunpack.c.l.b16 %v6212
  %v6318 = vpack.c.b16 %v6273, %v6272
  %v6319 = vpack.c.b16 %v6275, %v6274
  %v6320 = vpack.c.b16 %v6277, %v6276
  %v6321 = vpack.c.b16 %v6279, %v6278
  %v6322 = vpack.c.b16 %v6281, %v6280
  %v6323 = vpack.c.b16 %v6283, %v6282
  %v6324 = vpack.c.b16 %v6285, %v6284
  %v6325 = vpack.c.b16 %v6287, %v6286
  %v6326 = vpack.c.b16 %v6289, %v6288
  %v6327 = vpack.c.b16 %v6291, %v6290
  %v6328 = vpack.c.b16 %v6293, %v6292
  %v6329 = vpack.c.b16 %v6295, %v6294
  %v6330 = vpack.c.b16 %v6297, %v6296
  %v6331 = vpack.c.b16 %v6299, %v6298
  %v6332 = vpack.c.b16 %v6301, %v6300
  %v6333 = vpack.c.b16 %v6303, %v6302
  %v6334 = vpack.c.b16 %v6305, %v6304
  %v6335 = vpack.c.b16 %v6307, %v6306
  %v6336 = vpack.c.b16 %v6309, %v6308
  %v6337 = vpack.c.b16 %v6311, %v6310
  %v6338 = vpack.c.b16 %v6313, %v6312
  %v6339 = vpack.c.b16 %v6315, %v6314
  %v6340 = vpack.c.b16 %v6317, %v6316
  %v6353 = vunpack.c.l.b16 %v6214
  %v6354 = vunpack.c.l.b16 %v6215
  %v6355 = vunpack.c.l.b16 %v6216
  %v6356 = vunpack.c.l.b16 %v6217
  %v6357 = vunpack.c.l.b16 %v6218
  %v6358 = vunpack.c.l.b16 %v6219
  %v6359 = vunpack.c.l.b16 %v6220
  %v6360 = vunpack.c.l.b16 %v6221
  %v6361 = vunpack.c.l.b16 %v6222
  %v6362 = vunpack.c.l.b16 %v6223
  %v6363 = vunpack.c.l.b16 %v6224
  %v6364 = vunpack.c.l.b16 %v6225
  %v6365 = vpack.c.b16 %v6354, %v6353
  %v6366 = vpack.c.b16 %v6356, %v6355
  %v6367 = vpack.c.b16 %v6358, %v6357
  %v6368 = vpack.c.b16 %v6360, %v6359
  %v6369 = vpack.c.b16 %v6362, %v6361
  %v6370 = vpack.c.b16 %v6364, %v6363
  %v6378 = vsel %vm1912, %v6318, 0
  %v6381 = vsel %vm1912, %v6319, 0
  %v6384 = vsel %vm1912, %v6320, 0
  %v6387 = vsel %vm1912, %v6321, 0
  %v6390 = vsel %vm1912, %v6322, 0
  %v6393 = vsel %vm1912, %v6323, 0
  %v6396 = vsel %vm1912, %v6324, 0
  %v6399 = vsel %vm1912, %v6325, 0
  %v6402 = vsel %vm1912, %v6326, 0
  %v6405 = vsel %vm1912, %v6327, 0
  %v6408 = vsel %vm1912, %v6328, 0
  %v6411 = vsel %vm1912, %v6329, 0
  %v6414 = vsel %vm1912, %v6330, 0
  %v6417 = vsel %vm1912, %v6331, 0
  %v6420 = vsel %vm1912, %v6332, 0
  %v6423 = vsel %vm1912, %v6333, 0
  %v6426 = vsel %vm1912, %v6334, 0
  %v6429 = vsel %vm1912, %v6335, 0
  %v6432 = vsel %vm1912, %v6336, 0
  %v6435 = vsel %vm1912, %v6337, 0
  %v6438 = vsel %vm1912, %v6338, 0
  %v6441 = vsel %vm1912, %v6339, 0
  %v6444 = vsel %vm1912, %v6340, 0
  %6446 = vmatpush.bf16.msra.mxu0 0
  %6447 = vmatpush.bf16.msra.mxu0 0
  %6448 = vmatpush.bf16.msra.mxu0 %v6370
  %6449 = vmatpush.bf16.msra.mxu0 %v6369
  %6450 = vmatpush.bf16.msra.mxu0 %v6368
  %6451 = vmatpush.bf16.msra.mxu0 %v6367
  %6452 = vmatpush.bf16.msra.mxu0 %v6366
  %6453 = vmatpush.bf16.msra.mxu0 %v6365
  %6454 = vmatmul.bf16.gmra.mxu0 %v6378
  %v6455 = vpop.f32.mrf.mxu0
  %v6456 = vadd.f32 0.0, %v6455
  %v6457 = vpop.f32.mrf.mxu0
  %v6458 = vadd.f32 0.0, %v6457
  %6459 = vmatmul.bf16.gmra.mxu0 %v6381
  %v6460 = vpop.f32.mrf.mxu0
  %v6461 = vadd.f32 0.0, %v6460
  %v6462 = vpop.f32.mrf.mxu0
  %v6463 = vadd.f32 0.0, %v6462
  %6464 = vmatmul.bf16.gmra.mxu0 %v6384
  %v6465 = vpop.f32.mrf.mxu0
  %v6466 = vadd.f32 0.0, %v6465
  %v6467 = vpop.f32.mrf.mxu0
  %v6468 = vadd.f32 0.0, %v6467
  %6469 = vmatmul.bf16.gmra.mxu0 %v6387
  %v6470 = vpop.f32.mrf.mxu0
  %v6471 = vadd.f32 0.0, %v6470
  %v6472 = vpop.f32.mrf.mxu0
  %v6473 = vadd.f32 0.0, %v6472
  %6474 = vmatmul.bf16.gmra.mxu0 %v6390
  %v6475 = vpop.f32.mrf.mxu0
  %v6476 = vadd.f32 0.0, %v6475
  %v6477 = vpop.f32.mrf.mxu0
  %v6478 = vadd.f32 0.0, %v6477
  %6479 = vmatmul.bf16.gmra.mxu0 %v6393
  %v6480 = vpop.f32.mrf.mxu0
  %v6481 = vadd.f32 0.0, %v6480
  %v6482 = vpop.f32.mrf.mxu0
  %v6483 = vadd.f32 0.0, %v6482
  %6484 = vmatmul.bf16.gmra.mxu0 %v6396
  %v6485 = vpop.f32.mrf.mxu0
  %v6486 = vadd.f32 0.0, %v6485
  %v6487 = vpop.f32.mrf.mxu0
  %v6488 = vadd.f32 0.0, %v6487
  %6489 = vmatmul.bf16.gmra.mxu0 %v6399
  %v6490 = vpop.f32.mrf.mxu0
  %v6491 = vadd.f32 0.0, %v6490
  %v6492 = vpop.f32.mrf.mxu0
  %v6493 = vadd.f32 0.0, %v6492
  %6494 = vmatmul.bf16.gmra.mxu0 %v6402
  %v6495 = vpop.f32.mrf.mxu0
  %v6496 = vadd.f32 0.0, %v6495
  %v6497 = vpop.f32.mrf.mxu0
  %v6498 = vadd.f32 0.0, %v6497
  %6499 = vmatmul.bf16.gmra.mxu0 %v6405
  %v6500 = vpop.f32.mrf.mxu0
  %v6501 = vadd.f32 0.0, %v6500
  %v6502 = vpop.f32.mrf.mxu0
  %v6503 = vadd.f32 0.0, %v6502
  %6504 = vmatmul.bf16.gmra.mxu0 %v6408
  %v6505 = vpop.f32.mrf.mxu0
  %v6506 = vadd.f32 0.0, %v6505
  %v6507 = vpop.f32.mrf.mxu0
  %v6508 = vadd.f32 0.0, %v6507
  %6509 = vmatmul.bf16.gmra.mxu0 %v6411
  %v6510 = vpop.f32.mrf.mxu0
  %v6511 = vadd.f32 0.0, %v6510
  %v6512 = vpop.f32.mrf.mxu0
  %v6513 = vadd.f32 0.0, %v6512
  %6514 = vmatmul.bf16.gmra.mxu0 %v6414
  %v6515 = vpop.f32.mrf.mxu0
  %v6516 = vadd.f32 0.0, %v6515
  %v6517 = vpop.f32.mrf.mxu0
  %v6518 = vadd.f32 0.0, %v6517
  %6519 = vmatmul.bf16.gmra.mxu0 %v6417
  %v6520 = vpop.f32.mrf.mxu0
  %v6521 = vadd.f32 0.0, %v6520
  %v6522 = vpop.f32.mrf.mxu0
  %v6523 = vadd.f32 0.0, %v6522
  %6524 = vmatmul.bf16.gmra.mxu0 %v6420
  %v6525 = vpop.f32.mrf.mxu0
  %v6526 = vadd.f32 0.0, %v6525
  %v6527 = vpop.f32.mrf.mxu0
  %v6528 = vadd.f32 0.0, %v6527
  %6529 = vmatmul.bf16.gmra.mxu0 %v6423
  %v6530 = vpop.f32.mrf.mxu0
  %v6531 = vadd.f32 0.0, %v6530
  %v6532 = vpop.f32.mrf.mxu0
  %v6533 = vadd.f32 0.0, %v6532
  %6534 = vmatmul.bf16.gmra.mxu0 %v6426
  %v6535 = vpop.f32.mrf.mxu0
  %v6536 = vadd.f32 0.0, %v6535
  %v6537 = vpop.f32.mrf.mxu0
  %v6538 = vadd.f32 0.0, %v6537
  %6539 = vmatmul.bf16.gmra.mxu0 %v6429
  %v6540 = vpop.f32.mrf.mxu0
  %v6541 = vadd.f32 0.0, %v6540
  %v6542 = vpop.f32.mrf.mxu0
  %v6543 = vadd.f32 0.0, %v6542
  %6544 = vmatmul.bf16.gmra.mxu0 %v6432
  %v6545 = vpop.f32.mrf.mxu0
  %v6546 = vadd.f32 0.0, %v6545
  %v6547 = vpop.f32.mrf.mxu0
  %v6548 = vadd.f32 0.0, %v6547
  %6549 = vmatmul.bf16.gmra.mxu0 %v6435
  %v6550 = vpop.f32.mrf.mxu0
  %v6551 = vadd.f32 0.0, %v6550
  %v6552 = vpop.f32.mrf.mxu0
  %v6553 = vadd.f32 0.0, %v6552
  %6554 = vmatmul.bf16.gmra.mxu0 %v6438
  %v6555 = vpop.f32.mrf.mxu0
  %v6556 = vadd.f32 0.0, %v6555
  %v6557 = vpop.f32.mrf.mxu0
  %v6558 = vadd.f32 0.0, %v6557
  %6559 = vmatmul.bf16.gmra.mxu0 %v6441
  %v6560 = vpop.f32.mrf.mxu0
  %v6561 = vadd.f32 0.0, %v6560
  %v6562 = vpop.f32.mrf.mxu0
  %v6563 = vadd.f32 0.0, %v6562
  %6564 = vmatmul.bf16.gmra.mxu0 %v6444
  %v6565 = vpop.f32.mrf.mxu0
  %v6566 = vadd.f32 0.0, %v6565
  %v6567 = vpop.f32.mrf.mxu0
  %v6568 = vadd.f32 0.0, %v6567
  %6569 = vdwg.mxu0
  %v6573 = vunpack.c.l.b16 %v6151
  %v6574 = vunpack.c.l.b16 %v6152
  %v6575 = vunpack.c.l.b16 %v6196
  %v6576 = vpack.c.b16 %v6574, %v6573
  %v6577 = vpack.c.b16 %v6575, %v6314
  %v6590 = vunpack.c.l.b16 %v6198
  %v6591 = vunpack.c.l.b16 %v6199
  %v6592 = vunpack.c.l.b16 %v6200
  %v6593 = vunpack.c.l.b16 %v6201
  %v6594 = vunpack.c.l.b16 %v6202
  %v6595 = vunpack.c.l.b16 %v6203
  %v6596 = vunpack.c.l.b16 %v6204
  %v6597 = vunpack.c.l.b16 %v6205
  %v6598 = vunpack.c.l.b16 %v6206
  %v6599 = vunpack.c.l.b16 %v6207
  %v6600 = vunpack.c.l.b16 %v6208
  %v6601 = vunpack.c.l.b16 %v6209
  %v6602 = vpack.c.b16 %v6591, %v6590
  %v6603 = vpack.c.b16 %v6593, %v6592
  %v6604 = vpack.c.b16 %v6595, %v6594
  %v6605 = vpack.c.b16 %v6597, %v6596
  %v6606 = vpack.c.b16 %v6599, %v6598
  %v6607 = vpack.c.b16 %v6601, %v6600
  %v6615 = vsel %vm1912, %v6576, 0
  %v6618 = vsel %vm1912, %v6577, 0
  %6620 = vmatpush.bf16.msra.mxu0 0
  %6621 = vmatpush.bf16.msra.mxu0 0
  %6622 = vmatpush.bf16.msra.mxu0 %v6607
  %6623 = vmatpush.bf16.msra.mxu0 %v6606
  %6624 = vmatpush.bf16.msra.mxu0 %v6605
  %6625 = vmatpush.bf16.msra.mxu0 %v6604
  %6626 = vmatpush.bf16.msra.mxu0 %v6603
  %6627 = vmatpush.bf16.msra.mxu0 %v6602
  %6628 = vmatmul.bf16.gmra.mxu0 %v6615
  %v6629 = vpop.f32.mrf.mxu0
  %v6630 = vadd.f32 %v6456, %v6629
  %v6631 = vpop.f32.mrf.mxu0
  %v6632 = vadd.f32 %v6458, %v6631
  %6633 = vmatmul.bf16.gmra.mxu0 %v6378
  %v6634 = vpop.f32.mrf.mxu0
  %v6635 = vadd.f32 %v6461, %v6634
  %v6636 = vpop.f32.mrf.mxu0
  %v6637 = vadd.f32 %v6463, %v6636
  %6638 = vmatmul.bf16.gmra.mxu0 %v6381
  %v6639 = vpop.f32.mrf.mxu0
  %v6640 = vadd.f32 %v6466, %v6639
  %v6641 = vpop.f32.mrf.mxu0
  %v6642 = vadd.f32 %v6468, %v6641
  %6643 = vmatmul.bf16.gmra.mxu0 %v6384
  %v6644 = vpop.f32.mrf.mxu0
  %v6645 = vadd.f32 %v6471, %v6644
  %v6646 = vpop.f32.mrf.mxu0
  %v6647 = vadd.f32 %v6473, %v6646
  %6648 = vmatmul.bf16.gmra.mxu0 %v6387
  %v6649 = vpop.f32.mrf.mxu0
  %v6650 = vadd.f32 %v6476, %v6649
  %v6651 = vpop.f32.mrf.mxu0
  %v6652 = vadd.f32 %v6478, %v6651
  %6653 = vmatmul.bf16.gmra.mxu0 %v6390
  %v6654 = vpop.f32.mrf.mxu0
  %v6655 = vadd.f32 %v6481, %v6654
  %v6656 = vpop.f32.mrf.mxu0
  %v6657 = vadd.f32 %v6483, %v6656
  %6658 = vmatmul.bf16.gmra.mxu0 %v6393
  %v6659 = vpop.f32.mrf.mxu0
  %v6660 = vadd.f32 %v6486, %v6659
  %v6661 = vpop.f32.mrf.mxu0
  %v6662 = vadd.f32 %v6488, %v6661
  %6663 = vmatmul.bf16.gmra.mxu0 %v6396
  %v6664 = vpop.f32.mrf.mxu0
  %v6665 = vadd.f32 %v6491, %v6664
  %v6666 = vpop.f32.mrf.mxu0
  %v6667 = vadd.f32 %v6493, %v6666
  %6668 = vmatmul.bf16.gmra.mxu0 %v6399
  %v6669 = vpop.f32.mrf.mxu0
  %v6670 = vadd.f32 %v6496, %v6669
  %v6671 = vpop.f32.mrf.mxu0
  %v6672 = vadd.f32 %v6498, %v6671
  %6673 = vmatmul.bf16.gmra.mxu0 %v6402
  %v6674 = vpop.f32.mrf.mxu0
  %v6675 = vadd.f32 %v6501, %v6674
  %v6676 = vpop.f32.mrf.mxu0
  %v6677 = vadd.f32 %v6503, %v6676
  %6678 = vmatmul.bf16.gmra.mxu0 %v6405
  %v6679 = vpop.f32.mrf.mxu0
  %v6680 = vadd.f32 %v6506, %v6679
  %v6681 = vpop.f32.mrf.mxu0
  %v6682 = vadd.f32 %v6508, %v6681
  %6683 = vmatmul.bf16.gmra.mxu0 %v6408
  %v6684 = vpop.f32.mrf.mxu0
  %v6685 = vadd.f32 %v6511, %v6684
  %v6686 = vpop.f32.mrf.mxu0
  %v6687 = vadd.f32 %v6513, %v6686
  %6688 = vmatmul.bf16.gmra.mxu0 %v6411
  %v6689 = vpop.f32.mrf.mxu0
  %v6690 = vadd.f32 %v6516, %v6689
  %v6691 = vpop.f32.mrf.mxu0
  %v6692 = vadd.f32 %v6518, %v6691
  %6693 = vmatmul.bf16.gmra.mxu0 %v6414
  %v6694 = vpop.f32.mrf.mxu0
  %v6695 = vadd.f32 %v6521, %v6694
  %v6696 = vpop.f32.mrf.mxu0
  %v6697 = vadd.f32 %v6523, %v6696
  %6698 = vmatmul.bf16.gmra.mxu0 %v6417
  %v6699 = vpop.f32.mrf.mxu0
  %v6700 = vadd.f32 %v6526, %v6699
  %v6701 = vpop.f32.mrf.mxu0
  %v6702 = vadd.f32 %v6528, %v6701
  %6703 = vmatmul.bf16.gmra.mxu0 %v6420
  %v6704 = vpop.f32.mrf.mxu0
  %v6705 = vadd.f32 %v6531, %v6704
  %v6706 = vpop.f32.mrf.mxu0
  %v6707 = vadd.f32 %v6533, %v6706
  %6708 = vmatmul.bf16.gmra.mxu0 %v6423
  %v6709 = vpop.f32.mrf.mxu0
  %v6710 = vadd.f32 %v6536, %v6709
  %v6711 = vpop.f32.mrf.mxu0
  %v6712 = vadd.f32 %v6538, %v6711
  %6713 = vmatmul.bf16.gmra.mxu0 %v6426
  %v6714 = vpop.f32.mrf.mxu0
  %v6715 = vadd.f32 %v6541, %v6714
  %v6716 = vpop.f32.mrf.mxu0
  %v6717 = vadd.f32 %v6543, %v6716
  %6718 = vmatmul.bf16.gmra.mxu0 %v6429
  %v6719 = vpop.f32.mrf.mxu0
  %v6720 = vadd.f32 %v6546, %v6719
  %v6721 = vpop.f32.mrf.mxu0
  %v6722 = vadd.f32 %v6548, %v6721
  %6723 = vmatmul.bf16.gmra.mxu0 %v6432
  %v6724 = vpop.f32.mrf.mxu0
  %v6725 = vadd.f32 %v6551, %v6724
  %v6726 = vpop.f32.mrf.mxu0
  %v6727 = vadd.f32 %v6553, %v6726
  %6728 = vmatmul.bf16.gmra.mxu0 %v6435
  %v6729 = vpop.f32.mrf.mxu0
  %v6730 = vadd.f32 %v6556, %v6729
  %v6731 = vpop.f32.mrf.mxu0
  %v6732 = vadd.f32 %v6558, %v6731
  %6733 = vmatmul.bf16.gmra.mxu0 %v6438
  %v6734 = vpop.f32.mrf.mxu0
  %v6735 = vadd.f32 %v6561, %v6734
  %v6736 = vpop.f32.mrf.mxu0
  %v6737 = vadd.f32 %v6563, %v6736
  %6738 = vmatmul.bf16.gmra.mxu0 %v6618
  %v6739 = vpop.f32.mrf.mxu0
  %v6740 = vadd.f32 %v6566, %v6739
  %v6741 = vpop.f32.mrf.mxu0
  %v6742 = vadd.f32 %v6568, %v6741
  %6743 = vdwg.mxu0
  %v6744 = vld [vmem:[#allocation2 + $0x10] sm:$0xf]
  %v6745 = vld [vmem:[#allocation2 + $0x14] sm:$0xf]
  %v6746 = vld [vmem:[#allocation2 + $0x18] sm:$0xf]
  %v6747 = vld [vmem:[#allocation2 + $0x1c] sm:$0xf]
  %v6748 = vld [vmem:[#allocation2 + $0x20] sm:$0xf]
  %v6749 = vld [vmem:[#allocation2 + $0x24] sm:$0xf]
  %v6750 = vld [vmem:[#allocation2 + $0x28] sm:$0xf]
  %v6751 = vld [vmem:[#allocation2 + $0x2c] sm:$0xf]
  %v6752 = vld [vmem:[#allocation2 + $0x30] sm:$0xf]
  %v6753 = vld [vmem:[#allocation2 + $0x34] sm:$0xf]
  %v6754 = vld [vmem:[#allocation2 + $0x38] sm:$0xf]
  %v6755 = vld [vmem:[#allocation2 + $0x3c] sm:$0xf]
  %v6756 = vld [vmem:[#allocation2 + $0x40] sm:$0xf]
  %v6757 = vld [vmem:[#allocation2 + $0x44] sm:$0xf]
  %v6758 = vld [vmem:[#allocation2 + $0x48] sm:$0xf]
  %v6759 = vld [vmem:[#allocation2 + $0x4c] sm:$0xf]
  %v6760 = vld [vmem:[#allocation2 + $0x50] sm:$0xf]
  %v6761 = vld [vmem:[#allocation2 + $0x54] sm:$0xf]
  %v6762 = vld [vmem:[#allocation2 + $0x58] sm:$0xf]
  %v6763 = vld [vmem:[#allocation2 + $0x5c] sm:$0xf]
  %v6764 = vld [vmem:[#allocation2 + $0x60] sm:$0xf]
  %v6765 = vld [vmem:[#allocation2 + $0x64] sm:$0xf]
  %v6766 = vld [vmem:[#allocation2 + $0x68] sm:$0xf]
  %v6767 = vld [vmem:[#allocation2 + $0x6c] sm:$0xf]
  %v6768 = vld [vmem:[#allocation2 + $0x70] sm:$0xf]
  %v6769 = vld [vmem:[#allocation2 + $0x74] sm:$0xf]
  %v6770 = vld [vmem:[#allocation2 + $0x78] sm:$0xf]
  %v6771 = vld [vmem:[#allocation2 + $0x7c] sm:$0xf]
  %v6772 = vld [vmem:[#allocation2 + $0x80] sm:$0xf]
  %v6773 = vld [vmem:[#allocation2 + $0x84] sm:$0xf]
  %v6774 = vld [vmem:[#allocation2 + $0x88] sm:$0xf]
  %v6775 = vld [vmem:[#allocation2 + $0x8c] sm:$0xf]
  %v6776 = vld [vmem:[#allocation2 + $0x90] sm:$0xf]
  %v6777 = vld [vmem:[#allocation2 + $0x94] sm:$0xf]
  %v6778 = vld [vmem:[#allocation2 + $0x98] sm:$0xf]
  %v6779 = vld [vmem:[#allocation2 + $0x9c] sm:$0xf]
  %v6780 = vld [vmem:[#allocation2 + $0xa0] sm:$0xf]
  %v6781 = vld [vmem:[#allocation2 + $0xa4] sm:$0xf]
  %v6782 = vld [vmem:[#allocation2 + $0xa8] sm:$0xf]
  %v6783 = vld [vmem:[#allocation2 + $0xac] sm:$0xf]
  %v6784 = vld [vmem:[#allocation2 + $0xb0] sm:$0xf]
  %v6785 = vld [vmem:[#allocation2 + $0xb4] sm:$0xf]
  %v6786 = vld [vmem:[#allocation2 + $0xb8] sm:$0xf]
  %v6787 = vld [vmem:[#allocation2 + $0xbc] sm:$0xf]
  %v6788 = vld [vmem:[#allocation2 + $0xc0] sm:$0xf]
  %v6789 = vld [vmem:[#allocation2 + $0xc4] sm:$0x1]
  %s6790 = scalar_lea.vmem %s3, 384
  %v6791 = vld [vmem:[%s6790] sm:$0xf]
  %v6792 = vld [vmem:[%s6790 + $0x4] sm:$0xf]
  %v6793 = vld [vmem:[%s6790 + $0x8] sm:$0xf]
  %v6794 = vld [vmem:[%s6790 + $0xc] sm:$0xf]
  %v6795 = vld [vmem:[%s6790 + $0x10] sm:$0xf]
  %v6796 = vld [vmem:[%s6790 + $0x14] sm:$0xf]
  %v6797 = vld [vmem:[%s6790 + $0x18] sm:$0xf]
  %v6798 = vld [vmem:[%s6790 + $0x1c] sm:$0xf]
  %v6799 = vld [vmem:[%s6790 + $0x20] sm:$0xf]
  %v6800 = vld [vmem:[%s6790 + $0x24] sm:$0xf]
  %v6801 = vld [vmem:[%s6790 + $0x28] sm:$0xf]
  %v6802 = vld [vmem:[%s6790 + $0x2c] sm:$0xf]
  %v6849 = vunpack.c.l.b16 %v6744
  %v6850 = vunpack.c.l.b16 %v6745
  %v6851 = vunpack.c.l.b16 %v6746
  %v6852 = vunpack.c.l.b16 %v6747
  %v6853 = vunpack.c.l.b16 %v6748
  %v6854 = vunpack.c.l.b16 %v6749
  %v6855 = vunpack.c.l.b16 %v6750
  %v6856 = vunpack.c.l.b16 %v6751
  %v6857 = vunpack.c.l.b16 %v6752
  %v6858 = vunpack.c.l.b16 %v6753
  %v6859 = vunpack.c.l.b16 %v6754
  %v6860 = vunpack.c.l.b16 %v6755
  %v6861 = vunpack.c.l.b16 %v6756
  %v6862 = vunpack.c.l.b16 %v6757
  %v6863 = vunpack.c.l.b16 %v6758
  %v6864 = vunpack.c.l.b16 %v6759
  %v6865 = vunpack.c.l.b16 %v6760
  %v6866 = vunpack.c.l.b16 %v6761
  %v6867 = vunpack.c.l.b16 %v6762
  %v6868 = vunpack.c.l.b16 %v6763
  %v6869 = vunpack.c.l.b16 %v6764
  %v6870 = vunpack.c.l.b16 %v6765
  %v6871 = vunpack.c.l.b16 %v6766
  %v6872 = vunpack.c.l.b16 %v6767
  %v6873 = vunpack.c.l.b16 %v6768
  %v6874 = vunpack.c.l.b16 %v6769
  %v6875 = vunpack.c.l.b16 %v6770
  %v6876 = vunpack.c.l.b16 %v6771
  %v6877 = vunpack.c.l.b16 %v6772
  %v6878 = vunpack.c.l.b16 %v6773
  %v6879 = vunpack.c.l.b16 %v6774
  %v6880 = vunpack.c.l.b16 %v6775
  %v6881 = vunpack.c.l.b16 %v6776
  %v6882 = vunpack.c.l.b16 %v6777
  %v6883 = vunpack.c.l.b16 %v6778
  %v6884 = vunpack.c.l.b16 %v6779
  %v6885 = vunpack.c.l.b16 %v6780
  %v6886 = vunpack.c.l.b16 %v6781
  %v6887 = vunpack.c.l.b16 %v6782
  %v6888 = vunpack.c.l.b16 %v6783
  %v6889 = vunpack.c.l.b16 %v6784
  %v6890 = vunpack.c.l.b16 %v6785
  %v6891 = vunpack.c.l.b16 %v6786
  %v6892 = vunpack.c.l.b16 %v6787
  %v6893 = vunpack.c.l.b16 %v6788
  %v6894 = vunpack.c.l.b16 %v6789
  %v6895 = vpack.c.b16 %v6850, %v6849
  %v6896 = vpack.c.b16 %v6852, %v6851
  %v6897 = vpack.c.b16 %v6854, %v6853
  %v6898 = vpack.c.b16 %v6856, %v6855
  %v6899 = vpack.c.b16 %v6858, %v6857
  %v6900 = vpack.c.b16 %v6860, %v6859
  %v6901 = vpack.c.b16 %v6862, %v6861
  %v6902 = vpack.c.b16 %v6864, %v6863
  %v6903 = vpack.c.b16 %v6866, %v6865
  %v6904 = vpack.c.b16 %v6868, %v6867
  %v6905 = vpack.c.b16 %v6870, %v6869
  %v6906 = vpack.c.b16 %v6872, %v6871
  %v6907 = vpack.c.b16 %v6874, %v6873
  %v6908 = vpack.c.b16 %v6876, %v6875
  %v6909 = vpack.c.b16 %v6878, %v6877
  %v6910 = vpack.c.b16 %v6880, %v6879
  %v6911 = vpack.c.b16 %v6882, %v6881
  %v6912 = vpack.c.b16 %v6884, %v6883
  %v6913 = vpack.c.b16 %v6886, %v6885
  %v6914 = vpack.c.b16 %v6888, %v6887
  %v6915 = vpack.c.b16 %v6890, %v6889
  %v6916 = vpack.c.b16 %v6892, %v6891
  %v6917 = vpack.c.b16 %v6894, %v6893
  %v6930 = vunpack.c.l.b16 %v6791
  %v6931 = vunpack.c.l.b16 %v6792
  %v6932 = vunpack.c.l.b16 %v6793
  %v6933 = vunpack.c.l.b16 %v6794
  %v6934 = vunpack.c.l.b16 %v6795
  %v6935 = vunpack.c.l.b16 %v6796
  %v6936 = vunpack.c.l.b16 %v6797
  %v6937 = vunpack.c.l.b16 %v6798
  %v6938 = vunpack.c.l.b16 %v6799
  %v6939 = vunpack.c.l.b16 %v6800
  %v6940 = vunpack.c.l.b16 %v6801
  %v6941 = vunpack.c.l.b16 %v6802
  %v6942 = vpack.c.b16 %v6931, %v6930
  %v6943 = vpack.c.b16 %v6933, %v6932
  %v6944 = vpack.c.b16 %v6935, %v6934
  %v6945 = vpack.c.b16 %v6937, %v6936
  %v6946 = vpack.c.b16 %v6939, %v6938
  %v6947 = vpack.c.b16 %v6941, %v6940
  %v6955 = vsel %vm1912, %v6895, 0
  %v6958 = vsel %vm1912, %v6896, 0
  %v6961 = vsel %vm1912, %v6897, 0
  %v6964 = vsel %vm1912, %v6898, 0
  %v6967 = vsel %vm1912, %v6899, 0
  %v6970 = vsel %vm1912, %v6900, 0
  %v6973 = vsel %vm1912, %v6901, 0
  %v6976 = vsel %vm1912, %v6902, 0
  %v6979 = vsel %vm1912, %v6903, 0
  %v6982 = vsel %vm1912, %v6904, 0
  %v6985 = vsel %vm1912, %v6905, 0
  %v6988 = vsel %vm1912, %v6906, 0
  %v6991 = vsel %vm1912, %v6907, 0
  %v6994 = vsel %vm1912, %v6908, 0
  %v6997 = vsel %vm1912, %v6909, 0
  %v7000 = vsel %vm1912, %v6910, 0
  %v7003 = vsel %vm1912, %v6911, 0
  %v7006 = vsel %vm1912, %v6912, 0
  %v7009 = vsel %vm1912, %v6913, 0
  %v7012 = vsel %vm1912, %v6914, 0
  %v7015 = vsel %vm1912, %v6915, 0
  %v7018 = vsel %vm1912, %v6916, 0
  %v7021 = vsel %vm1912, %v6917, 0
  %7023 = vmatpush.bf16.msra.mxu0 0
  %7024 = vmatpush.bf16.msra.mxu0 0
  %7025 = vmatpush.bf16.msra.mxu0 %v6947
  %7026 = vmatpush.bf16.msra.mxu0 %v6946
  %7027 = vmatpush.bf16.msra.mxu0 %v6945
  %7028 = vmatpush.bf16.msra.mxu0 %v6944
  %7029 = vmatpush.bf16.msra.mxu0 %v6943
  %7030 = vmatpush.bf16.msra.mxu0 %v6942
  %7031 = vmatmul.bf16.gmra.mxu0 %v6955
  %v7032 = vpop.f32.mrf.mxu0
  %v7033 = vadd.f32 0.0, %v7032
  %v7034 = vpop.f32.mrf.mxu0
  %v7035 = vadd.f32 0.0, %v7034
  %7036 = vmatmul.bf16.gmra.mxu0 %v6958
  %v7037 = vpop.f32.mrf.mxu0
  %v7038 = vadd.f32 0.0, %v7037
  %v7039 = vpop.f32.mrf.mxu0
  %v7040 = vadd.f32 0.0, %v7039
  %7041 = vmatmul.bf16.gmra.mxu0 %v6961
  %v7042 = vpop.f32.mrf.mxu0
  %v7043 = vadd.f32 0.0, %v7042
  %v7044 = vpop.f32.mrf.mxu0
  %v7045 = vadd.f32 0.0, %v7044
  %7046 = vmatmul.bf16.gmra.mxu0 %v6964
  %v7047 = vpop.f32.mrf.mxu0
  %v7048 = vadd.f32 0.0, %v7047
  %v7049 = vpop.f32.mrf.mxu0
  %v7050 = vadd.f32 0.0, %v7049
  %7051 = vmatmul.bf16.gmra.mxu0 %v6967
  %v7052 = vpop.f32.mrf.mxu0
  %v7053 = vadd.f32 0.0, %v7052
  %v7054 = vpop.f32.mrf.mxu0
  %v7055 = vadd.f32 0.0, %v7054
  %7056 = vmatmul.bf16.gmra.mxu0 %v6970
  %v7057 = vpop.f32.mrf.mxu0
  %v7058 = vadd.f32 0.0, %v7057
  %v7059 = vpop.f32.mrf.mxu0
  %v7060 = vadd.f32 0.0, %v7059
  %7061 = vmatmul.bf16.gmra.mxu0 %v6973
  %v7062 = vpop.f32.mrf.mxu0
  %v7063 = vadd.f32 0.0, %v7062
  %v7064 = vpop.f32.mrf.mxu0
  %v7065 = vadd.f32 0.0, %v7064
  %7066 = vmatmul.bf16.gmra.mxu0 %v6976
  %v7067 = vpop.f32.mrf.mxu0
  %v7068 = vadd.f32 0.0, %v7067
  %v7069 = vpop.f32.mrf.mxu0
  %v7070 = vadd.f32 0.0, %v7069
  %7071 = vmatmul.bf16.gmra.mxu0 %v6979
  %v7072 = vpop.f32.mrf.mxu0
  %v7073 = vadd.f32 0.0, %v7072
  %v7074 = vpop.f32.mrf.mxu0
  %v7075 = vadd.f32 0.0, %v7074
  %7076 = vmatmul.bf16.gmra.mxu0 %v6982
  %v7077 = vpop.f32.mrf.mxu0
  %v7078 = vadd.f32 0.0, %v7077
  %v7079 = vpop.f32.mrf.mxu0
  %v7080 = vadd.f32 0.0, %v7079
  %7081 = vmatmul.bf16.gmra.mxu0 %v6985
  %v7082 = vpop.f32.mrf.mxu0
  %v7083 = vadd.f32 0.0, %v7082
  %v7084 = vpop.f32.mrf.mxu0
  %v7085 = vadd.f32 0.0, %v7084
  %7086 = vmatmul.bf16.gmra.mxu0 %v6988
  %v7087 = vpop.f32.mrf.mxu0
  %v7088 = vadd.f32 0.0, %v7087
  %v7089 = vpop.f32.mrf.mxu0
  %v7090 = vadd.f32 0.0, %v7089
  %7091 = vmatmul.bf16.gmra.mxu0 %v6991
  %v7092 = vpop.f32.mrf.mxu0
  %v7093 = vadd.f32 0.0, %v7092
  %v7094 = vpop.f32.mrf.mxu0
  %v7095 = vadd.f32 0.0, %v7094
  %7096 = vmatmul.bf16.gmra.mxu0 %v6994
  %v7097 = vpop.f32.mrf.mxu0
  %v7098 = vadd.f32 0.0, %v7097
  %v7099 = vpop.f32.mrf.mxu0
  %v7100 = vadd.f32 0.0, %v7099
  %7101 = vmatmul.bf16.gmra.mxu0 %v6997
  %v7102 = vpop.f32.mrf.mxu0
  %v7103 = vadd.f32 0.0, %v7102
  %v7104 = vpop.f32.mrf.mxu0
  %v7105 = vadd.f32 0.0, %v7104
  %7106 = vmatmul.bf16.gmra.mxu0 %v7000
  %v7107 = vpop.f32.mrf.mxu0
  %v7108 = vadd.f32 0.0, %v7107
  %v7109 = vpop.f32.mrf.mxu0
  %v7110 = vadd.f32 0.0, %v7109
  %7111 = vmatmul.bf16.gmra.mxu0 %v7003
  %v7112 = vpop.f32.mrf.mxu0
  %v7113 = vadd.f32 0.0, %v7112
  %v7114 = vpop.f32.mrf.mxu0
  %v7115 = vadd.f32 0.0, %v7114
  %7116 = vmatmul.bf16.gmra.mxu0 %v7006
  %v7117 = vpop.f32.mrf.mxu0
  %v7118 = vadd.f32 0.0, %v7117
  %v7119 = vpop.f32.mrf.mxu0
  %v7120 = vadd.f32 0.0, %v7119
  %7121 = vmatmul.bf16.gmra.mxu0 %v7009
  %v7122 = vpop.f32.mrf.mxu0
  %v7123 = vadd.f32 0.0, %v7122
  %v7124 = vpop.f32.mrf.mxu0
  %v7125 = vadd.f32 0.0, %v7124
  %7126 = vmatmul.bf16.gmra.mxu0 %v7012
  %v7127 = vpop.f32.mrf.mxu0
  %v7128 = vadd.f32 0.0, %v7127
  %v7129 = vpop.f32.mrf.mxu0
  %v7130 = vadd.f32 0.0, %v7129
  %7131 = vmatmul.bf16.gmra.mxu0 %v7015
  %v7132 = vpop.f32.mrf.mxu0
  %v7133 = vadd.f32 0.0, %v7132
  %v7134 = vpop.f32.mrf.mxu0
  %v7135 = vadd.f32 0.0, %v7134
  %7136 = vmatmul.bf16.gmra.mxu0 %v7018
  %v7137 = vpop.f32.mrf.mxu0
  %v7138 = vadd.f32 0.0, %v7137
  %v7139 = vpop.f32.mrf.mxu0
  %v7140 = vadd.f32 0.0, %v7139
  %7141 = vmatmul.bf16.gmra.mxu0 %v7021
  %v7142 = vpop.f32.mrf.mxu0
  %v7143 = vadd.f32 0.0, %v7142
  %v7144 = vpop.f32.mrf.mxu0
  %v7145 = vadd.f32 0.0, %v7144
  %7146 = vdwg.mxu0
  %v7147 = vadd.f32 %v6630, %v7033
  %v7148 = vadd.f32 %v6632, %v7035
  %v7149 = vadd.f32 %v6635, %v7038
  %v7150 = vadd.f32 %v6637, %v7040
  %v7151 = vadd.f32 %v6640, %v7043
  %v7152 = vadd.f32 %v6642, %v7045
  %v7153 = vadd.f32 %v6645, %v7048
  %v7154 = vadd.f32 %v6647, %v7050
  %v7155 = vadd.f32 %v6650, %v7053
  %v7156 = vadd.f32 %v6652, %v7055
  %v7157 = vadd.f32 %v6655, %v7058
  %v7158 = vadd.f32 %v6657, %v7060
  %v7159 = vadd.f32 %v6660, %v7063
  %v7160 = vadd.f32 %v6662, %v7065
  %v7161 = vadd.f32 %v6665, %v7068
  %v7162 = vadd.f32 %v6667, %v7070
  %v7163 = vadd.f32 %v6670, %v7073
  %v7164 = vadd.f32 %v6672, %v7075
  %v7165 = vadd.f32 %v6675, %v7078
  %v7166 = vadd.f32 %v6677, %v7080
  %v7167 = vadd.f32 %v6680, %v7083
  %v7168 = vadd.f32 %v6682, %v7085
  %v7169 = vadd.f32 %v6685, %v7088
  %v7170 = vadd.f32 %v6687, %v7090
  %v7171 = vadd.f32 %v6690, %v7093
  %v7172 = vadd.f32 %v6692, %v7095
  %v7173 = vadd.f32 %v6695, %v7098
  %v7174 = vadd.f32 %v6697, %v7100
  %v7175 = vadd.f32 %v6700, %v7103
  %v7176 = vadd.f32 %v6702, %v7105
  %v7177 = vadd.f32 %v6705, %v7108
  %v7178 = vadd.f32 %v6707, %v7110
  %v7179 = vadd.f32 %v6710, %v7113
  %v7180 = vadd.f32 %v6712, %v7115
  %v7181 = vadd.f32 %v6715, %v7118
  %v7182 = vadd.f32 %v6717, %v7120
  %v7183 = vadd.f32 %v6720, %v7123
  %v7184 = vadd.f32 %v6722, %v7125
  %v7185 = vadd.f32 %v6725, %v7128
  %v7186 = vadd.f32 %v6727, %v7130
  %v7187 = vadd.f32 %v6730, %v7133
  %v7188 = vadd.f32 %v6732, %v7135
  %v7189 = vadd.f32 %v6735, %v7138
  %v7190 = vadd.f32 %v6737, %v7140
  %v7191 = vadd.f32 %v6740, %v7143
  %v7192 = vadd.f32 %v6742, %v7145
  %v7193 = vld [vmem:[%s5 + $0x3] sm:$0x1]
  %v7194 = vperm.slane %v7193, 0
  %v7195 = vadd.f32 %v7147, %v7194
  %v7196 = vadd.f32 %v7148, %v7194
  %v7197 = vadd.f32 %v7149, %v7194
  %v7198 = vadd.f32 %v7150, %v7194
  %v7199 = vadd.f32 %v7151, %v7194
  %v7200 = vadd.f32 %v7152, %v7194
  %v7201 = vadd.f32 %v7153, %v7194
  %v7202 = vadd.f32 %v7154, %v7194
  %v7203 = vadd.f32 %v7155, %v7194
  %v7204 = vadd.f32 %v7156, %v7194
  %v7205 = vadd.f32 %v7157, %v7194
  %v7206 = vadd.f32 %v7158, %v7194
  %v7207 = vadd.f32 %v7159, %v7194
  %v7208 = vadd.f32 %v7160, %v7194
  %v7209 = vadd.f32 %v7161, %v7194
  %v7210 = vadd.f32 %v7162, %v7194
  %v7211 = vadd.f32 %v7163, %v7194
  %v7212 = vadd.f32 %v7164, %v7194
  %v7213 = vadd.f32 %v7165, %v7194
  %v7214 = vadd.f32 %v7166, %v7194
  %v7215 = vadd.f32 %v7167, %v7194
  %v7216 = vadd.f32 %v7168, %v7194
  %v7217 = vadd.f32 %v7169, %v7194
  %v7218 = vadd.f32 %v7170, %v7194
  %v7219 = vadd.f32 %v7171, %v7194
  %v7220 = vadd.f32 %v7172, %v7194
  %v7221 = vadd.f32 %v7173, %v7194
  %v7222 = vadd.f32 %v7174, %v7194
  %v7223 = vadd.f32 %v7175, %v7194
  %v7224 = vadd.f32 %v7176, %v7194
  %v7225 = vadd.f32 %v7177, %v7194
  %v7226 = vadd.f32 %v7178, %v7194
  %v7227 = vadd.f32 %v7179, %v7194
  %v7228 = vadd.f32 %v7180, %v7194
  %v7229 = vadd.f32 %v7181, %v7194
  %v7230 = vadd.f32 %v7182, %v7194
  %v7231 = vadd.f32 %v7183, %v7194
  %v7232 = vadd.f32 %v7184, %v7194
  %v7233 = vadd.f32 %v7185, %v7194
  %v7234 = vadd.f32 %v7186, %v7194
  %v7235 = vadd.f32 %v7187, %v7194
  %v7236 = vadd.f32 %v7188, %v7194
  %v7237 = vadd.f32 %v7189, %v7194
  %v7238 = vadd.f32 %v7190, %v7194
  %v7239 = vadd.f32 %v7191, %v7194
  %v7240 = vadd.f32 %v7192, %v7194
  %vm7241 = vcmp.ge.f32.partialorder %v7195, 0.0
  %vm7242 = vcmp.ge.f32.partialorder %v7196, 0.0
  %vm7243 = vcmp.ge.f32.partialorder %v7197, 0.0
  %vm7244 = vcmp.ge.f32.partialorder %v7198, 0.0
  %vm7245 = vcmp.ge.f32.partialorder %v7199, 0.0
  %vm7246 = vcmp.ge.f32.partialorder %v7200, 0.0
  %vm7247 = vcmp.ge.f32.partialorder %v7201, 0.0
  %vm7248 = vcmp.ge.f32.partialorder %v7202, 0.0
  %vm7249 = vcmp.ge.f32.partialorder %v7203, 0.0
  %vm7250 = vcmp.ge.f32.partialorder %v7204, 0.0
  %vm7251 = vcmp.ge.f32.partialorder %v7205, 0.0
  %vm7252 = vcmp.ge.f32.partialorder %v7206, 0.0
  %vm7253 = vcmp.ge.f32.partialorder %v7207, 0.0
  %vm7254 = vcmp.ge.f32.partialorder %v7208, 0.0
  %vm7255 = vcmp.ge.f32.partialorder %v7209, 0.0
  %vm7256 = vcmp.ge.f32.partialorder %v7210, 0.0
  %vm7257 = vcmp.ge.f32.partialorder %v7211, 0.0
  %vm7258 = vcmp.ge.f32.partialorder %v7212, 0.0
  %vm7259 = vcmp.ge.f32.partialorder %v7213, 0.0
  %vm7260 = vcmp.ge.f32.partialorder %v7214, 0.0
  %vm7261 = vcmp.ge.f32.partialorder %v7215, 0.0
  %vm7262 = vcmp.ge.f32.partialorder %v7216, 0.0
  %vm7263 = vcmp.ge.f32.partialorder %v7217, 0.0
  %vm7264 = vcmp.ge.f32.partialorder %v7218, 0.0
  %vm7265 = vcmp.ge.f32.partialorder %v7219, 0.0
  %vm7266 = vcmp.ge.f32.partialorder %v7220, 0.0
  %vm7267 = vcmp.ge.f32.partialorder %v7221, 0.0
  %vm7268 = vcmp.ge.f32.partialorder %v7222, 0.0
  %vm7269 = vcmp.ge.f32.partialorder %v7223, 0.0
  %vm7270 = vcmp.ge.f32.partialorder %v7224, 0.0
  %vm7271 = vcmp.ge.f32.partialorder %v7225, 0.0
  %vm7272 = vcmp.ge.f32.partialorder %v7226, 0.0
  %vm7273 = vcmp.ge.f32.partialorder %v7227, 0.0
  %vm7274 = vcmp.ge.f32.partialorder %v7228, 0.0
  %vm7275 = vcmp.ge.f32.partialorder %v7229, 0.0
  %vm7276 = vcmp.ge.f32.partialorder %v7230, 0.0
  %vm7277 = vcmp.ge.f32.partialorder %v7231, 0.0
  %vm7278 = vcmp.ge.f32.partialorder %v7232, 0.0
  %vm7279 = vcmp.ge.f32.partialorder %v7233, 0.0
  %vm7280 = vcmp.ge.f32.partialorder %v7234, 0.0
  %vm7281 = vcmp.ge.f32.partialorder %v7235, 0.0
  %vm7282 = vcmp.ge.f32.partialorder %v7236, 0.0
  %vm7283 = vcmp.ge.f32.partialorder %v7237, 0.0
  %vm7284 = vcmp.ge.f32.partialorder %v7238, 0.0
  %vm7285 = vcmp.ge.f32.partialorder %v7239, 0.0
  %vm7286 = vcmp.ge.f32.partialorder %v7240, 0.0
  %v7287 = vmul.f32 %v7195, 0.2
  %v7288 = vmul.f32 %v7196, 0.2
  %v7289 = vmul.f32 %v7197, 0.2
  %v7290 = vmul.f32 %v7198, 0.2
  %v7291 = vmul.f32 %v7199, 0.2
  %v7292 = vmul.f32 %v7200, 0.2
  %v7293 = vmul.f32 %v7201, 0.2
  %v7294 = vmul.f32 %v7202, 0.2
  %v7295 = vmul.f32 %v7203, 0.2
  %v7296 = vmul.f32 %v7204, 0.2
  %v7297 = vmul.f32 %v7205, 0.2
  %v7298 = vmul.f32 %v7206, 0.2
  %v7299 = vmul.f32 %v7207, 0.2
  %v7300 = vmul.f32 %v7208, 0.2
  %v7301 = vmul.f32 %v7209, 0.2
  %v7302 = vmul.f32 %v7210, 0.2
  %v7303 = vmul.f32 %v7211, 0.2
  %v7304 = vmul.f32 %v7212, 0.2
  %v7305 = vmul.f32 %v7213, 0.2
  %v7306 = vmul.f32 %v7214, 0.2
  %v7307 = vmul.f32 %v7215, 0.2
  %v7308 = vmul.f32 %v7216, 0.2
  %v7309 = vmul.f32 %v7217, 0.2
  %v7310 = vmul.f32 %v7218, 0.2
  %v7311 = vmul.f32 %v7219, 0.2
  %v7312 = vmul.f32 %v7220, 0.2
  %v7313 = vmul.f32 %v7221, 0.2
  %v7314 = vmul.f32 %v7222, 0.2
  %v7315 = vmul.f32 %v7223, 0.2
  %v7316 = vmul.f32 %v7224, 0.2
  %v7317 = vmul.f32 %v7225, 0.2
  %v7318 = vmul.f32 %v7226, 0.2
  %v7319 = vmul.f32 %v7227, 0.2
  %v7320 = vmul.f32 %v7228, 0.2
  %v7321 = vmul.f32 %v7229, 0.2
  %v7322 = vmul.f32 %v7230, 0.2
  %v7323 = vmul.f32 %v7231, 0.2
  %v7324 = vmul.f32 %v7232, 0.2
  %v7325 = vmul.f32 %v7233, 0.2
  %v7326 = vmul.f32 %v7234, 0.2
  %v7327 = vmul.f32 %v7235, 0.2
  %v7328 = vmul.f32 %v7236, 0.2
  %v7329 = vmul.f32 %v7237, 0.2
  %v7330 = vmul.f32 %v7238, 0.2
  %v7331 = vmul.f32 %v7239, 0.2
  %v7332 = vmul.f32 %v7240, 0.2
  %v7333 = vsel %vm7241, %v7195, %v7287
  %v7334 = vsel %vm7242, %v7196, %v7288
  %v7335 = vsel %vm7243, %v7197, %v7289
  %v7336 = vsel %vm7244, %v7198, %v7290
  %v7337 = vsel %vm7245, %v7199, %v7291
  %v7338 = vsel %vm7246, %v7200, %v7292
  %v7339 = vsel %vm7247, %v7201, %v7293
  %v7340 = vsel %vm7248, %v7202, %v7294
  %v7341 = vsel %vm7249, %v7203, %v7295
  %v7342 = vsel %vm7250, %v7204, %v7296
  %v7343 = vsel %vm7251, %v7205, %v7297
  %v7344 = vsel %vm7252, %v7206, %v7298
  %v7345 = vsel %vm7253, %v7207, %v7299
  %v7346 = vsel %vm7254, %v7208, %v7300
  %v7347 = vsel %vm7255, %v7209, %v7301
  %v7348 = vsel %vm7256, %v7210, %v7302
  %v7349 = vsel %vm7257, %v7211, %v7303
  %v7350 = vsel %vm7258, %v7212, %v7304
  %v7351 = vsel %vm7259, %v7213, %v7305
  %v7352 = vsel %vm7260, %v7214, %v7306
  %v7353 = vsel %vm7261, %v7215, %v7307
  %v7354 = vsel %vm7262, %v7216, %v7308
  %v7355 = vsel %vm7263, %v7217, %v7309
  %v7356 = vsel %vm7264, %v7218, %v7310
  %v7357 = vsel %vm7265, %v7219, %v7311
  %v7358 = vsel %vm7266, %v7220, %v7312
  %v7359 = vsel %vm7267, %v7221, %v7313
  %v7360 = vsel %vm7268, %v7222, %v7314
  %v7361 = vsel %vm7269, %v7223, %v7315
  %v7362 = vsel %vm7270, %v7224, %v7316
  %v7363 = vsel %vm7271, %v7225, %v7317
  %v7364 = vsel %vm7272, %v7226, %v7318
  %v7365 = vsel %vm7273, %v7227, %v7319
  %v7366 = vsel %vm7274, %v7228, %v7320
  %v7367 = vsel %vm7275, %v7229, %v7321
  %v7368 = vsel %vm7276, %v7230, %v7322
  %v7369 = vsel %vm7277, %v7231, %v7323
  %v7370 = vsel %vm7278, %v7232, %v7324
  %v7371 = vsel %vm7279, %v7233, %v7325
  %v7372 = vsel %vm7280, %v7234, %v7326
  %v7373 = vsel %vm7281, %v7235, %v7327
  %v7374 = vsel %vm7282, %v7236, %v7328
  %v7375 = vsel %vm7283, %v7237, %v7329
  %v7376 = vsel %vm7284, %v7238, %v7330
  %v7377 = vsel %vm7285, %v7239, %v7331
  %v7378 = vsel %vm7286, %v7240, %v7332
  %v7379 = vpack.c.bf16 %v7333, %v7333
  %v7380 = vpack.c.bf16 %v7334, %v7334
  %v7381 = vpack.c.bf16 %v7335, %v7335
  %v7382 = vpack.c.bf16 %v7336, %v7336
  %v7383 = vpack.c.bf16 %v7337, %v7337
  %v7384 = vpack.c.bf16 %v7338, %v7338
  %v7385 = vpack.c.bf16 %v7339, %v7339
  %v7386 = vpack.c.bf16 %v7340, %v7340
  %v7387 = vpack.c.bf16 %v7341, %v7341
  %v7388 = vpack.c.bf16 %v7342, %v7342
  %v7389 = vpack.c.bf16 %v7343, %v7343
  %v7390 = vpack.c.bf16 %v7344, %v7344
  %v7391 = vpack.c.bf16 %v7345, %v7345
  %v7392 = vpack.c.bf16 %v7346, %v7346
  %v7393 = vpack.c.bf16 %v7347, %v7347
  %v7394 = vpack.c.bf16 %v7348, %v7348
  %v7395 = vpack.c.bf16 %v7349, %v7349
  %v7396 = vpack.c.bf16 %v7350, %v7350
  %v7397 = vpack.c.bf16 %v7351, %v7351
  %v7398 = vpack.c.bf16 %v7352, %v7352
  %v7399 = vpack.c.bf16 %v7353, %v7353
  %v7400 = vpack.c.bf16 %v7354, %v7354
  %v7401 = vpack.c.bf16 %v7355, %v7355
  %v7402 = vpack.c.bf16 %v7356, %v7356
  %v7403 = vpack.c.bf16 %v7357, %v7357
  %v7404 = vpack.c.bf16 %v7358, %v7358
  %v7405 = vpack.c.bf16 %v7359, %v7359
  %v7406 = vpack.c.bf16 %v7360, %v7360
  %v7407 = vpack.c.bf16 %v7361, %v7361
  %v7408 = vpack.c.bf16 %v7362, %v7362
  %v7409 = vpack.c.bf16 %v7363, %v7363
  %v7410 = vpack.c.bf16 %v7364, %v7364
  %v7411 = vpack.c.bf16 %v7365, %v7365
  %v7412 = vpack.c.bf16 %v7366, %v7366
  %v7413 = vpack.c.bf16 %v7367, %v7367
  %v7414 = vpack.c.bf16 %v7368, %v7368
  %v7415 = vpack.c.bf16 %v7369, %v7369
  %v7416 = vpack.c.bf16 %v7370, %v7370
  %v7417 = vpack.c.bf16 %v7371, %v7371
  %v7418 = vpack.c.bf16 %v7372, %v7372
  %v7419 = vpack.c.bf16 %v7373, %v7373
  %v7420 = vpack.c.bf16 %v7374, %v7374
  %v7421 = vpack.c.bf16 %v7375, %v7375
  %v7422 = vpack.c.bf16 %v7376, %v7376
  %v7423 = vpack.c.bf16 %v7377, %v7377
  %v7424 = vpack.c.bf16 %v7378, %v7378
  %v7470 = vunpack.c.l.b16 %v7379
  %v7471 = vunpack.c.l.b16 %v7380
  %v7472 = vunpack.c.l.b16 %v7381
  %v7473 = vunpack.c.l.b16 %v7382
  %v7474 = vunpack.c.l.b16 %v7383
  %v7475 = vunpack.c.l.b16 %v7384
  %v7476 = vunpack.c.l.b16 %v7385
  %v7477 = vunpack.c.l.b16 %v7386
  %v7478 = vunpack.c.l.b16 %v7387
  %v7479 = vunpack.c.l.b16 %v7388
  %v7480 = vunpack.c.l.b16 %v7389
  %v7481 = vunpack.c.l.b16 %v7390
  %v7482 = vunpack.c.l.b16 %v7391
  %v7483 = vunpack.c.l.b16 %v7392
  %v7484 = vunpack.c.l.b16 %v7393
  %v7485 = vunpack.c.l.b16 %v7394
  %v7486 = vunpack.c.l.b16 %v7395
  %v7487 = vunpack.c.l.b16 %v7396
  %v7488 = vunpack.c.l.b16 %v7397
  %v7489 = vunpack.c.l.b16 %v7398
  %v7490 = vunpack.c.l.b16 %v7399
  %v7491 = vunpack.c.l.b16 %v7400
  %v7492 = vunpack.c.l.b16 %v7401
  %v7493 = vunpack.c.l.b16 %v7402
  %v7494 = vunpack.c.l.b16 %v7403
  %v7495 = vunpack.c.l.b16 %v7404
  %v7496 = vunpack.c.l.b16 %v7405
  %v7497 = vunpack.c.l.b16 %v7406
  %v7498 = vunpack.c.l.b16 %v7407
  %v7499 = vunpack.c.l.b16 %v7408
  %v7500 = vunpack.c.l.b16 %v7409
  %v7501 = vunpack.c.l.b16 %v7410
  %v7502 = vunpack.c.l.b16 %v7411
  %v7503 = vunpack.c.l.b16 %v7412
  %v7504 = vunpack.c.l.b16 %v7413
  %v7505 = vunpack.c.l.b16 %v7414
  %v7506 = vunpack.c.l.b16 %v7415
  %v7507 = vunpack.c.l.b16 %v7416
  %v7508 = vunpack.c.l.b16 %v7417
  %v7509 = vunpack.c.l.b16 %v7418
  %v7510 = vunpack.c.l.b16 %v7419
  %v7511 = vunpack.c.l.b16 %v7420
  %v7512 = vunpack.c.l.b16 %v7421
  %v7513 = vunpack.c.l.b16 %v7422
  %v7514 = vunpack.c.l.b16 %v7423
  %v7515 = vpack.c.b16 %v7471, %v7470
  %v7516 = vpack.c.b16 %v7473, %v7472
  %v7517 = vpack.c.b16 %v7475, %v7474
  %v7518 = vpack.c.b16 %v7477, %v7476
  %v7519 = vpack.c.b16 %v7479, %v7478
  %v7520 = vpack.c.b16 %v7481, %v7480
  %v7521 = vpack.c.b16 %v7483, %v7482
  %v7522 = vpack.c.b16 %v7485, %v7484
  %v7523 = vpack.c.b16 %v7487, %v7486
  %v7524 = vpack.c.b16 %v7489, %v7488
  %v7525 = vpack.c.b16 %v7491, %v7490
  %v7526 = vpack.c.b16 %v7493, %v7492
  %v7527 = vpack.c.b16 %v7495, %v7494
  %v7528 = vpack.c.b16 %v7497, %v7496
  %v7529 = vpack.c.b16 %v7499, %v7498
  %v7530 = vpack.c.b16 %v7501, %v7500
  %v7531 = vpack.c.b16 %v7503, %v7502
  %v7532 = vpack.c.b16 %v7505, %v7504
  %v7533 = vpack.c.b16 %v7507, %v7506
  %v7534 = vpack.c.b16 %v7509, %v7508
  %v7535 = vpack.c.b16 %v7511, %v7510
  %v7536 = vpack.c.b16 %v7513, %v7512
  %v7537 = vpack.c.b16 %v7514, %v7514
  %v7539 = vunpack.c.l.b16 %v7424
  %v7540 = vpack.c.b16 %v7539, %v7514
  %v7542 = vshrl.u32 %v7515, 16
  %v7544 = vshll.u32 %v7515, 16
  %v7546 = vrot.slane %v7544, 1
  %v7547 = vor.u32 %v7542, %v7546
  %v7549 = vshll.u32 %v7516, 16
  %v7551 = vrot.slane %v7549, 1
  %v7552 = vsel %vm872, %v7547, %v7551
  %v7553 = vshrl.u32 %v7516, 16
  %v7555 = vor.u32 %v7553, %v7551
  %v7557 = vshll.u32 %v7517, 16
  %v7559 = vrot.slane %v7557, 1
  %v7560 = vsel %vm872, %v7555, %v7559
  %v7561 = vshrl.u32 %v7517, 16
  %v7563 = vor.u32 %v7561, %v7559
  %v7565 = vshll.u32 %v7518, 16
  %v7567 = vrot.slane %v7565, 1
  %v7568 = vsel %vm872, %v7563, %v7567
  %v7569 = vshrl.u32 %v7518, 16
  %v7571 = vor.u32 %v7569, %v7567
  %v7573 = vshll.u32 %v7519, 16
  %v7575 = vrot.slane %v7573, 1
  %v7576 = vsel %vm872, %v7571, %v7575
  %v7577 = vshrl.u32 %v7519, 16
  %v7579 = vor.u32 %v7577, %v7575
  %v7581 = vshll.u32 %v7520, 16
  %v7583 = vrot.slane %v7581, 1
  %v7584 = vsel %vm872, %v7579, %v7583
  %v7585 = vshrl.u32 %v7520, 16
  %v7587 = vor.u32 %v7585, %v7583
  %v7589 = vshll.u32 %v7521, 16
  %v7591 = vrot.slane %v7589, 1
  %v7592 = vsel %vm872, %v7587, %v7591
  %v7593 = vshrl.u32 %v7521, 16
  %v7595 = vor.u32 %v7593, %v7591
  %v7597 = vshll.u32 %v7522, 16
  %v7599 = vrot.slane %v7597, 1
  %v7600 = vsel %vm872, %v7595, %v7599
  %v7601 = vshrl.u32 %v7522, 16
  %v7603 = vor.u32 %v7601, %v7599
  %v7605 = vshll.u32 %v7523, 16
  %v7607 = vrot.slane %v7605, 1
  %v7608 = vsel %vm872, %v7603, %v7607
  %v7609 = vshrl.u32 %v7523, 16
  %v7611 = vor.u32 %v7609, %v7607
  %v7613 = vshll.u32 %v7524, 16
  %v7615 = vrot.slane %v7613, 1
  %v7616 = vsel %vm872, %v7611, %v7615
  %v7617 = vshrl.u32 %v7524, 16
  %v7619 = vor.u32 %v7617, %v7615
  %v7621 = vshll.u32 %v7525, 16
  %v7623 = vrot.slane %v7621, 1
  %v7624 = vsel %vm872, %v7619, %v7623
  %v7625 = vshrl.u32 %v7525, 16
  %v7627 = vor.u32 %v7625, %v7623
  %v7629 = vshll.u32 %v7526, 16
  %v7631 = vrot.slane %v7629, 1
  %v7632 = vsel %vm872, %v7627, %v7631
  %v7633 = vshrl.u32 %v7526, 16
  %v7635 = vor.u32 %v7633, %v7631
  %v7637 = vshll.u32 %v7527, 16
  %v7639 = vrot.slane %v7637, 1
  %v7640 = vsel %vm872, %v7635, %v7639
  %v7641 = vshrl.u32 %v7527, 16
  %v7643 = vor.u32 %v7641, %v7639
  %v7645 = vshll.u32 %v7528, 16
  %v7647 = vrot.slane %v7645, 1
  %v7648 = vsel %vm872, %v7643, %v7647
  %v7649 = vshrl.u32 %v7528, 16
  %v7651 = vor.u32 %v7649, %v7647
  %v7653 = vshll.u32 %v7529, 16
  %v7655 = vrot.slane %v7653, 1
  %v7656 = vsel %vm872, %v7651, %v7655
  %v7657 = vshrl.u32 %v7529, 16
  %v7659 = vor.u32 %v7657, %v7655
  %v7661 = vshll.u32 %v7530, 16
  %v7663 = vrot.slane %v7661, 1
  %v7664 = vsel %vm872, %v7659, %v7663
  %v7665 = vshrl.u32 %v7530, 16
  %v7667 = vor.u32 %v7665, %v7663
  %v7669 = vshll.u32 %v7531, 16
  %v7671 = vrot.slane %v7669, 1
  %v7672 = vsel %vm872, %v7667, %v7671
  %v7673 = vshrl.u32 %v7531, 16
  %v7675 = vor.u32 %v7673, %v7671
  %v7677 = vshll.u32 %v7532, 16
  %v7679 = vrot.slane %v7677, 1
  %v7680 = vsel %vm872, %v7675, %v7679
  %v7681 = vshrl.u32 %v7532, 16
  %v7683 = vor.u32 %v7681, %v7679
  %v7685 = vshll.u32 %v7533, 16
  %v7687 = vrot.slane %v7685, 1
  %v7688 = vsel %vm872, %v7683, %v7687
  %v7689 = vshrl.u32 %v7533, 16
  %v7691 = vor.u32 %v7689, %v7687
  %v7693 = vshll.u32 %v7534, 16
  %v7695 = vrot.slane %v7693, 1
  %v7696 = vsel %vm872, %v7691, %v7695
  %v7697 = vshrl.u32 %v7534, 16
  %v7699 = vor.u32 %v7697, %v7695
  %v7701 = vshll.u32 %v7535, 16
  %v7703 = vrot.slane %v7701, 1
  %v7704 = vsel %vm872, %v7699, %v7703
  %v7705 = vshrl.u32 %v7535, 16
  %v7707 = vor.u32 %v7705, %v7703
  %v7709 = vshll.u32 %v7536, 16
  %v7711 = vrot.slane %v7709, 1
  %v7712 = vsel %vm872, %v7707, %v7711
  %v7713 = vshrl.u32 %v7536, 16
  %v7715 = vor.u32 %v7713, %v7711
  %v7717 = vshll.u32 %v7540, 16
  %v7719 = vrot.slane %v7717, 1
  %v7720 = vsel %vm872, %v7715, %v7719
  %v7721 = vshrl.u32 %v7540, 16
  %v7723 = vor.u32 %v7721, %v7719
  %7724 = vrot.lane.b32.xlu0 %v7552, 32
  %v7725 = vpop.permute.xlu0 %7724
  %7726 = vrot.lane.b32.xlu0 %v7560, 32
  %v7727 = vpop.permute.xlu0 %7726
  %7728 = vrot.lane.b32.xlu0 %v7568, 32
  %v7729 = vpop.permute.xlu0 %7728
  %7730 = vrot.lane.b32.xlu0 %v7576, 32
  %v7731 = vpop.permute.xlu0 %7730
  %7732 = vrot.lane.b32.xlu0 %v7584, 32
  %v7733 = vpop.permute.xlu0 %7732
  %7734 = vrot.lane.b32.xlu0 %v7592, 32
  %v7735 = vpop.permute.xlu0 %7734
  %7736 = vrot.lane.b32.xlu0 %v7600, 32
  %v7737 = vpop.permute.xlu0 %7736
  %7738 = vrot.lane.b32.xlu0 %v7608, 32
  %v7739 = vpop.permute.xlu0 %7738
  %7740 = vrot.lane.b32.xlu0 %v7616, 32
  %v7741 = vpop.permute.xlu0 %7740
  %7742 = vrot.lane.b32.xlu0 %v7624, 32
  %v7743 = vpop.permute.xlu0 %7742
  %7744 = vrot.lane.b32.xlu0 %v7632, 32
  %v7745 = vpop.permute.xlu0 %7744
  %7746 = vrot.lane.b32.xlu0 %v7640, 32
  %v7747 = vpop.permute.xlu0 %7746
  %7748 = vrot.lane.b32.xlu0 %v7648, 32
  %v7749 = vpop.permute.xlu0 %7748
  %7750 = vrot.lane.b32.xlu0 %v7656, 32
  %v7751 = vpop.permute.xlu0 %7750
  %7752 = vrot.lane.b32.xlu0 %v7664, 32
  %v7753 = vpop.permute.xlu0 %7752
  %7754 = vrot.lane.b32.xlu0 %v7672, 32
  %v7755 = vpop.permute.xlu0 %7754
  %7756 = vrot.lane.b32.xlu0 %v7680, 32
  %v7757 = vpop.permute.xlu0 %7756
  %7758 = vrot.lane.b32.xlu0 %v7688, 32
  %v7759 = vpop.permute.xlu0 %7758
  %7760 = vrot.lane.b32.xlu0 %v7696, 32
  %v7761 = vpop.permute.xlu0 %7760
  %7762 = vrot.lane.b32.xlu0 %v7704, 32
  %v7763 = vpop.permute.xlu0 %7762
  %7764 = vrot.lane.b32.xlu0 %v7712, 32
  %v7765 = vpop.permute.xlu0 %7764
  %7766 = vrot.lane.b32.xlu0 %v7720, 32
  %v7767 = vpop.permute.xlu0 %7766
  %7768 = vrot.lane.b32.xlu0 %v7723, 32
  %v7769 = vpop.permute.xlu0 %7768
  %v7770 = vrot.slane %v7515, 1
  %v7771 = vrot.slane %v7516, 1
  %v7772 = vsel %vm1162, %v7770, %v7771
  %v7773 = vrot.slane %v7517, 1
  %v7774 = vsel %vm1162, %v7771, %v7773
  %v7775 = vrot.slane %v7518, 1
  %v7776 = vsel %vm1162, %v7773, %v7775
  %v7777 = vrot.slane %v7519, 1
  %v7778 = vsel %vm1162, %v7775, %v7777
  %v7779 = vrot.slane %v7520, 1
  %v7780 = vsel %vm1162, %v7777, %v7779
  %v7781 = vrot.slane %v7521, 1
  %v7782 = vsel %vm1162, %v7779, %v7781
  %v7783 = vrot.slane %v7522, 1
  %v7784 = vsel %vm1162, %v7781, %v7783
  %v7785 = vrot.slane %v7523, 1
  %v7786 = vsel %vm1162, %v7783, %v7785
  %v7787 = vrot.slane %v7524, 1
  %v7788 = vsel %vm1162, %v7785, %v7787
  %v7789 = vrot.slane %v7525, 1
  %v7790 = vsel %vm1162, %v7787, %v7789
  %v7791 = vrot.slane %v7526, 1
  %v7792 = vsel %vm1162, %v7789, %v7791
  %v7793 = vrot.slane %v7527, 1
  %v7794 = vsel %vm1162, %v7791, %v7793
  %v7795 = vrot.slane %v7528, 1
  %v7796 = vsel %vm1162, %v7793, %v7795
  %v7797 = vrot.slane %v7529, 1
  %v7798 = vsel %vm1162, %v7795, %v7797
  %v7799 = vrot.slane %v7530, 1
  %v7800 = vsel %vm1162, %v7797, %v7799
  %v7801 = vrot.slane %v7531, 1
  %v7802 = vsel %vm1162, %v7799, %v7801
  %v7803 = vrot.slane %v7532, 1
  %v7804 = vsel %vm1162, %v7801, %v7803
  %v7805 = vrot.slane %v7533, 1
  %v7806 = vsel %vm1162, %v7803, %v7805
  %v7807 = vrot.slane %v7534, 1
  %v7808 = vsel %vm1162, %v7805, %v7807
  %v7809 = vrot.slane %v7535, 1
  %v7810 = vsel %vm1162, %v7807, %v7809
  %v7811 = vrot.slane %v7536, 1
  %v7812 = vsel %vm1162, %v7809, %v7811
  %v7813 = vrot.slane %v7540, 1
  %v7814 = vsel %vm1162, %v7811, %v7813
  %7815 = vrot.lane.b32.xlu0 %v7772, 64
  %v7816 = vpop.permute.xlu0 %7815
  %7817 = vrot.lane.b32.xlu0 %v7774, 64
  %v7818 = vpop.permute.xlu0 %7817
  %7819 = vrot.lane.b32.xlu0 %v7776, 64
  %v7820 = vpop.permute.xlu0 %7819
  %7821 = vrot.lane.b32.xlu0 %v7778, 64
  %v7822 = vpop.permute.xlu0 %7821
  %7823 = vrot.lane.b32.xlu0 %v7780, 64
  %v7824 = vpop.permute.xlu0 %7823
  %7825 = vrot.lane.b32.xlu0 %v7782, 64
  %v7826 = vpop.permute.xlu0 %7825
  %7827 = vrot.lane.b32.xlu0 %v7784, 64
  %v7828 = vpop.permute.xlu0 %7827
  %7829 = vrot.lane.b32.xlu0 %v7786, 64
  %v7830 = vpop.permute.xlu0 %7829
  %7831 = vrot.lane.b32.xlu0 %v7788, 64
  %v7832 = vpop.permute.xlu0 %7831
  %7833 = vrot.lane.b32.xlu0 %v7790, 64
  %v7834 = vpop.permute.xlu0 %7833
  %7835 = vrot.lane.b32.xlu0 %v7792, 64
  %v7836 = vpop.permute.xlu0 %7835
  %7837 = vrot.lane.b32.xlu0 %v7794, 64
  %v7838 = vpop.permute.xlu0 %7837
  %7839 = vrot.lane.b32.xlu0 %v7796, 64
  %v7840 = vpop.permute.xlu0 %7839
  %7841 = vrot.lane.b32.xlu0 %v7798, 64
  %v7842 = vpop.permute.xlu0 %7841
  %7843 = vrot.lane.b32.xlu0 %v7800, 64
  %v7844 = vpop.permute.xlu0 %7843
  %7845 = vrot.lane.b32.xlu0 %v7802, 64
  %v7846 = vpop.permute.xlu0 %7845
  %7847 = vrot.lane.b32.xlu0 %v7804, 64
  %v7848 = vpop.permute.xlu0 %7847
  %7849 = vrot.lane.b32.xlu0 %v7806, 64
  %v7850 = vpop.permute.xlu0 %7849
  %7851 = vrot.lane.b32.xlu0 %v7808, 64
  %v7852 = vpop.permute.xlu0 %7851
  %7853 = vrot.lane.b32.xlu0 %v7810, 64
  %v7854 = vpop.permute.xlu0 %7853
  %7855 = vrot.lane.b32.xlu0 %v7812, 64
  %v7856 = vpop.permute.xlu0 %7855
  %7857 = vrot.lane.b32.xlu0 %v7814, 64
  %v7858 = vpop.permute.xlu0 %7857
  %7859 = vrot.lane.b32.xlu0 %v7813, 64
  %v7860 = vpop.permute.xlu0 %7859
  %v7862 = vsel %vm1278, %v7515, %v7725
  %v7864 = vsel %vm1278, %v7516, %v7727
  %v7866 = vsel %vm1278, %v7517, %v7729
  %v7868 = vsel %vm1278, %v7518, %v7731
  %v7870 = vsel %vm1278, %v7519, %v7733
  %v7872 = vsel %vm1278, %v7520, %v7735
  %v7874 = vsel %vm1278, %v7521, %v7737
  %v7876 = vsel %vm1278, %v7522, %v7739
  %v7878 = vsel %vm1278, %v7523, %v7741
  %v7880 = vsel %vm1278, %v7524, %v7743
  %v7882 = vsel %vm1278, %v7525, %v7745
  %v7884 = vsel %vm1278, %v7526, %v7747
  %v7886 = vsel %vm1278, %v7527, %v7749
  %v7888 = vsel %vm1278, %v7528, %v7751
  %v7890 = vsel %vm1278, %v7529, %v7753
  %v7892 = vsel %vm1278, %v7530, %v7755
  %v7894 = vsel %vm1278, %v7531, %v7757
  %v7896 = vsel %vm1278, %v7532, %v7759
  %v7898 = vsel %vm1278, %v7533, %v7761
  %v7900 = vsel %vm1278, %v7534, %v7763
  %v7902 = vsel %vm1278, %v7535, %v7765
  %v7904 = vsel %vm1278, %v7536, %v7767
  %v7907 = vsel %vm1278, %v7537, %v7769
  %v7909 = vsel %vm1337, %v7862, %v7816
  %v7911 = vsel %vm1337, %v7864, %v7818
  %v7913 = vsel %vm1337, %v7866, %v7820
  %v7915 = vsel %vm1337, %v7868, %v7822
  %v7917 = vsel %vm1337, %v7870, %v7824
  %v7919 = vsel %vm1337, %v7872, %v7826
  %v7921 = vsel %vm1337, %v7874, %v7828
  %v7923 = vsel %vm1337, %v7876, %v7830
  %v7925 = vsel %vm1337, %v7878, %v7832
  %v7927 = vsel %vm1337, %v7880, %v7834
  %v7929 = vsel %vm1337, %v7882, %v7836
  %v7931 = vsel %vm1337, %v7884, %v7838
  %v7933 = vsel %vm1337, %v7886, %v7840
  %v7935 = vsel %vm1337, %v7888, %v7842
  %v7937 = vsel %vm1337, %v7890, %v7844
  %v7939 = vsel %vm1337, %v7892, %v7846
  %v7941 = vsel %vm1337, %v7894, %v7848
  %v7943 = vsel %vm1337, %v7896, %v7850
  %v7945 = vsel %vm1337, %v7898, %v7852
  %v7947 = vsel %vm1337, %v7900, %v7854
  %v7949 = vsel %vm1337, %v7902, %v7856
  %v7951 = vsel %vm1337, %v7904, %v7858
  %v7953 = vsel %vm1337, %v7907, %v7860
  %v7977 = vunpack.c.l.b16 %v7909
  %v7978 = vunpack.c.h.b16 %v7909
  %v7979 = vunpack.c.l.b16 %v7911
  %v7980 = vunpack.c.h.b16 %v7911
  %v7981 = vunpack.c.l.b16 %v7913
  %v7982 = vunpack.c.h.b16 %v7913
  %v7983 = vunpack.c.l.b16 %v7915
  %v7984 = vunpack.c.h.b16 %v7915
  %v7985 = vunpack.c.l.b16 %v7917
  %v7986 = vunpack.c.h.b16 %v7917
  %v7987 = vunpack.c.l.b16 %v7919
  %v7988 = vunpack.c.h.b16 %v7919
  %v7989 = vunpack.c.l.b16 %v7921
  %v7990 = vunpack.c.h.b16 %v7921
  %v7991 = vunpack.c.l.b16 %v7923
  %v7992 = vunpack.c.h.b16 %v7923
  %v7993 = vunpack.c.l.b16 %v7925
  %v7994 = vunpack.c.h.b16 %v7925
  %v7995 = vunpack.c.l.b16 %v7927
  %v7996 = vunpack.c.h.b16 %v7927
  %v7997 = vunpack.c.l.b16 %v7929
  %v7998 = vunpack.c.h.b16 %v7929
  %v7999 = vunpack.c.l.b16 %v7931
  %v8000 = vunpack.c.h.b16 %v7931
  %v8001 = vunpack.c.l.b16 %v7933
  %v8002 = vunpack.c.h.b16 %v7933
  %v8003 = vunpack.c.l.b16 %v7935
  %v8004 = vunpack.c.h.b16 %v7935
  %v8005 = vunpack.c.l.b16 %v7937
  %v8006 = vunpack.c.h.b16 %v7937
  %v8007 = vunpack.c.l.b16 %v7939
  %v8008 = vunpack.c.h.b16 %v7939
  %v8009 = vunpack.c.l.b16 %v7941
  %v8010 = vunpack.c.h.b16 %v7941
  %v8011 = vunpack.c.l.b16 %v7943
  %v8012 = vunpack.c.h.b16 %v7943
  %v8013 = vunpack.c.l.b16 %v7945
  %v8014 = vunpack.c.h.b16 %v7945
  %v8015 = vunpack.c.l.b16 %v7947
  %v8016 = vunpack.c.h.b16 %v7947
  %v8017 = vunpack.c.l.b16 %v7949
  %v8018 = vunpack.c.h.b16 %v7949
  %v8019 = vunpack.c.l.b16 %v7951
  %v8020 = vunpack.c.h.b16 %v7951
  %v8021 = vunpack.c.l.b16 %v7953
  %v8022 = vpack.c.b16 %v7977, %v7977
  %v8023 = vpack.c.b16 %v7978, %v7978
  %v8024 = vpack.c.b16 %v7979, %v7979
  %v8025 = vpack.c.b16 %v7980, %v7980
  %v8026 = vpack.c.b16 %v7981, %v7981
  %v8027 = vpack.c.b16 %v7982, %v7982
  %v8028 = vpack.c.b16 %v7983, %v7983
  %v8029 = vpack.c.b16 %v7984, %v7984
  %v8030 = vpack.c.b16 %v7985, %v7985
  %v8031 = vpack.c.b16 %v7986, %v7986
  %v8032 = vpack.c.b16 %v7987, %v7987
  %v8033 = vpack.c.b16 %v7988, %v7988
  %v8034 = vpack.c.b16 %v7989, %v7989
  %v8035 = vpack.c.b16 %v7990, %v7990
  %v8036 = vpack.c.b16 %v7991, %v7991
  %v8037 = vpack.c.b16 %v7992, %v7992
  %v8038 = vpack.c.b16 %v7993, %v7993
  %v8039 = vpack.c.b16 %v7994, %v7994
  %v8040 = vpack.c.b16 %v7995, %v7995
  %v8041 = vpack.c.b16 %v7996, %v7996
  %v8042 = vpack.c.b16 %v7997, %v7997
  %v8043 = vpack.c.b16 %v7998, %v7998
  %v8044 = vpack.c.b16 %v7999, %v7999
  %v8045 = vpack.c.b16 %v8000, %v8000
  %v8046 = vpack.c.b16 %v8001, %v8001
  %v8047 = vpack.c.b16 %v8002, %v8002
  %v8048 = vpack.c.b16 %v8003, %v8003
  %v8049 = vpack.c.b16 %v8004, %v8004
  %v8050 = vpack.c.b16 %v8005, %v8005
  %v8051 = vpack.c.b16 %v8006, %v8006
  %v8052 = vpack.c.b16 %v8007, %v8007
  %v8053 = vpack.c.b16 %v8008, %v8008
  %v8054 = vpack.c.b16 %v8009, %v8009
  %v8055 = vpack.c.b16 %v8010, %v8010
  %v8056 = vpack.c.b16 %v8011, %v8011
  %v8057 = vpack.c.b16 %v8012, %v8012
  %v8058 = vpack.c.b16 %v8013, %v8013
  %v8059 = vpack.c.b16 %v8014, %v8014
  %v8060 = vpack.c.b16 %v8015, %v8015
  %v8061 = vpack.c.b16 %v8016, %v8016
  %v8062 = vpack.c.b16 %v8017, %v8017
  %v8063 = vpack.c.b16 %v8018, %v8018
  %v8064 = vpack.c.b16 %v8019, %v8019
  %v8065 = vpack.c.b16 %v8020, %v8020
  %v8066 = vpack.c.b16 %v8021, %v8021
  %8112 = vst.msk [vmem:[#allocation3] sm:$0xf] %vm1599, %v8022
  %8113 = vst.msk [vmem:[#allocation3 + $0x4] sm:$0xf] %vm1599, %v8023
  %8114 = vst.msk [vmem:[#allocation3 + $0x8] sm:$0xf] %vm1599, %v8024
  %8115 = vst.msk [vmem:[#allocation3 + $0xc] sm:$0xf] %vm1599, %v8025
  %8116 = vst.msk [vmem:[#allocation3 + $0x10] sm:$0xf] %vm1599, %v8026
  %8117 = vst.msk [vmem:[#allocation3 + $0x14] sm:$0xf] %vm1599, %v8027
  %8118 = vst.msk [vmem:[#allocation3 + $0x18] sm:$0xf] %vm1599, %v8028
  %8119 = vst.msk [vmem:[#allocation3 + $0x1c] sm:$0xf] %vm1599, %v8029
  %8120 = vst.msk [vmem:[#allocation3 + $0x20] sm:$0xf] %vm1599, %v8030
  %8121 = vst.msk [vmem:[#allocation3 + $0x24] sm:$0xf] %vm1599, %v8031
  %8122 = vst.msk [vmem:[#allocation3 + $0x28] sm:$0xf] %vm1599, %v8032
  %8123 = vst.msk [vmem:[#allocation3 + $0x2c] sm:$0xf] %vm1599, %v8033
  %8124 = vst.msk [vmem:[#allocation3 + $0x30] sm:$0xf] %vm1599, %v8034
  %8125 = vst.msk [vmem:[#allocation3 + $0x34] sm:$0xf] %vm1599, %v8035
  %8126 = vst.msk [vmem:[#allocation3 + $0x38] sm:$0xf] %vm1599, %v8036
  %8127 = vst.msk [vmem:[#allocation3 + $0x3c] sm:$0xf] %vm1599, %v8037
  %8128 = vst.msk [vmem:[#allocation3 + $0x40] sm:$0xf] %vm1599, %v8038
  %8129 = vst.msk [vmem:[#allocation3 + $0x44] sm:$0xf] %vm1599, %v8039
  %8130 = vst.msk [vmem:[#allocation3 + $0x48] sm:$0xf] %vm1599, %v8040
  %8131 = vst.msk [vmem:[#allocation3 + $0x4c] sm:$0xf] %vm1599, %v8041
  %8132 = vst.msk [vmem:[#allocation3 + $0x50] sm:$0xf] %vm1599, %v8042
  %8133 = vst.msk [vmem:[#allocation3 + $0x54] sm:$0xf] %vm1599, %v8043
  %8134 = vst.msk [vmem:[#allocation3 + $0x58] sm:$0xf] %vm1599, %v8044
  %8135 = vst.msk [vmem:[#allocation3 + $0x5c] sm:$0xf] %vm1599, %v8045
  %8136 = vst.msk [vmem:[#allocation3 + $0x60] sm:$0xf] %vm1599, %v8046
  %8137 = vst.msk [vmem:[#allocation3 + $0x64] sm:$0xf] %vm1599, %v8047
  %8138 = vst.msk [vmem:[#allocation3 + $0x68] sm:$0xf] %vm1599, %v8048
  %8139 = vst.msk [vmem:[#allocation3 + $0x6c] sm:$0xf] %vm1599, %v8049
  %8140 = vst.msk [vmem:[#allocation3 + $0x70] sm:$0xf] %vm1599, %v8050
  %8141 = vst.msk [vmem:[#allocation3 + $0x74] sm:$0xf] %vm1599, %v8051
  %8142 = vst.msk [vmem:[#allocation3 + $0x78] sm:$0xf] %vm1599, %v8052
  %8143 = vst.msk [vmem:[#allocation3 + $0x7c] sm:$0xf] %vm1599, %v8053
  %8144 = vst.msk [vmem:[#allocation3 + $0x80] sm:$0xf] %vm1599, %v8054
  %8145 = vst.msk [vmem:[#allocation3 + $0x84] sm:$0xf] %vm1599, %v8055
  %8146 = vst.msk [vmem:[#allocation3 + $0x88] sm:$0xf] %vm1599, %v8056
  %8147 = vst.msk [vmem:[#allocation3 + $0x8c] sm:$0xf] %vm1599, %v8057
  %8148 = vst.msk [vmem:[#allocation3 + $0x90] sm:$0xf] %vm1599, %v8058
  %8149 = vst.msk [vmem:[#allocation3 + $0x94] sm:$0xf] %vm1599, %v8059
  %8150 = vst.msk [vmem:[#allocation3 + $0x98] sm:$0xf] %vm1599, %v8060
  %8151 = vst.msk [vmem:[#allocation3 + $0x9c] sm:$0xf] %vm1599, %v8061
  %8152 = vst.msk [vmem:[#allocation3 + $0xa0] sm:$0xf] %vm1599, %v8062
  %8153 = vst.msk [vmem:[#allocation3 + $0xa4] sm:$0xf] %vm1599, %v8063
  %8154 = vst.msk [vmem:[#allocation3 + $0xa8] sm:$0xf] %vm1599, %v8064
  %8155 = vst.msk [vmem:[#allocation3 + $0xac] sm:$0xf] %vm1599, %v8065
  %8156 = vst.msk [vmem:[#allocation3 + $0xb0] sm:$0xf] %vm1599, %v8066
  %v8157 = vld [vmem:[#allocation3] sm:$0xf]
  %v8158 = vld [vmem:[#allocation3 + $0x4] sm:$0xf]
  %v8159 = vld [vmem:[#allocation3 + $0x8] sm:$0xf]
  %v8160 = vld [vmem:[#allocation3 + $0xc] sm:$0xf]
  %v8161 = vld [vmem:[#allocation3 + $0x10] sm:$0xf]
  %v8162 = vld [vmem:[#allocation3 + $0x14] sm:$0xf]
  %v8163 = vld [vmem:[#allocation3 + $0x18] sm:$0xf]
  %v8164 = vld [vmem:[#allocation3 + $0x1c] sm:$0xf]
  %v8165 = vld [vmem:[#allocation3 + $0x20] sm:$0xf]
  %v8166 = vld [vmem:[#allocation3 + $0x24] sm:$0xf]
  %v8167 = vld [vmem:[#allocation3 + $0x28] sm:$0xf]
  %v8168 = vld [vmem:[#allocation3 + $0x2c] sm:$0xf]
  %v8169 = vld [vmem:[#allocation3 + $0x30] sm:$0xf]
  %v8170 = vld [vmem:[#allocation3 + $0x34] sm:$0xf]
  %v8171 = vld [vmem:[#allocation3 + $0x38] sm:$0xf]
  %v8172 = vld [vmem:[#allocation3 + $0x3c] sm:$0xf]
  %v8173 = vld [vmem:[#allocation3 + $0x40] sm:$0xf]
  %v8174 = vld [vmem:[#allocation3 + $0x44] sm:$0xf]
  %v8175 = vld [vmem:[#allocation3 + $0x48] sm:$0xf]
  %v8176 = vld [vmem:[#allocation3 + $0x4c] sm:$0xf]
  %v8177 = vld [vmem:[#allocation3 + $0x50] sm:$0xf]
  %v8178 = vld [vmem:[#allocation3 + $0x54] sm:$0xf]
  %v8179 = vld [vmem:[#allocation3 + $0x58] sm:$0xf]
  %v8180 = vld [vmem:[#allocation3 + $0x5c] sm:$0xf]
  %v8181 = vld [vmem:[#allocation3 + $0x60] sm:$0xf]
  %v8182 = vld [vmem:[#allocation3 + $0x64] sm:$0xf]
  %v8183 = vld [vmem:[#allocation3 + $0x68] sm:$0xf]
  %v8184 = vld [vmem:[#allocation3 + $0x6c] sm:$0xf]
  %v8185 = vld [vmem:[#allocation3 + $0x70] sm:$0xf]
  %v8186 = vld [vmem:[#allocation3 + $0x74] sm:$0xf]
  %v8187 = vld [vmem:[#allocation3 + $0x78] sm:$0xf]
  %v8188 = vld [vmem:[#allocation3 + $0x7c] sm:$0xf]
  %v8189 = vld [vmem:[#allocation3 + $0x80] sm:$0xf]
  %v8190 = vld [vmem:[#allocation3 + $0x84] sm:$0xf]
  %v8191 = vld [vmem:[#allocation3 + $0x88] sm:$0xf]
  %v8192 = vld [vmem:[#allocation3 + $0x8c] sm:$0xf]
  %v8193 = vld [vmem:[#allocation3 + $0x90] sm:$0xf]
  %v8194 = vld [vmem:[#allocation3 + $0x94] sm:$0xf]
  %v8195 = vld [vmem:[#allocation3 + $0x98] sm:$0xf]
  %v8196 = vld [vmem:[#allocation3 + $0x9c] sm:$0xf]
  %v8197 = vld [vmem:[#allocation3 + $0xa0] sm:$0xf]
  %v8198 = vld [vmem:[%s4] sm:$0xf]
  %v8199 = vld [vmem:[%s4 + $0x4] sm:$0xf]
  %v8200 = vld [vmem:[%s4 + $0x8] sm:$0xf]
  %v8201 = vld [vmem:[%s4 + $0xc] sm:$0xf]
  %v8202 = vld [vmem:[%s4 + $0x10] sm:$0xf]
  %v8203 = vld [vmem:[%s4 + $0x14] sm:$0xf]
  %v8204 = vld [vmem:[%s4 + $0x18] sm:$0xf]
  %v8205 = vld [vmem:[%s4 + $0x1c] sm:$0xf]
  %v8206 = vld [vmem:[%s4 + $0x20] sm:$0xf]
  %v8207 = vld [vmem:[%s4 + $0x24] sm:$0xf]
  %v8208 = vld [vmem:[%s4 + $0x28] sm:$0xf]
  %v8209 = vld [vmem:[%s4 + $0x2c] sm:$0xf]
  %v8210 = vld [vmem:[#allocation3 + $0xa4] sm:$0xf]
  %v8211 = vld [vmem:[#allocation3 + $0xa8] sm:$0xf]
  %s8212 = scalar_lea.vmem %s4, 48
  %v8213 = vld [vmem:[%s8212] sm:$0xf]
  %v8214 = vld [vmem:[%s8212 + $0x4] sm:$0xf]
  %v8215 = vld [vmem:[%s8212 + $0x8] sm:$0xf]
  %v8216 = vld [vmem:[%s8212 + $0xc] sm:$0xf]
  %v8217 = vld [vmem:[%s8212 + $0x10] sm:$0xf]
  %v8218 = vld [vmem:[%s8212 + $0x14] sm:$0xf]
  %v8219 = vld [vmem:[%s8212 + $0x18] sm:$0xf]
  %v8220 = vld [vmem:[%s8212 + $0x1c] sm:$0xf]
  %v8221 = vld [vmem:[%s8212 + $0x20] sm:$0xf]
  %v8222 = vld [vmem:[%s8212 + $0x24] sm:$0xf]
  %v8223 = vld [vmem:[%s8212 + $0x28] sm:$0xf]
  %v8224 = vld [vmem:[%s8212 + $0x2c] sm:$0xf]
  %v8266 = vunpack.c.l.b16 %v8159
  %v8267 = vunpack.c.l.b16 %v8160
  %v8268 = vunpack.c.l.b16 %v8161
  %v8269 = vunpack.c.l.b16 %v8162
  %v8270 = vunpack.c.l.b16 %v8163
  %v8271 = vunpack.c.l.b16 %v8164
  %v8272 = vunpack.c.l.b16 %v8165
  %v8273 = vunpack.c.l.b16 %v8166
  %v8274 = vunpack.c.l.b16 %v8167
  %v8275 = vunpack.c.l.b16 %v8168
  %v8276 = vunpack.c.l.b16 %v8169
  %v8277 = vunpack.c.l.b16 %v8170
  %v8278 = vunpack.c.l.b16 %v8171
  %v8279 = vunpack.c.l.b16 %v8172
  %v8280 = vunpack.c.l.b16 %v8173
  %v8281 = vunpack.c.l.b16 %v8174
  %v8282 = vunpack.c.l.b16 %v8175
  %v8283 = vunpack.c.l.b16 %v8176
  %v8284 = vunpack.c.l.b16 %v8177
  %v8285 = vunpack.c.l.b16 %v8178
  %v8286 = vunpack.c.l.b16 %v8179
  %v8287 = vunpack.c.l.b16 %v8180
  %v8288 = vunpack.c.l.b16 %v8181
  %v8289 = vunpack.c.l.b16 %v8182
  %v8290 = vunpack.c.l.b16 %v8183
  %v8291 = vunpack.c.l.b16 %v8184
  %v8292 = vunpack.c.l.b16 %v8185
  %v8293 = vunpack.c.l.b16 %v8186
  %v8294 = vunpack.c.l.b16 %v8187
  %v8295 = vunpack.c.l.b16 %v8188
  %v8296 = vunpack.c.l.b16 %v8189
  %v8297 = vunpack.c.l.b16 %v8190
  %v8298 = vunpack.c.l.b16 %v8191
  %v8299 = vunpack.c.l.b16 %v8192
  %v8300 = vunpack.c.l.b16 %v8193
  %v8301 = vunpack.c.l.b16 %v8194
  %v8302 = vunpack.c.l.b16 %v8195
  %v8303 = vunpack.c.l.b16 %v8196
  %v8304 = vunpack.c.l.b16 %v8197
  %v8305 = vunpack.c.l.b16 %v8210
  %v8306 = vunpack.c.l.b16 %v8211
  %v8307 = vpack.c.b16 %v8267, %v8266
  %v8308 = vpack.c.b16 %v8269, %v8268
  %v8309 = vpack.c.b16 %v8271, %v8270
  %v8310 = vpack.c.b16 %v8273, %v8272
  %v8311 = vpack.c.b16 %v8275, %v8274
  %v8312 = vpack.c.b16 %v8277, %v8276
  %v8313 = vpack.c.b16 %v8279, %v8278
  %v8314 = vpack.c.b16 %v8281, %v8280
  %v8315 = vpack.c.b16 %v8283, %v8282
  %v8316 = vpack.c.b16 %v8285, %v8284
  %v8317 = vpack.c.b16 %v8287, %v8286
  %v8318 = vpack.c.b16 %v8289, %v8288
  %v8319 = vpack.c.b16 %v8291, %v8290
  %v8320 = vpack.c.b16 %v8293, %v8292
  %v8321 = vpack.c.b16 %v8295, %v8294
  %v8322 = vpack.c.b16 %v8297, %v8296
  %v8323 = vpack.c.b16 %v8299, %v8298
  %v8324 = vpack.c.b16 %v8301, %v8300
  %v8325 = vpack.c.b16 %v8303, %v8302
  %v8326 = vpack.c.b16 %v8305, %v8304
  %v8327 = vpack.c.b16 %v8306, %v8306
  %v8340 = vunpack.c.l.b16 %v8213
  %v8341 = vunpack.c.l.b16 %v8214
  %v8342 = vunpack.c.l.b16 %v8215
  %v8343 = vunpack.c.l.b16 %v8216
  %v8344 = vunpack.c.l.b16 %v8217
  %v8345 = vunpack.c.l.b16 %v8218
  %v8346 = vunpack.c.l.b16 %v8219
  %v8347 = vunpack.c.l.b16 %v8220
  %v8348 = vunpack.c.l.b16 %v8221
  %v8349 = vunpack.c.l.b16 %v8222
  %v8350 = vunpack.c.l.b16 %v8223
  %v8351 = vunpack.c.l.b16 %v8224
  %v8352 = vpack.c.b16 %v8341, %v8340
  %v8353 = vpack.c.b16 %v8343, %v8342
  %v8354 = vpack.c.b16 %v8345, %v8344
  %v8355 = vpack.c.b16 %v8347, %v8346
  %v8356 = vpack.c.b16 %v8349, %v8348
  %v8357 = vpack.c.b16 %v8351, %v8350
  %v8365 = vsel %vm1912, %v8307, 0
  %v8368 = vsel %vm1912, %v8308, 0
  %v8371 = vsel %vm1912, %v8309, 0
  %v8374 = vsel %vm1912, %v8310, 0
  %v8377 = vsel %vm1912, %v8311, 0
  %v8380 = vsel %vm1912, %v8312, 0
  %v8383 = vsel %vm1912, %v8313, 0
  %v8386 = vsel %vm1912, %v8314, 0
  %v8389 = vsel %vm1912, %v8315, 0
  %v8392 = vsel %vm1912, %v8316, 0
  %v8395 = vsel %vm1912, %v8317, 0
  %v8398 = vsel %vm1912, %v8318, 0
  %v8401 = vsel %vm1912, %v8319, 0
  %v8404 = vsel %vm1912, %v8320, 0
  %v8407 = vsel %vm1912, %v8321, 0
  %v8410 = vsel %vm1912, %v8322, 0
  %v8413 = vsel %vm1912, %v8323, 0
  %v8416 = vsel %vm1912, %v8324, 0
  %v8419 = vsel %vm1912, %v8325, 0
  %v8422 = vsel %vm1912, %v8326, 0
  %v8425 = vsel %vm1912, %v8327, 0
  %8427 = vmatpush.bf16.msra.mxu0 0
  %8428 = vmatpush.bf16.msra.mxu0 0
  %8429 = vmatpush.bf16.msra.mxu0 %v8357
  %8430 = vmatpush.bf16.msra.mxu0 %v8356
  %8431 = vmatpush.bf16.msra.mxu0 %v8355
  %8432 = vmatpush.bf16.msra.mxu0 %v8354
  %8433 = vmatpush.bf16.msra.mxu0 %v8353
  %8434 = vmatpush.bf16.msra.mxu0 %v8352
  %8435 = vmatmul.bf16.gmra.mxu0 %v8365
  %v8436 = vpop.f32.mrf.mxu0
  %v8437 = vadd.f32 0.0, %v8436
  %v8438 = vpop.f32.mrf.mxu0
  %v8439 = vadd.f32 0.0, %v8438
  %8440 = vmatmul.bf16.gmra.mxu0 %v8368
  %v8441 = vpop.f32.mrf.mxu0
  %v8442 = vadd.f32 0.0, %v8441
  %v8443 = vpop.f32.mrf.mxu0
  %v8444 = vadd.f32 0.0, %v8443
  %8445 = vmatmul.bf16.gmra.mxu0 %v8371
  %v8446 = vpop.f32.mrf.mxu0
  %v8447 = vadd.f32 0.0, %v8446
  %v8448 = vpop.f32.mrf.mxu0
  %v8449 = vadd.f32 0.0, %v8448
  %8450 = vmatmul.bf16.gmra.mxu0 %v8374
  %v8451 = vpop.f32.mrf.mxu0
  %v8452 = vadd.f32 0.0, %v8451
  %v8453 = vpop.f32.mrf.mxu0
  %v8454 = vadd.f32 0.0, %v8453
  %8455 = vmatmul.bf16.gmra.mxu0 %v8377
  %v8456 = vpop.f32.mrf.mxu0
  %v8457 = vadd.f32 0.0, %v8456
  %v8458 = vpop.f32.mrf.mxu0
  %v8459 = vadd.f32 0.0, %v8458
  %8460 = vmatmul.bf16.gmra.mxu0 %v8380
  %v8461 = vpop.f32.mrf.mxu0
  %v8462 = vadd.f32 0.0, %v8461
  %v8463 = vpop.f32.mrf.mxu0
  %v8464 = vadd.f32 0.0, %v8463
  %8465 = vmatmul.bf16.gmra.mxu0 %v8383
  %v8466 = vpop.f32.mrf.mxu0
  %v8467 = vadd.f32 0.0, %v8466
  %v8468 = vpop.f32.mrf.mxu0
  %v8469 = vadd.f32 0.0, %v8468
  %8470 = vmatmul.bf16.gmra.mxu0 %v8386
  %v8471 = vpop.f32.mrf.mxu0
  %v8472 = vadd.f32 0.0, %v8471
  %v8473 = vpop.f32.mrf.mxu0
  %v8474 = vadd.f32 0.0, %v8473
  %8475 = vmatmul.bf16.gmra.mxu0 %v8389
  %v8476 = vpop.f32.mrf.mxu0
  %v8477 = vadd.f32 0.0, %v8476
  %v8478 = vpop.f32.mrf.mxu0
  %v8479 = vadd.f32 0.0, %v8478
  %8480 = vmatmul.bf16.gmra.mxu0 %v8392
  %v8481 = vpop.f32.mrf.mxu0
  %v8482 = vadd.f32 0.0, %v8481
  %v8483 = vpop.f32.mrf.mxu0
  %v8484 = vadd.f32 0.0, %v8483
  %8485 = vmatmul.bf16.gmra.mxu0 %v8395
  %v8486 = vpop.f32.mrf.mxu0
  %v8487 = vadd.f32 0.0, %v8486
  %v8488 = vpop.f32.mrf.mxu0
  %v8489 = vadd.f32 0.0, %v8488
  %8490 = vmatmul.bf16.gmra.mxu0 %v8398
  %v8491 = vpop.f32.mrf.mxu0
  %v8492 = vadd.f32 0.0, %v8491
  %v8493 = vpop.f32.mrf.mxu0
  %v8494 = vadd.f32 0.0, %v8493
  %8495 = vmatmul.bf16.gmra.mxu0 %v8401
  %v8496 = vpop.f32.mrf.mxu0
  %v8497 = vadd.f32 0.0, %v8496
  %v8498 = vpop.f32.mrf.mxu0
  %v8499 = vadd.f32 0.0, %v8498
  %8500 = vmatmul.bf16.gmra.mxu0 %v8404
  %v8501 = vpop.f32.mrf.mxu0
  %v8502 = vadd.f32 0.0, %v8501
  %v8503 = vpop.f32.mrf.mxu0
  %v8504 = vadd.f32 0.0, %v8503
  %8505 = vmatmul.bf16.gmra.mxu0 %v8407
  %v8506 = vpop.f32.mrf.mxu0
  %v8507 = vadd.f32 0.0, %v8506
  %v8508 = vpop.f32.mrf.mxu0
  %v8509 = vadd.f32 0.0, %v8508
  %8510 = vmatmul.bf16.gmra.mxu0 %v8410
  %v8511 = vpop.f32.mrf.mxu0
  %v8512 = vadd.f32 0.0, %v8511
  %v8513 = vpop.f32.mrf.mxu0
  %v8514 = vadd.f32 0.0, %v8513
  %8515 = vmatmul.bf16.gmra.mxu0 %v8413
  %v8516 = vpop.f32.mrf.mxu0
  %v8517 = vadd.f32 0.0, %v8516
  %v8518 = vpop.f32.mrf.mxu0
  %v8519 = vadd.f32 0.0, %v8518
  %8520 = vmatmul.bf16.gmra.mxu0 %v8416
  %v8521 = vpop.f32.mrf.mxu0
  %v8522 = vadd.f32 0.0, %v8521
  %v8523 = vpop.f32.mrf.mxu0
  %v8524 = vadd.f32 0.0, %v8523
  %8525 = vmatmul.bf16.gmra.mxu0 %v8419
  %v8526 = vpop.f32.mrf.mxu0
  %v8527 = vadd.f32 0.0, %v8526
  %v8528 = vpop.f32.mrf.mxu0
  %v8529 = vadd.f32 0.0, %v8528
  %8530 = vmatmul.bf16.gmra.mxu0 %v8422
  %v8531 = vpop.f32.mrf.mxu0
  %v8532 = vadd.f32 0.0, %v8531
  %v8533 = vpop.f32.mrf.mxu0
  %v8534 = vadd.f32 0.0, %v8533
  %8535 = vmatmul.bf16.gmra.mxu0 %v8425
  %v8536 = vpop.f32.mrf.mxu0
  %v8537 = vadd.f32 0.0, %v8536
  %v8538 = vpop.f32.mrf.mxu0
  %8539 = vdwg.mxu0
  %v8542 = vunpack.c.l.b16 %v8157
  %v8543 = vunpack.c.l.b16 %v8158
  %v8544 = vpack.c.b16 %v8543, %v8542
  %v8545 = vpack.c.b16 %v8304, %v8304
  %v8558 = vunpack.c.l.b16 %v8198
  %v8559 = vunpack.c.l.b16 %v8199
  %v8560 = vunpack.c.l.b16 %v8200
  %v8561 = vunpack.c.l.b16 %v8201
  %v8562 = vunpack.c.l.b16 %v8202
  %v8563 = vunpack.c.l.b16 %v8203
  %v8564 = vunpack.c.l.b16 %v8204
  %v8565 = vunpack.c.l.b16 %v8205
  %v8566 = vunpack.c.l.b16 %v8206
  %v8567 = vunpack.c.l.b16 %v8207
  %v8568 = vunpack.c.l.b16 %v8208
  %v8569 = vunpack.c.l.b16 %v8209
  %v8570 = vpack.c.b16 %v8559, %v8558
  %v8571 = vpack.c.b16 %v8561, %v8560
  %v8572 = vpack.c.b16 %v8563, %v8562
  %v8573 = vpack.c.b16 %v8565, %v8564
  %v8574 = vpack.c.b16 %v8567, %v8566
  %v8575 = vpack.c.b16 %v8569, %v8568
  %v8583 = vsel %vm1912, %v8544, 0
  %v8586 = vsel %vm1912, %v8545, 0
  %8588 = vmatpush.bf16.msra.mxu0 0
  %8589 = vmatpush.bf16.msra.mxu0 0
  %8590 = vmatpush.bf16.msra.mxu0 %v8575
  %8591 = vmatpush.bf16.msra.mxu0 %v8574
  %8592 = vmatpush.bf16.msra.mxu0 %v8573
  %8593 = vmatpush.bf16.msra.mxu0 %v8572
  %8594 = vmatpush.bf16.msra.mxu0 %v8571
  %8595 = vmatpush.bf16.msra.mxu0 %v8570
  %8596 = vmatmul.bf16.gmra.mxu0 %v8583
  %v8597 = vpop.f32.mrf.mxu0
  %v8598 = vadd.f32 %v8437, %v8597
  %v8599 = vpop.f32.mrf.mxu0
  %v8600 = vadd.f32 %v8439, %v8599
  %8601 = vmatmul.bf16.gmra.mxu0 %v8365
  %v8602 = vpop.f32.mrf.mxu0
  %v8603 = vadd.f32 %v8442, %v8602
  %v8604 = vpop.f32.mrf.mxu0
  %v8605 = vadd.f32 %v8444, %v8604
  %8606 = vmatmul.bf16.gmra.mxu0 %v8368
  %v8607 = vpop.f32.mrf.mxu0
  %v8608 = vadd.f32 %v8447, %v8607
  %v8609 = vpop.f32.mrf.mxu0
  %v8610 = vadd.f32 %v8449, %v8609
  %8611 = vmatmul.bf16.gmra.mxu0 %v8371
  %v8612 = vpop.f32.mrf.mxu0
  %v8613 = vadd.f32 %v8452, %v8612
  %v8614 = vpop.f32.mrf.mxu0
  %v8615 = vadd.f32 %v8454, %v8614
  %8616 = vmatmul.bf16.gmra.mxu0 %v8374
  %v8617 = vpop.f32.mrf.mxu0
  %v8618 = vadd.f32 %v8457, %v8617
  %v8619 = vpop.f32.mrf.mxu0
  %v8620 = vadd.f32 %v8459, %v8619
  %8621 = vmatmul.bf16.gmra.mxu0 %v8377
  %v8622 = vpop.f32.mrf.mxu0
  %v8623 = vadd.f32 %v8462, %v8622
  %v8624 = vpop.f32.mrf.mxu0
  %v8625 = vadd.f32 %v8464, %v8624
  %8626 = vmatmul.bf16.gmra.mxu0 %v8380
  %v8627 = vpop.f32.mrf.mxu0
  %v8628 = vadd.f32 %v8467, %v8627
  %v8629 = vpop.f32.mrf.mxu0
  %v8630 = vadd.f32 %v8469, %v8629
  %8631 = vmatmul.bf16.gmra.mxu0 %v8383
  %v8632 = vpop.f32.mrf.mxu0
  %v8633 = vadd.f32 %v8472, %v8632
  %v8634 = vpop.f32.mrf.mxu0
  %v8635 = vadd.f32 %v8474, %v8634
  %8636 = vmatmul.bf16.gmra.mxu0 %v8386
  %v8637 = vpop.f32.mrf.mxu0
  %v8638 = vadd.f32 %v8477, %v8637
  %v8639 = vpop.f32.mrf.mxu0
  %v8640 = vadd.f32 %v8479, %v8639
  %8641 = vmatmul.bf16.gmra.mxu0 %v8389
  %v8642 = vpop.f32.mrf.mxu0
  %v8643 = vadd.f32 %v8482, %v8642
  %v8644 = vpop.f32.mrf.mxu0
  %v8645 = vadd.f32 %v8484, %v8644
  %8646 = vmatmul.bf16.gmra.mxu0 %v8392
  %v8647 = vpop.f32.mrf.mxu0
  %v8648 = vadd.f32 %v8487, %v8647
  %v8649 = vpop.f32.mrf.mxu0
  %v8650 = vadd.f32 %v8489, %v8649
  %8651 = vmatmul.bf16.gmra.mxu0 %v8395
  %v8652 = vpop.f32.mrf.mxu0
  %v8653 = vadd.f32 %v8492, %v8652
  %v8654 = vpop.f32.mrf.mxu0
  %v8655 = vadd.f32 %v8494, %v8654
  %8656 = vmatmul.bf16.gmra.mxu0 %v8398
  %v8657 = vpop.f32.mrf.mxu0
  %v8658 = vadd.f32 %v8497, %v8657
  %v8659 = vpop.f32.mrf.mxu0
  %v8660 = vadd.f32 %v8499, %v8659
  %8661 = vmatmul.bf16.gmra.mxu0 %v8401
  %v8662 = vpop.f32.mrf.mxu0
  %v8663 = vadd.f32 %v8502, %v8662
  %v8664 = vpop.f32.mrf.mxu0
  %v8665 = vadd.f32 %v8504, %v8664
  %8666 = vmatmul.bf16.gmra.mxu0 %v8404
  %v8667 = vpop.f32.mrf.mxu0
  %v8668 = vadd.f32 %v8507, %v8667
  %v8669 = vpop.f32.mrf.mxu0
  %v8670 = vadd.f32 %v8509, %v8669
  %8671 = vmatmul.bf16.gmra.mxu0 %v8407
  %v8672 = vpop.f32.mrf.mxu0
  %v8673 = vadd.f32 %v8512, %v8672
  %v8674 = vpop.f32.mrf.mxu0
  %v8675 = vadd.f32 %v8514, %v8674
  %8676 = vmatmul.bf16.gmra.mxu0 %v8410
  %v8677 = vpop.f32.mrf.mxu0
  %v8678 = vadd.f32 %v8517, %v8677
  %v8679 = vpop.f32.mrf.mxu0
  %v8680 = vadd.f32 %v8519, %v8679
  %8681 = vmatmul.bf16.gmra.mxu0 %v8413
  %v8682 = vpop.f32.mrf.mxu0
  %v8683 = vadd.f32 %v8522, %v8682
  %v8684 = vpop.f32.mrf.mxu0
  %v8685 = vadd.f32 %v8524, %v8684
  %8686 = vmatmul.bf16.gmra.mxu0 %v8416
  %v8687 = vpop.f32.mrf.mxu0
  %v8688 = vadd.f32 %v8527, %v8687
  %v8689 = vpop.f32.mrf.mxu0
  %v8690 = vadd.f32 %v8529, %v8689
  %8691 = vmatmul.bf16.gmra.mxu0 %v8419
  %v8692 = vpop.f32.mrf.mxu0
  %v8693 = vadd.f32 %v8532, %v8692
  %v8694 = vpop.f32.mrf.mxu0
  %v8695 = vadd.f32 %v8534, %v8694
  %8696 = vmatmul.bf16.gmra.mxu0 %v8586
  %v8697 = vpop.f32.mrf.mxu0
  %v8698 = vadd.f32 %v8537, %v8697
  %v8699 = vpop.f32.mrf.mxu0
  %8700 = vdwg.mxu0
  %v8701 = vld [vmem:[#allocation3 + $0x10] sm:$0xf]
  %v8702 = vld [vmem:[#allocation3 + $0x14] sm:$0xf]
  %v8703 = vld [vmem:[#allocation3 + $0x18] sm:$0xf]
  %v8704 = vld [vmem:[#allocation3 + $0x1c] sm:$0xf]
  %v8705 = vld [vmem:[#allocation3 + $0x20] sm:$0xf]
  %v8706 = vld [vmem:[#allocation3 + $0x24] sm:$0xf]
  %v8707 = vld [vmem:[#allocation3 + $0x28] sm:$0xf]
  %v8708 = vld [vmem:[#allocation3 + $0x2c] sm:$0xf]
  %v8709 = vld [vmem:[#allocation3 + $0x30] sm:$0xf]
  %v8710 = vld [vmem:[#allocation3 + $0x34] sm:$0xf]
  %v8711 = vld [vmem:[#allocation3 + $0x38] sm:$0xf]
  %v8712 = vld [vmem:[#allocation3 + $0x3c] sm:$0xf]
  %v8713 = vld [vmem:[#allocation3 + $0x40] sm:$0xf]
  %v8714 = vld [vmem:[#allocation3 + $0x44] sm:$0xf]
  %v8715 = vld [vmem:[#allocation3 + $0x48] sm:$0xf]
  %v8716 = vld [vmem:[#allocation3 + $0x4c] sm:$0xf]
  %v8717 = vld [vmem:[#allocation3 + $0x50] sm:$0xf]
  %v8718 = vld [vmem:[#allocation3 + $0x54] sm:$0xf]
  %v8719 = vld [vmem:[#allocation3 + $0x58] sm:$0xf]
  %v8720 = vld [vmem:[#allocation3 + $0x5c] sm:$0xf]
  %v8721 = vld [vmem:[#allocation3 + $0x60] sm:$0xf]
  %v8722 = vld [vmem:[#allocation3 + $0x64] sm:$0xf]
  %v8723 = vld [vmem:[#allocation3 + $0x68] sm:$0xf]
  %v8724 = vld [vmem:[#allocation3 + $0x6c] sm:$0xf]
  %v8725 = vld [vmem:[#allocation3 + $0x70] sm:$0xf]
  %v8726 = vld [vmem:[#allocation3 + $0x74] sm:$0xf]
  %v8727 = vld [vmem:[#allocation3 + $0x78] sm:$0xf]
  %v8728 = vld [vmem:[#allocation3 + $0x7c] sm:$0xf]
  %v8729 = vld [vmem:[#allocation3 + $0x80] sm:$0xf]
  %v8730 = vld [vmem:[#allocation3 + $0x84] sm:$0xf]
  %v8731 = vld [vmem:[#allocation3 + $0x88] sm:$0xf]
  %v8732 = vld [vmem:[#allocation3 + $0x8c] sm:$0xf]
  %v8733 = vld [vmem:[#allocation3 + $0x90] sm:$0xf]
  %v8734 = vld [vmem:[#allocation3 + $0x94] sm:$0xf]
  %v8735 = vld [vmem:[#allocation3 + $0x98] sm:$0xf]
  %v8736 = vld [vmem:[#allocation3 + $0x9c] sm:$0xf]
  %v8737 = vld [vmem:[#allocation3 + $0xa0] sm:$0xf]
  %v8738 = vld [vmem:[#allocation3 + $0xa4] sm:$0xf]
  %v8739 = vld [vmem:[#allocation3 + $0xa8] sm:$0xf]
  %v8740 = vld [vmem:[#allocation3 + $0xac] sm:$0xf]
  %v8741 = vld [vmem:[#allocation3 + $0xb0] sm:$0xf]
  %s8742 = scalar_lea.vmem %s4, 96
  %v8743 = vld [vmem:[%s8742] sm:$0xf]
  %v8744 = vld [vmem:[%s8742 + $0x4] sm:$0xf]
  %v8745 = vld [vmem:[%s8742 + $0x8] sm:$0xf]
  %v8746 = vld [vmem:[%s8742 + $0xc] sm:$0xf]
  %v8747 = vld [vmem:[%s8742 + $0x10] sm:$0xf]
  %v8748 = vld [vmem:[%s8742 + $0x14] sm:$0xf]
  %v8749 = vld [vmem:[%s8742 + $0x18] sm:$0xf]
  %v8750 = vld [vmem:[%s8742 + $0x1c] sm:$0xf]
  %v8751 = vld [vmem:[%s8742 + $0x20] sm:$0xf]
  %v8752 = vld [vmem:[%s8742 + $0x24] sm:$0xf]
  %v8753 = vld [vmem:[%s8742 + $0x28] sm:$0xf]
  %v8754 = vld [vmem:[%s8742 + $0x2c] sm:$0xf]
  %v8796 = vunpack.c.l.b16 %v8701
  %v8797 = vunpack.c.l.b16 %v8702
  %v8798 = vunpack.c.l.b16 %v8703
  %v8799 = vunpack.c.l.b16 %v8704
  %v8800 = vunpack.c.l.b16 %v8705
  %v8801 = vunpack.c.l.b16 %v8706
  %v8802 = vunpack.c.l.b16 %v8707
  %v8803 = vunpack.c.l.b16 %v8708
  %v8804 = vunpack.c.l.b16 %v8709
  %v8805 = vunpack.c.l.b16 %v8710
  %v8806 = vunpack.c.l.b16 %v8711
  %v8807 = vunpack.c.l.b16 %v8712
  %v8808 = vunpack.c.l.b16 %v8713
  %v8809 = vunpack.c.l.b16 %v8714
  %v8810 = vunpack.c.l.b16 %v8715
  %v8811 = vunpack.c.l.b16 %v8716
  %v8812 = vunpack.c.l.b16 %v8717
  %v8813 = vunpack.c.l.b16 %v8718
  %v8814 = vunpack.c.l.b16 %v8719
  %v8815 = vunpack.c.l.b16 %v8720
  %v8816 = vunpack.c.l.b16 %v8721
  %v8817 = vunpack.c.l.b16 %v8722
  %v8818 = vunpack.c.l.b16 %v8723
  %v8819 = vunpack.c.l.b16 %v8724
  %v8820 = vunpack.c.l.b16 %v8725
  %v8821 = vunpack.c.l.b16 %v8726
  %v8822 = vunpack.c.l.b16 %v8727
  %v8823 = vunpack.c.l.b16 %v8728
  %v8824 = vunpack.c.l.b16 %v8729
  %v8825 = vunpack.c.l.b16 %v8730
  %v8826 = vunpack.c.l.b16 %v8731
  %v8827 = vunpack.c.l.b16 %v8732
  %v8828 = vunpack.c.l.b16 %v8733
  %v8829 = vunpack.c.l.b16 %v8734
  %v8830 = vunpack.c.l.b16 %v8735
  %v8831 = vunpack.c.l.b16 %v8736
  %v8832 = vunpack.c.l.b16 %v8737
  %v8833 = vunpack.c.l.b16 %v8738
  %v8834 = vunpack.c.l.b16 %v8739
  %v8835 = vunpack.c.l.b16 %v8740
  %v8836 = vunpack.c.l.b16 %v8741
  %v8837 = vpack.c.b16 %v8797, %v8796
  %v8838 = vpack.c.b16 %v8799, %v8798
  %v8839 = vpack.c.b16 %v8801, %v8800
  %v8840 = vpack.c.b16 %v8803, %v8802
  %v8841 = vpack.c.b16 %v8805, %v8804
  %v8842 = vpack.c.b16 %v8807, %v8806
  %v8843 = vpack.c.b16 %v8809, %v8808
  %v8844 = vpack.c.b16 %v8811, %v8810
  %v8845 = vpack.c.b16 %v8813, %v8812
  %v8846 = vpack.c.b16 %v8815, %v8814
  %v8847 = vpack.c.b16 %v8817, %v8816
  %v8848 = vpack.c.b16 %v8819, %v8818
  %v8849 = vpack.c.b16 %v8821, %v8820
  %v8850 = vpack.c.b16 %v8823, %v8822
  %v8851 = vpack.c.b16 %v8825, %v8824
  %v8852 = vpack.c.b16 %v8827, %v8826
  %v8853 = vpack.c.b16 %v8829, %v8828
  %v8854 = vpack.c.b16 %v8831, %v8830
  %v8855 = vpack.c.b16 %v8833, %v8832
  %v8856 = vpack.c.b16 %v8835, %v8834
  %v8857 = vpack.c.b16 %v8836, %v8836
  %v8870 = vunpack.c.l.b16 %v8743
  %v8871 = vunpack.c.l.b16 %v8744
  %v8872 = vunpack.c.l.b16 %v8745
  %v8873 = vunpack.c.l.b16 %v8746
  %v8874 = vunpack.c.l.b16 %v8747
  %v8875 = vunpack.c.l.b16 %v8748
  %v8876 = vunpack.c.l.b16 %v8749
  %v8877 = vunpack.c.l.b16 %v8750
  %v8878 = vunpack.c.l.b16 %v8751
  %v8879 = vunpack.c.l.b16 %v8752
  %v8880 = vunpack.c.l.b16 %v8753
  %v8881 = vunpack.c.l.b16 %v8754
  %v8882 = vpack.c.b16 %v8871, %v8870
  %v8883 = vpack.c.b16 %v8873, %v8872
  %v8884 = vpack.c.b16 %v8875, %v8874
  %v8885 = vpack.c.b16 %v8877, %v8876
  %v8886 = vpack.c.b16 %v8879, %v8878
  %v8887 = vpack.c.b16 %v8881, %v8880
  %v8895 = vsel %vm1912, %v8837, 0
  %v8898 = vsel %vm1912, %v8838, 0
  %v8901 = vsel %vm1912, %v8839, 0
  %v8904 = vsel %vm1912, %v8840, 0
  %v8907 = vsel %vm1912, %v8841, 0
  %v8910 = vsel %vm1912, %v8842, 0
  %v8913 = vsel %vm1912, %v8843, 0
  %v8916 = vsel %vm1912, %v8844, 0
  %v8919 = vsel %vm1912, %v8845, 0
  %v8922 = vsel %vm1912, %v8846, 0
  %v8925 = vsel %vm1912, %v8847, 0
  %v8928 = vsel %vm1912, %v8848, 0
  %v8931 = vsel %vm1912, %v8849, 0
  %v8934 = vsel %vm1912, %v8850, 0
  %v8937 = vsel %vm1912, %v8851, 0
  %v8940 = vsel %vm1912, %v8852, 0
  %v8943 = vsel %vm1912, %v8853, 0
  %v8946 = vsel %vm1912, %v8854, 0
  %v8949 = vsel %vm1912, %v8855, 0
  %v8952 = vsel %vm1912, %v8856, 0
  %v8955 = vsel %vm1912, %v8857, 0
  %8957 = vmatpush.bf16.msra.mxu0 0
  %8958 = vmatpush.bf16.msra.mxu0 0
  %8959 = vmatpush.bf16.msra.mxu0 %v8887
  %8960 = vmatpush.bf16.msra.mxu0 %v8886
  %8961 = vmatpush.bf16.msra.mxu0 %v8885
  %8962 = vmatpush.bf16.msra.mxu0 %v8884
  %8963 = vmatpush.bf16.msra.mxu0 %v8883
  %8964 = vmatpush.bf16.msra.mxu0 %v8882
  %8965 = vmatmul.bf16.gmra.mxu0 %v8895
  %v8966 = vpop.f32.mrf.mxu0
  %v8967 = vadd.f32 0.0, %v8966
  %v8968 = vpop.f32.mrf.mxu0
  %v8969 = vadd.f32 0.0, %v8968
  %8970 = vmatmul.bf16.gmra.mxu0 %v8898
  %v8971 = vpop.f32.mrf.mxu0
  %v8972 = vadd.f32 0.0, %v8971
  %v8973 = vpop.f32.mrf.mxu0
  %v8974 = vadd.f32 0.0, %v8973
  %8975 = vmatmul.bf16.gmra.mxu0 %v8901
  %v8976 = vpop.f32.mrf.mxu0
  %v8977 = vadd.f32 0.0, %v8976
  %v8978 = vpop.f32.mrf.mxu0
  %v8979 = vadd.f32 0.0, %v8978
  %8980 = vmatmul.bf16.gmra.mxu0 %v8904
  %v8981 = vpop.f32.mrf.mxu0
  %v8982 = vadd.f32 0.0, %v8981
  %v8983 = vpop.f32.mrf.mxu0
  %v8984 = vadd.f32 0.0, %v8983
  %8985 = vmatmul.bf16.gmra.mxu0 %v8907
  %v8986 = vpop.f32.mrf.mxu0
  %v8987 = vadd.f32 0.0, %v8986
  %v8988 = vpop.f32.mrf.mxu0
  %v8989 = vadd.f32 0.0, %v8988
  %8990 = vmatmul.bf16.gmra.mxu0 %v8910
  %v8991 = vpop.f32.mrf.mxu0
  %v8992 = vadd.f32 0.0, %v8991
  %v8993 = vpop.f32.mrf.mxu0
  %v8994 = vadd.f32 0.0, %v8993
  %8995 = vmatmul.bf16.gmra.mxu0 %v8913
  %v8996 = vpop.f32.mrf.mxu0
  %v8997 = vadd.f32 0.0, %v8996
  %v8998 = vpop.f32.mrf.mxu0
  %v8999 = vadd.f32 0.0, %v8998
  %9000 = vmatmul.bf16.gmra.mxu0 %v8916
  %v9001 = vpop.f32.mrf.mxu0
  %v9002 = vadd.f32 0.0, %v9001
  %v9003 = vpop.f32.mrf.mxu0
  %v9004 = vadd.f32 0.0, %v9003
  %9005 = vmatmul.bf16.gmra.mxu0 %v8919
  %v9006 = vpop.f32.mrf.mxu0
  %v9007 = vadd.f32 0.0, %v9006
  %v9008 = vpop.f32.mrf.mxu0
  %v9009 = vadd.f32 0.0, %v9008
  %9010 = vmatmul.bf16.gmra.mxu0 %v8922
  %v9011 = vpop.f32.mrf.mxu0
  %v9012 = vadd.f32 0.0, %v9011
  %v9013 = vpop.f32.mrf.mxu0
  %v9014 = vadd.f32 0.0, %v9013
  %9015 = vmatmul.bf16.gmra.mxu0 %v8925
  %v9016 = vpop.f32.mrf.mxu0
  %v9017 = vadd.f32 0.0, %v9016
  %v9018 = vpop.f32.mrf.mxu0
  %v9019 = vadd.f32 0.0, %v9018
  %9020 = vmatmul.bf16.gmra.mxu0 %v8928
  %v9021 = vpop.f32.mrf.mxu0
  %v9022 = vadd.f32 0.0, %v9021
  %v9023 = vpop.f32.mrf.mxu0
  %v9024 = vadd.f32 0.0, %v9023
  %9025 = vmatmul.bf16.gmra.mxu0 %v8931
  %v9026 = vpop.f32.mrf.mxu0
  %v9027 = vadd.f32 0.0, %v9026
  %v9028 = vpop.f32.mrf.mxu0
  %v9029 = vadd.f32 0.0, %v9028
  %9030 = vmatmul.bf16.gmra.mxu0 %v8934
  %v9031 = vpop.f32.mrf.mxu0
  %v9032 = vadd.f32 0.0, %v9031
  %v9033 = vpop.f32.mrf.mxu0
  %v9034 = vadd.f32 0.0, %v9033
  %9035 = vmatmul.bf16.gmra.mxu0 %v8937
  %v9036 = vpop.f32.mrf.mxu0
  %v9037 = vadd.f32 0.0, %v9036
  %v9038 = vpop.f32.mrf.mxu0
  %v9039 = vadd.f32 0.0, %v9038
  %9040 = vmatmul.bf16.gmra.mxu0 %v8940
  %v9041 = vpop.f32.mrf.mxu0
  %v9042 = vadd.f32 0.0, %v9041
  %v9043 = vpop.f32.mrf.mxu0
  %v9044 = vadd.f32 0.0, %v9043
  %9045 = vmatmul.bf16.gmra.mxu0 %v8943
  %v9046 = vpop.f32.mrf.mxu0
  %v9047 = vadd.f32 0.0, %v9046
  %v9048 = vpop.f32.mrf.mxu0
  %v9049 = vadd.f32 0.0, %v9048
  %9050 = vmatmul.bf16.gmra.mxu0 %v8946
  %v9051 = vpop.f32.mrf.mxu0
  %v9052 = vadd.f32 0.0, %v9051
  %v9053 = vpop.f32.mrf.mxu0
  %v9054 = vadd.f32 0.0, %v9053
  %9055 = vmatmul.bf16.gmra.mxu0 %v8949
  %v9056 = vpop.f32.mrf.mxu0
  %v9057 = vadd.f32 0.0, %v9056
  %v9058 = vpop.f32.mrf.mxu0
  %v9059 = vadd.f32 0.0, %v9058
  %9060 = vmatmul.bf16.gmra.mxu0 %v8952
  %v9061 = vpop.f32.mrf.mxu0
  %v9062 = vadd.f32 0.0, %v9061
  %v9063 = vpop.f32.mrf.mxu0
  %v9064 = vadd.f32 0.0, %v9063
  %9065 = vmatmul.bf16.gmra.mxu0 %v8955
  %v9066 = vpop.f32.mrf.mxu0
  %v9067 = vadd.f32 0.0, %v9066
  %v9068 = vpop.f32.mrf.mxu0
  %9069 = vdwg.mxu0
  %v9070 = vadd.f32 %v8598, %v8967
  %v9071 = vadd.f32 %v8600, %v8969
  %v9072 = vadd.f32 %v8603, %v8972
  %v9073 = vadd.f32 %v8605, %v8974
  %v9074 = vadd.f32 %v8608, %v8977
  %v9075 = vadd.f32 %v8610, %v8979
  %v9076 = vadd.f32 %v8613, %v8982
  %v9077 = vadd.f32 %v8615, %v8984
  %v9078 = vadd.f32 %v8618, %v8987
  %v9079 = vadd.f32 %v8620, %v8989
  %v9080 = vadd.f32 %v8623, %v8992
  %v9081 = vadd.f32 %v8625, %v8994
  %v9082 = vadd.f32 %v8628, %v8997
  %v9083 = vadd.f32 %v8630, %v8999
  %v9084 = vadd.f32 %v8633, %v9002
  %v9085 = vadd.f32 %v8635, %v9004
  %v9086 = vadd.f32 %v8638, %v9007
  %v9087 = vadd.f32 %v8640, %v9009
  %v9088 = vadd.f32 %v8643, %v9012
  %v9089 = vadd.f32 %v8645, %v9014
  %v9090 = vadd.f32 %v8648, %v9017
  %v9091 = vadd.f32 %v8650, %v9019
  %v9092 = vadd.f32 %v8653, %v9022
  %v9093 = vadd.f32 %v8655, %v9024
  %v9094 = vadd.f32 %v8658, %v9027
  %v9095 = vadd.f32 %v8660, %v9029
  %v9096 = vadd.f32 %v8663, %v9032
  %v9097 = vadd.f32 %v8665, %v9034
  %v9098 = vadd.f32 %v8668, %v9037
  %v9099 = vadd.f32 %v8670, %v9039
  %v9100 = vadd.f32 %v8673, %v9042
  %v9101 = vadd.f32 %v8675, %v9044
  %v9102 = vadd.f32 %v8678, %v9047
  %v9103 = vadd.f32 %v8680, %v9049
  %v9104 = vadd.f32 %v8683, %v9052
  %v9105 = vadd.f32 %v8685, %v9054
  %v9106 = vadd.f32 %v8688, %v9057
  %v9107 = vadd.f32 %v8690, %v9059
  %v9108 = vadd.f32 %v8693, %v9062
  %v9109 = vadd.f32 %v8695, %v9064
  %v9110 = vadd.f32 %v8698, %v9067
  %v9111 = vld [vmem:[%s5 + $0x4] sm:$0x1]
  %v9112 = vperm.slane %v9111, 0
  %v9113 = vadd.f32 %v9070, %v9112
  %v9114 = vadd.f32 %v9071, %v9112
  %v9115 = vadd.f32 %v9072, %v9112
  %v9116 = vadd.f32 %v9073, %v9112
  %v9117 = vadd.f32 %v9074, %v9112
  %v9118 = vadd.f32 %v9075, %v9112
  %v9119 = vadd.f32 %v9076, %v9112
  %v9120 = vadd.f32 %v9077, %v9112
  %v9121 = vadd.f32 %v9078, %v9112
  %v9122 = vadd.f32 %v9079, %v9112
  %v9123 = vadd.f32 %v9080, %v9112
  %v9124 = vadd.f32 %v9081, %v9112
  %v9125 = vadd.f32 %v9082, %v9112
  %v9126 = vadd.f32 %v9083, %v9112
  %v9127 = vadd.f32 %v9084, %v9112
  %v9128 = vadd.f32 %v9085, %v9112
  %v9129 = vadd.f32 %v9086, %v9112
  %v9130 = vadd.f32 %v9087, %v9112
  %v9131 = vadd.f32 %v9088, %v9112
  %v9132 = vadd.f32 %v9089, %v9112
  %v9133 = vadd.f32 %v9090, %v9112
  %v9134 = vadd.f32 %v9091, %v9112
  %v9135 = vadd.f32 %v9092, %v9112
  %v9136 = vadd.f32 %v9093, %v9112
  %v9137 = vadd.f32 %v9094, %v9112
  %v9138 = vadd.f32 %v9095, %v9112
  %v9139 = vadd.f32 %v9096, %v9112
  %v9140 = vadd.f32 %v9097, %v9112
  %v9141 = vadd.f32 %v9098, %v9112
  %v9142 = vadd.f32 %v9099, %v9112
  %v9143 = vadd.f32 %v9100, %v9112
  %v9144 = vadd.f32 %v9101, %v9112
  %v9145 = vadd.f32 %v9102, %v9112
  %v9146 = vadd.f32 %v9103, %v9112
  %v9147 = vadd.f32 %v9104, %v9112
  %v9148 = vadd.f32 %v9105, %v9112
  %v9149 = vadd.f32 %v9106, %v9112
  %v9150 = vadd.f32 %v9107, %v9112
  %v9151 = vadd.f32 %v9108, %v9112
  %v9152 = vadd.f32 %v9109, %v9112
  %v9153 = vadd.f32 %v9110, %v9112
  %v9154 = vtanh.pop %v9113
  %v9155 = vtanh.pop %v9114
  %v9156 = vtanh.pop %v9115
  %v9157 = vtanh.pop %v9116
  %v9158 = vtanh.pop %v9117
  %v9159 = vtanh.pop %v9118
  %v9160 = vtanh.pop %v9119
  %v9161 = vtanh.pop %v9120
  %v9162 = vtanh.pop %v9121
  %v9163 = vtanh.pop %v9122
  %v9164 = vtanh.pop %v9123
  %v9165 = vtanh.pop %v9124
  %v9166 = vtanh.pop %v9125
  %v9167 = vtanh.pop %v9126
  %v9168 = vtanh.pop %v9127
  %v9169 = vtanh.pop %v9128
  %v9170 = vtanh.pop %v9129
  %v9171 = vtanh.pop %v9130
  %v9172 = vtanh.pop %v9131
  %v9173 = vtanh.pop %v9132
  %v9174 = vtanh.pop %v9133
  %v9175 = vtanh.pop %v9134
  %v9176 = vtanh.pop %v9135
  %v9177 = vtanh.pop %v9136
  %v9178 = vtanh.pop %v9137
  %v9179 = vtanh.pop %v9138
  %v9180 = vtanh.pop %v9139
  %v9181 = vtanh.pop %v9140
  %v9182 = vtanh.pop %v9141
  %v9183 = vtanh.pop %v9142
  %v9184 = vtanh.pop %v9143
  %v9185 = vtanh.pop %v9144
  %v9186 = vtanh.pop %v9145
  %v9187 = vtanh.pop %v9146
  %v9188 = vtanh.pop %v9147
  %v9189 = vtanh.pop %v9148
  %v9190 = vtanh.pop %v9149
  %v9191 = vtanh.pop %v9150
  %v9192 = vtanh.pop %v9151
  %v9193 = vtanh.pop %v9152
  %v9194 = vtanh.pop %v9153
  %v9195 = vld [vmem:[%s1] sm:$0xff]
  %v9196 = vld [vmem:[%s1 + $0x8] sm:$0xff]
  %v9197 = vld [vmem:[%s1 + $0x10] sm:$0xff]
  %v9198 = vld [vmem:[%s1 + $0x18] sm:$0xff]
  %v9199 = vld [vmem:[%s1 + $0x20] sm:$0xff]
  %v9200 = vld [vmem:[%s1 + $0x28] sm:$0xff]
  %v9201 = vld [vmem:[%s1 + $0x30] sm:$0xff]
  %v9202 = vld [vmem:[%s1 + $0x38] sm:$0xff]
  %v9203 = vld [vmem:[%s1 + $0x40] sm:$0xff]
  %v9204 = vld [vmem:[%s1 + $0x48] sm:$0xff]
  %v9205 = vld [vmem:[%s1 + $0x50] sm:$0xff]
  %v9206 = vld [vmem:[%s1 + $0x58] sm:$0xff]
  %v9207 = vld [vmem:[%s1 + $0x60] sm:$0xff]
  %v9208 = vld [vmem:[%s1 + $0x68] sm:$0xff]
  %v9209 = vld [vmem:[%s1 + $0x70] sm:$0xff]
  %v9210 = vld [vmem:[%s1 + $0x78] sm:$0xff]
  %v9211 = vld [vmem:[%s1 + $0x80] sm:$0xff]
  %v9212 = vld [vmem:[%s1 + $0x88] sm:$0xff]
  %v9213 = vld [vmem:[%s1 + $0x90] sm:$0xff]
  %v9214 = vld [vmem:[%s1 + $0x98] sm:$0xff]
  %v9215 = vld [vmem:[%s1 + $0xa0] sm:$0xff]
  %v9216 = vld [vmem:[%s1 + $0xa8] sm:$0xff]
  %v9217 = vld [vmem:[%s1 + $0xb0] sm:$0xff]
  %v9218 = vld [vmem:[%s1 + $0xb8] sm:$0xff]
  %v9219 = vld [vmem:[%s1 + $0xc0] sm:$0xff]
  %v9220 = vld [vmem:[%s1 + $0xc8] sm:$0xff]
  %v9221 = vld [vmem:[%s1 + $0xd0] sm:$0xff]
  %v9222 = vld [vmem:[%s1 + $0xd8] sm:$0xff]
  %v9223 = vld [vmem:[%s1 + $0xe0] sm:$0xff]
  %v9224 = vld [vmem:[%s1 + $0xe8] sm:$0xff]
  %v9225 = vld [vmem:[%s1 + $0xf0] sm:$0xff]
  %v9226 = vld [vmem:[%s1 + $0xf8] sm:$0xff]
  %v9227 = vld [vmem:[%s1 + $0x100] sm:$0xff]
  %v9228 = vld [vmem:[%s1 + $0x108] sm:$0xff]
  %v9229 = vld [vmem:[%s1 + $0x110] sm:$0xff]
  %v9230 = vld [vmem:[%s1 + $0x118] sm:$0xff]
  %v9231 = vld [vmem:[%s1 + $0x120] sm:$0xff]
  %v9232 = vld [vmem:[%s1 + $0x128] sm:$0xff]
  %v9233 = vld [vmem:[%s1 + $0x130] sm:$0xff]
  %v9234 = vld [vmem:[%s1 + $0x138] sm:$0xff]
  %v9235 = vld [vmem:[%s1 + $0x140] sm:$0xff]
  %v9236 = vadd.f32 %v9154, %v9195
  %v9237 = vadd.f32 %v9155, %v9196
  %v9238 = vadd.f32 %v9156, %v9197
  %v9239 = vadd.f32 %v9157, %v9198
  %v9240 = vadd.f32 %v9158, %v9199
  %v9241 = vadd.f32 %v9159, %v9200
  %v9242 = vadd.f32 %v9160, %v9201
  %v9243 = vadd.f32 %v9161, %v9202
  %v9244 = vadd.f32 %v9162, %v9203
  %v9245 = vadd.f32 %v9163, %v9204
  %v9246 = vadd.f32 %v9164, %v9205
  %v9247 = vadd.f32 %v9165, %v9206
  %v9248 = vadd.f32 %v9166, %v9207
  %v9249 = vadd.f32 %v9167, %v9208
  %v9250 = vadd.f32 %v9168, %v9209
  %v9251 = vadd.f32 %v9169, %v9210
  %v9252 = vadd.f32 %v9170, %v9211
  %v9253 = vadd.f32 %v9171, %v9212
  %v9254 = vadd.f32 %v9172, %v9213
  %v9255 = vadd.f32 %v9173, %v9214
  %v9256 = vadd.f32 %v9174, %v9215
  %v9257 = vadd.f32 %v9175, %v9216
  %v9258 = vadd.f32 %v9176, %v9217
  %v9259 = vadd.f32 %v9177, %v9218
  %v9260 = vadd.f32 %v9178, %v9219
  %v9261 = vadd.f32 %v9179, %v9220
  %v9262 = vadd.f32 %v9180, %v9221
  %v9263 = vadd.f32 %v9181, %v9222
  %v9264 = vadd.f32 %v9182, %v9223
  %v9265 = vadd.f32 %v9183, %v9224
  %v9266 = vadd.f32 %v9184, %v9225
  %v9267 = vadd.f32 %v9185, %v9226
  %v9268 = vadd.f32 %v9186, %v9227
  %v9269 = vadd.f32 %v9187, %v9228
  %v9270 = vadd.f32 %v9188, %v9229
  %v9271 = vadd.f32 %v9189, %v9230
  %v9272 = vadd.f32 %v9190, %v9231
  %v9273 = vadd.f32 %v9191, %v9232
  %v9274 = vadd.f32 %v9192, %v9233
  %v9275 = vadd.f32 %v9193, %v9234
  %v9276 = vadd.f32 %v9194, %v9235
  %9277 = vst [vmem:[%s6] sm:$0xff] %v9236
  %9278 = vst [vmem:[%s6 + $0x8] sm:$0xff] %v9237
  %9279 = vst [vmem:[%s6 + $0x10] sm:$0xff] %v9238
  %9280 = vst [vmem:[%s6 + $0x18] sm:$0xff] %v9239
  %9281 = vst [vmem:[%s6 + $0x20] sm:$0xff] %v9240
  %9282 = vst [vmem:[%s6 + $0x28] sm:$0xff] %v9241
  %9283 = vst [vmem:[%s6 + $0x30] sm:$0xff] %v9242
  %9284 = vst [vmem:[%s6 + $0x38] sm:$0xff] %v9243
  %9285 = vst [vmem:[%s6 + $0x40] sm:$0xff] %v9244
  %9286 = vst [vmem:[%s6 + $0x48] sm:$0xff] %v9245
  %9287 = vst [vmem:[%s6 + $0x50] sm:$0xff] %v9246
  %9288 = vst [vmem:[%s6 + $0x58] sm:$0xff] %v9247
  %9289 = vst [vmem:[%s6 + $0x60] sm:$0xff] %v9248
  %9290 = vst [vmem:[%s6 + $0x68] sm:$0xff] %v9249
  %9291 = vst [vmem:[%s6 + $0x70] sm:$0xff] %v9250
  %9292 = vst [vmem:[%s6 + $0x78] sm:$0xff] %v9251
  %9293 = vst [vmem:[%s6 + $0x80] sm:$0xff] %v9252
  %9294 = vst [vmem:[%s6 + $0x88] sm:$0xff] %v9253
  %9295 = vst [vmem:[%s6 + $0x90] sm:$0xff] %v9254
  %9296 = vst [vmem:[%s6 + $0x98] sm:$0xff] %v9255
  %9297 = vst [vmem:[%s6 + $0xa0] sm:$0xff] %v9256
  %9298 = vst [vmem:[%s6 + $0xa8] sm:$0xff] %v9257
  %9299 = vst [vmem:[%s6 + $0xb0] sm:$0xff] %v9258
  %9300 = vst [vmem:[%s6 + $0xb8] sm:$0xff] %v9259
  %9301 = vst [vmem:[%s6 + $0xc0] sm:$0xff] %v9260
  %9302 = vst [vmem:[%s6 + $0xc8] sm:$0xff] %v9261
  %9303 = vst [vmem:[%s6 + $0xd0] sm:$0xff] %v9262
  %9304 = vst [vmem:[%s6 + $0xd8] sm:$0xff] %v9263
  %9305 = vst [vmem:[%s6 + $0xe0] sm:$0xff] %v9264
  %9306 = vst [vmem:[%s6 + $0xe8] sm:$0xff] %v9265
  %9307 = vst [vmem:[%s6 + $0xf0] sm:$0xff] %v9266
  %9308 = vst [vmem:[%s6 + $0xf8] sm:$0xff] %v9267
  %9309 = vst [vmem:[%s6 + $0x100] sm:$0xff] %v9268
  %9310 = vst [vmem:[%s6 + $0x108] sm:$0xff] %v9269
  %9311 = vst [vmem:[%s6 + $0x110] sm:$0xff] %v9270
  %9312 = vst [vmem:[%s6 + $0x118] sm:$0xff] %v9271
  %9313 = vst [vmem:[%s6 + $0x120] sm:$0xff] %v9272
  %9314 = vst [vmem:[%s6 + $0x128] sm:$0xff] %v9273
  %9315 = vst [vmem:[%s6 + $0x130] sm:$0xff] %v9274
  %9316 = vst [vmem:[%s6 + $0x138] sm:$0xff] %v9275
  %9317 = vst [vmem:[%s6 + $0x140] sm:$0xff] %v9276
  // Predicated region
  $region26: #{forward_pallas.1} parent=0 // pred_check
    _
  $region27: #{forward_pallas.1} parent=0 // pred_check_branch
    %9319 = sbr.rel (0) target = $region29
  $region28: #{forward_pallas.1} parent=0 // pred_region
    _
  $region29: #{forward_pallas.1} parent=0 // pred_fallthru
    _
  // Predicated region
  $region30: #{forward_pallas.1} parent=0 // pred_check
    _
  $region31: #{forward_pallas.1} parent=0 // pred_check_branch
    %9321 = sbr.rel (0) target = $region33
  $region32: #{forward_pallas.1} parent=0 // pred_region
    _
  $region33: #{forward_pallas.1} parent=0 // pred_fallthru
    _

</llo_original>
